<compile_context>
chip_gen: v7x
topology: tpu7x:2x2x1
jax: 0.10.0
libtpu: 0.0.40
codegen_flags: <defaults>
</compile_context>

<pallas_src>
import functools

import jax
import jax.numpy as jnp
from jax import lax
from jax.experimental import pallas as pl
from jax.experimental.pallas import tpu as pltpu


def _dense_block_kernel(x_hwc_ref, x_chw_ref,
                        wb1_ref, wb2_ref, wb3_ref,
                        bc1_ref, bc2_ref, bc3_ref,
                        wa1_ref, wa2_ref,
                        br1_ref, br2_ref,
                        o_ref,
                        bufx, buf1, buf2,
                        *, K, H, W, inp, outp, compute_dtype):
    """One batch element of the fused DenseBlock.

    x_hwc_ref : (1, H, W, inp)        input, channels-last view
    x_chw_ref : (1, inp, H*W)         input, channel-major view (pass-through)
    wb*_ref   : (outp, K*K*Cin_l)     im2col weights, output-channel-major
    bc*_ref   : (outp, 1)             bias as a column (broadcast over lanes)
    wa*_ref   : (K*K*Cin_l, outp)     im2col weights, HWC orientation (layers 1-2)
    br*_ref   : (1, outp)             bias as a row
    o_ref     : (1, inp+3*outp, H*W)  output, channel-major (lane-dense)
    bufx/1/2  : (Hp, Wp, C) VMEM      persistent padded activations (f32)
    """
    p = K // 2
    Hp, Wp = H + 2 * p, W + 2 * p
    HW = H * W

    def write_reflect_padded(buf, interior):
        # Interior write + in-kernel reflect borders (rows first, then cols --
        # corners come out identical to jnp.pad(..., mode='reflect')).
        buf[p:p + H, p:p + W, :] = interior
        for j in range(p):                                   # rows
            buf[p - 1 - j:p - j, :, :] = buf[p + 1 + j:p + 2 + j, :, :]
            buf[Hp - p + j:Hp - p + j + 1, :, :] = \
                buf[Hp - p - 2 - j:Hp - p - 1 - j, :, :]
        for j in range(p):                                   # cols
            buf[:, p - 1 - j:p - j, :] = buf[:, p + 1 + j:p + 2 + j, :]
            buf[:, Wp - p + j:Wp - p + j + 1, :] = \
                buf[:, Wp - p - 2 - j:Wp - p - 1 - j, :]

    # Seed the persistent activation buffer with the input image.
    write_reflect_padded(bufx, x_hwc_ref[0].astype(jnp.float32))

    # DenseBlock concatenation passes the input channels straight through.
    # Channel-major view -> dense 256-lane store at channel rows [0:inp).
    o_ref[0, 0:inp, :] = x_chw_ref[0].astype(o_ref.dtype)

    def build_patch(segments):
        # im2col patch matrix (H*W, K*K*Cin_l): one deep MXU contraction per
        # layer.  Reshape keeps the minor (channel) dim, so it is layout-free;
        # cast to bf16 (optional) happens after the reshape.
        pieces = []
        for kh in range(K):
            for kw in range(K):
                for buf, c in segments:
                    piece = buf[kh:kh + H, kw:kw + W, :]      # (H, W, c)
                    pieces.append(piece.reshape(HW, c).astype(compute_dtype))
        return jnp.concatenate(pieces, axis=-1)

    segments = [(bufx, inp), (buf1, outp), (buf2, outp)]
    w_b = [wb1_ref, wb2_ref, wb3_ref]
    b_col = [bc1_ref, bc2_ref, bc3_ref]
    w_a = [wa1_ref, wa2_ref, None]
    b_row = [br1_ref, br2_ref, None]
    next_buf = [buf1, buf2, None]

    c_off = inp
    for l in range(3):
        patch = build_patch(segments[:l + 1])                 # (H*W, 9*Cin_l)

        # Output-channel-major result (outp, H*W): contraction on both
        # operands' last dims (same pattern as flash-attn q@k^T), so no
        # in-kernel transpose, and the store below is a full-width vst.
        y_t = lax.dot_general(w_b[l][...], patch, (((1,), (1,)), ((), ())),
                              preferred_element_type=jnp.float32)
        y_t = jnp.maximum(y_t + b_col[l][...], 0.0)           # bias + ReLU (f32)
        o_ref[0, c_off:c_off + outp, :] = y_t.astype(o_ref.dtype)
        c_off += outp

        # Layers 1-2 also produce the HWC-oriented copy that seeds the next
        # layer's padded buffer (one extra cheap MXU pass beats any relayout).
        if next_buf[l] is not None:
            y = jnp.dot(patch, w_a[l][...], preferred_element_type=jnp.float32)
            y = jnp.maximum(y + b_row[l][...], 0.0)
            write_reflect_padded(next_buf[l], y.reshape(H, W, outp))


def dense_block_forward(x_nchw, params, kernel_size, *,
                        compute_dtype=jnp.bfloat16):
    """DenseBlock forward: NCHW in, NCHW out, stride = 1.

    params: list of 3 (w, b) with w in HWIO layout (K, K, Cin_l, outp), b (outp,).
    compute_dtype: matmul operand dtype (accumulation is always f32).
    """
    K = kernel_size
    assert K % 2 == 1, "reflect 'same' padding assumes odd kernel_size"
    assert len(params) == 3
    N, inp, H, W = x_nchw.shape
    p = K // 2
    assert H > p and W > p, "reflect padding needs H, W > kernel_size // 2"
    outp = params[0][1].shape[0]
    c_total = inp + 3 * outp
    HW = H * W
    Hp, Wp = H + 2 * p, W + 2 * p

    # Two tiny views of the input (8 KB here): channels-last for the conv
    # buffer, flat channel-major for the concat pass-through.
    x_hwc = jnp.transpose(x_nchw, (0, 2, 3, 1))               # (N, H, W, inp)
    x_chw = x_nchw.reshape(N, inp, HW)                        # free reshape

    # Per-layer weight prep (wrapper side, negligible):
    #   w_a: (K*K*Cin_l, outp) im2col-stacked; w_b: its transpose.
    w_a_list, w_b_list, b_row_list, b_col_list = [], [], [], []
    for w, b in params:
        cin_l = w.shape[2]
        wa = w.reshape(K * K * cin_l, outp).astype(compute_dtype)
        w_a_list.append(wa)
        w_b_list.append(wa.T)
        b_row_list.append(b.reshape(1, outp).astype(jnp.float32))
        b_col_list.append(b.reshape(outp, 1).astype(jnp.float32))

    def rep(shape):  # replicated (grid-invariant) small operand
        nd = len(shape)
        return pl.BlockSpec(shape, lambda n, _nd=nd: (0,) * _nd)

    operands = [x_hwc, x_chw]
    in_specs = [
        pl.BlockSpec((1, H, W, inp), lambda n: (n, 0, 0, 0)),
        pl.BlockSpec((1, inp, HW), lambda n: (n, 0, 0)),
    ]
    for arr in (w_b_list + b_col_list + w_a_list[:2] + b_row_list[:2]):
        operands.append(arr)
        in_specs.append(rep(arr.shape))

    kernel = functools.partial(
        _dense_block_kernel, K=K, H=H, W=W, inp=inp, outp=outp,
        compute_dtype=compute_dtype)

    out = pl.pallas_call(
        kernel,
        out_shape=jax.ShapeDtypeStruct((N, c_total, HW), x_nchw.dtype),
        grid=(N,),
        in_specs=in_specs,
        # Lane-dense out_spec: last dim H*W = 256 (multiple of 128).
        out_specs=pl.BlockSpec((1, c_total, HW), lambda n: (n, 0, 0)),
        scratch_shapes=[
            pltpu.VMEM((Hp, Wp, inp), jnp.float32),
            pltpu.VMEM((Hp, Wp, outp), jnp.float32),
            pltpu.VMEM((Hp, Wp, outp), jnp.float32),
        ],
        compiler_params=pltpu.CompilerParams(
            dimension_semantics=("parallel",),   # N batch steps -> both TCs on v7x
            vmem_limit_bytes=32 * 1024 * 1024,   # actual use ~1 MiB; see header
        ),
    )(*operands)

    # Channel-major (N, C, H*W) -> NCHW is a pure reshape: no output transpose.
    return out.reshape(N, c_total, H, W)


def init_dense_block_params(key, inp, kernel_size, outp=16, num_layers=3):
    """Deterministic parameter init; weights stored HWIO (K, K, Cin, Cout)."""
    params = []
    for i in range(num_layers):
        cin = inp + i * outp
        key, wk, bk = jax.random.split(key, 3)
        w = 0.1 * jax.random.normal(wk, (kernel_size, kernel_size, cin, outp),
                                    dtype=jnp.float32)
        b = 0.1 * jax.random.normal(bk, (outp,), dtype=jnp.float32)
        params.append((w, b))
    return params


def _reference_forward(x_nchw, params, kernel_size, *, operand_dtype=None):
    """Pure-JAX reference (lax.conv).  With operand_dtype=bfloat16 it mirrors
    the kernel's bf16 operand rounding (accumulation stays f32), so the bf16
    kernel can be validated at tight tolerance."""
    p = kernel_size // 2
    x = jnp.transpose(x_nchw, (0, 2, 3, 1)).astype(jnp.float32)  # NHWC f32
    for w, b in params:
        xp = jnp.pad(x, ((0, 0), (p, p), (p, p), (0, 0)), mode="reflect")
        if operand_dtype is not None:
            xp = xp.astype(operand_dtype)
            w = w.astype(operand_dtype)
            prec = None
        else:
            prec = lax.Precision.HIGHEST
        y = lax.conv_general_dilated(
            xp, w, window_strides=(1, 1), padding="VALID",
            dimension_numbers=("NHWC", "HWIO", "NHWC"),
            preferred_element_type=jnp.float32, precision=prec)
        y = jnp.maximum(y + b.astype(jnp.float32), 0.0)
        x = jnp.concatenate([x, y], axis=-1)
    return jnp.transpose(x, (0, 3, 1, 2))


if __name__ == "__main__":
    # DenseBlock(inp=4, kernel_size=3, stride=1, outp=16); input NCHW (2,4,16,16)
    inp, kernel_size, outp = 4, 3, 16
    key = jax.random.PRNGKey(0)
    key, xk = jax.random.split(key)
    x = jax.random.normal(xk, (2, inp, 16, 16), dtype=jnp.float32)
    params = init_dense_block_params(key, inp, kernel_size, outp)
    c_total = inp + 3 * outp

    # --- f32 operand path: matches the float32 PyTorch module. -------------
    run_f32 = jax.jit(functools.partial(dense_block_forward,
                                        kernel_size=kernel_size,
                                        compute_dtype=jnp.float32))
    out_f32 = jax.block_until_ready(run_f32(x, params))
    assert out_f32.shape == (2, c_total, 16, 16), out_f32.shape
    ref_f32 = _reference_forward(x, params, kernel_size)
    # 2e-2 only bounds the worst case where the MXU / XLA run f32 contractions
    # as reduced-precision bf16 passes; the tight, deliberate numerical check
    # is the operand-rounding-mirrored bf16 comparison below (5e-3).
    assert jnp.allclose(out_f32, ref_f32, atol=2e-2, rtol=2e-2), (
        float(jnp.max(jnp.abs(out_f32 - ref_f32))))

    # --- bf16 operand path (default; f32 accumulation). ---------------------
    run_bf16 = jax.jit(functools.partial(dense_block_forward,
                                         kernel_size=kernel_size,
                                         compute_dtype=jnp.bfloat16))
    out_bf16 = jax.block_until_ready(run_bf16(x, params))
    assert out_bf16.shape == (2, c_total, 16, 16), out_bf16.shape
    ref_bf16 = _reference_forward(x, params, kernel_size,
                                  operand_dtype=jnp.bfloat16)
    assert jnp.allclose(out_bf16, ref_bf16, atol=5e-3, rtol=5e-3), (
        float(jnp.max(jnp.abs(out_bf16 - ref_bf16))))

    print("KERNEL_OK")
</pallas_src>

<mosaic_0001>
module attributes {stable_mosaic.version = 11 : i64} {
  func.func @_dense_block_kernel(%arg0: i32, %arg1: memref<1x16x16x4xf32, #tpu.memory_space<vmem>>, %arg2: memref<1x4x256xf32, #tpu.memory_space<vmem>>, %arg3: memref<16x36xf32, #tpu.memory_space<vmem>>, %arg4: memref<16x180xf32, #tpu.memory_space<vmem>>, %arg5: memref<16x324xf32, #tpu.memory_space<vmem>>, %arg6: memref<16x1xf32, #tpu.memory_space<vmem>>, %arg7: memref<16x1xf32, #tpu.memory_space<vmem>>, %arg8: memref<16x1xf32, #tpu.memory_space<vmem>>, %arg9: memref<36x16xf32, #tpu.memory_space<vmem>>, %arg10: memref<180x16xf32, #tpu.memory_space<vmem>>, %arg11: memref<1x16xf32, #tpu.memory_space<vmem>>, %arg12: memref<1x16xf32, #tpu.memory_space<vmem>>, %arg13: memref<1x52x256xf32, #tpu.memory_space<vmem>>, %arg14: memref<18x18x4xf32, #tpu.memory_space<vmem>>, %arg15: memref<18x18x16xf32, #tpu.memory_space<vmem>>, %arg16: memref<18x18x16xf32, #tpu.memory_space<vmem>>) attributes {dimension_semantics = [#tpu.dimension_semantics<parallel>], iteration_bounds = array<i64: 2>, scalar_prefetch = 0 : i64, scratch_operands = 3 : i64, tpu.core_type = #tpu.core_type<tc>, window_params = [{transform_indices = @transform_0, window_bounds = array<i64: 1, 16, 16, 4>}, {transform_indices = @transform_1, window_bounds = array<i64: 1, 4, 256>}, {pipeline_mode = #tpu.pipeline_mode<synchronous>, transform_indices = @transform_2, window_bounds = array<i64: 16, 36>}, {pipeline_mode = #tpu.pipeline_mode<synchronous>, transform_indices = @transform_3, window_bounds = array<i64: 16, 180>}, {pipeline_mode = #tpu.pipeline_mode<synchronous>, transform_indices = @transform_4, window_bounds = array<i64: 16, 324>}, {pipeline_mode = #tpu.pipeline_mode<synchronous>, transform_indices = @transform_5, window_bounds = array<i64: 16, 1>}, {pipeline_mode = #tpu.pipeline_mode<synchronous>, transform_indices = @transform_6, window_bounds = array<i64: 16, 1>}, {pipeline_mode = #tpu.pipeline_mode<synchronous>, transform_indices = @transform_7, window_bounds = array<i64: 16, 1>}, {pipeline_mode = #tpu.pipeline_mode<synchronous>, transform_indices = @transform_8, window_bounds = array<i64: 36, 16>}, {pipeline_mode = #tpu.pipeline_mode<synchronous>, transform_indices = @transform_9, window_bounds = array<i64: 180, 16>}, {pipeline_mode = #tpu.pipeline_mode<synchronous>, transform_indices = @transform_10, window_bounds = array<i64: 1, 16>}, {pipeline_mode = #tpu.pipeline_mode<synchronous>, transform_indices = @transform_11, window_bounds = array<i64: 1, 16>}, {transform_indices = @transform_12, window_bounds = array<i64: 1, 52, 256>}]} {
    %c0 = arith.constant 0 : index
    %c0_0 = arith.constant 0 : index
    %c0_1 = arith.constant 0 : index
    %c0_2 = arith.constant 0 : index
    %0 = vector.load %arg1[%c0, %c0_0, %c0_1, %c0_2] : memref<1x16x16x4xf32, #tpu.memory_space<vmem>>, vector<1x16x16x4xf32>
    %1 = vector.shape_cast %0 : vector<1x16x16x4xf32> to vector<16x16x4xf32>
    %c1 = arith.constant 1 : index
    %c1_3 = arith.constant 1 : index
    %c0_4 = arith.constant 0 : index
    %2 = vector.load %arg14[%c1, %c1_3, %c0_4] : memref<18x18x4xf32, #tpu.memory_space<vmem>>, vector<16x16x4xf32>
    tpu.vector_store %arg14[%c1, %c1_3, %c0_4], %1 {strides = array<i32>} : memref<18x18x4xf32, #tpu.memory_space<vmem>>, vector<16x16x4xf32>,
    %c2 = arith.constant 2 : index
    %c0_5 = arith.constant 0 : index
    %c0_6 = arith.constant 0 : index
    %3 = vector.load %arg14[%c2, %c0_5, %c0_6] : memref<18x18x4xf32, #tpu.memory_space<vmem>>, vector<1x18x4xf32>
    %c0_7 = arith.constant 0 : index
    %c0_8 = arith.constant 0 : index
    %c0_9 = arith.constant 0 : index
    %4 = vector.load %arg14[%c0_7, %c0_8, %c0_9] : memref<18x18x4xf32, #tpu.memory_space<vmem>>, vector<1x18x4xf32>
    tpu.vector_store %arg14[%c0_7, %c0_8, %c0_9], %3 {strides = array<i32>} : memref<18x18x4xf32, #tpu.memory_space<vmem>>, vector<1x18x4xf32>,
    %c15 = arith.constant 15 : index
    %c0_10 = arith.constant 0 : index
    %c0_11 = arith.constant 0 : index
    %5 = vector.load %arg14[%c15, %c0_10, %c0_11] : memref<18x18x4xf32, #tpu.memory_space<vmem>>, vector<1x18x4xf32>
    %c17 = arith.constant 17 : index
    %c0_12 = arith.constant 0 : index
    %c0_13 = arith.constant 0 : index
    %6 = vector.load %arg14[%c17, %c0_12, %c0_13] : memref<18x18x4xf32, #tpu.memory_space<vmem>>, vector<1x18x4xf32>
    tpu.vector_store %arg14[%c17, %c0_12, %c0_13], %5 {strides = array<i32>} : memref<18x18x4xf32, #tpu.memory_space<vmem>>, vector<1x18x4xf32>,
    %c0_14 = arith.constant 0 : index
    %c2_15 = arith.constant 2 : index
    %c0_16 = arith.constant 0 : index
    %7 = vector.load %arg14[%c0_14, %c2_15, %c0_16] : memref<18x18x4xf32, #tpu.memory_space<vmem>>, vector<18x1x4xf32>
    %c0_17 = arith.constant 0 : index
    %c0_18 = arith.constant 0 : index
    %c0_19 = arith.constant 0 : index
    %8 = vector.load %arg14[%c0_17, %c0_18, %c0_19] : memref<18x18x4xf32, #tpu.memory_space<vmem>>, vector<18x1x4xf32>
    tpu.vector_store %arg14[%c0_17, %c0_18, %c0_19], %7 {strides = array<i32>} : memref<18x18x4xf32, #tpu.memory_space<vmem>>, vector<18x1x4xf32>,
    %c0_20 = arith.constant 0 : index
    %c15_21 = arith.constant 15 : index
    %c0_22 = arith.constant 0 : index
    %9 = vector.load %arg14[%c0_20, %c15_21, %c0_22] : memref<18x18x4xf32, #tpu.memory_space<vmem>>, vector<18x1x4xf32>
    %c0_23 = arith.constant 0 : index
    %c17_24 = arith.constant 17 : index
    %c0_25 = arith.constant 0 : index
    %10 = vector.load %arg14[%c0_23, %c17_24, %c0_25] : memref<18x18x4xf32, #tpu.memory_space<vmem>>, vector<18x1x4xf32>
    tpu.vector_store %arg14[%c0_23, %c17_24, %c0_25], %9 {strides = array<i32>} : memref<18x18x4xf32, #tpu.memory_space<vmem>>, vector<18x1x4xf32>,
    %c0_26 = arith.constant 0 : index
    %c0_27 = arith.constant 0 : index
    %c0_28 = arith.constant 0 : index
    %11 = vector.load %arg2[%c0_26, %c0_27, %c0_28] : memref<1x4x256xf32, #tpu.memory_space<vmem>>, vector<1x4x256xf32>
    %12 = vector.shape_cast %11 : vector<1x4x256xf32> to vector<4x256xf32>
    %c0_29 = arith.constant 0 : index
    %c0_30 = arith.constant 0 : index
    %c0_31 = arith.constant 0 : index
    %13 = vector.load %arg13[%c0_29, %c0_30, %c0_31] : memref<1x52x256xf32, #tpu.memory_space<vmem>>, vector<1x4x256xf32>
    %14 = vector.shape_cast %13 : vector<1x4x256xf32> to vector<4x256xf32>
    %15 = vector.shape_cast %12 : vector<4x256xf32> to vector<1x4x256xf32>
    tpu.vector_store %arg13[%c0_29, %c0_30, %c0_31], %15 {strides = array<i32>} : memref<1x52x256xf32, #tpu.memory_space<vmem>>, vector<1x4x256xf32>,
    %c0_32 = arith.constant 0 : index
    %c0_33 = arith.constant 0 : index
    %c0_34 = arith.constant 0 : index
    %16 = vector.load %arg14[%c0_32, %c0_33, %c0_34] : memref<18x18x4xf32, #tpu.memory_space<vmem>>, vector<16x16x4xf32>
    %17 = vector.shape_cast %16 : vector<16x16x4xf32> to vector<256x4xf32>
    %c0_35 = arith.constant 0 : index
    %c1_36 = arith.constant 1 : index
    %c0_37 = arith.constant 0 : index
    %18 = vector.load %arg14[%c0_35, %c1_36, %c0_37] : memref<18x18x4xf32, #tpu.memory_space<vmem>>, vector<16x16x4xf32>
    %19 = vector.shape_cast %18 : vector<16x16x4xf32> to vector<256x4xf32>
    %c0_38 = arith.constant 0 : index
    %c2_39 = arith.constant 2 : index
    %c0_40 = arith.constant 0 : index
    %20 = vector.load %arg14[%c0_38, %c2_39, %c0_40] : memref<18x18x4xf32, #tpu.memory_space<vmem>>, vector<16x16x4xf32>
    %21 = vector.shape_cast %20 : vector<16x16x4xf32> to vector<256x4xf32>
    %c1_41 = arith.constant 1 : index
    %c0_42 = arith.constant 0 : index
    %c0_43 = arith.constant 0 : index
    %22 = vector.load %arg14[%c1_41, %c0_42, %c0_43] : memref<18x18x4xf32, #tpu.memory_space<vmem>>, vector<16x16x4xf32>
    %23 = vector.shape_cast %22 : vector<16x16x4xf32> to vector<256x4xf32>
    %c1_44 = arith.constant 1 : index
    %c1_45 = arith.constant 1 : index
    %c0_46 = arith.constant 0 : index
    %24 = vector.load %arg14[%c1_44, %c1_45, %c0_46] : memref<18x18x4xf32, #tpu.memory_space<vmem>>, vector<16x16x4xf32>
    %25 = vector.shape_cast %24 : vector<16x16x4xf32> to vector<256x4xf32>
    %c1_47 = arith.constant 1 : index
    %c2_48 = arith.constant 2 : index
    %c0_49 = arith.constant 0 : index
    %26 = vector.load %arg14[%c1_47, %c2_48, %c0_49] : memref<18x18x4xf32, #tpu.memory_space<vmem>>, vector<16x16x4xf32>
    %27 = vector.shape_cast %26 : vector<16x16x4xf32> to vector<256x4xf32>
    %c2_50 = arith.constant 2 : index
    %c0_51 = arith.constant 0 : index
    %c0_52 = arith.constant 0 : index
    %28 = vector.load %arg14[%c2_50, %c0_51, %c0_52] : memref<18x18x4xf32, #tpu.memory_space<vmem>>, vector<16x16x4xf32>
    %29 = vector.shape_cast %28 : vector<16x16x4xf32> to vector<256x4xf32>
    %c2_53 = arith.constant 2 : index
    %c1_54 = arith.constant 1 : index
    %c0_55 = arith.constant 0 : index
    %30 = vector.load %arg14[%c2_53, %c1_54, %c0_55] : memref<18x18x4xf32, #tpu.memory_space<vmem>>, vector<16x16x4xf32>
    %31 = vector.shape_cast %30 : vector<16x16x4xf32> to vector<256x4xf32>
    %c2_56 = arith.constant 2 : index
    %c2_57 = arith.constant 2 : index
    %c0_58 = arith.constant 0 : index
    %32 = vector.load %arg14[%c2_56, %c2_57, %c0_58] : memref<18x18x4xf32, #tpu.memory_space<vmem>>, vector<16x16x4xf32>
    %33 = vector.shape_cast %32 : vector<16x16x4xf32> to vector<256x4xf32>
    %34 = tpu.concatenate %17, %19, %21, %23, %25, %27, %29, %31, %33 in 1 : vector<256x4xf32>, vector<256x4xf32>, vector<256x4xf32>, vector<256x4xf32>, vector<256x4xf32>, vector<256x4xf32>, vector<256x4xf32>, vector<256x4xf32>, vector<256x4xf32> -> vector<256x36xf32>
    %c0_59 = arith.constant 0 : index
    %c0_60 = arith.constant 0 : index
    %35 = vector.load %arg3[%c0_59, %c0_60] : memref<16x36xf32, #tpu.memory_space<vmem>>, vector<16x36xf32>
    %cst = arith.constant dense<0.000000e+00> : vector<16x256xf32>
    %36 = tpu.matmul %35, %34, %cst {dimension_numbers = #tpu.dot_dimension_numbers<[1], [1], [0], [0], [0, 0, 1, 0], [], []>} : vector<16x36xf32>, vector<256x36xf32>, vector<16x256xf32> -> vector<16x256xf32>
    %c0_61 = arith.constant 0 : index
    %c0_62 = arith.constant 0 : index
    %37 = vector.load %arg6[%c0_61, %c0_62] : memref<16x1xf32, #tpu.memory_space<vmem>>, vector<16x1xf32>
    %38 = vector.broadcast %37 : vector<16x1xf32> to vector<16x256xf32>
    %39 = arith.addf %36, %38 : vector<16x256xf32>
    %cst_63 = arith.constant 0.000000e+00 : f32
    %40 = vector.broadcast %cst_63 : f32 to vector<16x256xf32>
    %41 = arith.maximumf %39, %40 : vector<16x256xf32>
    %c0_64 = arith.constant 0 : index
    %c4 = arith.constant 4 : index
    %c0_65 = arith.constant 0 : index
    %42 = vector.load %arg13[%c0_64, %c4, %c0_65] : memref<1x52x256xf32, #tpu.memory_space<vmem>>, vector<1x16x256xf32>
    %43 = vector.shape_cast %42 : vector<1x16x256xf32> to vector<16x256xf32>
    %44 = vector.shape_cast %41 : vector<16x256xf32> to vector<1x16x256xf32>
    tpu.vector_store %arg13[%c0_64, %c4, %c0_65], %44 {strides = array<i32>} : memref<1x52x256xf32, #tpu.memory_space<vmem>>, vector<1x16x256xf32>,
    %c0_66 = arith.constant 0 : index
    %c0_67 = arith.constant 0 : index
    %45 = vector.load %arg9[%c0_66, %c0_67] : memref<36x16xf32, #tpu.memory_space<vmem>>, vector<36x16xf32>
    %cst_68 = arith.constant dense<0.000000e+00> : vector<256x16xf32>
    %46 = tpu.matmul %34, %45, %cst_68 {dimension_numbers = #tpu.dot_dimension_numbers<[1], [0], [0], [1], [0, 0, 1, 1], [], []>} : vector<256x36xf32>, vector<36x16xf32>, vector<256x16xf32> -> vector<256x16xf32>
    %c0_69 = arith.constant 0 : index
    %c0_70 = arith.constant 0 : index
    %47 = vector.load %arg11[%c0_69, %c0_70] : memref<1x16xf32, #tpu.memory_space<vmem>>, vector<1x16xf32>
    %48 = vector.broadcast %47 : vector<1x16xf32> to vector<256x16xf32>
    %49 = arith.addf %46, %48 : vector<256x16xf32>
    %cst_71 = arith.constant 0.000000e+00 : f32
    %50 = vector.broadcast %cst_71 : f32 to vector<256x16xf32>
    %51 = arith.maximumf %49, %50 : vector<256x16xf32>
    %52 = vector.shape_cast %51 : vector<256x16xf32> to vector<16x16x16xf32>
    %c1_72 = arith.constant 1 : index
    %c1_73 = arith.constant 1 : index
    %c0_74 = arith.constant 0 : index
    %53 = vector.load %arg15[%c1_72, %c1_73, %c0_74] : memref<18x18x16xf32, #tpu.memory_space<vmem>>, vector<16x16x16xf32>
    tpu.vector_store %arg15[%c1_72, %c1_73, %c0_74], %52 {strides = array<i32>} : memref<18x18x16xf32, #tpu.memory_space<vmem>>, vector<16x16x16xf32>,
    %c2_75 = arith.constant 2 : index
    %c0_76 = arith.constant 0 : index
    %c0_77 = arith.constant 0 : index
    %54 = vector.load %arg15[%c2_75, %c0_76, %c0_77] : memref<18x18x16xf32, #tpu.memory_space<vmem>>, vector<1x18x16xf32>
    %c0_78 = arith.constant 0 : index
    %c0_79 = arith.constant 0 : index
    %c0_80 = arith.constant 0 : index
    %55 = vector.load %arg15[%c0_78, %c0_79, %c0_80] : memref<18x18x16xf32, #tpu.memory_space<vmem>>, vector<1x18x16xf32>
    tpu.vector_store %arg15[%c0_78, %c0_79, %c0_80], %54 {strides = array<i32>} : memref<18x18x16xf32, #tpu.memory_space<vmem>>, vector<1x18x16xf32>,
    %c15_81 = arith.constant 15 : index
    %c0_82 = arith.constant 0 : index
    %c0_83 = arith.constant 0 : index
    %56 = vector.load %arg15[%c15_81, %c0_82, %c0_83] : memref<18x18x16xf32, #tpu.memory_space<vmem>>, vector<1x18x16xf32>
    %c17_84 = arith.constant 17 : index
    %c0_85 = arith.constant 0 : index
    %c0_86 = arith.constant 0 : index
    %57 = vector.load %arg15[%c17_84, %c0_85, %c0_86] : memref<18x18x16xf32, #tpu.memory_space<vmem>>, vector<1x18x16xf32>
    tpu.vector_store %arg15[%c17_84, %c0_85, %c0_86], %56 {strides = array<i32>} : memref<18x18x16xf32, #tpu.memory_space<vmem>>, vector<1x18x16xf32>,
    %c0_87 = arith.constant 0 : index
    %c2_88 = arith.constant 2 : index
    %c0_89 = arith.constant 0 : index
    %58 = vector.load %arg15[%c0_87, %c2_88, %c0_89] : memref<18x18x16xf32, #tpu.memory_space<vmem>>, vector<18x1x16xf32>
    %c0_90 = arith.constant 0 : index
    %c0_91 = arith.constant 0 : index
    %c0_92 = arith.constant 0 : index
    %59 = vector.load %arg15[%c0_90, %c0_91, %c0_92] : memref<18x18x16xf32, #tpu.memory_space<vmem>>, vector<18x1x16xf32>
    tpu.vector_store %arg15[%c0_90, %c0_91, %c0_92], %58 {strides = array<i32>} : memref<18x18x16xf32, #tpu.memory_space<vmem>>, vector<18x1x16xf32>,
    %c0_93 = arith.constant 0 : index
    %c15_94 = arith.constant 15 : index
    %c0_95 = arith.constant 0 : index
    %60 = vector.load %arg15[%c0_93, %c15_94, %c0_95] : memref<18x18x16xf32, #tpu.memory_space<vmem>>, vector<18x1x16xf32>
    %c0_96 = arith.constant 0 : index
    %c17_97 = arith.constant 17 : index
    %c0_98 = arith.constant 0 : index
    %61 = vector.load %arg15[%c0_96, %c17_97, %c0_98] : memref<18x18x16xf32, #tpu.memory_space<vmem>>, vector<18x1x16xf32>
    tpu.vector_store %arg15[%c0_96, %c17_97, %c0_98], %60 {strides = array<i32>} : memref<18x18x16xf32, #tpu.memory_space<vmem>>, vector<18x1x16xf32>,
    %c0_99 = arith.constant 0 : index
    %c0_100 = arith.constant 0 : index
    %c0_101 = arith.constant 0 : index
    %62 = vector.load %arg14[%c0_99, %c0_100, %c0_101] : memref<18x18x4xf32, #tpu.memory_space<vmem>>, vector<16x16x4xf32>
    %63 = vector.shape_cast %62 : vector<16x16x4xf32> to vector<256x4xf32>
    %c0_102 = arith.constant 0 : index
    %c0_103 = arith.constant 0 : index
    %c0_104 = arith.constant 0 : index
    %64 = vector.load %arg15[%c0_102, %c0_103, %c0_104] : memref<18x18x16xf32, #tpu.memory_space<vmem>>, vector<16x16x16xf32>
    %65 = vector.shape_cast %64 : vector<16x16x16xf32> to vector<256x16xf32>
    %c0_105 = arith.constant 0 : index
    %c1_106 = arith.constant 1 : index
    %c0_107 = arith.constant 0 : index
    %66 = vector.load %arg14[%c0_105, %c1_106, %c0_107] : memref<18x18x4xf32, #tpu.memory_space<vmem>>, vector<16x16x4xf32>
    %67 = vector.shape_cast %66 : vector<16x16x4xf32> to vector<256x4xf32>
    %c0_108 = arith.constant 0 : index
    %c1_109 = arith.constant 1 : index
    %c0_110 = arith.constant 0 : index
    %68 = vector.load %arg15[%c0_108, %c1_109, %c0_110] : memref<18x18x16xf32, #tpu.memory_space<vmem>>, vector<16x16x16xf32>
    %69 = vector.shape_cast %68 : vector<16x16x16xf32> to vector<256x16xf32>
    %c0_111 = arith.constant 0 : index
    %c2_112 = arith.constant 2 : index
    %c0_113 = arith.constant 0 : index
    %70 = vector.load %arg14[%c0_111, %c2_112, %c0_113] : memref<18x18x4xf32, #tpu.memory_space<vmem>>, vector<16x16x4xf32>
    %71 = vector.shape_cast %70 : vector<16x16x4xf32> to vector<256x4xf32>
    %c0_114 = arith.constant 0 : index
    %c2_115 = arith.constant 2 : index
    %c0_116 = arith.constant 0 : index
    %72 = vector.load %arg15[%c0_114, %c2_115, %c0_116] : memref<18x18x16xf32, #tpu.memory_space<vmem>>, vector<16x16x16xf32>
    %73 = vector.shape_cast %72 : vector<16x16x16xf32> to vector<256x16xf32>
    %c1_117 = arith.constant 1 : index
    %c0_118 = arith.constant 0 : index
    %c0_119 = arith.constant 0 : index
    %74 = vector.load %arg14[%c1_117, %c0_118, %c0_119] : memref<18x18x4xf32, #tpu.memory_space<vmem>>, vector<16x16x4xf32>
    %75 = vector.shape_cast %74 : vector<16x16x4xf32> to vector<256x4xf32>
    %c1_120 = arith.constant 1 : index
    %c0_121 = arith.constant 0 : index
    %c0_122 = arith.constant 0 : index
    %76 = vector.load %arg15[%c1_120, %c0_121, %c0_122] : memref<18x18x16xf32, #tpu.memory_space<vmem>>, vector<16x16x16xf32>
    %77 = vector.shape_cast %76 : vector<16x16x16xf32> to vector<256x16xf32>
    %c1_123 = arith.constant 1 : index
    %c1_124 = arith.constant 1 : index
    %c0_125 = arith.constant 0 : index
    %78 = vector.load %arg14[%c1_123, %c1_124, %c0_125] : memref<18x18x4xf32, #tpu.memory_space<vmem>>, vector<16x16x4xf32>
    %79 = vector.shape_cast %78 : vector<16x16x4xf32> to vector<256x4xf32>
    %c1_126 = arith.constant 1 : index
    %c1_127 = arith.constant 1 : index
    %c0_128 = arith.constant 0 : index
    %80 = vector.load %arg15[%c1_126, %c1_127, %c0_128] : memref<18x18x16xf32, #tpu.memory_space<vmem>>, vector<16x16x16xf32>
    %81 = vector.shape_cast %80 : vector<16x16x16xf32> to vector<256x16xf32>
    %c1_129 = arith.constant 1 : index
    %c2_130 = arith.constant 2 : index
    %c0_131 = arith.constant 0 : index
    %82 = vector.load %arg14[%c1_129, %c2_130, %c0_131] : memref<18x18x4xf32, #tpu.memory_space<vmem>>, vector<16x16x4xf32>
    %83 = vector.shape_cast %82 : vector<16x16x4xf32> to vector<256x4xf32>
    %c1_132 = arith.constant 1 : index
    %c2_133 = arith.constant 2 : index
    %c0_134 = arith.constant 0 : index
    %84 = vector.load %arg15[%c1_132, %c2_133, %c0_134] : memref<18x18x16xf32, #tpu.memory_space<vmem>>, vector<16x16x16xf32>
    %85 = vector.shape_cast %84 : vector<16x16x16xf32> to vector<256x16xf32>
    %c2_135 = arith.constant 2 : index
    %c0_136 = arith.constant 0 : index
    %c0_137 = arith.constant 0 : index
    %86 = vector.load %arg14[%c2_135, %c0_136, %c0_137] : memref<18x18x4xf32, #tpu.memory_space<vmem>>, vector<16x16x4xf32>
    %87 = vector.shape_cast %86 : vector<16x16x4xf32> to vector<256x4xf32>
    %c2_138 = arith.constant 2 : index
    %c0_139 = arith.constant 0 : index
    %c0_140 = arith.constant 0 : index
    %88 = vector.load %arg15[%c2_138, %c0_139, %c0_140] : memref<18x18x16xf32, #tpu.memory_space<vmem>>, vector<16x16x16xf32>
    %89 = vector.shape_cast %88 : vector<16x16x16xf32> to vector<256x16xf32>
    %c2_141 = arith.constant 2 : index
    %c1_142 = arith.constant 1 : index
    %c0_143 = arith.constant 0 : index
    %90 = vector.load %arg14[%c2_141, %c1_142, %c0_143] : memref<18x18x4xf32, #tpu.memory_space<vmem>>, vector<16x16x4xf32>
    %91 = vector.shape_cast %90 : vector<16x16x4xf32> to vector<256x4xf32>
    %c2_144 = arith.constant 2 : index
    %c1_145 = arith.constant 1 : index
    %c0_146 = arith.constant 0 : index
    %92 = vector.load %arg15[%c2_144, %c1_145, %c0_146] : memref<18x18x16xf32, #tpu.memory_space<vmem>>, vector<16x16x16xf32>
    %93 = vector.shape_cast %92 : vector<16x16x16xf32> to vector<256x16xf32>
    %c2_147 = arith.constant 2 : index
    %c2_148 = arith.constant 2 : index
    %c0_149 = arith.constant 0 : index
    %94 = vector.load %arg14[%c2_147, %c2_148, %c0_149] : memref<18x18x4xf32, #tpu.memory_space<vmem>>, vector<16x16x4xf32>
    %95 = vector.shape_cast %94 : vector<16x16x4xf32> to vector<256x4xf32>
    %c2_150 = arith.constant 2 : index
    %c2_151 = arith.constant 2 : index
    %c0_152 = arith.constant 0 : index
    %96 = vector.load %arg15[%c2_150, %c2_151, %c0_152] : memref<18x18x16xf32, #tpu.memory_space<vmem>>, vector<16x16x16xf32>
    %97 = vector.shape_cast %96 : vector<16x16x16xf32> to vector<256x16xf32>
    %98 = tpu.concatenate %63, %65, %67, %69, %71, %73, %75, %77, %79, %81, %83, %85, %87, %89, %91, %93 in 1 : vector<256x4xf32>, vector<256x16xf32>, vector<256x4xf32>, vector<256x16xf32>, vector<256x4xf32>, vector<256x16xf32>, vector<256x4xf32>, vector<256x16xf32>, vector<256x4xf32>, vector<256x16xf32>, vector<256x4xf32>, vector<256x16xf32>, vector<256x4xf32>, vector<256x16xf32>, vector<256x4xf32>, vector<256x16xf32> -> vector<256x160xf32>
    %99 = tpu.concatenate %95, %97 in 1 : vector<256x4xf32>, vector<256x16xf32> -> vector<256x20xf32>
    %100 = tpu.concatenate %98, %99 in 1 : vector<256x160xf32>, vector<256x20xf32> -> vector<256x180xf32>
    %c0_153 = arith.constant 0 : index
    %c0_154 = arith.constant 0 : index
    %101 = vector.load %arg4[%c0_153, %c0_154] : memref<16x180xf32, #tpu.memory_space<vmem>>, vector<16x180xf32>
    %cst_155 = arith.constant dense<0.000000e+00> : vector<16x256xf32>
    %102 = tpu.matmul %101, %100, %cst_155 {dimension_numbers = #tpu.dot_dimension_numbers<[1], [1], [0], [0], [0, 0, 1, 0], [], []>} : vector<16x180xf32>, vector<256x180xf32>, vector<16x256xf32> -> vector<16x256xf32>
    %c0_156 = arith.constant 0 : index
    %c0_157 = arith.constant 0 : index
    %103 = vector.load %arg7[%c0_156, %c0_157] : memref<16x1xf32, #tpu.memory_space<vmem>>, vector<16x1xf32>
    %104 = vector.broadcast %103 : vector<16x1xf32> to vector<16x256xf32>
    %105 = arith.addf %102, %104 : vector<16x256xf32>
    %cst_158 = arith.constant 0.000000e+00 : f32
    %106 = vector.broadcast %cst_158 : f32 to vector<16x256xf32>
    %107 = arith.maximumf %105, %106 : vector<16x256xf32>
    %c0_159 = arith.constant 0 : index
    %c20 = arith.constant 20 : index
    %c0_160 = arith.constant 0 : index
    %108 = vector.load %arg13[%c0_159, %c20, %c0_160] : memref<1x52x256xf32, #tpu.memory_space<vmem>>, vector<1x16x256xf32>
    %109 = vector.shape_cast %108 : vector<1x16x256xf32> to vector<16x256xf32>
    %110 = vector.shape_cast %107 : vector<16x256xf32> to vector<1x16x256xf32>
    tpu.vector_store %arg13[%c0_159, %c20, %c0_160], %110 {strides = array<i32>} : memref<1x52x256xf32, #tpu.memory_space<vmem>>, vector<1x16x256xf32>,
    %c0_161 = arith.constant 0 : index
    %c0_162 = arith.constant 0 : index
    %111 = vector.load %arg10[%c0_161, %c0_162] : memref<180x16xf32, #tpu.memory_space<vmem>>, vector<180x16xf32>
    %cst_163 = arith.constant dense<0.000000e+00> : vector<256x16xf32>
    %112 = tpu.matmul %100, %111, %cst_163 {dimension_numbers = #tpu.dot_dimension_numbers<[1], [0], [0], [1], [0, 0, 1, 1], [], []>} : vector<256x180xf32>, vector<180x16xf32>, vector<256x16xf32> -> vector<256x16xf32>
    %c0_164 = arith.constant 0 : index
    %c0_165 = arith.constant 0 : index
    %113 = vector.load %arg12[%c0_164, %c0_165] : memref<1x16xf32, #tpu.memory_space<vmem>>, vector<1x16xf32>
    %114 = vector.broadcast %113 : vector<1x16xf32> to vector<256x16xf32>
    %115 = arith.addf %112, %114 : vector<256x16xf32>
    %cst_166 = arith.constant 0.000000e+00 : f32
    %116 = vector.broadcast %cst_166 : f32 to vector<256x16xf32>
    %117 = arith.maximumf %115, %116 : vector<256x16xf32>
    %118 = vector.shape_cast %117 : vector<256x16xf32> to vector<16x16x16xf32>
    %c1_167 = arith.constant 1 : index
    %c1_168 = arith.constant 1 : index
    %c0_169 = arith.constant 0 : index
    %119 = vector.load %arg16[%c1_167, %c1_168, %c0_169] : memref<18x18x16xf32, #tpu.memory_space<vmem>>, vector<16x16x16xf32>
    tpu.vector_store %arg16[%c1_167, %c1_168, %c0_169], %118 {strides = array<i32>} : memref<18x18x16xf32, #tpu.memory_space<vmem>>, vector<16x16x16xf32>,
    %c2_170 = arith.constant 2 : index
    %c0_171 = arith.constant 0 : index
    %c0_172 = arith.constant 0 : index
    %120 = vector.load %arg16[%c2_170, %c0_171, %c0_172] : memref<18x18x16xf32, #tpu.memory_space<vmem>>, vector<1x18x16xf32>
    %c0_173 = arith.constant 0 : index
    %c0_174 = arith.constant 0 : index
    %c0_175 = arith.constant 0 : index
    %121 = vector.load %arg16[%c0_173, %c0_174, %c0_175] : memref<18x18x16xf32, #tpu.memory_space<vmem>>, vector<1x18x16xf32>
    tpu.vector_store %arg16[%c0_173, %c0_174, %c0_175], %120 {strides = array<i32>} : memref<18x18x16xf32, #tpu.memory_space<vmem>>, vector<1x18x16xf32>,
    %c15_176 = arith.constant 15 : index
    %c0_177 = arith.constant 0 : index
    %c0_178 = arith.constant 0 : index
    %122 = vector.load %arg16[%c15_176, %c0_177, %c0_178] : memref<18x18x16xf32, #tpu.memory_space<vmem>>, vector<1x18x16xf32>
    %c17_179 = arith.constant 17 : index
    %c0_180 = arith.constant 0 : index
    %c0_181 = arith.constant 0 : index
    %123 = vector.load %arg16[%c17_179, %c0_180, %c0_181] : memref<18x18x16xf32, #tpu.memory_space<vmem>>, vector<1x18x16xf32>
    tpu.vector_store %arg16[%c17_179, %c0_180, %c0_181], %122 {strides = array<i32>} : memref<18x18x16xf32, #tpu.memory_space<vmem>>, vector<1x18x16xf32>,
    %c0_182 = arith.constant 0 : index
    %c2_183 = arith.constant 2 : index
    %c0_184 = arith.constant 0 : index
    %124 = vector.load %arg16[%c0_182, %c2_183, %c0_184] : memref<18x18x16xf32, #tpu.memory_space<vmem>>, vector<18x1x16xf32>
    %c0_185 = arith.constant 0 : index
    %c0_186 = arith.constant 0 : index
    %c0_187 = arith.constant 0 : index
    %125 = vector.load %arg16[%c0_185, %c0_186, %c0_187] : memref<18x18x16xf32, #tpu.memory_space<vmem>>, vector<18x1x16xf32>
    tpu.vector_store %arg16[%c0_185, %c0_186, %c0_187], %124 {strides = array<i32>} : memref<18x18x16xf32, #tpu.memory_space<vmem>>, vector<18x1x16xf32>,
    %c0_188 = arith.constant 0 : index
    %c15_189 = arith.constant 15 : index
    %c0_190 = arith.constant 0 : index
    %126 = vector.load %arg16[%c0_188, %c15_189, %c0_190] : memref<18x18x16xf32, #tpu.memory_space<vmem>>, vector<18x1x16xf32>
    %c0_191 = arith.constant 0 : index
    %c17_192 = arith.constant 17 : index
    %c0_193 = arith.constant 0 : index
    %127 = vector.load %arg16[%c0_191, %c17_192, %c0_193] : memref<18x18x16xf32, #tpu.memory_space<vmem>>, vector<18x1x16xf32>
    tpu.vector_store %arg16[%c0_191, %c17_192, %c0_193], %126 {strides = array<i32>} : memref<18x18x16xf32, #tpu.memory_space<vmem>>, vector<18x1x16xf32>,
    %c0_194 = arith.constant 0 : index
    %c0_195 = arith.constant 0 : index
    %c0_196 = arith.constant 0 : index
    %128 = vector.load %arg14[%c0_194, %c0_195, %c0_196] : memref<18x18x4xf32, #tpu.memory_space<vmem>>, vector<16x16x4xf32>
    %129 = vector.shape_cast %128 : vector<16x16x4xf32> to vector<256x4xf32>
    %c0_197 = arith.constant 0 : index
    %c0_198 = arith.constant 0 : index
    %c0_199 = arith.constant 0 : index
    %130 = vector.load %arg15[%c0_197, %c0_198, %c0_199] : memref<18x18x16xf32, #tpu.memory_space<vmem>>, vector<16x16x16xf32>
    %131 = vector.shape_cast %130 : vector<16x16x16xf32> to vector<256x16xf32>
    %c0_200 = arith.constant 0 : index
    %c0_201 = arith.constant 0 : index
    %c0_202 = arith.constant 0 : index
    %132 = vector.load %arg16[%c0_200, %c0_201, %c0_202] : memref<18x18x16xf32, #tpu.memory_space<vmem>>, vector<16x16x16xf32>
    %133 = vector.shape_cast %132 : vector<16x16x16xf32> to vector<256x16xf32>
    %c0_203 = arith.constant 0 : index
    %c1_204 = arith.constant 1 : index
    %c0_205 = arith.constant 0 : index
    %134 = vector.load %arg14[%c0_203, %c1_204, %c0_205] : memref<18x18x4xf32, #tpu.memory_space<vmem>>, vector<16x16x4xf32>
    %135 = vector.shape_cast %134 : vector<16x16x4xf32> to vector<256x4xf32>
    %c0_206 = arith.constant 0 : index
    %c1_207 = arith.constant 1 : index
    %c0_208 = arith.constant 0 : index
    %136 = vector.load %arg15[%c0_206, %c1_207, %c0_208] : memref<18x18x16xf32, #tpu.memory_space<vmem>>, vector<16x16x16xf32>
    %137 = vector.shape_cast %136 : vector<16x16x16xf32> to vector<256x16xf32>
    %c0_209 = arith.constant 0 : index
    %c1_210 = arith.constant 1 : index
    %c0_211 = arith.constant 0 : index
    %138 = vector.load %arg16[%c0_209, %c1_210, %c0_211] : memref<18x18x16xf32, #tpu.memory_space<vmem>>, vector<16x16x16xf32>
    %139 = vector.shape_cast %138 : vector<16x16x16xf32> to vector<256x16xf32>
    %c0_212 = arith.constant 0 : index
    %c2_213 = arith.constant 2 : index
    %c0_214 = arith.constant 0 : index
    %140 = vector.load %arg14[%c0_212, %c2_213, %c0_214] : memref<18x18x4xf32, #tpu.memory_space<vmem>>, vector<16x16x4xf32>
    %141 = vector.shape_cast %140 : vector<16x16x4xf32> to vector<256x4xf32>
    %c0_215 = arith.constant 0 : index
    %c2_216 = arith.constant 2 : index
    %c0_217 = arith.constant 0 : index
    %142 = vector.load %arg15[%c0_215, %c2_216, %c0_217] : memref<18x18x16xf32, #tpu.memory_space<vmem>>, vector<16x16x16xf32>
    %143 = vector.shape_cast %142 : vector<16x16x16xf32> to vector<256x16xf32>
    %c0_218 = arith.constant 0 : index
    %c2_219 = arith.constant 2 : index
    %c0_220 = arith.constant 0 : index
    %144 = vector.load %arg16[%c0_218, %c2_219, %c0_220] : memref<18x18x16xf32, #tpu.memory_space<vmem>>, vector<16x16x16xf32>
    %145 = vector.shape_cast %144 : vector<16x16x16xf32> to vector<256x16xf32>
    %c1_221 = arith.constant 1 : index
    %c0_222 = arith.constant 0 : index
    %c0_223 = arith.constant 0 : index
    %146 = vector.load %arg14[%c1_221, %c0_222, %c0_223] : memref<18x18x4xf32, #tpu.memory_space<vmem>>, vector<16x16x4xf32>
    %147 = vector.shape_cast %146 : vector<16x16x4xf32> to vector<256x4xf32>
    %c1_224 = arith.constant 1 : index
    %c0_225 = arith.constant 0 : index
    %c0_226 = arith.constant 0 : index
    %148 = vector.load %arg15[%c1_224, %c0_225, %c0_226] : memref<18x18x16xf32, #tpu.memory_space<vmem>>, vector<16x16x16xf32>
    %149 = vector.shape_cast %148 : vector<16x16x16xf32> to vector<256x16xf32>
    %c1_227 = arith.constant 1 : index
    %c0_228 = arith.constant 0 : index
    %c0_229 = arith.constant 0 : index
    %150 = vector.load %arg16[%c1_227, %c0_228, %c0_229] : memref<18x18x16xf32, #tpu.memory_space<vmem>>, vector<16x16x16xf32>
    %151 = vector.shape_cast %150 : vector<16x16x16xf32> to vector<256x16xf32>
    %c1_230 = arith.constant 1 : index
    %c1_231 = arith.constant 1 : index
    %c0_232 = arith.constant 0 : index
    %152 = vector.load %arg14[%c1_230, %c1_231, %c0_232] : memref<18x18x4xf32, #tpu.memory_space<vmem>>, vector<16x16x4xf32>
    %153 = vector.shape_cast %152 : vector<16x16x4xf32> to vector<256x4xf32>
    %c1_233 = arith.constant 1 : index
    %c1_234 = arith.constant 1 : index
    %c0_235 = arith.constant 0 : index
    %154 = vector.load %arg15[%c1_233, %c1_234, %c0_235] : memref<18x18x16xf32, #tpu.memory_space<vmem>>, vector<16x16x16xf32>
    %155 = vector.shape_cast %154 : vector<16x16x16xf32> to vector<256x16xf32>
    %c1_236 = arith.constant 1 : index
    %c1_237 = arith.constant 1 : index
    %c0_238 = arith.constant 0 : index
    %156 = vector.load %arg16[%c1_236, %c1_237, %c0_238] : memref<18x18x16xf32, #tpu.memory_space<vmem>>, vector<16x16x16xf32>
    %157 = vector.shape_cast %156 : vector<16x16x16xf32> to vector<256x16xf32>
    %c1_239 = arith.constant 1 : index
    %c2_240 = arith.constant 2 : index
    %c0_241 = arith.constant 0 : index
    %158 = vector.load %arg14[%c1_239, %c2_240, %c0_241] : memref<18x18x4xf32, #tpu.memory_space<vmem>>, vector<16x16x4xf32>
    %159 = vector.shape_cast %158 : vector<16x16x4xf32> to vector<256x4xf32>
    %c1_242 = arith.constant 1 : index
    %c2_243 = arith.constant 2 : index
    %c0_244 = arith.constant 0 : index
    %160 = vector.load %arg15[%c1_242, %c2_243, %c0_244] : memref<18x18x16xf32, #tpu.memory_space<vmem>>, vector<16x16x16xf32>
    %161 = vector.shape_cast %160 : vector<16x16x16xf32> to vector<256x16xf32>
    %c1_245 = arith.constant 1 : index
    %c2_246 = arith.constant 2 : index
    %c0_247 = arith.constant 0 : index
    %162 = vector.load %arg16[%c1_245, %c2_246, %c0_247] : memref<18x18x16xf32, #tpu.memory_space<vmem>>, vector<16x16x16xf32>
    %163 = vector.shape_cast %162 : vector<16x16x16xf32> to vector<256x16xf32>
    %c2_248 = arith.constant 2 : index
    %c0_249 = arith.constant 0 : index
    %c0_250 = arith.constant 0 : index
    %164 = vector.load %arg14[%c2_248, %c0_249, %c0_250] : memref<18x18x4xf32, #tpu.memory_space<vmem>>, vector<16x16x4xf32>
    %165 = vector.shape_cast %164 : vector<16x16x4xf32> to vector<256x4xf32>
    %c2_251 = arith.constant 2 : index
    %c0_252 = arith.constant 0 : index
    %c0_253 = arith.constant 0 : index
    %166 = vector.load %arg15[%c2_251, %c0_252, %c0_253] : memref<18x18x16xf32, #tpu.memory_space<vmem>>, vector<16x16x16xf32>
    %167 = vector.shape_cast %166 : vector<16x16x16xf32> to vector<256x16xf32>
    %c2_254 = arith.constant 2 : index
    %c0_255 = arith.constant 0 : index
    %c0_256 = arith.constant 0 : index
    %168 = vector.load %arg16[%c2_254, %c0_255, %c0_256] : memref<18x18x16xf32, #tpu.memory_space<vmem>>, vector<16x16x16xf32>
    %169 = vector.shape_cast %168 : vector<16x16x16xf32> to vector<256x16xf32>
    %c2_257 = arith.constant 2 : index
    %c1_258 = arith.constant 1 : index
    %c0_259 = arith.constant 0 : index
    %170 = vector.load %arg14[%c2_257, %c1_258, %c0_259] : memref<18x18x4xf32, #tpu.memory_space<vmem>>, vector<16x16x4xf32>
    %171 = vector.shape_cast %170 : vector<16x16x4xf32> to vector<256x4xf32>
    %c2_260 = arith.constant 2 : index
    %c1_261 = arith.constant 1 : index
    %c0_262 = arith.constant 0 : index
    %172 = vector.load %arg15[%c2_260, %c1_261, %c0_262] : memref<18x18x16xf32, #tpu.memory_space<vmem>>, vector<16x16x16xf32>
    %173 = vector.shape_cast %172 : vector<16x16x16xf32> to vector<256x16xf32>
    %c2_263 = arith.constant 2 : index
    %c1_264 = arith.constant 1 : index
    %c0_265 = arith.constant 0 : index
    %174 = vector.load %arg16[%c2_263, %c1_264, %c0_265] : memref<18x18x16xf32, #tpu.memory_space<vmem>>, vector<16x16x16xf32>
    %175 = vector.shape_cast %174 : vector<16x16x16xf32> to vector<256x16xf32>
    %c2_266 = arith.constant 2 : index
    %c2_267 = arith.constant 2 : index
    %c0_268 = arith.constant 0 : index
    %176 = vector.load %arg14[%c2_266, %c2_267, %c0_268] : memref<18x18x4xf32, #tpu.memory_space<vmem>>, vector<16x16x4xf32>
    %177 = vector.shape_cast %176 : vector<16x16x4xf32> to vector<256x4xf32>
    %c2_269 = arith.constant 2 : index
    %c2_270 = arith.constant 2 : index
    %c0_271 = arith.constant 0 : index
    %178 = vector.load %arg15[%c2_269, %c2_270, %c0_271] : memref<18x18x16xf32, #tpu.memory_space<vmem>>, vector<16x16x16xf32>
    %179 = vector.shape_cast %178 : vector<16x16x16xf32> to vector<256x16xf32>
    %c2_272 = arith.constant 2 : index
    %c2_273 = arith.constant 2 : index
    %c0_274 = arith.constant 0 : index
    %180 = vector.load %arg16[%c2_272, %c2_273, %c0_274] : memref<18x18x16xf32, #tpu.memory_space<vmem>>, vector<16x16x16xf32>
    %181 = vector.shape_cast %180 : vector<16x16x16xf32> to vector<256x16xf32>
    %182 = tpu.concatenate %129, %131, %133, %135, %137, %139, %141, %143, %145, %147, %149, %151, %153, %155, %157, %159 in 1 : vector<256x4xf32>, vector<256x16xf32>, vector<256x16xf32>, vector<256x4xf32>, vector<256x16xf32>, vector<256x16xf32>, vector<256x4xf32>, vector<256x16xf32>, vector<256x16xf32>, vector<256x4xf32>, vector<256x16xf32>, vector<256x16xf32>, vector<256x4xf32>, vector<256x16xf32>, vector<256x16xf32>, vector<256x4xf32> -> vector<256x184xf32>
    %183 = tpu.concatenate %161, %163, %165, %167, %169, %171, %173, %175, %177, %179, %181 in 1 : vector<256x16xf32>, vector<256x16xf32>, vector<256x4xf32>, vector<256x16xf32>, vector<256x16xf32>, vector<256x4xf32>, vector<256x16xf32>, vector<256x16xf32>, vector<256x4xf32>, vector<256x16xf32>, vector<256x16xf32> -> vector<256x140xf32>
    %184 = tpu.concatenate %182, %183 in 1 : vector<256x184xf32>, vector<256x140xf32> -> vector<256x324xf32>
    %c0_275 = arith.constant 0 : index
    %c0_276 = arith.constant 0 : index
    %185 = vector.load %arg5[%c0_275, %c0_276] : memref<16x324xf32, #tpu.memory_space<vmem>>, vector<16x324xf32>
    %cst_277 = arith.constant dense<0.000000e+00> : vector<16x256xf32>
    %186 = tpu.matmul %185, %184, %cst_277 {dimension_numbers = #tpu.dot_dimension_numbers<[1], [1], [0], [0], [0, 0, 1, 0], [], []>} : vector<16x324xf32>, vector<256x324xf32>, vector<16x256xf32> -> vector<16x256xf32>
    %c0_278 = arith.constant 0 : index
    %c0_279 = arith.constant 0 : index
    %187 = vector.load %arg8[%c0_278, %c0_279] : memref<16x1xf32, #tpu.memory_space<vmem>>, vector<16x1xf32>
    %188 = vector.broadcast %187 : vector<16x1xf32> to vector<16x256xf32>
    %189 = arith.addf %186, %188 : vector<16x256xf32>
    %cst_280 = arith.constant 0.000000e+00 : f32
    %190 = vector.broadcast %cst_280 : f32 to vector<16x256xf32>
    %191 = arith.maximumf %189, %190 : vector<16x256xf32>
    %c0_281 = arith.constant 0 : index
    %c36 = arith.constant 36 : index
    %c0_282 = arith.constant 0 : index
    %192 = vector.load %arg13[%c0_281, %c36, %c0_282] : memref<1x52x256xf32, #tpu.memory_space<vmem>>, vector<1x16x256xf32>
    %193 = vector.shape_cast %192 : vector<1x16x256xf32> to vector<16x256xf32>
    %194 = vector.shape_cast %191 : vector<16x256xf32> to vector<1x16x256xf32>
    tpu.vector_store %arg13[%c0_281, %c36, %c0_282], %194 {strides = array<i32>} : memref<1x52x256xf32, #tpu.memory_space<vmem>>, vector<1x16x256xf32>,
    return
  }
  func.func @transform_0(%arg0: i32) -> (i32, i32, i32, i32) {
    %c0_i32 = arith.constant 0 : i32
    %c0_i32_0 = arith.constant 0 : i32
    %c0_i32_1 = arith.constant 0 : i32
    %c0_i32_2 = arith.constant 0 : i32
    return %arg0, %c0_i32, %c0_i32_0, %c0_i32_1 : i32, i32, i32, i32
  }
  func.func @transform_1(%arg0: i32) -> (i32, i32, i32) {
    %c0_i32 = arith.constant 0 : i32
    %c0_i32_0 = arith.constant 0 : i32
    %c0_i32_1 = arith.constant 0 : i32
    return %arg0, %c0_i32, %c0_i32_0 : i32, i32, i32
  }
  func.func @transform_2(%arg0: i32) -> (i32, i32) {
    %c0_i32 = arith.constant 0 : i32
    %c0_i32_0 = arith.constant 0 : i32
    %c0_i32_1 = arith.constant 0 : i32
    return %c0_i32, %c0_i32_0 : i32, i32
  }
  func.func @transform_3(%arg0: i32) -> (i32, i32) {
    %c0_i32 = arith.constant 0 : i32
    %c0_i32_0 = arith.constant 0 : i32
    %c0_i32_1 = arith.constant 0 : i32
    return %c0_i32, %c0_i32_0 : i32, i32
  }
  func.func @transform_4(%arg0: i32) -> (i32, i32) {
    %c0_i32 = arith.constant 0 : i32
    %c0_i32_0 = arith.constant 0 : i32
    %c0_i32_1 = arith.constant 0 : i32
    return %c0_i32, %c0_i32_0 : i32, i32
  }
  func.func @transform_5(%arg0: i32) -> (i32, i32) {
    %c0_i32 = arith.constant 0 : i32
    %c0_i32_0 = arith.constant 0 : i32
    %c0_i32_1 = arith.constant 0 : i32
    return %c0_i32, %c0_i32_0 : i32, i32
  }
  func.func @transform_6(%arg0: i32) -> (i32, i32) {
    %c0_i32 = arith.constant 0 : i32
    %c0_i32_0 = arith.constant 0 : i32
    %c0_i32_1 = arith.constant 0 : i32
    return %c0_i32, %c0_i32_0 : i32, i32
  }
  func.func @transform_7(%arg0: i32) -> (i32, i32) {
    %c0_i32 = arith.constant 0 : i32
    %c0_i32_0 = arith.constant 0 : i32
    %c0_i32_1 = arith.constant 0 : i32
    return %c0_i32, %c0_i32_0 : i32, i32
  }
  func.func @transform_8(%arg0: i32) -> (i32, i32) {
    %c0_i32 = arith.constant 0 : i32
    %c0_i32_0 = arith.constant 0 : i32
    %c0_i32_1 = arith.constant 0 : i32
    return %c0_i32, %c0_i32_0 : i32, i32
  }
  func.func @transform_9(%arg0: i32) -> (i32, i32) {
    %c0_i32 = arith.constant 0 : i32
    %c0_i32_0 = arith.constant 0 : i32
    %c0_i32_1 = arith.constant 0 : i32
    return %c0_i32, %c0_i32_0 : i32, i32
  }
  func.func @transform_10(%arg0: i32) -> (i32, i32) {
    %c0_i32 = arith.constant 0 : i32
    %c0_i32_0 = arith.constant 0 : i32
    %c0_i32_1 = arith.constant 0 : i32
    return %c0_i32, %c0_i32_0 : i32, i32
  }
  func.func @transform_11(%arg0: i32) -> (i32, i32) {
    %c0_i32 = arith.constant 0 : i32
    %c0_i32_0 = arith.constant 0 : i32
    %c0_i32_1 = arith.constant 0 : i32
    return %c0_i32, %c0_i32_0 : i32, i32
  }
  func.func @transform_12(%arg0: i32) -> (i32, i32, i32) {
    %c0_i32 = arith.constant 0 : i32
    %c0_i32_0 = arith.constant 0 : i32
    %c0_i32_1 = arith.constant 0 : i32
    return %arg0, %c0_i32, %c0_i32_0 : i32, i32, i32
  }
}

</mosaic_0001>

<llo_original>
// kernel: dense_block_forward.1
$region0: #{dense_block_forward.1}
  #allocation0 [shape = 'u32[]', space=smem, size = 0x4, offset = 0x4, fixed_abs, tag = 'smem constant byte address 0x4 - core index']
  #allocation1 [shape = 'u32[144,128]{1,0:T(1,128)}', space=vmem, size = 0x12000, scoped, tag = 'internal scratch']
  #allocation2 [shape = 'f32[18,18,4]{2,1,0:T(8,128)}', space=vmem, size = 0x36000, scoped, tag = 'scratch operand']
  #allocation3 [shape = 'f32[18,18,16]{2,1,0:T(8,128)}', space=vmem, size = 0x36000, scoped, tag = 'scratch operand']
  #allocation4 [shape = 'f32[18,18,16]{2,1,0:T(8,128)}', space=vmem, size = 0x36000, scoped, tag = 'scratch operand']
  %s0 = inlined_call_operand.vmem [shape: f32[2,16,16,4], index: 0, kind: input, shape index: {}]
  %s1 = inlined_call_operand.vmem [shape: f32[2,4,256], index: 1, kind: input, shape index: {}]
  %s2 = inlined_call_operand.vmem [shape: f32[16,36], index: 2, kind: input, shape index: {}]
  %s3 = inlined_call_operand.vmem [shape: f32[16,180], index: 3, kind: input, shape index: {}]
  %s4 = inlined_call_operand.vmem [shape: f32[16,324], index: 4, kind: input, shape index: {}]
  %s5 = inlined_call_operand.vmem [shape: f32[16,1], index: 5, kind: input, shape index: {}]
  %s6 = inlined_call_operand.vmem [shape: f32[16,1], index: 6, kind: input, shape index: {}]
  %s7 = inlined_call_operand.vmem [shape: f32[16,1], index: 7, kind: input, shape index: {}]
  %s8 = inlined_call_operand.vmem [shape: f32[36,16], index: 8, kind: input, shape index: {}]
  %s9 = inlined_call_operand.vmem [shape: f32[180,16], index: 9, kind: input, shape index: {}]
  %s10 = inlined_call_operand.vmem [shape: f32[1,16], index: 10, kind: input, shape index: {}]
  %s11 = inlined_call_operand.vmem [shape: f32[1,16], index: 11, kind: input, shape index: {}]
  %s12 = inlined_call_operand.vmem [shape: f32[2,52,256], index: 12, kind: output, shape index: {}]
  %s13 = sld [smem:[#allocation0]]
  $region81: #{dense_block_forward.1} parent=0
    _
  %s15 = ssub.s32 1, %s13
  %s16 = scalar_select 0, %s15, %s13
  loop: start=0, step=1, limit=4
  $region2: #{dense_block_forward.1} parent=0 // loop_pre_header
    _
  $region3: #{dense_block_forward.1} parent=0 // loop_header
    %s18 = sphi 0, %s22
    %p19 = scmp.ge.s32.totalorder %s18, 4
    %s28 = sphi 0, %s30
    %s31 = sphi 0, %s28
    %s32 = sphi 0, %s31
    %s48 = sphi 0, %s32
    %s54 = sphi 0, %s56
    %s57 = sphi 0, %s54
    %s58 = sphi 0, %s57
    %s74 = sphi 0, %s58
    %s78 = sphi 0, %s78
    %s80 = sphi 0, %s78
    %s81 = sphi 0, %s80
    %s95 = sphi 0, %s81
    %s99 = sphi 0, %s99
    %s101 = sphi 0, %s99
    %s102 = sphi 0, %s101
    %s116 = sphi 0, %s102
    %s120 = sphi 0, %s120
    %s122 = sphi 0, %s120
    %s123 = sphi 0, %s122
    %s137 = sphi 0, %s123
    %s141 = sphi 0, %s141
    %s143 = sphi 0, %s141
    %s144 = sphi 0, %s143
    %s158 = sphi 0, %s144
    %s162 = sphi 0, %s162
    %s164 = sphi 0, %s162
    %s165 = sphi 0, %s164
    %s179 = sphi 0, %s165
    %s183 = sphi 0, %s183
    %s185 = sphi 0, %s183
    %s186 = sphi 0, %s185
    %s200 = sphi 0, %s186
    %s204 = sphi 0, %s204
    %s206 = sphi 0, %s204
    %s207 = sphi 0, %s206
    %s221 = sphi 0, %s207
    %s225 = sphi 0, %s225
    %s227 = sphi 0, %s225
    %s228 = sphi 0, %s227
    %s242 = sphi 0, %s228
    %s246 = sphi 0, %s246
    %s248 = sphi 0, %s246
    %s249 = sphi 0, %s248
    %s263 = sphi 0, %s249
    %s267 = sphi 0, %s267
    %s269 = sphi 0, %s267
    %s270 = sphi 0, %s269
    %s284 = sphi 0, %s270
    %s290 = sphi 0, %s292
    %s293 = sphi 0, %s290
    %s294 = sphi 0, %s293
    %s310 = sphi 0, %s294
  $region4: #{dense_block_forward.1} parent=0 // loop_header_branch
    %21 = sbr.rel (%p19) target = $region8
  $region5: #{dense_block_forward.1} parent=0 // loop_body
    %s23 = ssub.s32 %s18, 1
    %s24 = ssub.s32 %s18, 2
    %s25 = sadd.s32 %s18, 1
    %s26 = ssub.s32 %s18, %s25
    %p27 = scmp.eq.s32.totalorder %s26, 0
    %s29 = sadd.s32 %s28, 1
    %s30 = scalar_select %p27, %s28, %s29
    %p33 = pneg %p27
    %p34 = scmp.eq.s32.totalorder %s18, 1
    %p35 = por %p33, %p34
    %p36 = scmp.ne.s32.totalorder %s28, %s31
    %p37 = scmp.eq.s32.totalorder %s18, 0
    %p38 = por %p36, %p37
    %p39 = scmp.ne.s32.totalorder %s28, %s31
    %p40 = scmp.eq.s32.totalorder %s23, 1
    %p41 = por %p39, %p40
    %p42 = scmp.ne.s32.totalorder %s31, %s32
    %p43 = scmp.eq.s32.totalorder %s23, 0
    %p44 = por %p42, %p43
    %p45 = scmp.ne.s32.totalorder %s31, %s32
    %p46 = scmp.eq.s32.totalorder %s24, 1
    %p47 = por %p45, %p46
    %p49 = scmp.ne.s32.totalorder %s32, %s48
    %p50 = scmp.eq.s32.totalorder %s24, 0
    %p51 = por %p49, %p50
    %s52 = ssub.s32 %s18, %s25
    %p53 = scmp.eq.s32.totalorder %s52, 0
    %s55 = sadd.s32 %s54, 1
    %s56 = scalar_select %p53, %s54, %s55
    %p59 = pneg %p53
    %p60 = scmp.eq.s32.totalorder %s18, 1
    %p61 = por %p59, %p60
    %p62 = scmp.ne.s32.totalorder %s54, %s57
    %p63 = scmp.eq.s32.totalorder %s18, 0
    %p64 = por %p62, %p63
    %p65 = scmp.ne.s32.totalorder %s54, %s57
    %p66 = scmp.eq.s32.totalorder %s23, 1
    %p67 = por %p65, %p66
    %p68 = scmp.ne.s32.totalorder %s57, %s58
    %p69 = scmp.eq.s32.totalorder %s23, 0
    %p70 = por %p68, %p69
    %p71 = scmp.ne.s32.totalorder %s57, %s58
    %p72 = scmp.eq.s32.totalorder %s24, 1
    %p73 = por %p71, %p72
    %p75 = scmp.ne.s32.totalorder %s58, %s74
    %p76 = scmp.eq.s32.totalorder %s24, 0
    %p77 = por %p75, %p76
    %s79 = sadd.s32 %s78, 1
    %p82 = scmp.eq.s32.totalorder %s18, 1
    %p83 = scmp.ne.s32.totalorder %s78, %s80
    %p84 = scmp.eq.s32.totalorder %s18, 0
    %p85 = por %p83, %p84
    %p86 = scmp.ne.s32.totalorder %s78, %s80
    %p87 = scmp.eq.s32.totalorder %s23, 1
    %p88 = por %p86, %p87
    %p89 = scmp.ne.s32.totalorder %s80, %s81
    %p90 = scmp.eq.s32.totalorder %s23, 0
    %p91 = por %p89, %p90
    %p92 = scmp.ne.s32.totalorder %s80, %s81
    %p93 = scmp.eq.s32.totalorder %s24, 1
    %p94 = por %p92, %p93
    %p96 = scmp.ne.s32.totalorder %s81, %s95
    %p97 = scmp.eq.s32.totalorder %s24, 0
    %p98 = por %p96, %p97
    %s100 = sadd.s32 %s99, 1
    %p103 = scmp.eq.s32.totalorder %s18, 1
    %p104 = scmp.ne.s32.totalorder %s99, %s101
    %p105 = scmp.eq.s32.totalorder %s18, 0
    %p106 = por %p104, %p105
    %p107 = scmp.ne.s32.totalorder %s99, %s101
    %p108 = scmp.eq.s32.totalorder %s23, 1
    %p109 = por %p107, %p108
    %p110 = scmp.ne.s32.totalorder %s101, %s102
    %p111 = scmp.eq.s32.totalorder %s23, 0
    %p112 = por %p110, %p111
    %p113 = scmp.ne.s32.totalorder %s101, %s102
    %p114 = scmp.eq.s32.totalorder %s24, 1
    %p115 = por %p113, %p114
    %p117 = scmp.ne.s32.totalorder %s102, %s116
    %p118 = scmp.eq.s32.totalorder %s24, 0
    %p119 = por %p117, %p118
    %s121 = sadd.s32 %s120, 1
    %p124 = scmp.eq.s32.totalorder %s18, 1
    %p125 = scmp.ne.s32.totalorder %s120, %s122
    %p126 = scmp.eq.s32.totalorder %s18, 0
    %p127 = por %p125, %p126
    %p128 = scmp.ne.s32.totalorder %s120, %s122
    %p129 = scmp.eq.s32.totalorder %s23, 1
    %p130 = por %p128, %p129
    %p131 = scmp.ne.s32.totalorder %s122, %s123
    %p132 = scmp.eq.s32.totalorder %s23, 0
    %p133 = por %p131, %p132
    %p134 = scmp.ne.s32.totalorder %s122, %s123
    %p135 = scmp.eq.s32.totalorder %s24, 1
    %p136 = por %p134, %p135
    %p138 = scmp.ne.s32.totalorder %s123, %s137
    %p139 = scmp.eq.s32.totalorder %s24, 0
    %p140 = por %p138, %p139
    %s142 = sadd.s32 %s141, 1
    %p145 = scmp.eq.s32.totalorder %s18, 1
    %p146 = scmp.ne.s32.totalorder %s141, %s143
    %p147 = scmp.eq.s32.totalorder %s18, 0
    %p148 = por %p146, %p147
    %p149 = scmp.ne.s32.totalorder %s141, %s143
    %p150 = scmp.eq.s32.totalorder %s23, 1
    %p151 = por %p149, %p150
    %p152 = scmp.ne.s32.totalorder %s143, %s144
    %p153 = scmp.eq.s32.totalorder %s23, 0
    %p154 = por %p152, %p153
    %p155 = scmp.ne.s32.totalorder %s143, %s144
    %p156 = scmp.eq.s32.totalorder %s24, 1
    %p157 = por %p155, %p156
    %p159 = scmp.ne.s32.totalorder %s144, %s158
    %p160 = scmp.eq.s32.totalorder %s24, 0
    %p161 = por %p159, %p160
    %s163 = sadd.s32 %s162, 1
    %p166 = scmp.eq.s32.totalorder %s18, 1
    %p167 = scmp.ne.s32.totalorder %s162, %s164
    %p168 = scmp.eq.s32.totalorder %s18, 0
    %p169 = por %p167, %p168
    %p170 = scmp.ne.s32.totalorder %s162, %s164
    %p171 = scmp.eq.s32.totalorder %s23, 1
    %p172 = por %p170, %p171
    %p173 = scmp.ne.s32.totalorder %s164, %s165
    %p174 = scmp.eq.s32.totalorder %s23, 0
    %p175 = por %p173, %p174
    %p176 = scmp.ne.s32.totalorder %s164, %s165
    %p177 = scmp.eq.s32.totalorder %s24, 1
    %p178 = por %p176, %p177
    %p180 = scmp.ne.s32.totalorder %s165, %s179
    %p181 = scmp.eq.s32.totalorder %s24, 0
    %p182 = por %p180, %p181
    %s184 = sadd.s32 %s183, 1
    %p187 = scmp.eq.s32.totalorder %s18, 1
    %p188 = scmp.ne.s32.totalorder %s183, %s185
    %p189 = scmp.eq.s32.totalorder %s18, 0
    %p190 = por %p188, %p189
    %p191 = scmp.ne.s32.totalorder %s183, %s185
    %p192 = scmp.eq.s32.totalorder %s23, 1
    %p193 = por %p191, %p192
    %p194 = scmp.ne.s32.totalorder %s185, %s186
    %p195 = scmp.eq.s32.totalorder %s23, 0
    %p196 = por %p194, %p195
    %p197 = scmp.ne.s32.totalorder %s185, %s186
    %p198 = scmp.eq.s32.totalorder %s24, 1
    %p199 = por %p197, %p198
    %p201 = scmp.ne.s32.totalorder %s186, %s200
    %p202 = scmp.eq.s32.totalorder %s24, 0
    %p203 = por %p201, %p202
    %s205 = sadd.s32 %s204, 1
    %p208 = scmp.eq.s32.totalorder %s18, 1
    %p209 = scmp.ne.s32.totalorder %s204, %s206
    %p210 = scmp.eq.s32.totalorder %s18, 0
    %p211 = por %p209, %p210
    %p212 = scmp.ne.s32.totalorder %s204, %s206
    %p213 = scmp.eq.s32.totalorder %s23, 1
    %p214 = por %p212, %p213
    %p215 = scmp.ne.s32.totalorder %s206, %s207
    %p216 = scmp.eq.s32.totalorder %s23, 0
    %p217 = por %p215, %p216
    %p218 = scmp.ne.s32.totalorder %s206, %s207
    %p219 = scmp.eq.s32.totalorder %s24, 1
    %p220 = por %p218, %p219
    %p222 = scmp.ne.s32.totalorder %s207, %s221
    %p223 = scmp.eq.s32.totalorder %s24, 0
    %p224 = por %p222, %p223
    %s226 = sadd.s32 %s225, 1
    %p229 = scmp.eq.s32.totalorder %s18, 1
    %p230 = scmp.ne.s32.totalorder %s225, %s227
    %p231 = scmp.eq.s32.totalorder %s18, 0
    %p232 = por %p230, %p231
    %p233 = scmp.ne.s32.totalorder %s225, %s227
    %p234 = scmp.eq.s32.totalorder %s23, 1
    %p235 = por %p233, %p234
    %p236 = scmp.ne.s32.totalorder %s227, %s228
    %p237 = scmp.eq.s32.totalorder %s23, 0
    %p238 = por %p236, %p237
    %p239 = scmp.ne.s32.totalorder %s227, %s228
    %p240 = scmp.eq.s32.totalorder %s24, 1
    %p241 = por %p239, %p240
    %p243 = scmp.ne.s32.totalorder %s228, %s242
    %p244 = scmp.eq.s32.totalorder %s24, 0
    %p245 = por %p243, %p244
    %s247 = sadd.s32 %s246, 1
    %p250 = scmp.eq.s32.totalorder %s18, 1
    %p251 = scmp.ne.s32.totalorder %s246, %s248
    %p252 = scmp.eq.s32.totalorder %s18, 0
    %p253 = por %p251, %p252
    %p254 = scmp.ne.s32.totalorder %s246, %s248
    %p255 = scmp.eq.s32.totalorder %s23, 1
    %p256 = por %p254, %p255
    %p257 = scmp.ne.s32.totalorder %s248, %s249
    %p258 = scmp.eq.s32.totalorder %s23, 0
    %p259 = por %p257, %p258
    %p260 = scmp.ne.s32.totalorder %s248, %s249
    %p261 = scmp.eq.s32.totalorder %s24, 1
    %p262 = por %p260, %p261
    %p264 = scmp.ne.s32.totalorder %s249, %s263
    %p265 = scmp.eq.s32.totalorder %s24, 0
    %p266 = por %p264, %p265
    %s268 = sadd.s32 %s267, 1
    %p271 = scmp.eq.s32.totalorder %s18, 1
    %p272 = scmp.ne.s32.totalorder %s267, %s269
    %p273 = scmp.eq.s32.totalorder %s18, 0
    %p274 = por %p272, %p273
    %p275 = scmp.ne.s32.totalorder %s267, %s269
    %p276 = scmp.eq.s32.totalorder %s23, 1
    %p277 = por %p275, %p276
    %p278 = scmp.ne.s32.totalorder %s269, %s270
    %p279 = scmp.eq.s32.totalorder %s23, 0
    %p280 = por %p278, %p279
    %p281 = scmp.ne.s32.totalorder %s269, %s270
    %p282 = scmp.eq.s32.totalorder %s24, 1
    %p283 = por %p281, %p282
    %p285 = scmp.ne.s32.totalorder %s270, %s284
    %p286 = scmp.eq.s32.totalorder %s24, 0
    %p287 = por %p285, %p286
    %s288 = ssub.s32 %s18, %s25
    %p289 = scmp.eq.s32.totalorder %s288, 0
    %s291 = sadd.s32 %s290, 1
    %s292 = scalar_select %p289, %s290, %s291
    %p295 = pneg %p289
    %p296 = scmp.eq.s32.totalorder %s18, 1
    %p297 = por %p295, %p296
    %p298 = scmp.ne.s32.totalorder %s290, %s293
    %p299 = scmp.eq.s32.totalorder %s18, 0
    %p300 = por %p298, %p299
    %p301 = scmp.ne.s32.totalorder %s290, %s293
    %p302 = scmp.eq.s32.totalorder %s23, 1
    %p303 = por %p301, %p302
    %p304 = scmp.ne.s32.totalorder %s293, %s294
    %p305 = scmp.eq.s32.totalorder %s23, 0
    %p306 = por %p304, %p305
    %p307 = scmp.ne.s32.totalorder %s293, %s294
    %p308 = scmp.eq.s32.totalorder %s24, 1
    %p309 = por %p307, %p308
    %p311 = scmp.ne.s32.totalorder %s294, %s310
    %p312 = scmp.eq.s32.totalorder %s24, 0
    %p313 = por %p311, %p312
    %p314 = scmp.le.s32.totalorder 1, %s18
    %p315 = scmp.lt.s32.totalorder %s18, 3
    %p316 = pnand %p314, %p315
    %p317 = pneg %p316
    // Predicated region
    $region9: #{dense_block_forward.1} parent=5 // pred_check
      _
    $region10: #{dense_block_forward.1} parent=5 // pred_check_branch
      %319 = sbr.rel (%p316) target = $region12
    $region11: #{dense_block_forward.1} parent=5 // pred_region
      %s320 = ssub.s32 %s18, 1
      // Predicated region
      $region13: #{dense_block_forward.1} parent=11 // pred_check
        %p321 = pneg %p91
      $region14: #{dense_block_forward.1} parent=11 // pred_check_branch
        %323 = sbr.rel (%p321) target = $region16
      $region15: #{dense_block_forward.1} parent=11 // pred_region
        _
      $region16: #{dense_block_forward.1} parent=11 // pred_fallthru
        _
      // Predicated region
      $region17: #{dense_block_forward.1} parent=11 // pred_check
        %p324 = pneg %p112
      $region18: #{dense_block_forward.1} parent=11 // pred_check_branch
        %326 = sbr.rel (%p324) target = $region20
      $region19: #{dense_block_forward.1} parent=11 // pred_region
        _
      $region20: #{dense_block_forward.1} parent=11 // pred_fallthru
        _
      // Predicated region
      $region21: #{dense_block_forward.1} parent=11 // pred_check
        %p327 = pneg %p133
      $region22: #{dense_block_forward.1} parent=11 // pred_check_branch
        %329 = sbr.rel (%p327) target = $region24
      $region23: #{dense_block_forward.1} parent=11 // pred_region
        _
      $region24: #{dense_block_forward.1} parent=11 // pred_fallthru
        _
      // Predicated region
      $region25: #{dense_block_forward.1} parent=11 // pred_check
        %p330 = pneg %p154
      $region26: #{dense_block_forward.1} parent=11 // pred_check_branch
        %332 = sbr.rel (%p330) target = $region28
      $region27: #{dense_block_forward.1} parent=11 // pred_region
        _
      $region28: #{dense_block_forward.1} parent=11 // pred_fallthru
        _
      // Predicated region
      $region29: #{dense_block_forward.1} parent=11 // pred_check
        %p333 = pneg %p175
      $region30: #{dense_block_forward.1} parent=11 // pred_check_branch
        %335 = sbr.rel (%p333) target = $region32
      $region31: #{dense_block_forward.1} parent=11 // pred_region
        _
      $region32: #{dense_block_forward.1} parent=11 // pred_fallthru
        _
      // Predicated region
      $region33: #{dense_block_forward.1} parent=11 // pred_check
        %p336 = pneg %p196
      $region34: #{dense_block_forward.1} parent=11 // pred_check_branch
        %338 = sbr.rel (%p336) target = $region36
      $region35: #{dense_block_forward.1} parent=11 // pred_region
        _
      $region36: #{dense_block_forward.1} parent=11 // pred_fallthru
        _
      // Predicated region
      $region37: #{dense_block_forward.1} parent=11 // pred_check
        %p339 = pneg %p217
      $region38: #{dense_block_forward.1} parent=11 // pred_check_branch
        %341 = sbr.rel (%p339) target = $region40
      $region39: #{dense_block_forward.1} parent=11 // pred_region
        _
      $region40: #{dense_block_forward.1} parent=11 // pred_fallthru
        _
      // Predicated region
      $region41: #{dense_block_forward.1} parent=11 // pred_check
        %p342 = pneg %p238
      $region42: #{dense_block_forward.1} parent=11 // pred_check_branch
        %344 = sbr.rel (%p342) target = $region44
      $region43: #{dense_block_forward.1} parent=11 // pred_region
        _
      $region44: #{dense_block_forward.1} parent=11 // pred_fallthru
        _
      // Predicated region
      $region45: #{dense_block_forward.1} parent=11 // pred_check
        %p345 = pneg %p259
      $region46: #{dense_block_forward.1} parent=11 // pred_check_branch
        %347 = sbr.rel (%p345) target = $region48
      $region47: #{dense_block_forward.1} parent=11 // pred_region
        _
      $region48: #{dense_block_forward.1} parent=11 // pred_fallthru
        _
      // Predicated region
      $region49: #{dense_block_forward.1} parent=11 // pred_check
        %p348 = pneg %p280
      $region50: #{dense_block_forward.1} parent=11 // pred_check_branch
        %350 = sbr.rel (%p348) target = $region52
      $region51: #{dense_block_forward.1} parent=11 // pred_region
        _
      $region52: #{dense_block_forward.1} parent=11 // pred_fallthru
        _
    $region12: #{dense_block_forward.1} parent=5 // pred_fallthru
      _
    %p351 = scmp.lt.s32.totalorder %s18, 2
    // Predicated region
    $region53: #{dense_block_forward.1} parent=5 // pred_check
      %p352 = pneg %p351
    $region54: #{dense_block_forward.1} parent=5 // pred_check_branch
      %354 = sbr.rel (%p352) target = $region56
    $region55: #{dense_block_forward.1} parent=5 // pred_region
      // Predicated region
      $region57: #{dense_block_forward.1} parent=55 // pred_check
        %p355 = pneg %p38
      $region58: #{dense_block_forward.1} parent=55 // pred_check_branch
        %357 = sbr.rel (%p355) target = $region60
      $region59: #{dense_block_forward.1} parent=55 // pred_region
        %p358 = scmp.lt.s32.totalorder %s18, 1
        %s359 = scalar_select %p358, %s18, 1
        %s360 = smul.addr %s359, 32
        %s361 = smul.addr %s360, 8
        %s362 = scalar_lea.vmem %s0, %s361
      $region60: #{dense_block_forward.1} parent=55 // pred_fallthru
        _
      // Predicated region
      $region61: #{dense_block_forward.1} parent=55 // pred_check
        %p363 = pneg %p64
      $region62: #{dense_block_forward.1} parent=55 // pred_check_branch
        %365 = sbr.rel (%p363) target = $region64
      $region63: #{dense_block_forward.1} parent=55 // pred_region
        %p366 = scmp.lt.s32.totalorder %s18, 1
        %s367 = scalar_select %p366, %s18, 1
        %s368 = smul.addr %s367, 2
        %s369 = smul.addr %s368, 4
        %s370 = scalar_lea.vmem %s1, %s369
      $region64: #{dense_block_forward.1} parent=55 // pred_fallthru
        _
    $region56: #{dense_block_forward.1} parent=5 // pred_fallthru
      _
    %p371 = scmp.le.s32.totalorder 1, %s18
    %p372 = scmp.lt.s32.totalorder %s18, 3
    %p373 = pnand %p371, %p372
    %p374 = pneg %p373
    // Predicated region
    $region65: #{dense_block_forward.1} parent=5 // pred_check
      _
    $region66: #{dense_block_forward.1} parent=5 // pred_check_branch
      %376 = sbr.rel (%p373) target = $region68
    $region67: #{dense_block_forward.1} parent=5 // pred_region
      %s377 = ssub.s32 %s18, 1
      %p378 = scmp.lt.s32.totalorder %s23, 1
      %s379 = scalar_select %p378, %s23, 1
      %s380 = smul.addr %s379, 32
      %s381 = smul.addr %s380, 8
      %s382 = scalar_lea.vmem %s0, %s381
      %p383 = pneg %p44
      %p384 = pneg %p41
      %p385 = scmp.lt.s32.totalorder %s23, 1
      %s386 = scalar_select %p385, %s23, 1
      %s387 = smul.addr %s386, 2
      %s388 = smul.addr %s387, 4
      %s389 = scalar_lea.vmem %s1, %s388
      %p390 = pneg %p70
      %p391 = pneg %p67
      %p392 = pneg %p91
      %p393 = pneg %p88
      %p394 = pneg %p112
      %p395 = pneg %p109
      %p396 = pneg %p133
      %p397 = pneg %p130
      %p398 = pneg %p154
      %p399 = pneg %p151
      %p400 = pneg %p175
      %p401 = pneg %p172
      %p402 = pneg %p196
      %p403 = pneg %p193
      %p404 = pneg %p217
      %p405 = pneg %p214
      %p406 = pneg %p238
      %p407 = pneg %p235
      %p408 = pneg %p259
      %p409 = pneg %p256
      %p410 = pneg %p280
      %p411 = pneg %p277
      %p412 = pneg %p306
      %p413 = pneg %p303
      %p414 = scmp.lt.s32.totalorder %s23, 1
      %s415 = scalar_select %p414, %s23, 1
      %s416 = smul.addr %s415, 14
      %s417 = smul.addr %s416, 8
      %s418 = scalar_lea.vmem %s12, %s417
      %p419 = scmp.lt.s32.totalorder %s23, 1
      %s420 = scalar_select %p419, %s23, 1
      %s421 = smul.addr %s420, 32
      %s422 = smul.addr %s421, 8
      %s423 = scalar_lea.vmem %s0, %s422
      %p424 = scmp.lt.s32.totalorder %s23, 1
      %s425 = scalar_select %p424, %s23, 1
      %s426 = smul.addr %s425, 2
      %s427 = smul.addr %s426, 4
      %s428 = scalar_lea.vmem %s1, %s427
      %p429 = scmp.lt.s32.totalorder %s23, 1
      %s430 = scalar_select %p429, %s23, 1
      %s431 = smul.addr %s430, 14
      %s432 = smul.addr %s431, 8
      %s433 = scalar_lea.vmem %s12, %s432
      %v434 = vld [vmem:[%s423] sm:$0xff]
      %v435 = vld [vmem:[%s423 + $0x8] sm:$0xff]
      %v436 = vld [vmem:[%s423 + $0x10] sm:$0xff]
      %v437 = vld [vmem:[%s423 + $0x18] sm:$0xff]
      %v438 = vld [vmem:[%s423 + $0x20] sm:$0xff]
      %v439 = vld [vmem:[%s423 + $0x28] sm:$0xff]
      %v440 = vld [vmem:[%s423 + $0x30] sm:$0xff]
      %v441 = vld [vmem:[%s423 + $0x38] sm:$0xff]
      %v442 = vld [vmem:[%s423 + $0x40] sm:$0xff]
      %v443 = vld [vmem:[%s423 + $0x48] sm:$0xff]
      %v444 = vld [vmem:[%s423 + $0x50] sm:$0xff]
      %v445 = vld [vmem:[%s423 + $0x58] sm:$0xff]
      %v446 = vld [vmem:[%s423 + $0x60] sm:$0xff]
      %v447 = vld [vmem:[%s423 + $0x68] sm:$0xff]
      %v448 = vld [vmem:[%s423 + $0x70] sm:$0xff]
      %v449 = vld [vmem:[%s423 + $0x78] sm:$0xff]
      %v450 = vld [vmem:[%s423 + $0x80] sm:$0xff]
      %v451 = vld [vmem:[%s423 + $0x88] sm:$0xff]
      %v452 = vld [vmem:[%s423 + $0x90] sm:$0xff]
      %v453 = vld [vmem:[%s423 + $0x98] sm:$0xff]
      %v454 = vld [vmem:[%s423 + $0xa0] sm:$0xff]
      %v455 = vld [vmem:[%s423 + $0xa8] sm:$0xff]
      %v456 = vld [vmem:[%s423 + $0xb0] sm:$0xff]
      %v457 = vld [vmem:[%s423 + $0xb8] sm:$0xff]
      %v458 = vld [vmem:[%s423 + $0xc0] sm:$0xff]
      %v459 = vld [vmem:[%s423 + $0xc8] sm:$0xff]
      %v460 = vld [vmem:[%s423 + $0xd0] sm:$0xff]
      %v461 = vld [vmem:[%s423 + $0xd8] sm:$0xff]
      %v462 = vld [vmem:[%s423 + $0xe0] sm:$0xff]
      %v463 = vld [vmem:[%s423 + $0xe8] sm:$0xff]
      %v464 = vld [vmem:[%s423 + $0xf0] sm:$0xff]
      %v465 = vld [vmem:[%s423 + $0xf8] sm:$0xff]
      %s466 = scalar_lea.vmem [#allocation2], 24
      %vm467 = vcmask 31744
      %468 = vst.msk [vmem:[%s466 + $0x1] sm:$0xff] %vm467, %v434
      %469 = vst.msk [vmem:[%s466 + $0x9] sm:$0xff] %vm467, %v435
      %470 = vst.msk [vmem:[%s466 + $0x19] sm:$0xff] %vm467, %v436
      %471 = vst.msk [vmem:[%s466 + $0x21] sm:$0xff] %vm467, %v437
      %472 = vst.msk [vmem:[%s466 + $0x31] sm:$0xff] %vm467, %v438
      %473 = vst.msk [vmem:[%s466 + $0x39] sm:$0xff] %vm467, %v439
      %474 = vst.msk [vmem:[%s466 + $0x49] sm:$0xff] %vm467, %v440
      %475 = vst.msk [vmem:[%s466 + $0x51] sm:$0xff] %vm467, %v441
      %476 = vst.msk [vmem:[%s466 + $0x61] sm:$0xff] %vm467, %v442
      %477 = vst.msk [vmem:[%s466 + $0x69] sm:$0xff] %vm467, %v443
      %478 = vst.msk [vmem:[%s466 + $0x79] sm:$0xff] %vm467, %v444
      %479 = vst.msk [vmem:[%s466 + $0x81] sm:$0xff] %vm467, %v445
      %480 = vst.msk [vmem:[%s466 + $0x91] sm:$0xff] %vm467, %v446
      %481 = vst.msk [vmem:[%s466 + $0x99] sm:$0xff] %vm467, %v447
      %482 = vst.msk [vmem:[%s466 + $0xa9] sm:$0xff] %vm467, %v448
      %483 = vst.msk [vmem:[%s466 + $0xb1] sm:$0xff] %vm467, %v449
      %484 = vst.msk [vmem:[%s466 + $0xc1] sm:$0xff] %vm467, %v450
      %485 = vst.msk [vmem:[%s466 + $0xc9] sm:$0xff] %vm467, %v451
      %486 = vst.msk [vmem:[%s466 + $0xd9] sm:$0xff] %vm467, %v452
      %487 = vst.msk [vmem:[%s466 + $0xe1] sm:$0xff] %vm467, %v453
      %488 = vst.msk [vmem:[%s466 + $0xf1] sm:$0xff] %vm467, %v454
      %489 = vst.msk [vmem:[%s466 + $0xf9] sm:$0xff] %vm467, %v455
      %490 = vst.msk [vmem:[%s466 + $0x109] sm:$0xff] %vm467, %v456
      %491 = vst.msk [vmem:[%s466 + $0x111] sm:$0xff] %vm467, %v457
      %492 = vst.msk [vmem:[%s466 + $0x121] sm:$0xff] %vm467, %v458
      %493 = vst.msk [vmem:[%s466 + $0x129] sm:$0xff] %vm467, %v459
      %494 = vst.msk [vmem:[%s466 + $0x139] sm:$0xff] %vm467, %v460
      %495 = vst.msk [vmem:[%s466 + $0x141] sm:$0xff] %vm467, %v461
      %496 = vst.msk [vmem:[%s466 + $0x151] sm:$0xff] %vm467, %v462
      %497 = vst.msk [vmem:[%s466 + $0x159] sm:$0xff] %vm467, %v463
      %498 = vst.msk [vmem:[%s466 + $0x169] sm:$0xff] %vm467, %v464
      %499 = vst.msk [vmem:[%s466 + $0x171] sm:$0xff] %vm467, %v465
      %s500 = scalar_lea.vmem [#allocation2], 48
      %v501 = vld [vmem:[%s500] sm:$0xff]
      %v502 = vld [vmem:[%s500 + $0x8] sm:$0xff]
      %v503 = vld [vmem:[%s500 + $0x10] sm:$0x3]
      %504 = vst.msk [vmem:[#allocation2] sm:$0xff] %vm467, %v501
      %505 = vst.msk [vmem:[#allocation2 + $0x8] sm:$0xff] %vm467, %v502
      %vm506 = vcmask 25600
      %507 = vst.msk [vmem:[#allocation2 + $0x10] sm:$0x3] %vm506, %v503
      %s508 = scalar_lea.vmem [#allocation2], 360
      %v509 = vld [vmem:[%s508] sm:$0xff]
      %v510 = vld [vmem:[%s508 + $0x8] sm:$0xff]
      %v511 = vld [vmem:[%s508 + $0x10] sm:$0x3]
      %s512 = scalar_lea.vmem [#allocation2], 408
      %513 = vst.msk [vmem:[%s512] sm:$0xff] %vm467, %v509
      %514 = vst.msk [vmem:[%s512 + $0x8] sm:$0xff] %vm467, %v510
      %515 = vst.msk [vmem:[%s512 + $0x10] sm:$0x3] %vm506, %v511
      %v516 = vld [vmem:[#allocation2 + $0x2] sm:$0x1]
      %v517 = vld [vmem:[#allocation2 + $0x1a] sm:$0x1]
      %v518 = vld [vmem:[#allocation2 + $0x32] sm:$0x1]
      %v519 = vld [vmem:[#allocation2 + $0x4a] sm:$0x1]
      %v520 = vld [vmem:[#allocation2 + $0x62] sm:$0x1]
      %v521 = vld [vmem:[#allocation2 + $0x7a] sm:$0x1]
      %v522 = vld [vmem:[#allocation2 + $0x92] sm:$0x1]
      %v523 = vld [vmem:[#allocation2 + $0xaa] sm:$0x1]
      %v524 = vld [vmem:[#allocation2 + $0xc2] sm:$0x1]
      %v525 = vld [vmem:[#allocation2 + $0xda] sm:$0x1]
      %v526 = vld [vmem:[#allocation2 + $0xf2] sm:$0x1]
      %v527 = vld [vmem:[#allocation2 + $0x10a] sm:$0x1]
      %v528 = vld [vmem:[#allocation2 + $0x122] sm:$0x1]
      %v529 = vld [vmem:[#allocation2 + $0x13a] sm:$0x1]
      %v530 = vld [vmem:[#allocation2 + $0x152] sm:$0x1]
      %v531 = vld [vmem:[#allocation2 + $0x16a] sm:$0x1]
      %v532 = vld [vmem:[#allocation2 + $0x182] sm:$0x1]
      %v533 = vld [vmem:[#allocation2 + $0x19a] sm:$0x1]
      %vm534 = vcmask 24576
      %535 = vst.msk [vmem:[#allocation2] sm:$0x1] %vm534, %v516
      %536 = vst.msk [vmem:[#allocation2 + $0x18] sm:$0x1] %vm534, %v517
      %537 = vst.msk [vmem:[#allocation2 + $0x30] sm:$0x1] %vm534, %v518
      %538 = vst.msk [vmem:[#allocation2 + $0x48] sm:$0x1] %vm534, %v519
      %539 = vst.msk [vmem:[#allocation2 + $0x60] sm:$0x1] %vm534, %v520
      %540 = vst.msk [vmem:[#allocation2 + $0x78] sm:$0x1] %vm534, %v521
      %541 = vst.msk [vmem:[#allocation2 + $0x90] sm:$0x1] %vm534, %v522
      %542 = vst.msk [vmem:[#allocation2 + $0xa8] sm:$0x1] %vm534, %v523
      %543 = vst.msk [vmem:[#allocation2 + $0xc0] sm:$0x1] %vm534, %v524
      %544 = vst.msk [vmem:[#allocation2 + $0xd8] sm:$0x1] %vm534, %v525
      %545 = vst.msk [vmem:[#allocation2 + $0xf0] sm:$0x1] %vm534, %v526
      %546 = vst.msk [vmem:[#allocation2 + $0x108] sm:$0x1] %vm534, %v527
      %547 = vst.msk [vmem:[#allocation2 + $0x120] sm:$0x1] %vm534, %v528
      %548 = vst.msk [vmem:[#allocation2 + $0x138] sm:$0x1] %vm534, %v529
      %549 = vst.msk [vmem:[#allocation2 + $0x150] sm:$0x1] %vm534, %v530
      %550 = vst.msk [vmem:[#allocation2 + $0x168] sm:$0x1] %vm534, %v531
      %551 = vst.msk [vmem:[#allocation2 + $0x180] sm:$0x1] %vm534, %v532
      %552 = vst.msk [vmem:[#allocation2 + $0x198] sm:$0x1] %vm534, %v533
      %v553 = vld [vmem:[#allocation2 + $0xf] sm:$0x1]
      %v554 = vld [vmem:[#allocation2 + $0x27] sm:$0x1]
      %v555 = vld [vmem:[#allocation2 + $0x3f] sm:$0x1]
      %v556 = vld [vmem:[#allocation2 + $0x57] sm:$0x1]
      %v557 = vld [vmem:[#allocation2 + $0x6f] sm:$0x1]
      %v558 = vld [vmem:[#allocation2 + $0x87] sm:$0x1]
      %v559 = vld [vmem:[#allocation2 + $0x9f] sm:$0x1]
      %v560 = vld [vmem:[#allocation2 + $0xb7] sm:$0x1]
      %v561 = vld [vmem:[#allocation2 + $0xcf] sm:$0x1]
      %v562 = vld [vmem:[#allocation2 + $0xe7] sm:$0x1]
      %v563 = vld [vmem:[#allocation2 + $0xff] sm:$0x1]
      %v564 = vld [vmem:[#allocation2 + $0x117] sm:$0x1]
      %v565 = vld [vmem:[#allocation2 + $0x12f] sm:$0x1]
      %v566 = vld [vmem:[#allocation2 + $0x147] sm:$0x1]
      %v567 = vld [vmem:[#allocation2 + $0x15f] sm:$0x1]
      %v568 = vld [vmem:[#allocation2 + $0x177] sm:$0x1]
      %v569 = vld [vmem:[#allocation2 + $0x18f] sm:$0x1]
      %v570 = vld [vmem:[#allocation2 + $0x1a7] sm:$0x1]
      %571 = vst.msk [vmem:[#allocation2 + $0x11] sm:$0x1] %vm534, %v553
      %572 = vst.msk [vmem:[#allocation2 + $0x29] sm:$0x1] %vm534, %v554
      %573 = vst.msk [vmem:[#allocation2 + $0x41] sm:$0x1] %vm534, %v555
      %574 = vst.msk [vmem:[#allocation2 + $0x59] sm:$0x1] %vm534, %v556
      %575 = vst.msk [vmem:[#allocation2 + $0x71] sm:$0x1] %vm534, %v557
      %576 = vst.msk [vmem:[#allocation2 + $0x89] sm:$0x1] %vm534, %v558
      %577 = vst.msk [vmem:[#allocation2 + $0xa1] sm:$0x1] %vm534, %v559
      %578 = vst.msk [vmem:[#allocation2 + $0xb9] sm:$0x1] %vm534, %v560
      %579 = vst.msk [vmem:[#allocation2 + $0xd1] sm:$0x1] %vm534, %v561
      %580 = vst.msk [vmem:[#allocation2 + $0xe9] sm:$0x1] %vm534, %v562
      %581 = vst.msk [vmem:[#allocation2 + $0x101] sm:$0x1] %vm534, %v563
      %582 = vst.msk [vmem:[#allocation2 + $0x119] sm:$0x1] %vm534, %v564
      %583 = vst.msk [vmem:[#allocation2 + $0x131] sm:$0x1] %vm534, %v565
      %584 = vst.msk [vmem:[#allocation2 + $0x149] sm:$0x1] %vm534, %v566
      %585 = vst.msk [vmem:[#allocation2 + $0x161] sm:$0x1] %vm534, %v567
      %586 = vst.msk [vmem:[#allocation2 + $0x179] sm:$0x1] %vm534, %v568
      %587 = vst.msk [vmem:[#allocation2 + $0x191] sm:$0x1] %vm534, %v569
      %588 = vst.msk [vmem:[#allocation2 + $0x1a9] sm:$0x1] %vm534, %v570
      %v589 = vld [vmem:[%s428] sm:$0xff]
      %v591 = vcombine.high %v589, %v589
      %593 = vst [vmem:[%s433] sm:$0xf] %v589
      %594 = vst [vmem:[%s433 + $0x8] sm:$0xf] %v591
      %v595 = vld [vmem:[#allocation2] sm:$0xff]
      %v596 = vld [vmem:[#allocation2 + $0x8] sm:$0xff]
      %v597 = vld [vmem:[#allocation2 + $0x18] sm:$0xff]
      %v598 = vld [vmem:[#allocation2 + $0x20] sm:$0xff]
      %v599 = vld [vmem:[#allocation2 + $0x30] sm:$0xff]
      %v600 = vld [vmem:[#allocation2 + $0x38] sm:$0xff]
      %v601 = vld [vmem:[#allocation2 + $0x48] sm:$0xff]
      %v602 = vld [vmem:[#allocation2 + $0x50] sm:$0xff]
      %v603 = vld [vmem:[#allocation2 + $0x60] sm:$0xff]
      %v604 = vld [vmem:[#allocation2 + $0x68] sm:$0xff]
      %v605 = vld [vmem:[#allocation2 + $0x78] sm:$0xff]
      %v606 = vld [vmem:[#allocation2 + $0x80] sm:$0xff]
      %v607 = vld [vmem:[#allocation2 + $0x90] sm:$0xff]
      %v608 = vld [vmem:[#allocation2 + $0x98] sm:$0xff]
      %v609 = vld [vmem:[#allocation2 + $0xa8] sm:$0xff]
      %v610 = vld [vmem:[#allocation2 + $0xb0] sm:$0xff]
      %v611 = vld [vmem:[#allocation2 + $0xc0] sm:$0xff]
      %v612 = vld [vmem:[#allocation2 + $0xc8] sm:$0xff]
      %v613 = vld [vmem:[#allocation2 + $0xd8] sm:$0xff]
      %v614 = vld [vmem:[#allocation2 + $0xe0] sm:$0xff]
      %v615 = vld [vmem:[#allocation2 + $0xf0] sm:$0xff]
      %v616 = vld [vmem:[#allocation2 + $0xf8] sm:$0xff]
      %v617 = vld [vmem:[#allocation2 + $0x108] sm:$0xff]
      %v618 = vld [vmem:[#allocation2 + $0x110] sm:$0xff]
      %v619 = vld [vmem:[#allocation2 + $0x120] sm:$0xff]
      %v620 = vld [vmem:[#allocation2 + $0x128] sm:$0xff]
      %v621 = vld [vmem:[#allocation2 + $0x138] sm:$0xff]
      %v622 = vld [vmem:[#allocation2 + $0x140] sm:$0xff]
      %v623 = vld [vmem:[#allocation2 + $0x150] sm:$0xff]
      %v624 = vld [vmem:[#allocation2 + $0x158] sm:$0xff]
      %v625 = vld [vmem:[#allocation2 + $0x168] sm:$0xff]
      %v626 = vld [vmem:[#allocation2 + $0x170] sm:$0xff]
      %v627 = vld [vmem:[#allocation2 + $0x1] sm:$0xff]
      %v628 = vld [vmem:[#allocation2 + $0x9] sm:$0xff]
      %v629 = vld [vmem:[#allocation2 + $0x19] sm:$0xff]
      %v630 = vld [vmem:[#allocation2 + $0x21] sm:$0xff]
      %v631 = vld [vmem:[#allocation2 + $0x31] sm:$0xff]
      %v632 = vld [vmem:[#allocation2 + $0x39] sm:$0xff]
      %v633 = vld [vmem:[#allocation2 + $0x49] sm:$0xff]
      %v634 = vld [vmem:[#allocation2 + $0x51] sm:$0xff]
      %v635 = vld [vmem:[#allocation2 + $0x61] sm:$0xff]
      %v636 = vld [vmem:[#allocation2 + $0x69] sm:$0xff]
      %v637 = vld [vmem:[#allocation2 + $0x79] sm:$0xff]
      %v638 = vld [vmem:[#allocation2 + $0x81] sm:$0xff]
      %v639 = vld [vmem:[#allocation2 + $0x91] sm:$0xff]
      %v640 = vld [vmem:[#allocation2 + $0x99] sm:$0xff]
      %v641 = vld [vmem:[#allocation2 + $0xa9] sm:$0xff]
      %v642 = vld [vmem:[#allocation2 + $0xb1] sm:$0xff]
      %v643 = vld [vmem:[#allocation2 + $0xc1] sm:$0xff]
      %v644 = vld [vmem:[#allocation2 + $0xc9] sm:$0xff]
      %v645 = vld [vmem:[#allocation2 + $0xd9] sm:$0xff]
      %v646 = vld [vmem:[#allocation2 + $0xe1] sm:$0xff]
      %v647 = vld [vmem:[#allocation2 + $0xf1] sm:$0xff]
      %v648 = vld [vmem:[#allocation2 + $0xf9] sm:$0xff]
      %v649 = vld [vmem:[#allocation2 + $0x109] sm:$0xff]
      %v650 = vld [vmem:[#allocation2 + $0x111] sm:$0xff]
      %v651 = vld [vmem:[#allocation2 + $0x121] sm:$0xff]
      %v652 = vld [vmem:[#allocation2 + $0x129] sm:$0xff]
      %v653 = vld [vmem:[#allocation2 + $0x139] sm:$0xff]
      %v654 = vld [vmem:[#allocation2 + $0x141] sm:$0xff]
      %v655 = vld [vmem:[#allocation2 + $0x151] sm:$0xff]
      %v656 = vld [vmem:[#allocation2 + $0x159] sm:$0xff]
      %v657 = vld [vmem:[#allocation2 + $0x169] sm:$0xff]
      %v658 = vld [vmem:[#allocation2 + $0x171] sm:$0xff]
      %v659 = vld [vmem:[#allocation2 + $0x2] sm:$0xff]
      %v660 = vld [vmem:[#allocation2 + $0xa] sm:$0xff]
      %v661 = vld [vmem:[#allocation2 + $0x1a] sm:$0xff]
      %v662 = vld [vmem:[#allocation2 + $0x22] sm:$0xff]
      %v663 = vld [vmem:[#allocation2 + $0x32] sm:$0xff]
      %v664 = vld [vmem:[#allocation2 + $0x3a] sm:$0xff]
      %v665 = vld [vmem:[#allocation2 + $0x4a] sm:$0xff]
      %v666 = vld [vmem:[#allocation2 + $0x52] sm:$0xff]
      %v667 = vld [vmem:[#allocation2 + $0x62] sm:$0xff]
      %v668 = vld [vmem:[#allocation2 + $0x6a] sm:$0xff]
      %v669 = vld [vmem:[#allocation2 + $0x7a] sm:$0xff]
      %v670 = vld [vmem:[#allocation2 + $0x82] sm:$0xff]
      %v671 = vld [vmem:[#allocation2 + $0x92] sm:$0xff]
      %v672 = vld [vmem:[#allocation2 + $0x9a] sm:$0xff]
      %v673 = vld [vmem:[#allocation2 + $0xaa] sm:$0xff]
      %v674 = vld [vmem:[#allocation2 + $0xb2] sm:$0xff]
      %v675 = vld [vmem:[#allocation2 + $0xc2] sm:$0xff]
      %v676 = vld [vmem:[#allocation2 + $0xca] sm:$0xff]
      %v677 = vld [vmem:[#allocation2 + $0xda] sm:$0xff]
      %v678 = vld [vmem:[#allocation2 + $0xe2] sm:$0xff]
      %v679 = vld [vmem:[#allocation2 + $0xf2] sm:$0xff]
      %v680 = vld [vmem:[#allocation2 + $0xfa] sm:$0xff]
      %v681 = vld [vmem:[#allocation2 + $0x10a] sm:$0xff]
      %v682 = vld [vmem:[#allocation2 + $0x112] sm:$0xff]
      %v683 = vld [vmem:[#allocation2 + $0x122] sm:$0xff]
      %v684 = vld [vmem:[#allocation2 + $0x12a] sm:$0xff]
      %v685 = vld [vmem:[#allocation2 + $0x13a] sm:$0xff]
      %v686 = vld [vmem:[#allocation2 + $0x142] sm:$0xff]
      %v687 = vld [vmem:[#allocation2 + $0x152] sm:$0xff]
      %v688 = vld [vmem:[#allocation2 + $0x15a] sm:$0xff]
      %v689 = vld [vmem:[#allocation2 + $0x16a] sm:$0xff]
      %v690 = vld [vmem:[#allocation2 + $0x172] sm:$0xff]
      %v691 = vld [vmem:[%s466] sm:$0xff]
      %v692 = vld [vmem:[%s466 + $0x8] sm:$0xff]
      %v693 = vld [vmem:[%s466 + $0x18] sm:$0xff]
      %v694 = vld [vmem:[%s466 + $0x20] sm:$0xff]
      %v695 = vld [vmem:[%s466 + $0x30] sm:$0xff]
      %v696 = vld [vmem:[%s466 + $0x38] sm:$0xff]
      %v697 = vld [vmem:[%s466 + $0x48] sm:$0xff]
      %v698 = vld [vmem:[%s466 + $0x50] sm:$0xff]
      %v699 = vld [vmem:[%s466 + $0x60] sm:$0xff]
      %v700 = vld [vmem:[%s466 + $0x68] sm:$0xff]
      %v701 = vld [vmem:[%s466 + $0x78] sm:$0xff]
      %v702 = vld [vmem:[%s466 + $0x80] sm:$0xff]
      %v703 = vld [vmem:[%s466 + $0x90] sm:$0xff]
      %v704 = vld [vmem:[%s466 + $0x98] sm:$0xff]
      %v705 = vld [vmem:[%s466 + $0xa8] sm:$0xff]
      %v706 = vld [vmem:[%s466 + $0xb0] sm:$0xff]
      %v707 = vld [vmem:[%s466 + $0xc0] sm:$0xff]
      %v708 = vld [vmem:[%s466 + $0xc8] sm:$0xff]
      %v709 = vld [vmem:[%s466 + $0xd8] sm:$0xff]
      %v710 = vld [vmem:[%s466 + $0xe0] sm:$0xff]
      %v711 = vld [vmem:[%s466 + $0xf0] sm:$0xff]
      %v712 = vld [vmem:[%s466 + $0xf8] sm:$0xff]
      %v713 = vld [vmem:[%s466 + $0x108] sm:$0xff]
      %v714 = vld [vmem:[%s466 + $0x110] sm:$0xff]
      %v715 = vld [vmem:[%s466 + $0x120] sm:$0xff]
      %v716 = vld [vmem:[%s466 + $0x128] sm:$0xff]
      %v717 = vld [vmem:[%s466 + $0x138] sm:$0xff]
      %v718 = vld [vmem:[%s466 + $0x140] sm:$0xff]
      %v719 = vld [vmem:[%s466 + $0x150] sm:$0xff]
      %v720 = vld [vmem:[%s466 + $0x158] sm:$0xff]
      %v721 = vld [vmem:[%s466 + $0x168] sm:$0xff]
      %v722 = vld [vmem:[%s466 + $0x170] sm:$0xff]
      %v723 = vld [vmem:[%s466 + $0x1] sm:$0xff]
      %v724 = vld [vmem:[%s466 + $0x9] sm:$0xff]
      %v725 = vld [vmem:[%s466 + $0x19] sm:$0xff]
      %v726 = vld [vmem:[%s466 + $0x21] sm:$0xff]
      %v727 = vld [vmem:[%s466 + $0x31] sm:$0xff]
      %v728 = vld [vmem:[%s466 + $0x39] sm:$0xff]
      %v729 = vld [vmem:[%s466 + $0x49] sm:$0xff]
      %v730 = vld [vmem:[%s466 + $0x51] sm:$0xff]
      %v731 = vld [vmem:[%s466 + $0x61] sm:$0xff]
      %v732 = vld [vmem:[%s466 + $0x69] sm:$0xff]
      %v733 = vld [vmem:[%s466 + $0x79] sm:$0xff]
      %v734 = vld [vmem:[%s466 + $0x81] sm:$0xff]
      %v735 = vld [vmem:[%s466 + $0x91] sm:$0xff]
      %v736 = vld [vmem:[%s466 + $0x99] sm:$0xff]
      %v737 = vld [vmem:[%s466 + $0xa9] sm:$0xff]
      %v738 = vld [vmem:[%s466 + $0xb1] sm:$0xff]
      %v739 = vld [vmem:[%s466 + $0xc1] sm:$0xff]
      %v740 = vld [vmem:[%s466 + $0xc9] sm:$0xff]
      %v741 = vld [vmem:[%s466 + $0xd9] sm:$0xff]
      %v742 = vld [vmem:[%s466 + $0xe1] sm:$0xff]
      %v743 = vld [vmem:[%s466 + $0xf1] sm:$0xff]
      %v744 = vld [vmem:[%s466 + $0xf9] sm:$0xff]
      %v745 = vld [vmem:[%s466 + $0x109] sm:$0xff]
      %v746 = vld [vmem:[%s466 + $0x111] sm:$0xff]
      %v747 = vld [vmem:[%s466 + $0x121] sm:$0xff]
      %v748 = vld [vmem:[%s466 + $0x129] sm:$0xff]
      %v749 = vld [vmem:[%s466 + $0x139] sm:$0xff]
      %v750 = vld [vmem:[%s466 + $0x141] sm:$0xff]
      %v751 = vld [vmem:[%s466 + $0x151] sm:$0xff]
      %v752 = vld [vmem:[%s466 + $0x159] sm:$0xff]
      %v753 = vld [vmem:[%s466 + $0x169] sm:$0xff]
      %v754 = vld [vmem:[%s466 + $0x171] sm:$0xff]
      %v755 = vld [vmem:[%s466 + $0x2] sm:$0xff]
      %v756 = vld [vmem:[%s466 + $0xa] sm:$0xff]
      %v757 = vld [vmem:[%s466 + $0x1a] sm:$0xff]
      %v758 = vld [vmem:[%s466 + $0x22] sm:$0xff]
      %v759 = vld [vmem:[%s466 + $0x32] sm:$0xff]
      %v760 = vld [vmem:[%s466 + $0x3a] sm:$0xff]
      %v761 = vld [vmem:[%s466 + $0x4a] sm:$0xff]
      %v762 = vld [vmem:[%s466 + $0x52] sm:$0xff]
      %v763 = vld [vmem:[%s466 + $0x62] sm:$0xff]
      %v764 = vld [vmem:[%s466 + $0x6a] sm:$0xff]
      %v765 = vld [vmem:[%s466 + $0x7a] sm:$0xff]
      %v766 = vld [vmem:[%s466 + $0x82] sm:$0xff]
      %v767 = vld [vmem:[%s466 + $0x92] sm:$0xff]
      %v768 = vld [vmem:[%s466 + $0x9a] sm:$0xff]
      %v769 = vld [vmem:[%s466 + $0xaa] sm:$0xff]
      %v770 = vld [vmem:[%s466 + $0xb2] sm:$0xff]
      %v771 = vld [vmem:[%s466 + $0xc2] sm:$0xff]
      %v772 = vld [vmem:[%s466 + $0xca] sm:$0xff]
      %v773 = vld [vmem:[%s466 + $0xda] sm:$0xff]
      %v774 = vld [vmem:[%s466 + $0xe2] sm:$0xff]
      %v775 = vld [vmem:[%s466 + $0xf2] sm:$0xff]
      %v776 = vld [vmem:[%s466 + $0xfa] sm:$0xff]
      %v777 = vld [vmem:[%s466 + $0x10a] sm:$0xff]
      %v778 = vld [vmem:[%s466 + $0x112] sm:$0xff]
      %v779 = vld [vmem:[%s466 + $0x122] sm:$0xff]
      %v780 = vld [vmem:[%s466 + $0x12a] sm:$0xff]
      %v781 = vld [vmem:[%s466 + $0x13a] sm:$0xff]
      %v782 = vld [vmem:[%s466 + $0x142] sm:$0xff]
      %v783 = vld [vmem:[%s466 + $0x152] sm:$0xff]
      %v784 = vld [vmem:[%s466 + $0x15a] sm:$0xff]
      %v785 = vld [vmem:[%s466 + $0x16a] sm:$0xff]
      %v786 = vld [vmem:[%s466 + $0x172] sm:$0xff]
      %v787 = vld [vmem:[%s500] sm:$0xff]
      %v788 = vld [vmem:[%s500 + $0x8] sm:$0xff]
      %v789 = vld [vmem:[%s500 + $0x18] sm:$0xff]
      %v790 = vld [vmem:[%s500 + $0x20] sm:$0xff]
      %v791 = vld [vmem:[%s500 + $0x30] sm:$0xff]
      %v792 = vld [vmem:[%s500 + $0x38] sm:$0xff]
      %v793 = vld [vmem:[%s500 + $0x48] sm:$0xff]
      %v794 = vld [vmem:[%s500 + $0x50] sm:$0xff]
      %v795 = vld [vmem:[%s500 + $0x60] sm:$0xff]
      %v796 = vld [vmem:[%s500 + $0x68] sm:$0xff]
      %v797 = vld [vmem:[%s500 + $0x78] sm:$0xff]
      %v798 = vld [vmem:[%s500 + $0x80] sm:$0xff]
      %v799 = vld [vmem:[%s500 + $0x90] sm:$0xff]
      %v800 = vld [vmem:[%s500 + $0x98] sm:$0xff]
      %v801 = vld [vmem:[%s500 + $0xa8] sm:$0xff]
      %v802 = vld [vmem:[%s500 + $0xb0] sm:$0xff]
      %v803 = vld [vmem:[%s500 + $0xc0] sm:$0xff]
      %v804 = vld [vmem:[%s500 + $0xc8] sm:$0xff]
      %v805 = vld [vmem:[%s500 + $0xd8] sm:$0xff]
      %v806 = vld [vmem:[%s500 + $0xe0] sm:$0xff]
      %v807 = vld [vmem:[%s500 + $0xf0] sm:$0xff]
      %v808 = vld [vmem:[%s500 + $0xf8] sm:$0xff]
      %v809 = vld [vmem:[%s500 + $0x108] sm:$0xff]
      %v810 = vld [vmem:[%s500 + $0x110] sm:$0xff]
      %v811 = vld [vmem:[%s500 + $0x120] sm:$0xff]
      %v812 = vld [vmem:[%s500 + $0x128] sm:$0xff]
      %v813 = vld [vmem:[%s500 + $0x138] sm:$0xff]
      %v814 = vld [vmem:[%s500 + $0x140] sm:$0xff]
      %v815 = vld [vmem:[%s500 + $0x150] sm:$0xff]
      %v816 = vld [vmem:[%s500 + $0x158] sm:$0xff]
      %v817 = vld [vmem:[%s500 + $0x168] sm:$0xff]
      %v818 = vld [vmem:[%s500 + $0x170] sm:$0xff]
      %v819 = vld [vmem:[%s500 + $0x1] sm:$0xff]
      %v820 = vld [vmem:[%s500 + $0x9] sm:$0xff]
      %v821 = vld [vmem:[%s500 + $0x19] sm:$0xff]
      %v822 = vld [vmem:[%s500 + $0x21] sm:$0xff]
      %v823 = vld [vmem:[%s500 + $0x31] sm:$0xff]
      %v824 = vld [vmem:[%s500 + $0x39] sm:$0xff]
      %v825 = vld [vmem:[%s500 + $0x49] sm:$0xff]
      %v826 = vld [vmem:[%s500 + $0x51] sm:$0xff]
      %v827 = vld [vmem:[%s500 + $0x61] sm:$0xff]
      %v828 = vld [vmem:[%s500 + $0x69] sm:$0xff]
      %v829 = vld [vmem:[%s500 + $0x79] sm:$0xff]
      %v830 = vld [vmem:[%s500 + $0x81] sm:$0xff]
      %v831 = vld [vmem:[%s500 + $0x91] sm:$0xff]
      %v832 = vld [vmem:[%s500 + $0x99] sm:$0xff]
      %v833 = vld [vmem:[%s500 + $0xa9] sm:$0xff]
      %v834 = vld [vmem:[%s500 + $0xb1] sm:$0xff]
      %v835 = vld [vmem:[%s500 + $0xc1] sm:$0xff]
      %v836 = vld [vmem:[%s500 + $0xc9] sm:$0xff]
      %v837 = vld [vmem:[%s500 + $0xd9] sm:$0xff]
      %v838 = vld [vmem:[%s500 + $0xe1] sm:$0xff]
      %v839 = vld [vmem:[%s500 + $0xf1] sm:$0xff]
      %v840 = vld [vmem:[%s500 + $0xf9] sm:$0xff]
      %v841 = vld [vmem:[%s500 + $0x109] sm:$0xff]
      %v842 = vld [vmem:[%s500 + $0x111] sm:$0xff]
      %v843 = vld [vmem:[%s500 + $0x121] sm:$0xff]
      %v844 = vld [vmem:[%s500 + $0x129] sm:$0xff]
      %v845 = vld [vmem:[%s500 + $0x139] sm:$0xff]
      %v846 = vld [vmem:[%s500 + $0x141] sm:$0xff]
      %v847 = vld [vmem:[%s500 + $0x151] sm:$0xff]
      %v848 = vld [vmem:[%s500 + $0x159] sm:$0xff]
      %v849 = vld [vmem:[%s500 + $0x169] sm:$0xff]
      %v850 = vld [vmem:[%s500 + $0x171] sm:$0xff]
      %v851 = vld [vmem:[%s500 + $0x2] sm:$0xff]
      %v852 = vld [vmem:[%s500 + $0xa] sm:$0xff]
      %v853 = vld [vmem:[%s500 + $0x1a] sm:$0xff]
      %v854 = vld [vmem:[%s500 + $0x22] sm:$0xff]
      %v855 = vld [vmem:[%s500 + $0x32] sm:$0xff]
      %v856 = vld [vmem:[%s500 + $0x3a] sm:$0xff]
      %v857 = vld [vmem:[%s500 + $0x4a] sm:$0xff]
      %v858 = vld [vmem:[%s500 + $0x52] sm:$0xff]
      %v859 = vld [vmem:[%s500 + $0x62] sm:$0xff]
      %v860 = vld [vmem:[%s500 + $0x6a] sm:$0xff]
      %v861 = vld [vmem:[%s500 + $0x7a] sm:$0xff]
      %v862 = vld [vmem:[%s500 + $0x82] sm:$0xff]
      %v863 = vld [vmem:[%s500 + $0x92] sm:$0xff]
      %v864 = vld [vmem:[%s500 + $0x9a] sm:$0xff]
      %v865 = vld [vmem:[%s500 + $0xaa] sm:$0xff]
      %v866 = vld [vmem:[%s500 + $0xb2] sm:$0xff]
      %v867 = vld [vmem:[%s500 + $0xc2] sm:$0xff]
      %v868 = vld [vmem:[%s500 + $0xca] sm:$0xff]
      %v869 = vld [vmem:[%s500 + $0xda] sm:$0xff]
      %v870 = vld [vmem:[%s500 + $0xe2] sm:$0xff]
      %v871 = vld [vmem:[%s500 + $0xf2] sm:$0xff]
      %v872 = vld [vmem:[%s500 + $0xfa] sm:$0xff]
      %v873 = vld [vmem:[%s500 + $0x10a] sm:$0xff]
      %v874 = vld [vmem:[%s500 + $0x112] sm:$0xff]
      %v875 = vld [vmem:[%s500 + $0x122] sm:$0xff]
      %v876 = vld [vmem:[%s500 + $0x12a] sm:$0xff]
      %v877 = vld [vmem:[%s500 + $0x13a] sm:$0xff]
      %v878 = vld [vmem:[%s500 + $0x142] sm:$0xff]
      %v879 = vld [vmem:[%s500 + $0x152] sm:$0xff]
      %v880 = vld [vmem:[%s500 + $0x15a] sm:$0xff]
      %v881 = vld [vmem:[%s500 + $0x16a] sm:$0xff]
      %v882 = vld [vmem:[%s500 + $0x172] sm:$0xff]
      %915 = vrot.lane.b32.xlu0 %v627, 4
      %v916 = vpop.permute.xlu0 %915
      %917 = vrot.lane.b32.xlu0 %v628, 4
      %v918 = vpop.permute.xlu0 %917
      %919 = vrot.lane.b32.xlu0 %v629, 4
      %v920 = vpop.permute.xlu0 %919
      %921 = vrot.lane.b32.xlu0 %v630, 4
      %v922 = vpop.permute.xlu0 %921
      %923 = vrot.lane.b32.xlu0 %v631, 4
      %v924 = vpop.permute.xlu0 %923
      %925 = vrot.lane.b32.xlu0 %v632, 4
      %v926 = vpop.permute.xlu0 %925
      %927 = vrot.lane.b32.xlu0 %v633, 4
      %v928 = vpop.permute.xlu0 %927
      %929 = vrot.lane.b32.xlu0 %v634, 4
      %v930 = vpop.permute.xlu0 %929
      %931 = vrot.lane.b32.xlu0 %v635, 4
      %v932 = vpop.permute.xlu0 %931
      %933 = vrot.lane.b32.xlu0 %v636, 4
      %v934 = vpop.permute.xlu0 %933
      %935 = vrot.lane.b32.xlu0 %v637, 4
      %v936 = vpop.permute.xlu0 %935
      %937 = vrot.lane.b32.xlu0 %v638, 4
      %v938 = vpop.permute.xlu0 %937
      %939 = vrot.lane.b32.xlu0 %v639, 4
      %v940 = vpop.permute.xlu0 %939
      %941 = vrot.lane.b32.xlu0 %v640, 4
      %v942 = vpop.permute.xlu0 %941
      %943 = vrot.lane.b32.xlu0 %v641, 4
      %v944 = vpop.permute.xlu0 %943
      %945 = vrot.lane.b32.xlu0 %v642, 4
      %v946 = vpop.permute.xlu0 %945
      %947 = vrot.lane.b32.xlu0 %v643, 4
      %v948 = vpop.permute.xlu0 %947
      %949 = vrot.lane.b32.xlu0 %v644, 4
      %v950 = vpop.permute.xlu0 %949
      %951 = vrot.lane.b32.xlu0 %v645, 4
      %v952 = vpop.permute.xlu0 %951
      %953 = vrot.lane.b32.xlu0 %v646, 4
      %v954 = vpop.permute.xlu0 %953
      %955 = vrot.lane.b32.xlu0 %v647, 4
      %v956 = vpop.permute.xlu0 %955
      %957 = vrot.lane.b32.xlu0 %v648, 4
      %v958 = vpop.permute.xlu0 %957
      %959 = vrot.lane.b32.xlu0 %v649, 4
      %v960 = vpop.permute.xlu0 %959
      %961 = vrot.lane.b32.xlu0 %v650, 4
      %v962 = vpop.permute.xlu0 %961
      %963 = vrot.lane.b32.xlu0 %v651, 4
      %v964 = vpop.permute.xlu0 %963
      %965 = vrot.lane.b32.xlu0 %v652, 4
      %v966 = vpop.permute.xlu0 %965
      %967 = vrot.lane.b32.xlu0 %v653, 4
      %v968 = vpop.permute.xlu0 %967
      %969 = vrot.lane.b32.xlu0 %v654, 4
      %v970 = vpop.permute.xlu0 %969
      %971 = vrot.lane.b32.xlu0 %v655, 4
      %v972 = vpop.permute.xlu0 %971
      %973 = vrot.lane.b32.xlu0 %v656, 4
      %v974 = vpop.permute.xlu0 %973
      %975 = vrot.lane.b32.xlu0 %v657, 4
      %v976 = vpop.permute.xlu0 %975
      %977 = vrot.lane.b32.xlu0 %v658, 4
      %v978 = vpop.permute.xlu0 %977
      %1043 = vrot.lane.b32.xlu0 %v659, 8
      %v1044 = vpop.permute.xlu0 %1043
      %1045 = vrot.lane.b32.xlu0 %v660, 8
      %v1046 = vpop.permute.xlu0 %1045
      %1047 = vrot.lane.b32.xlu0 %v661, 8
      %v1048 = vpop.permute.xlu0 %1047
      %1049 = vrot.lane.b32.xlu0 %v662, 8
      %v1050 = vpop.permute.xlu0 %1049
      %1051 = vrot.lane.b32.xlu0 %v663, 8
      %v1052 = vpop.permute.xlu0 %1051
      %1053 = vrot.lane.b32.xlu0 %v664, 8
      %v1054 = vpop.permute.xlu0 %1053
      %1055 = vrot.lane.b32.xlu0 %v665, 8
      %v1056 = vpop.permute.xlu0 %1055
      %1057 = vrot.lane.b32.xlu0 %v666, 8
      %v1058 = vpop.permute.xlu0 %1057
      %1059 = vrot.lane.b32.xlu0 %v667, 8
      %v1060 = vpop.permute.xlu0 %1059
      %1061 = vrot.lane.b32.xlu0 %v668, 8
      %v1062 = vpop.permute.xlu0 %1061
      %1063 = vrot.lane.b32.xlu0 %v669, 8
      %v1064 = vpop.permute.xlu0 %1063
      %1065 = vrot.lane.b32.xlu0 %v670, 8
      %v1066 = vpop.permute.xlu0 %1065
      %1067 = vrot.lane.b32.xlu0 %v671, 8
      %v1068 = vpop.permute.xlu0 %1067
      %1069 = vrot.lane.b32.xlu0 %v672, 8
      %v1070 = vpop.permute.xlu0 %1069
      %1071 = vrot.lane.b32.xlu0 %v673, 8
      %v1072 = vpop.permute.xlu0 %1071
      %1073 = vrot.lane.b32.xlu0 %v674, 8
      %v1074 = vpop.permute.xlu0 %1073
      %1075 = vrot.lane.b32.xlu0 %v675, 8
      %v1076 = vpop.permute.xlu0 %1075
      %1077 = vrot.lane.b32.xlu0 %v676, 8
      %v1078 = vpop.permute.xlu0 %1077
      %1079 = vrot.lane.b32.xlu0 %v677, 8
      %v1080 = vpop.permute.xlu0 %1079
      %1081 = vrot.lane.b32.xlu0 %v678, 8
      %v1082 = vpop.permute.xlu0 %1081
      %1083 = vrot.lane.b32.xlu0 %v679, 8
      %v1084 = vpop.permute.xlu0 %1083
      %1085 = vrot.lane.b32.xlu0 %v680, 8
      %v1086 = vpop.permute.xlu0 %1085
      %1087 = vrot.lane.b32.xlu0 %v681, 8
      %v1088 = vpop.permute.xlu0 %1087
      %1089 = vrot.lane.b32.xlu0 %v682, 8
      %v1090 = vpop.permute.xlu0 %1089
      %1091 = vrot.lane.b32.xlu0 %v683, 8
      %v1092 = vpop.permute.xlu0 %1091
      %1093 = vrot.lane.b32.xlu0 %v684, 8
      %v1094 = vpop.permute.xlu0 %1093
      %1095 = vrot.lane.b32.xlu0 %v685, 8
      %v1096 = vpop.permute.xlu0 %1095
      %1097 = vrot.lane.b32.xlu0 %v686, 8
      %v1098 = vpop.permute.xlu0 %1097
      %1099 = vrot.lane.b32.xlu0 %v687, 8
      %v1100 = vpop.permute.xlu0 %1099
      %1101 = vrot.lane.b32.xlu0 %v688, 8
      %v1102 = vpop.permute.xlu0 %1101
      %1103 = vrot.lane.b32.xlu0 %v689, 8
      %v1104 = vpop.permute.xlu0 %1103
      %1105 = vrot.lane.b32.xlu0 %v690, 8
      %v1106 = vpop.permute.xlu0 %1105
      %1171 = vrot.lane.b32.xlu0 %v691, 12
      %v1172 = vpop.permute.xlu0 %1171
      %1173 = vrot.lane.b32.xlu0 %v692, 12
      %v1174 = vpop.permute.xlu0 %1173
      %1175 = vrot.lane.b32.xlu0 %v693, 12
      %v1176 = vpop.permute.xlu0 %1175
      %1177 = vrot.lane.b32.xlu0 %v694, 12
      %v1178 = vpop.permute.xlu0 %1177
      %1179 = vrot.lane.b32.xlu0 %v695, 12
      %v1180 = vpop.permute.xlu0 %1179
      %1181 = vrot.lane.b32.xlu0 %v696, 12
      %v1182 = vpop.permute.xlu0 %1181
      %1183 = vrot.lane.b32.xlu0 %v697, 12
      %v1184 = vpop.permute.xlu0 %1183
      %1185 = vrot.lane.b32.xlu0 %v698, 12
      %v1186 = vpop.permute.xlu0 %1185
      %1187 = vrot.lane.b32.xlu0 %v699, 12
      %v1188 = vpop.permute.xlu0 %1187
      %1189 = vrot.lane.b32.xlu0 %v700, 12
      %v1190 = vpop.permute.xlu0 %1189
      %1191 = vrot.lane.b32.xlu0 %v701, 12
      %v1192 = vpop.permute.xlu0 %1191
      %1193 = vrot.lane.b32.xlu0 %v702, 12
      %v1194 = vpop.permute.xlu0 %1193
      %1195 = vrot.lane.b32.xlu0 %v703, 12
      %v1196 = vpop.permute.xlu0 %1195
      %1197 = vrot.lane.b32.xlu0 %v704, 12
      %v1198 = vpop.permute.xlu0 %1197
      %1199 = vrot.lane.b32.xlu0 %v705, 12
      %v1200 = vpop.permute.xlu0 %1199
      %1201 = vrot.lane.b32.xlu0 %v706, 12
      %v1202 = vpop.permute.xlu0 %1201
      %1203 = vrot.lane.b32.xlu0 %v707, 12
      %v1204 = vpop.permute.xlu0 %1203
      %1205 = vrot.lane.b32.xlu0 %v708, 12
      %v1206 = vpop.permute.xlu0 %1205
      %1207 = vrot.lane.b32.xlu0 %v709, 12
      %v1208 = vpop.permute.xlu0 %1207
      %1209 = vrot.lane.b32.xlu0 %v710, 12
      %v1210 = vpop.permute.xlu0 %1209
      %1211 = vrot.lane.b32.xlu0 %v711, 12
      %v1212 = vpop.permute.xlu0 %1211
      %1213 = vrot.lane.b32.xlu0 %v712, 12
      %v1214 = vpop.permute.xlu0 %1213
      %1215 = vrot.lane.b32.xlu0 %v713, 12
      %v1216 = vpop.permute.xlu0 %1215
      %1217 = vrot.lane.b32.xlu0 %v714, 12
      %v1218 = vpop.permute.xlu0 %1217
      %1219 = vrot.lane.b32.xlu0 %v715, 12
      %v1220 = vpop.permute.xlu0 %1219
      %1221 = vrot.lane.b32.xlu0 %v716, 12
      %v1222 = vpop.permute.xlu0 %1221
      %1223 = vrot.lane.b32.xlu0 %v717, 12
      %v1224 = vpop.permute.xlu0 %1223
      %1225 = vrot.lane.b32.xlu0 %v718, 12
      %v1226 = vpop.permute.xlu0 %1225
      %1227 = vrot.lane.b32.xlu0 %v719, 12
      %v1228 = vpop.permute.xlu0 %1227
      %1229 = vrot.lane.b32.xlu0 %v720, 12
      %v1230 = vpop.permute.xlu0 %1229
      %1231 = vrot.lane.b32.xlu0 %v721, 12
      %v1232 = vpop.permute.xlu0 %1231
      %1233 = vrot.lane.b32.xlu0 %v722, 12
      %v1234 = vpop.permute.xlu0 %1233
      %1299 = vrot.lane.b32.xlu0 %v723, 16
      %v1300 = vpop.permute.xlu0 %1299
      %1301 = vrot.lane.b32.xlu0 %v724, 16
      %v1302 = vpop.permute.xlu0 %1301
      %1303 = vrot.lane.b32.xlu0 %v725, 16
      %v1304 = vpop.permute.xlu0 %1303
      %1305 = vrot.lane.b32.xlu0 %v726, 16
      %v1306 = vpop.permute.xlu0 %1305
      %1307 = vrot.lane.b32.xlu0 %v727, 16
      %v1308 = vpop.permute.xlu0 %1307
      %1309 = vrot.lane.b32.xlu0 %v728, 16
      %v1310 = vpop.permute.xlu0 %1309
      %1311 = vrot.lane.b32.xlu0 %v729, 16
      %v1312 = vpop.permute.xlu0 %1311
      %1313 = vrot.lane.b32.xlu0 %v730, 16
      %v1314 = vpop.permute.xlu0 %1313
      %1315 = vrot.lane.b32.xlu0 %v731, 16
      %v1316 = vpop.permute.xlu0 %1315
      %1317 = vrot.lane.b32.xlu0 %v732, 16
      %v1318 = vpop.permute.xlu0 %1317
      %1319 = vrot.lane.b32.xlu0 %v733, 16
      %v1320 = vpop.permute.xlu0 %1319
      %1321 = vrot.lane.b32.xlu0 %v734, 16
      %v1322 = vpop.permute.xlu0 %1321
      %1323 = vrot.lane.b32.xlu0 %v735, 16
      %v1324 = vpop.permute.xlu0 %1323
      %1325 = vrot.lane.b32.xlu0 %v736, 16
      %v1326 = vpop.permute.xlu0 %1325
      %1327 = vrot.lane.b32.xlu0 %v737, 16
      %v1328 = vpop.permute.xlu0 %1327
      %1329 = vrot.lane.b32.xlu0 %v738, 16
      %v1330 = vpop.permute.xlu0 %1329
      %1331 = vrot.lane.b32.xlu0 %v739, 16
      %v1332 = vpop.permute.xlu0 %1331
      %1333 = vrot.lane.b32.xlu0 %v740, 16
      %v1334 = vpop.permute.xlu0 %1333
      %1335 = vrot.lane.b32.xlu0 %v741, 16
      %v1336 = vpop.permute.xlu0 %1335
      %1337 = vrot.lane.b32.xlu0 %v742, 16
      %v1338 = vpop.permute.xlu0 %1337
      %1339 = vrot.lane.b32.xlu0 %v743, 16
      %v1340 = vpop.permute.xlu0 %1339
      %1341 = vrot.lane.b32.xlu0 %v744, 16
      %v1342 = vpop.permute.xlu0 %1341
      %1343 = vrot.lane.b32.xlu0 %v745, 16
      %v1344 = vpop.permute.xlu0 %1343
      %1345 = vrot.lane.b32.xlu0 %v746, 16
      %v1346 = vpop.permute.xlu0 %1345
      %1347 = vrot.lane.b32.xlu0 %v747, 16
      %v1348 = vpop.permute.xlu0 %1347
      %1349 = vrot.lane.b32.xlu0 %v748, 16
      %v1350 = vpop.permute.xlu0 %1349
      %1351 = vrot.lane.b32.xlu0 %v749, 16
      %v1352 = vpop.permute.xlu0 %1351
      %1353 = vrot.lane.b32.xlu0 %v750, 16
      %v1354 = vpop.permute.xlu0 %1353
      %1355 = vrot.lane.b32.xlu0 %v751, 16
      %v1356 = vpop.permute.xlu0 %1355
      %1357 = vrot.lane.b32.xlu0 %v752, 16
      %v1358 = vpop.permute.xlu0 %1357
      %1359 = vrot.lane.b32.xlu0 %v753, 16
      %v1360 = vpop.permute.xlu0 %1359
      %1361 = vrot.lane.b32.xlu0 %v754, 16
      %v1362 = vpop.permute.xlu0 %1361
      %1427 = vrot.lane.b32.xlu0 %v755, 20
      %v1428 = vpop.permute.xlu0 %1427
      %1429 = vrot.lane.b32.xlu0 %v756, 20
      %v1430 = vpop.permute.xlu0 %1429
      %1431 = vrot.lane.b32.xlu0 %v757, 20
      %v1432 = vpop.permute.xlu0 %1431
      %1433 = vrot.lane.b32.xlu0 %v758, 20
      %v1434 = vpop.permute.xlu0 %1433
      %1435 = vrot.lane.b32.xlu0 %v759, 20
      %v1436 = vpop.permute.xlu0 %1435
      %1437 = vrot.lane.b32.xlu0 %v760, 20
      %v1438 = vpop.permute.xlu0 %1437
      %1439 = vrot.lane.b32.xlu0 %v761, 20
      %v1440 = vpop.permute.xlu0 %1439
      %1441 = vrot.lane.b32.xlu0 %v762, 20
      %v1442 = vpop.permute.xlu0 %1441
      %1443 = vrot.lane.b32.xlu0 %v763, 20
      %v1444 = vpop.permute.xlu0 %1443
      %1445 = vrot.lane.b32.xlu0 %v764, 20
      %v1446 = vpop.permute.xlu0 %1445
      %1447 = vrot.lane.b32.xlu0 %v765, 20
      %v1448 = vpop.permute.xlu0 %1447
      %1449 = vrot.lane.b32.xlu0 %v766, 20
      %v1450 = vpop.permute.xlu0 %1449
      %1451 = vrot.lane.b32.xlu0 %v767, 20
      %v1452 = vpop.permute.xlu0 %1451
      %1453 = vrot.lane.b32.xlu0 %v768, 20
      %v1454 = vpop.permute.xlu0 %1453
      %1455 = vrot.lane.b32.xlu0 %v769, 20
      %v1456 = vpop.permute.xlu0 %1455
      %1457 = vrot.lane.b32.xlu0 %v770, 20
      %v1458 = vpop.permute.xlu0 %1457
      %1459 = vrot.lane.b32.xlu0 %v771, 20
      %v1460 = vpop.permute.xlu0 %1459
      %1461 = vrot.lane.b32.xlu0 %v772, 20
      %v1462 = vpop.permute.xlu0 %1461
      %1463 = vrot.lane.b32.xlu0 %v773, 20
      %v1464 = vpop.permute.xlu0 %1463
      %1465 = vrot.lane.b32.xlu0 %v774, 20
      %v1466 = vpop.permute.xlu0 %1465
      %1467 = vrot.lane.b32.xlu0 %v775, 20
      %v1468 = vpop.permute.xlu0 %1467
      %1469 = vrot.lane.b32.xlu0 %v776, 20
      %v1470 = vpop.permute.xlu0 %1469
      %1471 = vrot.lane.b32.xlu0 %v777, 20
      %v1472 = vpop.permute.xlu0 %1471
      %1473 = vrot.lane.b32.xlu0 %v778, 20
      %v1474 = vpop.permute.xlu0 %1473
      %1475 = vrot.lane.b32.xlu0 %v779, 20
      %v1476 = vpop.permute.xlu0 %1475
      %1477 = vrot.lane.b32.xlu0 %v780, 20
      %v1478 = vpop.permute.xlu0 %1477
      %1479 = vrot.lane.b32.xlu0 %v781, 20
      %v1480 = vpop.permute.xlu0 %1479
      %1481 = vrot.lane.b32.xlu0 %v782, 20
      %v1482 = vpop.permute.xlu0 %1481
      %1483 = vrot.lane.b32.xlu0 %v783, 20
      %v1484 = vpop.permute.xlu0 %1483
      %1485 = vrot.lane.b32.xlu0 %v784, 20
      %v1486 = vpop.permute.xlu0 %1485
      %1487 = vrot.lane.b32.xlu0 %v785, 20
      %v1488 = vpop.permute.xlu0 %1487
      %1489 = vrot.lane.b32.xlu0 %v786, 20
      %v1490 = vpop.permute.xlu0 %1489
      %1555 = vrot.lane.b32.xlu0 %v787, 24
      %v1556 = vpop.permute.xlu0 %1555
      %1557 = vrot.lane.b32.xlu0 %v788, 24
      %v1558 = vpop.permute.xlu0 %1557
      %1559 = vrot.lane.b32.xlu0 %v789, 24
      %v1560 = vpop.permute.xlu0 %1559
      %1561 = vrot.lane.b32.xlu0 %v790, 24
      %v1562 = vpop.permute.xlu0 %1561
      %1563 = vrot.lane.b32.xlu0 %v791, 24
      %v1564 = vpop.permute.xlu0 %1563
      %1565 = vrot.lane.b32.xlu0 %v792, 24
      %v1566 = vpop.permute.xlu0 %1565
      %1567 = vrot.lane.b32.xlu0 %v793, 24
      %v1568 = vpop.permute.xlu0 %1567
      %1569 = vrot.lane.b32.xlu0 %v794, 24
      %v1570 = vpop.permute.xlu0 %1569
      %1571 = vrot.lane.b32.xlu0 %v795, 24
      %v1572 = vpop.permute.xlu0 %1571
      %1573 = vrot.lane.b32.xlu0 %v796, 24
      %v1574 = vpop.permute.xlu0 %1573
      %1575 = vrot.lane.b32.xlu0 %v797, 24
      %v1576 = vpop.permute.xlu0 %1575
      %1577 = vrot.lane.b32.xlu0 %v798, 24
      %v1578 = vpop.permute.xlu0 %1577
      %1579 = vrot.lane.b32.xlu0 %v799, 24
      %v1580 = vpop.permute.xlu0 %1579
      %1581 = vrot.lane.b32.xlu0 %v800, 24
      %v1582 = vpop.permute.xlu0 %1581
      %1583 = vrot.lane.b32.xlu0 %v801, 24
      %v1584 = vpop.permute.xlu0 %1583
      %1585 = vrot.lane.b32.xlu0 %v802, 24
      %v1586 = vpop.permute.xlu0 %1585
      %1587 = vrot.lane.b32.xlu0 %v803, 24
      %v1588 = vpop.permute.xlu0 %1587
      %1589 = vrot.lane.b32.xlu0 %v804, 24
      %v1590 = vpop.permute.xlu0 %1589
      %1591 = vrot.lane.b32.xlu0 %v805, 24
      %v1592 = vpop.permute.xlu0 %1591
      %1593 = vrot.lane.b32.xlu0 %v806, 24
      %v1594 = vpop.permute.xlu0 %1593
      %1595 = vrot.lane.b32.xlu0 %v807, 24
      %v1596 = vpop.permute.xlu0 %1595
      %1597 = vrot.lane.b32.xlu0 %v808, 24
      %v1598 = vpop.permute.xlu0 %1597
      %1599 = vrot.lane.b32.xlu0 %v809, 24
      %v1600 = vpop.permute.xlu0 %1599
      %1601 = vrot.lane.b32.xlu0 %v810, 24
      %v1602 = vpop.permute.xlu0 %1601
      %1603 = vrot.lane.b32.xlu0 %v811, 24
      %v1604 = vpop.permute.xlu0 %1603
      %1605 = vrot.lane.b32.xlu0 %v812, 24
      %v1606 = vpop.permute.xlu0 %1605
      %1607 = vrot.lane.b32.xlu0 %v813, 24
      %v1608 = vpop.permute.xlu0 %1607
      %1609 = vrot.lane.b32.xlu0 %v814, 24
      %v1610 = vpop.permute.xlu0 %1609
      %1611 = vrot.lane.b32.xlu0 %v815, 24
      %v1612 = vpop.permute.xlu0 %1611
      %1613 = vrot.lane.b32.xlu0 %v816, 24
      %v1614 = vpop.permute.xlu0 %1613
      %1615 = vrot.lane.b32.xlu0 %v817, 24
      %v1616 = vpop.permute.xlu0 %1615
      %1617 = vrot.lane.b32.xlu0 %v818, 24
      %v1618 = vpop.permute.xlu0 %1617
      %1683 = vrot.lane.b32.xlu0 %v819, 28
      %v1684 = vpop.permute.xlu0 %1683
      %1685 = vrot.lane.b32.xlu0 %v820, 28
      %v1686 = vpop.permute.xlu0 %1685
      %1687 = vrot.lane.b32.xlu0 %v821, 28
      %v1688 = vpop.permute.xlu0 %1687
      %1689 = vrot.lane.b32.xlu0 %v822, 28
      %v1690 = vpop.permute.xlu0 %1689
      %1691 = vrot.lane.b32.xlu0 %v823, 28
      %v1692 = vpop.permute.xlu0 %1691
      %1693 = vrot.lane.b32.xlu0 %v824, 28
      %v1694 = vpop.permute.xlu0 %1693
      %1695 = vrot.lane.b32.xlu0 %v825, 28
      %v1696 = vpop.permute.xlu0 %1695
      %1697 = vrot.lane.b32.xlu0 %v826, 28
      %v1698 = vpop.permute.xlu0 %1697
      %1699 = vrot.lane.b32.xlu0 %v827, 28
      %v1700 = vpop.permute.xlu0 %1699
      %1701 = vrot.lane.b32.xlu0 %v828, 28
      %v1702 = vpop.permute.xlu0 %1701
      %1703 = vrot.lane.b32.xlu0 %v829, 28
      %v1704 = vpop.permute.xlu0 %1703
      %1705 = vrot.lane.b32.xlu0 %v830, 28
      %v1706 = vpop.permute.xlu0 %1705
      %1707 = vrot.lane.b32.xlu0 %v831, 28
      %v1708 = vpop.permute.xlu0 %1707
      %1709 = vrot.lane.b32.xlu0 %v832, 28
      %v1710 = vpop.permute.xlu0 %1709
      %1711 = vrot.lane.b32.xlu0 %v833, 28
      %v1712 = vpop.permute.xlu0 %1711
      %1713 = vrot.lane.b32.xlu0 %v834, 28
      %v1714 = vpop.permute.xlu0 %1713
      %1715 = vrot.lane.b32.xlu0 %v835, 28
      %v1716 = vpop.permute.xlu0 %1715
      %1717 = vrot.lane.b32.xlu0 %v836, 28
      %v1718 = vpop.permute.xlu0 %1717
      %1719 = vrot.lane.b32.xlu0 %v837, 28
      %v1720 = vpop.permute.xlu0 %1719
      %1721 = vrot.lane.b32.xlu0 %v838, 28
      %v1722 = vpop.permute.xlu0 %1721
      %1723 = vrot.lane.b32.xlu0 %v839, 28
      %v1724 = vpop.permute.xlu0 %1723
      %1725 = vrot.lane.b32.xlu0 %v840, 28
      %v1726 = vpop.permute.xlu0 %1725
      %1727 = vrot.lane.b32.xlu0 %v841, 28
      %v1728 = vpop.permute.xlu0 %1727
      %1729 = vrot.lane.b32.xlu0 %v842, 28
      %v1730 = vpop.permute.xlu0 %1729
      %1731 = vrot.lane.b32.xlu0 %v843, 28
      %v1732 = vpop.permute.xlu0 %1731
      %1733 = vrot.lane.b32.xlu0 %v844, 28
      %v1734 = vpop.permute.xlu0 %1733
      %1735 = vrot.lane.b32.xlu0 %v845, 28
      %v1736 = vpop.permute.xlu0 %1735
      %1737 = vrot.lane.b32.xlu0 %v846, 28
      %v1738 = vpop.permute.xlu0 %1737
      %1739 = vrot.lane.b32.xlu0 %v847, 28
      %v1740 = vpop.permute.xlu0 %1739
      %1741 = vrot.lane.b32.xlu0 %v848, 28
      %v1742 = vpop.permute.xlu0 %1741
      %1743 = vrot.lane.b32.xlu0 %v849, 28
      %v1744 = vpop.permute.xlu0 %1743
      %1745 = vrot.lane.b32.xlu0 %v850, 28
      %v1746 = vpop.permute.xlu0 %1745
      %1811 = vrot.lane.b32.xlu0 %v851, 32
      %v1812 = vpop.permute.xlu0 %1811
      %1813 = vrot.lane.b32.xlu0 %v852, 32
      %v1814 = vpop.permute.xlu0 %1813
      %1815 = vrot.lane.b32.xlu0 %v853, 32
      %v1816 = vpop.permute.xlu0 %1815
      %1817 = vrot.lane.b32.xlu0 %v854, 32
      %v1818 = vpop.permute.xlu0 %1817
      %1819 = vrot.lane.b32.xlu0 %v855, 32
      %v1820 = vpop.permute.xlu0 %1819
      %1821 = vrot.lane.b32.xlu0 %v856, 32
      %v1822 = vpop.permute.xlu0 %1821
      %1823 = vrot.lane.b32.xlu0 %v857, 32
      %v1824 = vpop.permute.xlu0 %1823
      %1825 = vrot.lane.b32.xlu0 %v858, 32
      %v1826 = vpop.permute.xlu0 %1825
      %1827 = vrot.lane.b32.xlu0 %v859, 32
      %v1828 = vpop.permute.xlu0 %1827
      %1829 = vrot.lane.b32.xlu0 %v860, 32
      %v1830 = vpop.permute.xlu0 %1829
      %1831 = vrot.lane.b32.xlu0 %v861, 32
      %v1832 = vpop.permute.xlu0 %1831
      %1833 = vrot.lane.b32.xlu0 %v862, 32
      %v1834 = vpop.permute.xlu0 %1833
      %1835 = vrot.lane.b32.xlu0 %v863, 32
      %v1836 = vpop.permute.xlu0 %1835
      %1837 = vrot.lane.b32.xlu0 %v864, 32
      %v1838 = vpop.permute.xlu0 %1837
      %1839 = vrot.lane.b32.xlu0 %v865, 32
      %v1840 = vpop.permute.xlu0 %1839
      %1841 = vrot.lane.b32.xlu0 %v866, 32
      %v1842 = vpop.permute.xlu0 %1841
      %1843 = vrot.lane.b32.xlu0 %v867, 32
      %v1844 = vpop.permute.xlu0 %1843
      %1845 = vrot.lane.b32.xlu0 %v868, 32
      %v1846 = vpop.permute.xlu0 %1845
      %1847 = vrot.lane.b32.xlu0 %v869, 32
      %v1848 = vpop.permute.xlu0 %1847
      %1849 = vrot.lane.b32.xlu0 %v870, 32
      %v1850 = vpop.permute.xlu0 %1849
      %1851 = vrot.lane.b32.xlu0 %v871, 32
      %v1852 = vpop.permute.xlu0 %1851
      %1853 = vrot.lane.b32.xlu0 %v872, 32
      %v1854 = vpop.permute.xlu0 %1853
      %1855 = vrot.lane.b32.xlu0 %v873, 32
      %v1856 = vpop.permute.xlu0 %1855
      %1857 = vrot.lane.b32.xlu0 %v874, 32
      %v1858 = vpop.permute.xlu0 %1857
      %1859 = vrot.lane.b32.xlu0 %v875, 32
      %v1860 = vpop.permute.xlu0 %1859
      %1861 = vrot.lane.b32.xlu0 %v876, 32
      %v1862 = vpop.permute.xlu0 %1861
      %1863 = vrot.lane.b32.xlu0 %v877, 32
      %v1864 = vpop.permute.xlu0 %1863
      %1865 = vrot.lane.b32.xlu0 %v878, 32
      %v1866 = vpop.permute.xlu0 %1865
      %1867 = vrot.lane.b32.xlu0 %v879, 32
      %v1868 = vpop.permute.xlu0 %1867
      %1869 = vrot.lane.b32.xlu0 %v880, 32
      %v1870 = vpop.permute.xlu0 %1869
      %1871 = vrot.lane.b32.xlu0 %v881, 32
      %v1872 = vpop.permute.xlu0 %1871
      %1873 = vrot.lane.b32.xlu0 %v882, 32
      %v1874 = vpop.permute.xlu0 %1873
      %v1907 = vsel %vm467, %v595, %v916
      %v1908 = vsel %vm467, %v596, %v918
      %v1909 = vsel %vm467, %v597, %v920
      %v1910 = vsel %vm467, %v598, %v922
      %v1911 = vsel %vm467, %v599, %v924
      %v1912 = vsel %vm467, %v600, %v926
      %v1913 = vsel %vm467, %v601, %v928
      %v1914 = vsel %vm467, %v602, %v930
      %v1915 = vsel %vm467, %v603, %v932
      %v1916 = vsel %vm467, %v604, %v934
      %v1917 = vsel %vm467, %v605, %v936
      %v1918 = vsel %vm467, %v606, %v938
      %v1919 = vsel %vm467, %v607, %v940
      %v1920 = vsel %vm467, %v608, %v942
      %v1921 = vsel %vm467, %v609, %v944
      %v1922 = vsel %vm467, %v610, %v946
      %v1923 = vsel %vm467, %v611, %v948
      %v1924 = vsel %vm467, %v612, %v950
      %v1925 = vsel %vm467, %v613, %v952
      %v1926 = vsel %vm467, %v614, %v954
      %v1927 = vsel %vm467, %v615, %v956
      %v1928 = vsel %vm467, %v616, %v958
      %v1929 = vsel %vm467, %v617, %v960
      %v1930 = vsel %vm467, %v618, %v962
      %v1931 = vsel %vm467, %v619, %v964
      %v1932 = vsel %vm467, %v620, %v966
      %v1933 = vsel %vm467, %v621, %v968
      %v1934 = vsel %vm467, %v622, %v970
      %v1935 = vsel %vm467, %v623, %v972
      %v1936 = vsel %vm467, %v624, %v974
      %v1937 = vsel %vm467, %v625, %v976
      %v1938 = vsel %vm467, %v626, %v978
      %vm1939 = vcmask 64512
      %v1940 = vsel %vm1939, %v1907, %v1044
      %v1941 = vsel %vm1939, %v1908, %v1046
      %v1942 = vsel %vm1939, %v1909, %v1048
      %v1943 = vsel %vm1939, %v1910, %v1050
      %v1944 = vsel %vm1939, %v1911, %v1052
      %v1945 = vsel %vm1939, %v1912, %v1054
      %v1946 = vsel %vm1939, %v1913, %v1056
      %v1947 = vsel %vm1939, %v1914, %v1058
      %v1948 = vsel %vm1939, %v1915, %v1060
      %v1949 = vsel %vm1939, %v1916, %v1062
      %v1950 = vsel %vm1939, %v1917, %v1064
      %v1951 = vsel %vm1939, %v1918, %v1066
      %v1952 = vsel %vm1939, %v1919, %v1068
      %v1953 = vsel %vm1939, %v1920, %v1070
      %v1954 = vsel %vm1939, %v1921, %v1072
      %v1955 = vsel %vm1939, %v1922, %v1074
      %v1956 = vsel %vm1939, %v1923, %v1076
      %v1957 = vsel %vm1939, %v1924, %v1078
      %v1958 = vsel %vm1939, %v1925, %v1080
      %v1959 = vsel %vm1939, %v1926, %v1082
      %v1960 = vsel %vm1939, %v1927, %v1084
      %v1961 = vsel %vm1939, %v1928, %v1086
      %v1962 = vsel %vm1939, %v1929, %v1088
      %v1963 = vsel %vm1939, %v1930, %v1090
      %v1964 = vsel %vm1939, %v1931, %v1092
      %v1965 = vsel %vm1939, %v1932, %v1094
      %v1966 = vsel %vm1939, %v1933, %v1096
      %v1967 = vsel %vm1939, %v1934, %v1098
      %v1968 = vsel %vm1939, %v1935, %v1100
      %v1969 = vsel %vm1939, %v1936, %v1102
      %v1970 = vsel %vm1939, %v1937, %v1104
      %v1971 = vsel %vm1939, %v1938, %v1106
      %vm1972 = vcmask 97280
      %v1973 = vsel %vm1972, %v1940, %v1172
      %v1974 = vsel %vm1972, %v1941, %v1174
      %v1975 = vsel %vm1972, %v1942, %v1176
      %v1976 = vsel %vm1972, %v1943, %v1178
      %v1977 = vsel %vm1972, %v1944, %v1180
      %v1978 = vsel %vm1972, %v1945, %v1182
      %v1979 = vsel %vm1972, %v1946, %v1184
      %v1980 = vsel %vm1972, %v1947, %v1186
      %v1981 = vsel %vm1972, %v1948, %v1188
      %v1982 = vsel %vm1972, %v1949, %v1190
      %v1983 = vsel %vm1972, %v1950, %v1192
      %v1984 = vsel %vm1972, %v1951, %v1194
      %v1985 = vsel %vm1972, %v1952, %v1196
      %v1986 = vsel %vm1972, %v1953, %v1198
      %v1987 = vsel %vm1972, %v1954, %v1200
      %v1988 = vsel %vm1972, %v1955, %v1202
      %v1989 = vsel %vm1972, %v1956, %v1204
      %v1990 = vsel %vm1972, %v1957, %v1206
      %v1991 = vsel %vm1972, %v1958, %v1208
      %v1992 = vsel %vm1972, %v1959, %v1210
      %v1993 = vsel %vm1972, %v1960, %v1212
      %v1994 = vsel %vm1972, %v1961, %v1214
      %v1995 = vsel %vm1972, %v1962, %v1216
      %v1996 = vsel %vm1972, %v1963, %v1218
      %v1997 = vsel %vm1972, %v1964, %v1220
      %v1998 = vsel %vm1972, %v1965, %v1222
      %v1999 = vsel %vm1972, %v1966, %v1224
      %v2000 = vsel %vm1972, %v1967, %v1226
      %v2001 = vsel %vm1972, %v1968, %v1228
      %v2002 = vsel %vm1972, %v1969, %v1230
      %v2003 = vsel %vm1972, %v1970, %v1232
      %v2004 = vsel %vm1972, %v1971, %v1234
      %vm2005 = vcmask 130048
      %v2006 = vsel %vm2005, %v1973, %v1300
      %v2007 = vsel %vm2005, %v1974, %v1302
      %v2008 = vsel %vm2005, %v1975, %v1304
      %v2009 = vsel %vm2005, %v1976, %v1306
      %v2010 = vsel %vm2005, %v1977, %v1308
      %v2011 = vsel %vm2005, %v1978, %v1310
      %v2012 = vsel %vm2005, %v1979, %v1312
      %v2013 = vsel %vm2005, %v1980, %v1314
      %v2014 = vsel %vm2005, %v1981, %v1316
      %v2015 = vsel %vm2005, %v1982, %v1318
      %v2016 = vsel %vm2005, %v1983, %v1320
      %v2017 = vsel %vm2005, %v1984, %v1322
      %v2018 = vsel %vm2005, %v1985, %v1324
      %v2019 = vsel %vm2005, %v1986, %v1326
      %v2020 = vsel %vm2005, %v1987, %v1328
      %v2021 = vsel %vm2005, %v1988, %v1330
      %v2022 = vsel %vm2005, %v1989, %v1332
      %v2023 = vsel %vm2005, %v1990, %v1334
      %v2024 = vsel %vm2005, %v1991, %v1336
      %v2025 = vsel %vm2005, %v1992, %v1338
      %v2026 = vsel %vm2005, %v1993, %v1340
      %v2027 = vsel %vm2005, %v1994, %v1342
      %v2028 = vsel %vm2005, %v1995, %v1344
      %v2029 = vsel %vm2005, %v1996, %v1346
      %v2030 = vsel %vm2005, %v1997, %v1348
      %v2031 = vsel %vm2005, %v1998, %v1350
      %v2032 = vsel %vm2005, %v1999, %v1352
      %v2033 = vsel %vm2005, %v2000, %v1354
      %v2034 = vsel %vm2005, %v2001, %v1356
      %v2035 = vsel %vm2005, %v2002, %v1358
      %v2036 = vsel %vm2005, %v2003, %v1360
      %v2037 = vsel %vm2005, %v2004, %v1362
      %vm2038 = vcmask 162816
      %v2039 = vsel %vm2038, %v2006, %v1428
      %v2040 = vsel %vm2038, %v2007, %v1430
      %v2041 = vsel %vm2038, %v2008, %v1432
      %v2042 = vsel %vm2038, %v2009, %v1434
      %v2043 = vsel %vm2038, %v2010, %v1436
      %v2044 = vsel %vm2038, %v2011, %v1438
      %v2045 = vsel %vm2038, %v2012, %v1440
      %v2046 = vsel %vm2038, %v2013, %v1442
      %v2047 = vsel %vm2038, %v2014, %v1444
      %v2048 = vsel %vm2038, %v2015, %v1446
      %v2049 = vsel %vm2038, %v2016, %v1448
      %v2050 = vsel %vm2038, %v2017, %v1450
      %v2051 = vsel %vm2038, %v2018, %v1452
      %v2052 = vsel %vm2038, %v2019, %v1454
      %v2053 = vsel %vm2038, %v2020, %v1456
      %v2054 = vsel %vm2038, %v2021, %v1458
      %v2055 = vsel %vm2038, %v2022, %v1460
      %v2056 = vsel %vm2038, %v2023, %v1462
      %v2057 = vsel %vm2038, %v2024, %v1464
      %v2058 = vsel %vm2038, %v2025, %v1466
      %v2059 = vsel %vm2038, %v2026, %v1468
      %v2060 = vsel %vm2038, %v2027, %v1470
      %v2061 = vsel %vm2038, %v2028, %v1472
      %v2062 = vsel %vm2038, %v2029, %v1474
      %v2063 = vsel %vm2038, %v2030, %v1476
      %v2064 = vsel %vm2038, %v2031, %v1478
      %v2065 = vsel %vm2038, %v2032, %v1480
      %v2066 = vsel %vm2038, %v2033, %v1482
      %v2067 = vsel %vm2038, %v2034, %v1484
      %v2068 = vsel %vm2038, %v2035, %v1486
      %v2069 = vsel %vm2038, %v2036, %v1488
      %v2070 = vsel %vm2038, %v2037, %v1490
      %vm2071 = vcmask 195584
      %v2072 = vsel %vm2071, %v2039, %v1556
      %v2073 = vsel %vm2071, %v2040, %v1558
      %v2074 = vsel %vm2071, %v2041, %v1560
      %v2075 = vsel %vm2071, %v2042, %v1562
      %v2076 = vsel %vm2071, %v2043, %v1564
      %v2077 = vsel %vm2071, %v2044, %v1566
      %v2078 = vsel %vm2071, %v2045, %v1568
      %v2079 = vsel %vm2071, %v2046, %v1570
      %v2080 = vsel %vm2071, %v2047, %v1572
      %v2081 = vsel %vm2071, %v2048, %v1574
      %v2082 = vsel %vm2071, %v2049, %v1576
      %v2083 = vsel %vm2071, %v2050, %v1578
      %v2084 = vsel %vm2071, %v2051, %v1580
      %v2085 = vsel %vm2071, %v2052, %v1582
      %v2086 = vsel %vm2071, %v2053, %v1584
      %v2087 = vsel %vm2071, %v2054, %v1586
      %v2088 = vsel %vm2071, %v2055, %v1588
      %v2089 = vsel %vm2071, %v2056, %v1590
      %v2090 = vsel %vm2071, %v2057, %v1592
      %v2091 = vsel %vm2071, %v2058, %v1594
      %v2092 = vsel %vm2071, %v2059, %v1596
      %v2093 = vsel %vm2071, %v2060, %v1598
      %v2094 = vsel %vm2071, %v2061, %v1600
      %v2095 = vsel %vm2071, %v2062, %v1602
      %v2096 = vsel %vm2071, %v2063, %v1604
      %v2097 = vsel %vm2071, %v2064, %v1606
      %v2098 = vsel %vm2071, %v2065, %v1608
      %v2099 = vsel %vm2071, %v2066, %v1610
      %v2100 = vsel %vm2071, %v2067, %v1612
      %v2101 = vsel %vm2071, %v2068, %v1614
      %v2102 = vsel %vm2071, %v2069, %v1616
      %v2103 = vsel %vm2071, %v2070, %v1618
      %vm2104 = vcmask 228352
      %v2105 = vsel %vm2104, %v2072, %v1684
      %v2106 = vsel %vm2104, %v2073, %v1686
      %v2107 = vsel %vm2104, %v2074, %v1688
      %v2108 = vsel %vm2104, %v2075, %v1690
      %v2109 = vsel %vm2104, %v2076, %v1692
      %v2110 = vsel %vm2104, %v2077, %v1694
      %v2111 = vsel %vm2104, %v2078, %v1696
      %v2112 = vsel %vm2104, %v2079, %v1698
      %v2113 = vsel %vm2104, %v2080, %v1700
      %v2114 = vsel %vm2104, %v2081, %v1702
      %v2115 = vsel %vm2104, %v2082, %v1704
      %v2116 = vsel %vm2104, %v2083, %v1706
      %v2117 = vsel %vm2104, %v2084, %v1708
      %v2118 = vsel %vm2104, %v2085, %v1710
      %v2119 = vsel %vm2104, %v2086, %v1712
      %v2120 = vsel %vm2104, %v2087, %v1714
      %v2121 = vsel %vm2104, %v2088, %v1716
      %v2122 = vsel %vm2104, %v2089, %v1718
      %v2123 = vsel %vm2104, %v2090, %v1720
      %v2124 = vsel %vm2104, %v2091, %v1722
      %v2125 = vsel %vm2104, %v2092, %v1724
      %v2126 = vsel %vm2104, %v2093, %v1726
      %v2127 = vsel %vm2104, %v2094, %v1728
      %v2128 = vsel %vm2104, %v2095, %v1730
      %v2129 = vsel %vm2104, %v2096, %v1732
      %v2130 = vsel %vm2104, %v2097, %v1734
      %v2131 = vsel %vm2104, %v2098, %v1736
      %v2132 = vsel %vm2104, %v2099, %v1738
      %v2133 = vsel %vm2104, %v2100, %v1740
      %v2134 = vsel %vm2104, %v2101, %v1742
      %v2135 = vsel %vm2104, %v2102, %v1744
      %v2136 = vsel %vm2104, %v2103, %v1746
      %vm2137 = vcmask 261120
      %v2138 = vsel %vm2137, %v2105, %v1812
      %v2139 = vsel %vm2137, %v2106, %v1814
      %v2140 = vsel %vm2137, %v2107, %v1816
      %v2141 = vsel %vm2137, %v2108, %v1818
      %v2142 = vsel %vm2137, %v2109, %v1820
      %v2143 = vsel %vm2137, %v2110, %v1822
      %v2144 = vsel %vm2137, %v2111, %v1824
      %v2145 = vsel %vm2137, %v2112, %v1826
      %v2146 = vsel %vm2137, %v2113, %v1828
      %v2147 = vsel %vm2137, %v2114, %v1830
      %v2148 = vsel %vm2137, %v2115, %v1832
      %v2149 = vsel %vm2137, %v2116, %v1834
      %v2150 = vsel %vm2137, %v2117, %v1836
      %v2151 = vsel %vm2137, %v2118, %v1838
      %v2152 = vsel %vm2137, %v2119, %v1840
      %v2153 = vsel %vm2137, %v2120, %v1842
      %v2154 = vsel %vm2137, %v2121, %v1844
      %v2155 = vsel %vm2137, %v2122, %v1846
      %v2156 = vsel %vm2137, %v2123, %v1848
      %v2157 = vsel %vm2137, %v2124, %v1850
      %v2158 = vsel %vm2137, %v2125, %v1852
      %v2159 = vsel %vm2137, %v2126, %v1854
      %v2160 = vsel %vm2137, %v2127, %v1856
      %v2161 = vsel %vm2137, %v2128, %v1858
      %v2162 = vsel %vm2137, %v2129, %v1860
      %v2163 = vsel %vm2137, %v2130, %v1862
      %v2164 = vsel %vm2137, %v2131, %v1864
      %v2165 = vsel %vm2137, %v2132, %v1866
      %v2166 = vsel %vm2137, %v2133, %v1868
      %v2167 = vsel %vm2137, %v2134, %v1870
      %v2168 = vsel %vm2137, %v2135, %v1872
      %v2169 = vsel %vm2137, %v2136, %v1874
      %v2170 = vld [vmem:[%s2] sm:$0xff]
      %v2171 = vld [vmem:[%s2 + $0x8] sm:$0xff]
      %v2172 = vld [vmem:[%s5] sm:$0xff]
      %v2173 = vld [vmem:[%s5 + $0x8] sm:$0xff]
      %2175 = vset.pattern.permute.xlu0 0
      %2176 = vperm.xlu0 %2175, %v2172
      %v2177 = vpop.permute.xlu0 %2176
      %2180 = vset.pattern.permute.xlu0 0
      %2181 = vperm.xlu0 %2180, %v2173
      %v2182 = vpop.permute.xlu0 %2181
      %vm2184 = vcmask 293888
      %v2186 = vsel %vm2184, %v2170, 0
      %v2189 = vsel %vm2184, %v2171, 0
      %v2192 = vsel %vm2184, %v2138, 0
      %v2195 = vsel %vm2184, %v2139, 0
      %v2198 = vsel %vm2184, %v2140, 0
      %v2201 = vsel %vm2184, %v2141, 0
      %v2204 = vsel %vm2184, %v2142, 0
      %v2207 = vsel %vm2184, %v2143, 0
      %v2210 = vsel %vm2184, %v2144, 0
      %v2213 = vsel %vm2184, %v2145, 0
      %v2216 = vsel %vm2184, %v2146, 0
      %v2219 = vsel %vm2184, %v2147, 0
      %v2222 = vsel %vm2184, %v2148, 0
      %v2225 = vsel %vm2184, %v2149, 0
      %v2228 = vsel %vm2184, %v2150, 0
      %v2231 = vsel %vm2184, %v2151, 0
      %v2234 = vsel %vm2184, %v2152, 0
      %v2237 = vsel %vm2184, %v2153, 0
      %v2240 = vsel %vm2184, %v2154, 0
      %v2243 = vsel %vm2184, %v2155, 0
      %v2246 = vsel %vm2184, %v2156, 0
      %v2249 = vsel %vm2184, %v2157, 0
      %v2252 = vsel %vm2184, %v2158, 0
      %v2255 = vsel %vm2184, %v2159, 0
      %v2258 = vsel %vm2184, %v2160, 0
      %v2261 = vsel %vm2184, %v2161, 0
      %v2264 = vsel %vm2184, %v2162, 0
      %v2267 = vsel %vm2184, %v2163, 0
      %v2270 = vsel %vm2184, %v2164, 0
      %v2273 = vsel %vm2184, %v2165, 0
      %v2276 = vsel %vm2184, %v2166, 0
      %v2279 = vsel %vm2184, %v2167, 0
      %v2282 = vsel %vm2184, %v2168, 0
      %v2285 = vsel %vm2184, %v2169, 0
      %2287 = vmatprep.subr.mxu0 0.0
      %2288 = vmatpush1.xpose.msra.mxu0 %v2192
      %2289 = vmatprep.subr.mxu0 0.0
      %2290 = vmatpush1.xpose.msra.mxu0 %v2195
      %2291 = vmatprep.subr.mxu0 0.0
      %2292 = vmatpush1.xpose.msra.mxu0 %v2198
      %2293 = vmatprep.subr.mxu0 0.0
      %2294 = vmatpush1.xpose.msra.mxu0 %v2201
      %2295 = vmatprep.subr.mxu0 0.0
      %2296 = vmatpush1.xpose.msra.mxu0 %v2204
      %2297 = vmatprep.subr.mxu0 0.0
      %2298 = vmatpush1.xpose.msra.mxu0 %v2207
      %2299 = vmatprep.subr.mxu0 0.0
      %2300 = vmatpush1.xpose.msra.mxu0 %v2210
      %2301 = vmatprep.subr.mxu0 0.0
      %2302 = vmatpush1.xpose.msra.mxu0 %v2213
      %2303 = vmatprep.subr.mxu0 0.0
      %2304 = vmatpush1.xpose.msra.mxu0 %v2216
      %2305 = vmatprep.subr.mxu0 0.0
      %2306 = vmatpush1.xpose.msra.mxu0 %v2219
      %2307 = vmatprep.subr.mxu0 0.0
      %2308 = vmatpush1.xpose.msra.mxu0 %v2222
      %2309 = vmatprep.subr.mxu0 0.0
      %2310 = vmatpush1.xpose.msra.mxu0 %v2225
      %2311 = vmatprep.subr.mxu0 0.0
      %2312 = vmatpush1.xpose.msra.mxu0 %v2228
      %2313 = vmatprep.subr.mxu0 0.0
      %2314 = vmatpush1.xpose.msra.mxu0 %v2231
      %2315 = vmatprep.subr.mxu0 0.0
      %2316 = vmatpush1.xpose.msra.mxu0 %v2234
      %2317 = vmatprep.subr.mxu0 0.0
      %2318 = vmatpush1.xpose.msra.mxu0 %v2237
      %2319 = vmatprep.subr.mxu0 0.0
      %2320 = vmatpush1.xpose.msra.mxu0 %v2240
      %2321 = vmatprep.subr.mxu0 0.0
      %2322 = vmatpush1.xpose.msra.mxu0 %v2243
      %2323 = vmatprep.subr.mxu0 0.0
      %2324 = vmatpush1.xpose.msra.mxu0 %v2246
      %2325 = vmatprep.subr.mxu0 0.0
      %2326 = vmatpush1.xpose.msra.mxu0 %v2249
      %2327 = vmatprep.subr.mxu0 0.0
      %2328 = vmatpush1.xpose.msra.mxu0 %v2252
      %2329 = vmatprep.subr.mxu0 0.0
      %2330 = vmatpush1.xpose.msra.mxu0 %v2255
      %2331 = vmatprep.subr.mxu0 0.0
      %2332 = vmatpush1.xpose.msra.mxu0 %v2258
      %2333 = vmatprep.subr.mxu0 0.0
      %2334 = vmatpush1.xpose.msra.mxu0 %v2261
      %2335 = vmatprep.subr.mxu0 0.0
      %2336 = vmatpush1.xpose.msra.mxu0 %v2264
      %2337 = vmatprep.subr.mxu0 0.0
      %2338 = vmatpush1.xpose.msra.mxu0 %v2267
      %2339 = vmatprep.subr.mxu0 0.0
      %2340 = vmatpush1.xpose.msra.mxu0 %v2270
      %2341 = vmatprep.subr.mxu0 0.0
      %2342 = vmatpush1.xpose.msra.mxu0 %v2273
      %2343 = vmatprep.subr.mxu0 0.0
      %2344 = vmatpush1.xpose.msra.mxu0 %v2276
      %2345 = vmatprep.subr.mxu0 0.0
      %2346 = vmatpush1.xpose.msra.mxu0 %v2279
      %2347 = vmatprep.subr.mxu0 0.0
      %2348 = vmatpush1.xpose.msra.mxu0 %v2282
      %2349 = vmatprep.subr.mxu0 0.0
      %2350 = vmatpush1.xpose.msra.mxu0 %v2285
      %2351 = vmatprep.mubr.f32.mxu0 0.0
      %2352 = vmatmul.mubr.f32.gmra.mrb[0].mxu0 %v2186
      %v2353 = vpop.f32.mrb[0].mxu0
      %v2354 = vadd.f32 %v2177, %v2353
      %v2355 = vpop.f32.mrb[0].mxu0
      %v2356 = vadd.f32 %v2177, %v2355
      %2357 = vmatprep.mubr.f32.mxu0 0.0
      %2358 = vmatmul.mubr.f32.gmra.mrb[0].mxu0 %v2189
      %v2359 = vpop.f32.mrb[0].mxu0
      %v2360 = vadd.f32 %v2182, %v2359
      %v2361 = vpop.f32.mrb[0].mxu0
      %v2362 = vadd.f32 %v2182, %v2361
      %2363 = vdwg.mxu0
      %v2364 = vmax.f32 %v2354, 0.0
      %v2365 = vmax.f32 %v2356, 0.0
      %v2366 = vmax.f32 %v2360, 0.0
      %v2367 = vmax.f32 %v2362, 0.0
      %vm2372 = vcmask 1043456
      %v2373 = vrot.slane %v2364, 4
      %v2374 = vrot.slane %v2365, 4
      %v2375 = vrot.slane %v2366, 4
      %v2376 = vsel %vm2372, %v2373, %v2375
      %v2377 = vrot.slane %v2367, 4
      %v2378 = vsel %vm2372, %v2374, %v2377
      %2385 = vst [vmem:[%s433] sm:$0xf0] %v2373
      %2386 = vst [vmem:[%s433 + $0x8] sm:$0xf0] %v2374
      %2387 = vst [vmem:[%s433 + $0x10] sm:$0xff] %v2376
      %2388 = vst [vmem:[%s433 + $0x18] sm:$0xff] %v2378
      %2389 = vst [vmem:[%s433 + $0x20] sm:$0xf] %v2375
      %2390 = vst [vmem:[%s433 + $0x28] sm:$0xf] %v2377
      %v2391 = vld [vmem:[%s8] sm:$0xff]
      %v2392 = vld [vmem:[%s8 + $0x8] sm:$0xff]
      %v2393 = vld [vmem:[%s8 + $0x10] sm:$0xff]
      %v2394 = vld [vmem:[%s8 + $0x18] sm:$0xff]
      %v2395 = vld [vmem:[%s8 + $0x20] sm:$0xf]
      %v2396 = vld [vmem:[%s10] sm:$0x1]
      %v2398 = vlaneseq
      %v2399 = vshrl.u32 %v2398, 7
      %v2400 = vsub.s32 0, %v2399
      %v2401 = vrot.slane %v2396, %v2400
      %v2404 = vsel %vm2372, %v2395, 0
      %2406 = vmatprep.subr.mxu0 0.0
      %2407 = vmatpush1.msra.mxu0 %v2391
      %2408 = vmatprep.subr.mxu0 0.0
      %2409 = vmatpush1.msra.mxu0 %v2392
      %2410 = vmatprep.subr.mxu0 0.0
      %2411 = vmatpush1.msra.mxu0 %v2393
      %2412 = vmatprep.subr.mxu0 0.0
      %2413 = vmatpush1.msra.mxu0 %v2394
      %2414 = vmatprep.subr.mxu0 0.0
      %2415 = vmatpush1.msra.mxu0 %v2404
      %2416 = vmatprep.subr.mxu0 0.0
      %2417 = vmatpush1.msra.mxu0 0.0
      %2418 = vmatprep.subr.mxu0 0.0
      %2419 = vmatpush1.msra.mxu0 0.0
      %2420 = vmatprep.subr.mxu0 0.0
      %2421 = vmatpush1.msra.mxu0 0.0
      %2422 = vmatprep.subr.mxu0 0.0
      %2423 = vmatpush1.msra.mxu0 0.0
      %2424 = vmatprep.subr.mxu0 0.0
      %2425 = vmatpush1.msra.mxu0 0.0
      %2426 = vmatprep.subr.mxu0 0.0
      %2427 = vmatpush1.msra.mxu0 0.0
      %2428 = vmatprep.subr.mxu0 0.0
      %2429 = vmatpush1.msra.mxu0 0.0
      %2430 = vmatprep.subr.mxu0 0.0
      %2431 = vmatpush1.msra.mxu0 0.0
      %2432 = vmatprep.subr.mxu0 0.0
      %2433 = vmatpush1.msra.mxu0 0.0
      %2434 = vmatprep.subr.mxu0 0.0
      %2435 = vmatpush1.msra.mxu0 0.0
      %2436 = vmatprep.subr.mxu0 0.0
      %2437 = vmatpush1.msra.mxu0 0.0
      %2438 = vmatprep.subr.mxu0 0.0
      %2439 = vmatpush1.msra.mxu0 0.0
      %2440 = vmatprep.subr.mxu0 0.0
      %2441 = vmatpush1.msra.mxu0 0.0
      %2442 = vmatprep.subr.mxu0 0.0
      %2443 = vmatpush1.msra.mxu0 0.0
      %2444 = vmatprep.subr.mxu0 0.0
      %2445 = vmatpush1.msra.mxu0 0.0
      %2446 = vmatprep.subr.mxu0 0.0
      %2447 = vmatpush1.msra.mxu0 0.0
      %2448 = vmatprep.subr.mxu0 0.0
      %2449 = vmatpush1.msra.mxu0 0.0
      %2450 = vmatprep.subr.mxu0 0.0
      %2451 = vmatpush1.msra.mxu0 0.0
      %2452 = vmatprep.subr.mxu0 0.0
      %2453 = vmatpush1.msra.mxu0 0.0
      %2454 = vmatprep.subr.mxu0 0.0
      %2455 = vmatpush1.msra.mxu0 0.0
      %2456 = vmatprep.subr.mxu0 0.0
      %2457 = vmatpush1.msra.mxu0 0.0
      %2458 = vmatprep.subr.mxu0 0.0
      %2459 = vmatpush1.msra.mxu0 0.0
      %2460 = vmatprep.subr.mxu0 0.0
      %2461 = vmatpush1.msra.mxu0 0.0
      %2462 = vmatprep.subr.mxu0 0.0
      %2463 = vmatpush1.msra.mxu0 0.0
      %2464 = vmatprep.subr.mxu0 0.0
      %2465 = vmatpush1.msra.mxu0 0.0
      %2466 = vmatprep.subr.mxu0 0.0
      %2467 = vmatpush1.msra.mxu0 0.0
      %2468 = vmatprep.subr.mxu0 0.0
      %2469 = vmatpush1.msra.mxu0 0.0
      %2470 = vmatprep.mubr.f32.mxu0 0.0
      %2471 = vmatmul.mubr.f32.gmra.mrb[0].mxu0 %v2192
      %v2472 = vpop.f32.mrb[0].mxu0
      %v2473 = vadd.f32 %v2401, %v2472
      %v2474 = vpop.f32.mrb[0].mxu0
      %2475 = vmatprep.mubr.f32.mxu0 0.0
      %2476 = vmatmul.mubr.f32.gmra.mrb[0].mxu0 %v2195
      %v2477 = vpop.f32.mrb[0].mxu0
      %v2478 = vadd.f32 %v2401, %v2477
      %v2479 = vpop.f32.mrb[0].mxu0
      %2480 = vmatprep.mubr.f32.mxu0 0.0
      %2481 = vmatmul.mubr.f32.gmra.mrb[0].mxu0 %v2198
      %v2482 = vpop.f32.mrb[0].mxu0
      %v2483 = vadd.f32 %v2401, %v2482
      %v2484 = vpop.f32.mrb[0].mxu0
      %2485 = vmatprep.mubr.f32.mxu0 0.0
      %2486 = vmatmul.mubr.f32.gmra.mrb[0].mxu0 %v2201
      %v2487 = vpop.f32.mrb[0].mxu0
      %v2488 = vadd.f32 %v2401, %v2487
      %v2489 = vpop.f32.mrb[0].mxu0
      %2490 = vmatprep.mubr.f32.mxu0 0.0
      %2491 = vmatmul.mubr.f32.gmra.mrb[0].mxu0 %v2204
      %v2492 = vpop.f32.mrb[0].mxu0
      %v2493 = vadd.f32 %v2401, %v2492
      %v2494 = vpop.f32.mrb[0].mxu0
      %2495 = vmatprep.mubr.f32.mxu0 0.0
      %2496 = vmatmul.mubr.f32.gmra.mrb[0].mxu0 %v2207
      %v2497 = vpop.f32.mrb[0].mxu0
      %v2498 = vadd.f32 %v2401, %v2497
      %v2499 = vpop.f32.mrb[0].mxu0
      %2500 = vmatprep.mubr.f32.mxu0 0.0
      %2501 = vmatmul.mubr.f32.gmra.mrb[0].mxu0 %v2210
      %v2502 = vpop.f32.mrb[0].mxu0
      %v2503 = vadd.f32 %v2401, %v2502
      %v2504 = vpop.f32.mrb[0].mxu0
      %2505 = vmatprep.mubr.f32.mxu0 0.0
      %2506 = vmatmul.mubr.f32.gmra.mrb[0].mxu0 %v2213
      %v2507 = vpop.f32.mrb[0].mxu0
      %v2508 = vadd.f32 %v2401, %v2507
      %v2509 = vpop.f32.mrb[0].mxu0
      %2510 = vmatprep.mubr.f32.mxu0 0.0
      %2511 = vmatmul.mubr.f32.gmra.mrb[0].mxu0 %v2216
      %v2512 = vpop.f32.mrb[0].mxu0
      %v2513 = vadd.f32 %v2401, %v2512
      %v2514 = vpop.f32.mrb[0].mxu0
      %2515 = vmatprep.mubr.f32.mxu0 0.0
      %2516 = vmatmul.mubr.f32.gmra.mrb[0].mxu0 %v2219
      %v2517 = vpop.f32.mrb[0].mxu0
      %v2518 = vadd.f32 %v2401, %v2517
      %v2519 = vpop.f32.mrb[0].mxu0
      %2520 = vmatprep.mubr.f32.mxu0 0.0
      %2521 = vmatmul.mubr.f32.gmra.mrb[0].mxu0 %v2222
      %v2522 = vpop.f32.mrb[0].mxu0
      %v2523 = vadd.f32 %v2401, %v2522
      %v2524 = vpop.f32.mrb[0].mxu0
      %2525 = vmatprep.mubr.f32.mxu0 0.0
      %2526 = vmatmul.mubr.f32.gmra.mrb[0].mxu0 %v2225
      %v2527 = vpop.f32.mrb[0].mxu0
      %v2528 = vadd.f32 %v2401, %v2527
      %v2529 = vpop.f32.mrb[0].mxu0
      %2530 = vmatprep.mubr.f32.mxu0 0.0
      %2531 = vmatmul.mubr.f32.gmra.mrb[0].mxu0 %v2228
      %v2532 = vpop.f32.mrb[0].mxu0
      %v2533 = vadd.f32 %v2401, %v2532
      %v2534 = vpop.f32.mrb[0].mxu0
      %2535 = vmatprep.mubr.f32.mxu0 0.0
      %2536 = vmatmul.mubr.f32.gmra.mrb[0].mxu0 %v2231
      %v2537 = vpop.f32.mrb[0].mxu0
      %v2538 = vadd.f32 %v2401, %v2537
      %v2539 = vpop.f32.mrb[0].mxu0
      %2540 = vmatprep.mubr.f32.mxu0 0.0
      %2541 = vmatmul.mubr.f32.gmra.mrb[0].mxu0 %v2234
      %v2542 = vpop.f32.mrb[0].mxu0
      %v2543 = vadd.f32 %v2401, %v2542
      %v2544 = vpop.f32.mrb[0].mxu0
      %2545 = vmatprep.mubr.f32.mxu0 0.0
      %2546 = vmatmul.mubr.f32.gmra.mrb[0].mxu0 %v2237
      %v2547 = vpop.f32.mrb[0].mxu0
      %v2548 = vadd.f32 %v2401, %v2547
      %v2549 = vpop.f32.mrb[0].mxu0
      %2550 = vmatprep.mubr.f32.mxu0 0.0
      %2551 = vmatmul.mubr.f32.gmra.mrb[0].mxu0 %v2240
      %v2552 = vpop.f32.mrb[0].mxu0
      %v2553 = vadd.f32 %v2401, %v2552
      %v2554 = vpop.f32.mrb[0].mxu0
      %2555 = vmatprep.mubr.f32.mxu0 0.0
      %2556 = vmatmul.mubr.f32.gmra.mrb[0].mxu0 %v2243
      %v2557 = vpop.f32.mrb[0].mxu0
      %v2558 = vadd.f32 %v2401, %v2557
      %v2559 = vpop.f32.mrb[0].mxu0
      %2560 = vmatprep.mubr.f32.mxu0 0.0
      %2561 = vmatmul.mubr.f32.gmra.mrb[0].mxu0 %v2246
      %v2562 = vpop.f32.mrb[0].mxu0
      %v2563 = vadd.f32 %v2401, %v2562
      %v2564 = vpop.f32.mrb[0].mxu0
      %2565 = vmatprep.mubr.f32.mxu0 0.0
      %2566 = vmatmul.mubr.f32.gmra.mrb[0].mxu0 %v2249
      %v2567 = vpop.f32.mrb[0].mxu0
      %v2568 = vadd.f32 %v2401, %v2567
      %v2569 = vpop.f32.mrb[0].mxu0
      %2570 = vmatprep.mubr.f32.mxu0 0.0
      %2571 = vmatmul.mubr.f32.gmra.mrb[0].mxu0 %v2252
      %v2572 = vpop.f32.mrb[0].mxu0
      %v2573 = vadd.f32 %v2401, %v2572
      %v2574 = vpop.f32.mrb[0].mxu0
      %2575 = vmatprep.mubr.f32.mxu0 0.0
      %2576 = vmatmul.mubr.f32.gmra.mrb[0].mxu0 %v2255
      %v2577 = vpop.f32.mrb[0].mxu0
      %v2578 = vadd.f32 %v2401, %v2577
      %v2579 = vpop.f32.mrb[0].mxu0
      %2580 = vmatprep.mubr.f32.mxu0 0.0
      %2581 = vmatmul.mubr.f32.gmra.mrb[0].mxu0 %v2258
      %v2582 = vpop.f32.mrb[0].mxu0
      %v2583 = vadd.f32 %v2401, %v2582
      %v2584 = vpop.f32.mrb[0].mxu0
      %2585 = vmatprep.mubr.f32.mxu0 0.0
      %2586 = vmatmul.mubr.f32.gmra.mrb[0].mxu0 %v2261
      %v2587 = vpop.f32.mrb[0].mxu0
      %v2588 = vadd.f32 %v2401, %v2587
      %v2589 = vpop.f32.mrb[0].mxu0
      %2590 = vmatprep.mubr.f32.mxu0 0.0
      %2591 = vmatmul.mubr.f32.gmra.mrb[0].mxu0 %v2264
      %v2592 = vpop.f32.mrb[0].mxu0
      %v2593 = vadd.f32 %v2401, %v2592
      %v2594 = vpop.f32.mrb[0].mxu0
      %2595 = vmatprep.mubr.f32.mxu0 0.0
      %2596 = vmatmul.mubr.f32.gmra.mrb[0].mxu0 %v2267
      %v2597 = vpop.f32.mrb[0].mxu0
      %v2598 = vadd.f32 %v2401, %v2597
      %v2599 = vpop.f32.mrb[0].mxu0
      %2600 = vmatprep.mubr.f32.mxu0 0.0
      %2601 = vmatmul.mubr.f32.gmra.mrb[0].mxu0 %v2270
      %v2602 = vpop.f32.mrb[0].mxu0
      %v2603 = vadd.f32 %v2401, %v2602
      %v2604 = vpop.f32.mrb[0].mxu0
      %2605 = vmatprep.mubr.f32.mxu0 0.0
      %2606 = vmatmul.mubr.f32.gmra.mrb[0].mxu0 %v2273
      %v2607 = vpop.f32.mrb[0].mxu0
      %v2608 = vadd.f32 %v2401, %v2607
      %v2609 = vpop.f32.mrb[0].mxu0
      %2610 = vmatprep.mubr.f32.mxu0 0.0
      %2611 = vmatmul.mubr.f32.gmra.mrb[0].mxu0 %v2276
      %v2612 = vpop.f32.mrb[0].mxu0
      %v2613 = vadd.f32 %v2401, %v2612
      %v2614 = vpop.f32.mrb[0].mxu0
      %2615 = vmatprep.mubr.f32.mxu0 0.0
      %2616 = vmatmul.mubr.f32.gmra.mrb[0].mxu0 %v2279
      %v2617 = vpop.f32.mrb[0].mxu0
      %v2618 = vadd.f32 %v2401, %v2617
      %v2619 = vpop.f32.mrb[0].mxu0
      %2620 = vmatprep.mubr.f32.mxu0 0.0
      %2621 = vmatmul.mubr.f32.gmra.mrb[0].mxu0 %v2282
      %v2622 = vpop.f32.mrb[0].mxu0
      %v2623 = vadd.f32 %v2401, %v2622
      %v2624 = vpop.f32.mrb[0].mxu0
      %2625 = vmatprep.mubr.f32.mxu0 0.0
      %2626 = vmatmul.mubr.f32.gmra.mrb[0].mxu0 %v2285
      %v2627 = vpop.f32.mrb[0].mxu0
      %v2628 = vadd.f32 %v2401, %v2627
      %v2629 = vpop.f32.mrb[0].mxu0
      %2630 = vdwg.mxu0
      %v2631 = vmax.f32 %v2473, 0.0
      %v2632 = vmax.f32 %v2478, 0.0
      %v2633 = vmax.f32 %v2483, 0.0
      %v2634 = vmax.f32 %v2488, 0.0
      %v2635 = vmax.f32 %v2493, 0.0
      %v2636 = vmax.f32 %v2498, 0.0
      %v2637 = vmax.f32 %v2503, 0.0
      %v2638 = vmax.f32 %v2508, 0.0
      %v2639 = vmax.f32 %v2513, 0.0
      %v2640 = vmax.f32 %v2518, 0.0
      %v2641 = vmax.f32 %v2523, 0.0
      %v2642 = vmax.f32 %v2528, 0.0
      %v2643 = vmax.f32 %v2533, 0.0
      %v2644 = vmax.f32 %v2538, 0.0
      %v2645 = vmax.f32 %v2543, 0.0
      %v2646 = vmax.f32 %v2548, 0.0
      %v2647 = vmax.f32 %v2553, 0.0
      %v2648 = vmax.f32 %v2558, 0.0
      %v2649 = vmax.f32 %v2563, 0.0
      %v2650 = vmax.f32 %v2568, 0.0
      %v2651 = vmax.f32 %v2573, 0.0
      %v2652 = vmax.f32 %v2578, 0.0
      %v2653 = vmax.f32 %v2583, 0.0
      %v2654 = vmax.f32 %v2588, 0.0
      %v2655 = vmax.f32 %v2593, 0.0
      %v2656 = vmax.f32 %v2598, 0.0
      %v2657 = vmax.f32 %v2603, 0.0
      %v2658 = vmax.f32 %v2608, 0.0
      %v2659 = vmax.f32 %v2613, 0.0
      %v2660 = vmax.f32 %v2618, 0.0
      %v2661 = vmax.f32 %v2623, 0.0
      %v2662 = vmax.f32 %v2628, 0.0
      %s2663 = scalar_lea.vmem [#allocation3], 24
      %2664 = vst.msk [vmem:[%s2663 + $0x1] sm:$0xff] %vm2005, %v2631
      %2665 = vst.msk [vmem:[%s2663 + $0x9] sm:$0xff] %vm2005, %v2632
      %2666 = vst.msk [vmem:[%s2663 + $0x19] sm:$0xff] %vm2005, %v2633
      %2667 = vst.msk [vmem:[%s2663 + $0x21] sm:$0xff] %vm2005, %v2634
      %2668 = vst.msk [vmem:[%s2663 + $0x31] sm:$0xff] %vm2005, %v2635
      %2669 = vst.msk [vmem:[%s2663 + $0x39] sm:$0xff] %vm2005, %v2636
      %2670 = vst.msk [vmem:[%s2663 + $0x49] sm:$0xff] %vm2005, %v2637
      %2671 = vst.msk [vmem:[%s2663 + $0x51] sm:$0xff] %vm2005, %v2638
      %2672 = vst.msk [vmem:[%s2663 + $0x61] sm:$0xff] %vm2005, %v2639
      %2673 = vst.msk [vmem:[%s2663 + $0x69] sm:$0xff] %vm2005, %v2640
      %2674 = vst.msk [vmem:[%s2663 + $0x79] sm:$0xff] %vm2005, %v2641
      %2675 = vst.msk [vmem:[%s2663 + $0x81] sm:$0xff] %vm2005, %v2642
      %2676 = vst.msk [vmem:[%s2663 + $0x91] sm:$0xff] %vm2005, %v2643
      %2677 = vst.msk [vmem:[%s2663 + $0x99] sm:$0xff] %vm2005, %v2644
      %2678 = vst.msk [vmem:[%s2663 + $0xa9] sm:$0xff] %vm2005, %v2645
      %2679 = vst.msk [vmem:[%s2663 + $0xb1] sm:$0xff] %vm2005, %v2646
      %2680 = vst.msk [vmem:[%s2663 + $0xc1] sm:$0xff] %vm2005, %v2647
      %2681 = vst.msk [vmem:[%s2663 + $0xc9] sm:$0xff] %vm2005, %v2648
      %2682 = vst.msk [vmem:[%s2663 + $0xd9] sm:$0xff] %vm2005, %v2649
      %2683 = vst.msk [vmem:[%s2663 + $0xe1] sm:$0xff] %vm2005, %v2650
      %2684 = vst.msk [vmem:[%s2663 + $0xf1] sm:$0xff] %vm2005, %v2651
      %2685 = vst.msk [vmem:[%s2663 + $0xf9] sm:$0xff] %vm2005, %v2652
      %2686 = vst.msk [vmem:[%s2663 + $0x109] sm:$0xff] %vm2005, %v2653
      %2687 = vst.msk [vmem:[%s2663 + $0x111] sm:$0xff] %vm2005, %v2654
      %2688 = vst.msk [vmem:[%s2663 + $0x121] sm:$0xff] %vm2005, %v2655
      %2689 = vst.msk [vmem:[%s2663 + $0x129] sm:$0xff] %vm2005, %v2656
      %2690 = vst.msk [vmem:[%s2663 + $0x139] sm:$0xff] %vm2005, %v2657
      %2691 = vst.msk [vmem:[%s2663 + $0x141] sm:$0xff] %vm2005, %v2658
      %2692 = vst.msk [vmem:[%s2663 + $0x151] sm:$0xff] %vm2005, %v2659
      %2693 = vst.msk [vmem:[%s2663 + $0x159] sm:$0xff] %vm2005, %v2660
      %2694 = vst.msk [vmem:[%s2663 + $0x169] sm:$0xff] %vm2005, %v2661
      %2695 = vst.msk [vmem:[%s2663 + $0x171] sm:$0xff] %vm2005, %v2662
      %s2696 = scalar_lea.vmem [#allocation3], 48
      %v2697 = vld [vmem:[%s2696] sm:$0xff]
      %v2698 = vld [vmem:[%s2696 + $0x8] sm:$0xff]
      %v2699 = vld [vmem:[%s2696 + $0x10] sm:$0x3]
      %2700 = vst.msk [vmem:[#allocation3] sm:$0xff] %vm2005, %v2697
      %2701 = vst.msk [vmem:[#allocation3 + $0x8] sm:$0xff] %vm2005, %v2698
      %vm2702 = vcmask 123904
      %2703 = vst.msk [vmem:[#allocation3 + $0x10] sm:$0x3] %vm2702, %v2699
      %s2704 = scalar_lea.vmem [#allocation3], 360
      %v2705 = vld [vmem:[%s2704] sm:$0xff]
      %v2706 = vld [vmem:[%s2704 + $0x8] sm:$0xff]
      %v2707 = vld [vmem:[%s2704 + $0x10] sm:$0x3]
      %s2708 = scalar_lea.vmem [#allocation3], 408
      %2709 = vst.msk [vmem:[%s2708] sm:$0xff] %vm2005, %v2705
      %2710 = vst.msk [vmem:[%s2708 + $0x8] sm:$0xff] %vm2005, %v2706
      %2711 = vst.msk [vmem:[%s2708 + $0x10] sm:$0x3] %vm2702, %v2707
      %v2712 = vld [vmem:[#allocation3 + $0x2] sm:$0x1]
      %v2713 = vld [vmem:[#allocation3 + $0x1a] sm:$0x1]
      %v2714 = vld [vmem:[#allocation3 + $0x32] sm:$0x1]
      %v2715 = vld [vmem:[#allocation3 + $0x4a] sm:$0x1]
      %v2716 = vld [vmem:[#allocation3 + $0x62] sm:$0x1]
      %v2717 = vld [vmem:[#allocation3 + $0x7a] sm:$0x1]
      %v2718 = vld [vmem:[#allocation3 + $0x92] sm:$0x1]
      %v2719 = vld [vmem:[#allocation3 + $0xaa] sm:$0x1]
      %v2720 = vld [vmem:[#allocation3 + $0xc2] sm:$0x1]
      %v2721 = vld [vmem:[#allocation3 + $0xda] sm:$0x1]
      %v2722 = vld [vmem:[#allocation3 + $0xf2] sm:$0x1]
      %v2723 = vld [vmem:[#allocation3 + $0x10a] sm:$0x1]
      %v2724 = vld [vmem:[#allocation3 + $0x122] sm:$0x1]
      %v2725 = vld [vmem:[#allocation3 + $0x13a] sm:$0x1]
      %v2726 = vld [vmem:[#allocation3 + $0x152] sm:$0x1]
      %v2727 = vld [vmem:[#allocation3 + $0x16a] sm:$0x1]
      %v2728 = vld [vmem:[#allocation3 + $0x182] sm:$0x1]
      %v2729 = vld [vmem:[#allocation3 + $0x19a] sm:$0x1]
      %vm2730 = vcmask 122880
      %2731 = vst.msk [vmem:[#allocation3] sm:$0x1] %vm2730, %v2712
      %2732 = vst.msk [vmem:[#allocation3 + $0x18] sm:$0x1] %vm2730, %v2713
      %2733 = vst.msk [vmem:[#allocation3 + $0x30] sm:$0x1] %vm2730, %v2714
      %2734 = vst.msk [vmem:[#allocation3 + $0x48] sm:$0x1] %vm2730, %v2715
      %2735 = vst.msk [vmem:[#allocation3 + $0x60] sm:$0x1] %vm2730, %v2716
      %2736 = vst.msk [vmem:[#allocation3 + $0x78] sm:$0x1] %vm2730, %v2717
      %2737 = vst.msk [vmem:[#allocation3 + $0x90] sm:$0x1] %vm2730, %v2718
      %2738 = vst.msk [vmem:[#allocation3 + $0xa8] sm:$0x1] %vm2730, %v2719
      %2739 = vst.msk [vmem:[#allocation3 + $0xc0] sm:$0x1] %vm2730, %v2720
      %2740 = vst.msk [vmem:[#allocation3 + $0xd8] sm:$0x1] %vm2730, %v2721
      %2741 = vst.msk [vmem:[#allocation3 + $0xf0] sm:$0x1] %vm2730, %v2722
      %2742 = vst.msk [vmem:[#allocation3 + $0x108] sm:$0x1] %vm2730, %v2723
      %2743 = vst.msk [vmem:[#allocation3 + $0x120] sm:$0x1] %vm2730, %v2724
      %2744 = vst.msk [vmem:[#allocation3 + $0x138] sm:$0x1] %vm2730, %v2725
      %2745 = vst.msk [vmem:[#allocation3 + $0x150] sm:$0x1] %vm2730, %v2726
      %2746 = vst.msk [vmem:[#allocation3 + $0x168] sm:$0x1] %vm2730, %v2727
      %2747 = vst.msk [vmem:[#allocation3 + $0x180] sm:$0x1] %vm2730, %v2728
      %2748 = vst.msk [vmem:[#allocation3 + $0x198] sm:$0x1] %vm2730, %v2729
      %v2749 = vld [vmem:[#allocation3 + $0xf] sm:$0x1]
      %v2750 = vld [vmem:[#allocation3 + $0x27] sm:$0x1]
      %v2751 = vld [vmem:[#allocation3 + $0x3f] sm:$0x1]
      %v2752 = vld [vmem:[#allocation3 + $0x57] sm:$0x1]
      %v2753 = vld [vmem:[#allocation3 + $0x6f] sm:$0x1]
      %v2754 = vld [vmem:[#allocation3 + $0x87] sm:$0x1]
      %v2755 = vld [vmem:[#allocation3 + $0x9f] sm:$0x1]
      %v2756 = vld [vmem:[#allocation3 + $0xb7] sm:$0x1]
      %v2757 = vld [vmem:[#allocation3 + $0xcf] sm:$0x1]
      %v2758 = vld [vmem:[#allocation3 + $0xe7] sm:$0x1]
      %v2759 = vld [vmem:[#allocation3 + $0xff] sm:$0x1]
      %v2760 = vld [vmem:[#allocation3 + $0x117] sm:$0x1]
      %v2761 = vld [vmem:[#allocation3 + $0x12f] sm:$0x1]
      %v2762 = vld [vmem:[#allocation3 + $0x147] sm:$0x1]
      %v2763 = vld [vmem:[#allocation3 + $0x15f] sm:$0x1]
      %v2764 = vld [vmem:[#allocation3 + $0x177] sm:$0x1]
      %v2765 = vld [vmem:[#allocation3 + $0x18f] sm:$0x1]
      %v2766 = vld [vmem:[#allocation3 + $0x1a7] sm:$0x1]
      %2767 = vst.msk [vmem:[#allocation3 + $0x11] sm:$0x1] %vm2730, %v2749
      %2768 = vst.msk [vmem:[#allocation3 + $0x29] sm:$0x1] %vm2730, %v2750
      %2769 = vst.msk [vmem:[#allocation3 + $0x41] sm:$0x1] %vm2730, %v2751
      %2770 = vst.msk [vmem:[#allocation3 + $0x59] sm:$0x1] %vm2730, %v2752
      %2771 = vst.msk [vmem:[#allocation3 + $0x71] sm:$0x1] %vm2730, %v2753
      %2772 = vst.msk [vmem:[#allocation3 + $0x89] sm:$0x1] %vm2730, %v2754
      %2773 = vst.msk [vmem:[#allocation3 + $0xa1] sm:$0x1] %vm2730, %v2755
      %2774 = vst.msk [vmem:[#allocation3 + $0xb9] sm:$0x1] %vm2730, %v2756
      %2775 = vst.msk [vmem:[#allocation3 + $0xd1] sm:$0x1] %vm2730, %v2757
      %2776 = vst.msk [vmem:[#allocation3 + $0xe9] sm:$0x1] %vm2730, %v2758
      %2777 = vst.msk [vmem:[#allocation3 + $0x101] sm:$0x1] %vm2730, %v2759
      %2778 = vst.msk [vmem:[#allocation3 + $0x119] sm:$0x1] %vm2730, %v2760
      %2779 = vst.msk [vmem:[#allocation3 + $0x131] sm:$0x1] %vm2730, %v2761
      %2780 = vst.msk [vmem:[#allocation3 + $0x149] sm:$0x1] %vm2730, %v2762
      %2781 = vst.msk [vmem:[#allocation3 + $0x161] sm:$0x1] %vm2730, %v2763
      %2782 = vst.msk [vmem:[#allocation3 + $0x179] sm:$0x1] %vm2730, %v2764
      %2783 = vst.msk [vmem:[#allocation3 + $0x191] sm:$0x1] %vm2730, %v2765
      %2784 = vst.msk [vmem:[#allocation3 + $0x1a9] sm:$0x1] %vm2730, %v2766
      %v2785 = vld [vmem:[#allocation2] sm:$0xff]
      %v2786 = vld [vmem:[#allocation2 + $0x8] sm:$0xff]
      %v2787 = vld [vmem:[#allocation2 + $0x18] sm:$0xff]
      %v2788 = vld [vmem:[#allocation2 + $0x20] sm:$0xff]
      %v2789 = vld [vmem:[#allocation2 + $0x30] sm:$0xff]
      %v2790 = vld [vmem:[#allocation2 + $0x38] sm:$0xff]
      %v2791 = vld [vmem:[#allocation2 + $0x48] sm:$0xff]
      %v2792 = vld [vmem:[#allocation2 + $0x50] sm:$0xff]
      %v2793 = vld [vmem:[#allocation2 + $0x60] sm:$0xff]
      %v2794 = vld [vmem:[#allocation2 + $0x68] sm:$0xff]
      %v2795 = vld [vmem:[#allocation2 + $0x78] sm:$0xff]
      %v2796 = vld [vmem:[#allocation2 + $0x80] sm:$0xff]
      %v2797 = vld [vmem:[#allocation2 + $0x90] sm:$0xff]
      %v2798 = vld [vmem:[#allocation2 + $0x98] sm:$0xff]
      %v2799 = vld [vmem:[#allocation2 + $0xa8] sm:$0xff]
      %v2800 = vld [vmem:[#allocation2 + $0xb0] sm:$0xff]
      %v2801 = vld [vmem:[#allocation2 + $0xc0] sm:$0xff]
      %v2802 = vld [vmem:[#allocation2 + $0xc8] sm:$0xff]
      %v2803 = vld [vmem:[#allocation2 + $0xd8] sm:$0xff]
      %v2804 = vld [vmem:[#allocation2 + $0xe0] sm:$0xff]
      %v2805 = vld [vmem:[#allocation2 + $0xf0] sm:$0xff]
      %v2806 = vld [vmem:[#allocation2 + $0xf8] sm:$0xff]
      %v2807 = vld [vmem:[#allocation2 + $0x108] sm:$0xff]
      %v2808 = vld [vmem:[#allocation2 + $0x110] sm:$0xff]
      %v2809 = vld [vmem:[#allocation2 + $0x120] sm:$0xff]
      %v2810 = vld [vmem:[#allocation2 + $0x128] sm:$0xff]
      %v2811 = vld [vmem:[#allocation2 + $0x138] sm:$0xff]
      %v2812 = vld [vmem:[#allocation2 + $0x140] sm:$0xff]
      %v2813 = vld [vmem:[#allocation2 + $0x150] sm:$0xff]
      %v2814 = vld [vmem:[#allocation2 + $0x158] sm:$0xff]
      %v2815 = vld [vmem:[#allocation2 + $0x168] sm:$0xff]
      %v2816 = vld [vmem:[#allocation2 + $0x170] sm:$0xff]
      %v2817 = vld [vmem:[#allocation3] sm:$0xff]
      %v2818 = vld [vmem:[#allocation3 + $0x8] sm:$0xff]
      %v2819 = vld [vmem:[#allocation3 + $0x18] sm:$0xff]
      %v2820 = vld [vmem:[#allocation3 + $0x20] sm:$0xff]
      %v2821 = vld [vmem:[#allocation3 + $0x30] sm:$0xff]
      %v2822 = vld [vmem:[#allocation3 + $0x38] sm:$0xff]
      %v2823 = vld [vmem:[#allocation3 + $0x48] sm:$0xff]
      %v2824 = vld [vmem:[#allocation3 + $0x50] sm:$0xff]
      %v2825 = vld [vmem:[#allocation3 + $0x60] sm:$0xff]
      %v2826 = vld [vmem:[#allocation3 + $0x68] sm:$0xff]
      %v2827 = vld [vmem:[#allocation3 + $0x78] sm:$0xff]
      %v2828 = vld [vmem:[#allocation3 + $0x80] sm:$0xff]
      %v2829 = vld [vmem:[#allocation3 + $0x90] sm:$0xff]
      %v2830 = vld [vmem:[#allocation3 + $0x98] sm:$0xff]
      %v2831 = vld [vmem:[#allocation3 + $0xa8] sm:$0xff]
      %v2832 = vld [vmem:[#allocation3 + $0xb0] sm:$0xff]
      %v2833 = vld [vmem:[#allocation3 + $0xc0] sm:$0xff]
      %v2834 = vld [vmem:[#allocation3 + $0xc8] sm:$0xff]
      %v2835 = vld [vmem:[#allocation3 + $0xd8] sm:$0xff]
      %v2836 = vld [vmem:[#allocation3 + $0xe0] sm:$0xff]
      %v2837 = vld [vmem:[#allocation3 + $0xf0] sm:$0xff]
      %v2838 = vld [vmem:[#allocation3 + $0xf8] sm:$0xff]
      %v2839 = vld [vmem:[#allocation3 + $0x108] sm:$0xff]
      %v2840 = vld [vmem:[#allocation3 + $0x110] sm:$0xff]
      %v2841 = vld [vmem:[#allocation3 + $0x120] sm:$0xff]
      %v2842 = vld [vmem:[#allocation3 + $0x128] sm:$0xff]
      %v2843 = vld [vmem:[#allocation3 + $0x138] sm:$0xff]
      %v2844 = vld [vmem:[#allocation3 + $0x140] sm:$0xff]
      %v2845 = vld [vmem:[#allocation3 + $0x150] sm:$0xff]
      %v2846 = vld [vmem:[#allocation3 + $0x158] sm:$0xff]
      %v2847 = vld [vmem:[#allocation3 + $0x168] sm:$0xff]
      %v2848 = vld [vmem:[#allocation3 + $0x170] sm:$0xff]
      %v2849 = vld [vmem:[#allocation2 + $0x1] sm:$0xff]
      %v2850 = vld [vmem:[#allocation2 + $0x9] sm:$0xff]
      %v2851 = vld [vmem:[#allocation2 + $0x19] sm:$0xff]
      %v2852 = vld [vmem:[#allocation2 + $0x21] sm:$0xff]
      %v2853 = vld [vmem:[#allocation2 + $0x31] sm:$0xff]
      %v2854 = vld [vmem:[#allocation2 + $0x39] sm:$0xff]
      %v2855 = vld [vmem:[#allocation2 + $0x49] sm:$0xff]
      %v2856 = vld [vmem:[#allocation2 + $0x51] sm:$0xff]
      %v2857 = vld [vmem:[#allocation2 + $0x61] sm:$0xff]
      %v2858 = vld [vmem:[#allocation2 + $0x69] sm:$0xff]
      %v2859 = vld [vmem:[#allocation2 + $0x79] sm:$0xff]
      %v2860 = vld [vmem:[#allocation2 + $0x81] sm:$0xff]
      %v2861 = vld [vmem:[#allocation2 + $0x91] sm:$0xff]
      %v2862 = vld [vmem:[#allocation2 + $0x99] sm:$0xff]
      %v2863 = vld [vmem:[#allocation2 + $0xa9] sm:$0xff]
      %v2864 = vld [vmem:[#allocation2 + $0xb1] sm:$0xff]
      %v2865 = vld [vmem:[#allocation2 + $0xc1] sm:$0xff]
      %v2866 = vld [vmem:[#allocation2 + $0xc9] sm:$0xff]
      %v2867 = vld [vmem:[#allocation2 + $0xd9] sm:$0xff]
      %v2868 = vld [vmem:[#allocation2 + $0xe1] sm:$0xff]
      %v2869 = vld [vmem:[#allocation2 + $0xf1] sm:$0xff]
      %v2870 = vld [vmem:[#allocation2 + $0xf9] sm:$0xff]
      %v2871 = vld [vmem:[#allocation2 + $0x109] sm:$0xff]
      %v2872 = vld [vmem:[#allocation2 + $0x111] sm:$0xff]
      %v2873 = vld [vmem:[#allocation2 + $0x121] sm:$0xff]
      %v2874 = vld [vmem:[#allocation2 + $0x129] sm:$0xff]
      %v2875 = vld [vmem:[#allocation2 + $0x139] sm:$0xff]
      %v2876 = vld [vmem:[#allocation2 + $0x141] sm:$0xff]
      %v2877 = vld [vmem:[#allocation2 + $0x151] sm:$0xff]
      %v2878 = vld [vmem:[#allocation2 + $0x159] sm:$0xff]
      %v2879 = vld [vmem:[#allocation2 + $0x169] sm:$0xff]
      %v2880 = vld [vmem:[#allocation2 + $0x171] sm:$0xff]
      %v2881 = vld [vmem:[#allocation3 + $0x1] sm:$0xff]
      %v2882 = vld [vmem:[#allocation3 + $0x9] sm:$0xff]
      %v2883 = vld [vmem:[#allocation3 + $0x19] sm:$0xff]
      %v2884 = vld [vmem:[#allocation3 + $0x21] sm:$0xff]
      %v2885 = vld [vmem:[#allocation3 + $0x31] sm:$0xff]
      %v2886 = vld [vmem:[#allocation3 + $0x39] sm:$0xff]
      %v2887 = vld [vmem:[#allocation3 + $0x49] sm:$0xff]
      %v2888 = vld [vmem:[#allocation3 + $0x51] sm:$0xff]
      %v2889 = vld [vmem:[#allocation3 + $0x61] sm:$0xff]
      %v2890 = vld [vmem:[#allocation3 + $0x69] sm:$0xff]
      %v2891 = vld [vmem:[#allocation3 + $0x79] sm:$0xff]
      %v2892 = vld [vmem:[#allocation3 + $0x81] sm:$0xff]
      %v2893 = vld [vmem:[#allocation3 + $0x91] sm:$0xff]
      %v2894 = vld [vmem:[#allocation3 + $0x99] sm:$0xff]
      %v2895 = vld [vmem:[#allocation3 + $0xa9] sm:$0xff]
      %v2896 = vld [vmem:[#allocation3 + $0xb1] sm:$0xff]
      %v2897 = vld [vmem:[#allocation3 + $0xc1] sm:$0xff]
      %v2898 = vld [vmem:[#allocation3 + $0xc9] sm:$0xff]
      %v2899 = vld [vmem:[#allocation3 + $0xd9] sm:$0xff]
      %v2900 = vld [vmem:[#allocation3 + $0xe1] sm:$0xff]
      %v2901 = vld [vmem:[#allocation3 + $0xf1] sm:$0xff]
      %v2902 = vld [vmem:[#allocation3 + $0xf9] sm:$0xff]
      %v2903 = vld [vmem:[#allocation3 + $0x109] sm:$0xff]
      %v2904 = vld [vmem:[#allocation3 + $0x111] sm:$0xff]
      %v2905 = vld [vmem:[#allocation3 + $0x121] sm:$0xff]
      %v2906 = vld [vmem:[#allocation3 + $0x129] sm:$0xff]
      %v2907 = vld [vmem:[#allocation3 + $0x139] sm:$0xff]
      %v2908 = vld [vmem:[#allocation3 + $0x141] sm:$0xff]
      %v2909 = vld [vmem:[#allocation3 + $0x151] sm:$0xff]
      %v2910 = vld [vmem:[#allocation3 + $0x159] sm:$0xff]
      %v2911 = vld [vmem:[#allocation3 + $0x169] sm:$0xff]
      %v2912 = vld [vmem:[#allocation3 + $0x171] sm:$0xff]
      %v2913 = vld [vmem:[#allocation2 + $0x2] sm:$0xff]
      %v2914 = vld [vmem:[#allocation2 + $0xa] sm:$0xff]
      %v2915 = vld [vmem:[#allocation2 + $0x1a] sm:$0xff]
      %v2916 = vld [vmem:[#allocation2 + $0x22] sm:$0xff]
      %v2917 = vld [vmem:[#allocation2 + $0x32] sm:$0xff]
      %v2918 = vld [vmem:[#allocation2 + $0x3a] sm:$0xff]
      %v2919 = vld [vmem:[#allocation2 + $0x4a] sm:$0xff]
      %v2920 = vld [vmem:[#allocation2 + $0x52] sm:$0xff]
      %v2921 = vld [vmem:[#allocation2 + $0x62] sm:$0xff]
      %v2922 = vld [vmem:[#allocation2 + $0x6a] sm:$0xff]
      %v2923 = vld [vmem:[#allocation2 + $0x7a] sm:$0xff]
      %v2924 = vld [vmem:[#allocation2 + $0x82] sm:$0xff]
      %v2925 = vld [vmem:[#allocation2 + $0x92] sm:$0xff]
      %v2926 = vld [vmem:[#allocation2 + $0x9a] sm:$0xff]
      %v2927 = vld [vmem:[#allocation2 + $0xaa] sm:$0xff]
      %v2928 = vld [vmem:[#allocation2 + $0xb2] sm:$0xff]
      %v2929 = vld [vmem:[#allocation2 + $0xc2] sm:$0xff]
      %v2930 = vld [vmem:[#allocation2 + $0xca] sm:$0xff]
      %v2931 = vld [vmem:[#allocation2 + $0xda] sm:$0xff]
      %v2932 = vld [vmem:[#allocation2 + $0xe2] sm:$0xff]
      %v2933 = vld [vmem:[#allocation2 + $0xf2] sm:$0xff]
      %v2934 = vld [vmem:[#allocation2 + $0xfa] sm:$0xff]
      %v2935 = vld [vmem:[#allocation2 + $0x10a] sm:$0xff]
      %v2936 = vld [vmem:[#allocation2 + $0x112] sm:$0xff]
      %v2937 = vld [vmem:[#allocation2 + $0x122] sm:$0xff]
      %v2938 = vld [vmem:[#allocation2 + $0x12a] sm:$0xff]
      %v2939 = vld [vmem:[#allocation2 + $0x13a] sm:$0xff]
      %v2940 = vld [vmem:[#allocation2 + $0x142] sm:$0xff]
      %v2941 = vld [vmem:[#allocation2 + $0x152] sm:$0xff]
      %v2942 = vld [vmem:[#allocation2 + $0x15a] sm:$0xff]
      %v2943 = vld [vmem:[#allocation2 + $0x16a] sm:$0xff]
      %v2944 = vld [vmem:[#allocation2 + $0x172] sm:$0xff]
      %v2945 = vld [vmem:[#allocation3 + $0x2] sm:$0xff]
      %v2946 = vld [vmem:[#allocation3 + $0xa] sm:$0xff]
      %v2947 = vld [vmem:[#allocation3 + $0x1a] sm:$0xff]
      %v2948 = vld [vmem:[#allocation3 + $0x22] sm:$0xff]
      %v2949 = vld [vmem:[#allocation3 + $0x32] sm:$0xff]
      %v2950 = vld [vmem:[#allocation3 + $0x3a] sm:$0xff]
      %v2951 = vld [vmem:[#allocation3 + $0x4a] sm:$0xff]
      %v2952 = vld [vmem:[#allocation3 + $0x52] sm:$0xff]
      %v2953 = vld [vmem:[#allocation3 + $0x62] sm:$0xff]
      %v2954 = vld [vmem:[#allocation3 + $0x6a] sm:$0xff]
      %v2955 = vld [vmem:[#allocation3 + $0x7a] sm:$0xff]
      %v2956 = vld [vmem:[#allocation3 + $0x82] sm:$0xff]
      %v2957 = vld [vmem:[#allocation3 + $0x92] sm:$0xff]
      %v2958 = vld [vmem:[#allocation3 + $0x9a] sm:$0xff]
      %v2959 = vld [vmem:[#allocation3 + $0xaa] sm:$0xff]
      %v2960 = vld [vmem:[#allocation3 + $0xb2] sm:$0xff]
      %v2961 = vld [vmem:[#allocation3 + $0xc2] sm:$0xff]
      %v2962 = vld [vmem:[#allocation3 + $0xca] sm:$0xff]
      %v2963 = vld [vmem:[#allocation3 + $0xda] sm:$0xff]
      %v2964 = vld [vmem:[#allocation3 + $0xe2] sm:$0xff]
      %v2965 = vld [vmem:[#allocation3 + $0xf2] sm:$0xff]
      %v2966 = vld [vmem:[#allocation3 + $0xfa] sm:$0xff]
      %v2967 = vld [vmem:[#allocation3 + $0x10a] sm:$0xff]
      %v2968 = vld [vmem:[#allocation3 + $0x112] sm:$0xff]
      %v2969 = vld [vmem:[#allocation3 + $0x122] sm:$0xff]
      %v2970 = vld [vmem:[#allocation3 + $0x12a] sm:$0xff]
      %v2971 = vld [vmem:[#allocation3 + $0x13a] sm:$0xff]
      %v2972 = vld [vmem:[#allocation3 + $0x142] sm:$0xff]
      %v2973 = vld [vmem:[#allocation3 + $0x152] sm:$0xff]
      %v2974 = vld [vmem:[#allocation3 + $0x15a] sm:$0xff]
      %v2975 = vld [vmem:[#allocation3 + $0x16a] sm:$0xff]
      %v2976 = vld [vmem:[#allocation3 + $0x172] sm:$0xff]
      %v2977 = vld [vmem:[%s466] sm:$0xff]
      %v2978 = vld [vmem:[%s466 + $0x8] sm:$0xff]
      %v2979 = vld [vmem:[%s466 + $0x18] sm:$0xff]
      %v2980 = vld [vmem:[%s466 + $0x20] sm:$0xff]
      %v2981 = vld [vmem:[%s466 + $0x30] sm:$0xff]
      %v2982 = vld [vmem:[%s466 + $0x38] sm:$0xff]
      %v2983 = vld [vmem:[%s466 + $0x48] sm:$0xff]
      %v2984 = vld [vmem:[%s466 + $0x50] sm:$0xff]
      %v2985 = vld [vmem:[%s466 + $0x60] sm:$0xff]
      %v2986 = vld [vmem:[%s466 + $0x68] sm:$0xff]
      %v2987 = vld [vmem:[%s466 + $0x78] sm:$0xff]
      %v2988 = vld [vmem:[%s466 + $0x80] sm:$0xff]
      %v2989 = vld [vmem:[%s466 + $0x90] sm:$0xff]
      %v2990 = vld [vmem:[%s466 + $0x98] sm:$0xff]
      %v2991 = vld [vmem:[%s466 + $0xa8] sm:$0xff]
      %v2992 = vld [vmem:[%s466 + $0xb0] sm:$0xff]
      %v2993 = vld [vmem:[%s466 + $0xc0] sm:$0xff]
      %v2994 = vld [vmem:[%s466 + $0xc8] sm:$0xff]
      %v2995 = vld [vmem:[%s466 + $0xd8] sm:$0xff]
      %v2996 = vld [vmem:[%s466 + $0xe0] sm:$0xff]
      %v2997 = vld [vmem:[%s466 + $0xf0] sm:$0xff]
      %v2998 = vld [vmem:[%s466 + $0xf8] sm:$0xff]
      %v2999 = vld [vmem:[%s466 + $0x108] sm:$0xff]
      %v3000 = vld [vmem:[%s466 + $0x110] sm:$0xff]
      %v3001 = vld [vmem:[%s466 + $0x120] sm:$0xff]
      %v3002 = vld [vmem:[%s466 + $0x128] sm:$0xff]
      %v3003 = vld [vmem:[%s466 + $0x138] sm:$0xff]
      %v3004 = vld [vmem:[%s466 + $0x140] sm:$0xff]
      %v3005 = vld [vmem:[%s466 + $0x150] sm:$0xff]
      %v3006 = vld [vmem:[%s466 + $0x158] sm:$0xff]
      %v3007 = vld [vmem:[%s466 + $0x168] sm:$0xff]
      %v3008 = vld [vmem:[%s466 + $0x170] sm:$0xff]
      %v3009 = vld [vmem:[%s2663] sm:$0xff]
      %v3010 = vld [vmem:[%s2663 + $0x8] sm:$0xff]
      %v3011 = vld [vmem:[%s2663 + $0x18] sm:$0xff]
      %v3012 = vld [vmem:[%s2663 + $0x20] sm:$0xff]
      %v3013 = vld [vmem:[%s2663 + $0x30] sm:$0xff]
      %v3014 = vld [vmem:[%s2663 + $0x38] sm:$0xff]
      %v3015 = vld [vmem:[%s2663 + $0x48] sm:$0xff]
      %v3016 = vld [vmem:[%s2663 + $0x50] sm:$0xff]
      %v3017 = vld [vmem:[%s2663 + $0x60] sm:$0xff]
      %v3018 = vld [vmem:[%s2663 + $0x68] sm:$0xff]
      %v3019 = vld [vmem:[%s2663 + $0x78] sm:$0xff]
      %v3020 = vld [vmem:[%s2663 + $0x80] sm:$0xff]
      %v3021 = vld [vmem:[%s2663 + $0x90] sm:$0xff]
      %v3022 = vld [vmem:[%s2663 + $0x98] sm:$0xff]
      %v3023 = vld [vmem:[%s2663 + $0xa8] sm:$0xff]
      %v3024 = vld [vmem:[%s2663 + $0xb0] sm:$0xff]
      %v3025 = vld [vmem:[%s2663 + $0xc0] sm:$0xff]
      %v3026 = vld [vmem:[%s2663 + $0xc8] sm:$0xff]
      %v3027 = vld [vmem:[%s2663 + $0xd8] sm:$0xff]
      %v3028 = vld [vmem:[%s2663 + $0xe0] sm:$0xff]
      %v3029 = vld [vmem:[%s2663 + $0xf0] sm:$0xff]
      %v3030 = vld [vmem:[%s2663 + $0xf8] sm:$0xff]
      %v3031 = vld [vmem:[%s2663 + $0x108] sm:$0xff]
      %v3032 = vld [vmem:[%s2663 + $0x110] sm:$0xff]
      %v3033 = vld [vmem:[%s2663 + $0x120] sm:$0xff]
      %v3034 = vld [vmem:[%s2663 + $0x128] sm:$0xff]
      %v3035 = vld [vmem:[%s2663 + $0x138] sm:$0xff]
      %v3036 = vld [vmem:[%s2663 + $0x140] sm:$0xff]
      %v3037 = vld [vmem:[%s2663 + $0x150] sm:$0xff]
      %v3038 = vld [vmem:[%s2663 + $0x158] sm:$0xff]
      %v3039 = vld [vmem:[%s2663 + $0x168] sm:$0xff]
      %v3040 = vld [vmem:[%s2663 + $0x170] sm:$0xff]
      %v3041 = vld [vmem:[%s466 + $0x1] sm:$0xff]
      %v3042 = vld [vmem:[%s466 + $0x9] sm:$0xff]
      %v3043 = vld [vmem:[%s466 + $0x19] sm:$0xff]
      %v3044 = vld [vmem:[%s466 + $0x21] sm:$0xff]
      %v3045 = vld [vmem:[%s466 + $0x31] sm:$0xff]
      %v3046 = vld [vmem:[%s466 + $0x39] sm:$0xff]
      %v3047 = vld [vmem:[%s466 + $0x49] sm:$0xff]
      %v3048 = vld [vmem:[%s466 + $0x51] sm:$0xff]
      %v3049 = vld [vmem:[%s466 + $0x61] sm:$0xff]
      %v3050 = vld [vmem:[%s466 + $0x69] sm:$0xff]
      %v3051 = vld [vmem:[%s466 + $0x79] sm:$0xff]
      %v3052 = vld [vmem:[%s466 + $0x81] sm:$0xff]
      %v3053 = vld [vmem:[%s466 + $0x91] sm:$0xff]
      %v3054 = vld [vmem:[%s466 + $0x99] sm:$0xff]
      %v3055 = vld [vmem:[%s466 + $0xa9] sm:$0xff]
      %v3056 = vld [vmem:[%s466 + $0xb1] sm:$0xff]
      %v3057 = vld [vmem:[%s466 + $0xc1] sm:$0xff]
      %v3058 = vld [vmem:[%s466 + $0xc9] sm:$0xff]
      %v3059 = vld [vmem:[%s466 + $0xd9] sm:$0xff]
      %v3060 = vld [vmem:[%s466 + $0xe1] sm:$0xff]
      %v3061 = vld [vmem:[%s466 + $0xf1] sm:$0xff]
      %v3062 = vld [vmem:[%s466 + $0xf9] sm:$0xff]
      %v3063 = vld [vmem:[%s466 + $0x109] sm:$0xff]
      %v3064 = vld [vmem:[%s466 + $0x111] sm:$0xff]
      %v3065 = vld [vmem:[%s466 + $0x121] sm:$0xff]
      %v3066 = vld [vmem:[%s466 + $0x129] sm:$0xff]
      %v3067 = vld [vmem:[%s466 + $0x139] sm:$0xff]
      %v3068 = vld [vmem:[%s466 + $0x141] sm:$0xff]
      %v3069 = vld [vmem:[%s466 + $0x151] sm:$0xff]
      %v3070 = vld [vmem:[%s466 + $0x159] sm:$0xff]
      %v3071 = vld [vmem:[%s466 + $0x169] sm:$0xff]
      %v3072 = vld [vmem:[%s466 + $0x171] sm:$0xff]
      %v3073 = vld [vmem:[%s2663 + $0x1] sm:$0xff]
      %v3074 = vld [vmem:[%s2663 + $0x9] sm:$0xff]
      %v3075 = vld [vmem:[%s2663 + $0x19] sm:$0xff]
      %v3076 = vld [vmem:[%s2663 + $0x21] sm:$0xff]
      %v3077 = vld [vmem:[%s2663 + $0x31] sm:$0xff]
      %v3078 = vld [vmem:[%s2663 + $0x39] sm:$0xff]
      %v3079 = vld [vmem:[%s2663 + $0x49] sm:$0xff]
      %v3080 = vld [vmem:[%s2663 + $0x51] sm:$0xff]
      %v3081 = vld [vmem:[%s2663 + $0x61] sm:$0xff]
      %v3082 = vld [vmem:[%s2663 + $0x69] sm:$0xff]
      %v3083 = vld [vmem:[%s2663 + $0x79] sm:$0xff]
      %v3084 = vld [vmem:[%s2663 + $0x81] sm:$0xff]
      %v3085 = vld [vmem:[%s2663 + $0x91] sm:$0xff]
      %v3086 = vld [vmem:[%s2663 + $0x99] sm:$0xff]
      %v3087 = vld [vmem:[%s2663 + $0xa9] sm:$0xff]
      %v3088 = vld [vmem:[%s2663 + $0xb1] sm:$0xff]
      %v3089 = vld [vmem:[%s2663 + $0xc1] sm:$0xff]
      %v3090 = vld [vmem:[%s2663 + $0xc9] sm:$0xff]
      %v3091 = vld [vmem:[%s2663 + $0xd9] sm:$0xff]
      %v3092 = vld [vmem:[%s2663 + $0xe1] sm:$0xff]
      %v3093 = vld [vmem:[%s2663 + $0xf1] sm:$0xff]
      %v3094 = vld [vmem:[%s2663 + $0xf9] sm:$0xff]
      %v3095 = vld [vmem:[%s2663 + $0x109] sm:$0xff]
      %v3096 = vld [vmem:[%s2663 + $0x111] sm:$0xff]
      %v3097 = vld [vmem:[%s2663 + $0x121] sm:$0xff]
      %v3098 = vld [vmem:[%s2663 + $0x129] sm:$0xff]
      %v3099 = vld [vmem:[%s2663 + $0x139] sm:$0xff]
      %v3100 = vld [vmem:[%s2663 + $0x141] sm:$0xff]
      %v3101 = vld [vmem:[%s2663 + $0x151] sm:$0xff]
      %v3102 = vld [vmem:[%s2663 + $0x159] sm:$0xff]
      %v3103 = vld [vmem:[%s2663 + $0x169] sm:$0xff]
      %v3104 = vld [vmem:[%s2663 + $0x171] sm:$0xff]
      %v3105 = vld [vmem:[%s466 + $0x2] sm:$0xff]
      %v3106 = vld [vmem:[%s466 + $0xa] sm:$0xff]
      %v3107 = vld [vmem:[%s466 + $0x1a] sm:$0xff]
      %v3108 = vld [vmem:[%s466 + $0x22] sm:$0xff]
      %v3109 = vld [vmem:[%s466 + $0x32] sm:$0xff]
      %v3110 = vld [vmem:[%s466 + $0x3a] sm:$0xff]
      %v3111 = vld [vmem:[%s466 + $0x4a] sm:$0xff]
      %v3112 = vld [vmem:[%s466 + $0x52] sm:$0xff]
      %v3113 = vld [vmem:[%s466 + $0x62] sm:$0xff]
      %v3114 = vld [vmem:[%s466 + $0x6a] sm:$0xff]
      %v3115 = vld [vmem:[%s466 + $0x7a] sm:$0xff]
      %v3116 = vld [vmem:[%s466 + $0x82] sm:$0xff]
      %v3117 = vld [vmem:[%s466 + $0x92] sm:$0xff]
      %v3118 = vld [vmem:[%s466 + $0x9a] sm:$0xff]
      %v3119 = vld [vmem:[%s466 + $0xaa] sm:$0xff]
      %v3120 = vld [vmem:[%s466 + $0xb2] sm:$0xff]
      %v3121 = vld [vmem:[%s466 + $0xc2] sm:$0xff]
      %v3122 = vld [vmem:[%s466 + $0xca] sm:$0xff]
      %v3123 = vld [vmem:[%s466 + $0xda] sm:$0xff]
      %v3124 = vld [vmem:[%s466 + $0xe2] sm:$0xff]
      %v3125 = vld [vmem:[%s466 + $0xf2] sm:$0xff]
      %v3126 = vld [vmem:[%s466 + $0xfa] sm:$0xff]
      %v3127 = vld [vmem:[%s466 + $0x10a] sm:$0xff]
      %v3128 = vld [vmem:[%s466 + $0x112] sm:$0xff]
      %v3129 = vld [vmem:[%s466 + $0x122] sm:$0xff]
      %v3130 = vld [vmem:[%s466 + $0x12a] sm:$0xff]
      %v3131 = vld [vmem:[%s466 + $0x13a] sm:$0xff]
      %v3132 = vld [vmem:[%s466 + $0x142] sm:$0xff]
      %v3133 = vld [vmem:[%s466 + $0x152] sm:$0xff]
      %v3134 = vld [vmem:[%s466 + $0x15a] sm:$0xff]
      %v3135 = vld [vmem:[%s466 + $0x16a] sm:$0xff]
      %v3136 = vld [vmem:[%s466 + $0x172] sm:$0xff]
      %v3137 = vld [vmem:[%s2663 + $0x2] sm:$0xff]
      %v3138 = vld [vmem:[%s2663 + $0xa] sm:$0xff]
      %v3139 = vld [vmem:[%s2663 + $0x1a] sm:$0xff]
      %v3140 = vld [vmem:[%s2663 + $0x22] sm:$0xff]
      %v3141 = vld [vmem:[%s2663 + $0x32] sm:$0xff]
      %v3142 = vld [vmem:[%s2663 + $0x3a] sm:$0xff]
      %v3143 = vld [vmem:[%s2663 + $0x4a] sm:$0xff]
      %v3144 = vld [vmem:[%s2663 + $0x52] sm:$0xff]
      %v3145 = vld [vmem:[%s2663 + $0x62] sm:$0xff]
      %v3146 = vld [vmem:[%s2663 + $0x6a] sm:$0xff]
      %v3147 = vld [vmem:[%s2663 + $0x7a] sm:$0xff]
      %v3148 = vld [vmem:[%s2663 + $0x82] sm:$0xff]
      %v3149 = vld [vmem:[%s2663 + $0x92] sm:$0xff]
      %v3150 = vld [vmem:[%s2663 + $0x9a] sm:$0xff]
      %v3151 = vld [vmem:[%s2663 + $0xaa] sm:$0xff]
      %v3152 = vld [vmem:[%s2663 + $0xb2] sm:$0xff]
      %v3153 = vld [vmem:[%s2663 + $0xc2] sm:$0xff]
      %v3154 = vld [vmem:[%s2663 + $0xca] sm:$0xff]
      %v3155 = vld [vmem:[%s2663 + $0xda] sm:$0xff]
      %v3156 = vld [vmem:[%s2663 + $0xe2] sm:$0xff]
      %v3157 = vld [vmem:[%s2663 + $0xf2] sm:$0xff]
      %v3158 = vld [vmem:[%s2663 + $0xfa] sm:$0xff]
      %v3159 = vld [vmem:[%s2663 + $0x10a] sm:$0xff]
      %v3160 = vld [vmem:[%s2663 + $0x112] sm:$0xff]
      %v3161 = vld [vmem:[%s2663 + $0x122] sm:$0xff]
      %v3162 = vld [vmem:[%s2663 + $0x12a] sm:$0xff]
      %v3163 = vld [vmem:[%s2663 + $0x13a] sm:$0xff]
      %v3164 = vld [vmem:[%s2663 + $0x142] sm:$0xff]
      %v3165 = vld [vmem:[%s2663 + $0x152] sm:$0xff]
      %v3166 = vld [vmem:[%s2663 + $0x15a] sm:$0xff]
      %v3167 = vld [vmem:[%s2663 + $0x16a] sm:$0xff]
      %v3168 = vld [vmem:[%s2663 + $0x172] sm:$0xff]
      %v3169 = vld [vmem:[%s500] sm:$0xff]
      %v3170 = vld [vmem:[%s500 + $0x8] sm:$0xff]
      %v3171 = vld [vmem:[%s500 + $0x18] sm:$0xff]
      %v3172 = vld [vmem:[%s500 + $0x20] sm:$0xff]
      %v3173 = vld [vmem:[%s500 + $0x30] sm:$0xff]
      %v3174 = vld [vmem:[%s500 + $0x38] sm:$0xff]
      %v3175 = vld [vmem:[%s500 + $0x48] sm:$0xff]
      %v3176 = vld [vmem:[%s500 + $0x50] sm:$0xff]
      %v3177 = vld [vmem:[%s500 + $0x60] sm:$0xff]
      %v3178 = vld [vmem:[%s500 + $0x68] sm:$0xff]
      %v3179 = vld [vmem:[%s500 + $0x78] sm:$0xff]
      %v3180 = vld [vmem:[%s500 + $0x80] sm:$0xff]
      %v3181 = vld [vmem:[%s500 + $0x90] sm:$0xff]
      %v3182 = vld [vmem:[%s500 + $0x98] sm:$0xff]
      %v3183 = vld [vmem:[%s500 + $0xa8] sm:$0xff]
      %v3184 = vld [vmem:[%s500 + $0xb0] sm:$0xff]
      %v3185 = vld [vmem:[%s500 + $0xc0] sm:$0xff]
      %v3186 = vld [vmem:[%s500 + $0xc8] sm:$0xff]
      %v3187 = vld [vmem:[%s500 + $0xd8] sm:$0xff]
      %v3188 = vld [vmem:[%s500 + $0xe0] sm:$0xff]
      %v3189 = vld [vmem:[%s500 + $0xf0] sm:$0xff]
      %v3190 = vld [vmem:[%s500 + $0xf8] sm:$0xff]
      %v3191 = vld [vmem:[%s500 + $0x108] sm:$0xff]
      %v3192 = vld [vmem:[%s500 + $0x110] sm:$0xff]
      %v3193 = vld [vmem:[%s500 + $0x120] sm:$0xff]
      %v3194 = vld [vmem:[%s500 + $0x128] sm:$0xff]
      %v3195 = vld [vmem:[%s500 + $0x138] sm:$0xff]
      %v3196 = vld [vmem:[%s500 + $0x140] sm:$0xff]
      %v3197 = vld [vmem:[%s500 + $0x150] sm:$0xff]
      %v3198 = vld [vmem:[%s500 + $0x158] sm:$0xff]
      %v3199 = vld [vmem:[%s500 + $0x168] sm:$0xff]
      %v3200 = vld [vmem:[%s500 + $0x170] sm:$0xff]
      %v3201 = vld [vmem:[%s2696] sm:$0xff]
      %v3202 = vld [vmem:[%s2696 + $0x8] sm:$0xff]
      %v3203 = vld [vmem:[%s2696 + $0x18] sm:$0xff]
      %v3204 = vld [vmem:[%s2696 + $0x20] sm:$0xff]
      %v3205 = vld [vmem:[%s2696 + $0x30] sm:$0xff]
      %v3206 = vld [vmem:[%s2696 + $0x38] sm:$0xff]
      %v3207 = vld [vmem:[%s2696 + $0x48] sm:$0xff]
      %v3208 = vld [vmem:[%s2696 + $0x50] sm:$0xff]
      %v3209 = vld [vmem:[%s2696 + $0x60] sm:$0xff]
      %v3210 = vld [vmem:[%s2696 + $0x68] sm:$0xff]
      %v3211 = vld [vmem:[%s2696 + $0x78] sm:$0xff]
      %v3212 = vld [vmem:[%s2696 + $0x80] sm:$0xff]
      %v3213 = vld [vmem:[%s2696 + $0x90] sm:$0xff]
      %v3214 = vld [vmem:[%s2696 + $0x98] sm:$0xff]
      %v3215 = vld [vmem:[%s2696 + $0xa8] sm:$0xff]
      %v3216 = vld [vmem:[%s2696 + $0xb0] sm:$0xff]
      %v3217 = vld [vmem:[%s2696 + $0xc0] sm:$0xff]
      %v3218 = vld [vmem:[%s2696 + $0xc8] sm:$0xff]
      %v3219 = vld [vmem:[%s2696 + $0xd8] sm:$0xff]
      %v3220 = vld [vmem:[%s2696 + $0xe0] sm:$0xff]
      %v3221 = vld [vmem:[%s2696 + $0xf0] sm:$0xff]
      %v3222 = vld [vmem:[%s2696 + $0xf8] sm:$0xff]
      %v3223 = vld [vmem:[%s2696 + $0x108] sm:$0xff]
      %v3224 = vld [vmem:[%s2696 + $0x110] sm:$0xff]
      %v3225 = vld [vmem:[%s2696 + $0x120] sm:$0xff]
      %v3226 = vld [vmem:[%s2696 + $0x128] sm:$0xff]
      %v3227 = vld [vmem:[%s2696 + $0x138] sm:$0xff]
      %v3228 = vld [vmem:[%s2696 + $0x140] sm:$0xff]
      %v3229 = vld [vmem:[%s2696 + $0x150] sm:$0xff]
      %v3230 = vld [vmem:[%s2696 + $0x158] sm:$0xff]
      %v3231 = vld [vmem:[%s2696 + $0x168] sm:$0xff]
      %v3232 = vld [vmem:[%s2696 + $0x170] sm:$0xff]
      %v3233 = vld [vmem:[%s500 + $0x1] sm:$0xff]
      %v3234 = vld [vmem:[%s500 + $0x9] sm:$0xff]
      %v3235 = vld [vmem:[%s500 + $0x19] sm:$0xff]
      %v3236 = vld [vmem:[%s500 + $0x21] sm:$0xff]
      %v3237 = vld [vmem:[%s500 + $0x31] sm:$0xff]
      %v3238 = vld [vmem:[%s500 + $0x39] sm:$0xff]
      %v3239 = vld [vmem:[%s500 + $0x49] sm:$0xff]
      %v3240 = vld [vmem:[%s500 + $0x51] sm:$0xff]
      %v3241 = vld [vmem:[%s500 + $0x61] sm:$0xff]
      %v3242 = vld [vmem:[%s500 + $0x69] sm:$0xff]
      %v3243 = vld [vmem:[%s500 + $0x79] sm:$0xff]
      %v3244 = vld [vmem:[%s500 + $0x81] sm:$0xff]
      %v3245 = vld [vmem:[%s500 + $0x91] sm:$0xff]
      %v3246 = vld [vmem:[%s500 + $0x99] sm:$0xff]
      %v3247 = vld [vmem:[%s500 + $0xa9] sm:$0xff]
      %v3248 = vld [vmem:[%s500 + $0xb1] sm:$0xff]
      %v3249 = vld [vmem:[%s500 + $0xc1] sm:$0xff]
      %v3250 = vld [vmem:[%s500 + $0xc9] sm:$0xff]
      %v3251 = vld [vmem:[%s500 + $0xd9] sm:$0xff]
      %v3252 = vld [vmem:[%s500 + $0xe1] sm:$0xff]
      %v3253 = vld [vmem:[%s500 + $0xf1] sm:$0xff]
      %v3254 = vld [vmem:[%s500 + $0xf9] sm:$0xff]
      %v3255 = vld [vmem:[%s500 + $0x109] sm:$0xff]
      %v3256 = vld [vmem:[%s500 + $0x111] sm:$0xff]
      %v3257 = vld [vmem:[%s500 + $0x121] sm:$0xff]
      %v3258 = vld [vmem:[%s500 + $0x129] sm:$0xff]
      %v3259 = vld [vmem:[%s500 + $0x139] sm:$0xff]
      %v3260 = vld [vmem:[%s500 + $0x141] sm:$0xff]
      %v3261 = vld [vmem:[%s500 + $0x151] sm:$0xff]
      %v3262 = vld [vmem:[%s500 + $0x159] sm:$0xff]
      %v3263 = vld [vmem:[%s500 + $0x169] sm:$0xff]
      %v3264 = vld [vmem:[%s500 + $0x171] sm:$0xff]
      %v3265 = vld [vmem:[%s2696 + $0x1] sm:$0xff]
      %v3266 = vld [vmem:[%s2696 + $0x9] sm:$0xff]
      %v3267 = vld [vmem:[%s2696 + $0x19] sm:$0xff]
      %v3268 = vld [vmem:[%s2696 + $0x21] sm:$0xff]
      %v3269 = vld [vmem:[%s2696 + $0x31] sm:$0xff]
      %v3270 = vld [vmem:[%s2696 + $0x39] sm:$0xff]
      %v3271 = vld [vmem:[%s2696 + $0x49] sm:$0xff]
      %v3272 = vld [vmem:[%s2696 + $0x51] sm:$0xff]
      %v3273 = vld [vmem:[%s2696 + $0x61] sm:$0xff]
      %v3274 = vld [vmem:[%s2696 + $0x69] sm:$0xff]
      %v3275 = vld [vmem:[%s2696 + $0x79] sm:$0xff]
      %v3276 = vld [vmem:[%s2696 + $0x81] sm:$0xff]
      %v3277 = vld [vmem:[%s2696 + $0x91] sm:$0xff]
      %v3278 = vld [vmem:[%s2696 + $0x99] sm:$0xff]
      %v3279 = vld [vmem:[%s2696 + $0xa9] sm:$0xff]
      %v3280 = vld [vmem:[%s2696 + $0xb1] sm:$0xff]
      %v3281 = vld [vmem:[%s2696 + $0xc1] sm:$0xff]
      %v3282 = vld [vmem:[%s2696 + $0xc9] sm:$0xff]
      %v3283 = vld [vmem:[%s2696 + $0xd9] sm:$0xff]
      %v3284 = vld [vmem:[%s2696 + $0xe1] sm:$0xff]
      %v3285 = vld [vmem:[%s2696 + $0xf1] sm:$0xff]
      %v3286 = vld [vmem:[%s2696 + $0xf9] sm:$0xff]
      %v3287 = vld [vmem:[%s2696 + $0x109] sm:$0xff]
      %v3288 = vld [vmem:[%s2696 + $0x111] sm:$0xff]
      %v3289 = vld [vmem:[%s2696 + $0x121] sm:$0xff]
      %v3290 = vld [vmem:[%s2696 + $0x129] sm:$0xff]
      %v3291 = vld [vmem:[%s2696 + $0x139] sm:$0xff]
      %v3292 = vld [vmem:[%s2696 + $0x141] sm:$0xff]
      %v3293 = vld [vmem:[%s2696 + $0x151] sm:$0xff]
      %v3294 = vld [vmem:[%s2696 + $0x159] sm:$0xff]
      %v3295 = vld [vmem:[%s2696 + $0x169] sm:$0xff]
      %v3296 = vld [vmem:[%s2696 + $0x171] sm:$0xff]
      %v3297 = vld [vmem:[%s500 + $0x2] sm:$0xff]
      %v3298 = vld [vmem:[%s500 + $0xa] sm:$0xff]
      %v3299 = vld [vmem:[%s500 + $0x1a] sm:$0xff]
      %v3300 = vld [vmem:[%s500 + $0x22] sm:$0xff]
      %v3301 = vld [vmem:[%s500 + $0x32] sm:$0xff]
      %v3302 = vld [vmem:[%s500 + $0x3a] sm:$0xff]
      %v3303 = vld [vmem:[%s500 + $0x4a] sm:$0xff]
      %v3304 = vld [vmem:[%s500 + $0x52] sm:$0xff]
      %v3305 = vld [vmem:[%s500 + $0x62] sm:$0xff]
      %v3306 = vld [vmem:[%s500 + $0x6a] sm:$0xff]
      %v3307 = vld [vmem:[%s500 + $0x7a] sm:$0xff]
      %v3308 = vld [vmem:[%s500 + $0x82] sm:$0xff]
      %v3309 = vld [vmem:[%s500 + $0x92] sm:$0xff]
      %v3310 = vld [vmem:[%s500 + $0x9a] sm:$0xff]
      %v3311 = vld [vmem:[%s500 + $0xaa] sm:$0xff]
      %v3312 = vld [vmem:[%s500 + $0xb2] sm:$0xff]
      %v3313 = vld [vmem:[%s500 + $0xc2] sm:$0xff]
      %v3314 = vld [vmem:[%s500 + $0xca] sm:$0xff]
      %v3315 = vld [vmem:[%s500 + $0xda] sm:$0xff]
      %v3316 = vld [vmem:[%s500 + $0xe2] sm:$0xff]
      %v3317 = vld [vmem:[%s500 + $0xf2] sm:$0xff]
      %v3318 = vld [vmem:[%s500 + $0xfa] sm:$0xff]
      %v3319 = vld [vmem:[%s500 + $0x10a] sm:$0xff]
      %v3320 = vld [vmem:[%s500 + $0x112] sm:$0xff]
      %v3321 = vld [vmem:[%s500 + $0x122] sm:$0xff]
      %v3322 = vld [vmem:[%s500 + $0x12a] sm:$0xff]
      %v3323 = vld [vmem:[%s500 + $0x13a] sm:$0xff]
      %v3324 = vld [vmem:[%s500 + $0x142] sm:$0xff]
      %v3325 = vld [vmem:[%s500 + $0x152] sm:$0xff]
      %v3326 = vld [vmem:[%s500 + $0x15a] sm:$0xff]
      %v3327 = vld [vmem:[%s500 + $0x16a] sm:$0xff]
      %v3328 = vld [vmem:[%s500 + $0x172] sm:$0xff]
      %v3329 = vld [vmem:[%s2696 + $0x2] sm:$0xff]
      %v3330 = vld [vmem:[%s2696 + $0xa] sm:$0xff]
      %v3331 = vld [vmem:[%s2696 + $0x1a] sm:$0xff]
      %v3332 = vld [vmem:[%s2696 + $0x22] sm:$0xff]
      %v3333 = vld [vmem:[%s2696 + $0x32] sm:$0xff]
      %v3334 = vld [vmem:[%s2696 + $0x3a] sm:$0xff]
      %v3335 = vld [vmem:[%s2696 + $0x4a] sm:$0xff]
      %v3336 = vld [vmem:[%s2696 + $0x52] sm:$0xff]
      %v3337 = vld [vmem:[%s2696 + $0x62] sm:$0xff]
      %v3338 = vld [vmem:[%s2696 + $0x6a] sm:$0xff]
      %v3339 = vld [vmem:[%s2696 + $0x7a] sm:$0xff]
      %v3340 = vld [vmem:[%s2696 + $0x82] sm:$0xff]
      %v3341 = vld [vmem:[%s2696 + $0x92] sm:$0xff]
      %v3342 = vld [vmem:[%s2696 + $0x9a] sm:$0xff]
      %v3343 = vld [vmem:[%s2696 + $0xaa] sm:$0xff]
      %v3344 = vld [vmem:[%s2696 + $0xb2] sm:$0xff]
      %v3345 = vld [vmem:[%s2696 + $0xc2] sm:$0xff]
      %v3346 = vld [vmem:[%s2696 + $0xca] sm:$0xff]
      %v3347 = vld [vmem:[%s2696 + $0xda] sm:$0xff]
      %v3348 = vld [vmem:[%s2696 + $0xe2] sm:$0xff]
      %v3349 = vld [vmem:[%s2696 + $0xf2] sm:$0xff]
      %v3350 = vld [vmem:[%s2696 + $0xfa] sm:$0xff]
      %v3351 = vld [vmem:[%s2696 + $0x10a] sm:$0xff]
      %v3352 = vld [vmem:[%s2696 + $0x112] sm:$0xff]
      %v3353 = vld [vmem:[%s2696 + $0x122] sm:$0xff]
      %v3354 = vld [vmem:[%s2696 + $0x12a] sm:$0xff]
      %v3355 = vld [vmem:[%s2696 + $0x13a] sm:$0xff]
      %v3356 = vld [vmem:[%s2696 + $0x142] sm:$0xff]
      %v3357 = vld [vmem:[%s2696 + $0x152] sm:$0xff]
      %v3358 = vld [vmem:[%s2696 + $0x15a] sm:$0xff]
      %v3359 = vld [vmem:[%s2696 + $0x16a] sm:$0xff]
      %v3360 = vld [vmem:[%s2696 + $0x172] sm:$0xff]
      %3393 = vrot.lane.b32.xlu0 %v2817, 4
      %v3394 = vpop.permute.xlu0 %3393
      %3395 = vrot.lane.b32.xlu0 %v2818, 4
      %v3396 = vpop.permute.xlu0 %3395
      %3397 = vrot.lane.b32.xlu0 %v2819, 4
      %v3398 = vpop.permute.xlu0 %3397
      %3399 = vrot.lane.b32.xlu0 %v2820, 4
      %v3400 = vpop.permute.xlu0 %3399
      %3401 = vrot.lane.b32.xlu0 %v2821, 4
      %v3402 = vpop.permute.xlu0 %3401
      %3403 = vrot.lane.b32.xlu0 %v2822, 4
      %v3404 = vpop.permute.xlu0 %3403
      %3405 = vrot.lane.b32.xlu0 %v2823, 4
      %v3406 = vpop.permute.xlu0 %3405
      %3407 = vrot.lane.b32.xlu0 %v2824, 4
      %v3408 = vpop.permute.xlu0 %3407
      %3409 = vrot.lane.b32.xlu0 %v2825, 4
      %v3410 = vpop.permute.xlu0 %3409
      %3411 = vrot.lane.b32.xlu0 %v2826, 4
      %v3412 = vpop.permute.xlu0 %3411
      %3413 = vrot.lane.b32.xlu0 %v2827, 4
      %v3414 = vpop.permute.xlu0 %3413
      %3415 = vrot.lane.b32.xlu0 %v2828, 4
      %v3416 = vpop.permute.xlu0 %3415
      %3417 = vrot.lane.b32.xlu0 %v2829, 4
      %v3418 = vpop.permute.xlu0 %3417
      %3419 = vrot.lane.b32.xlu0 %v2830, 4
      %v3420 = vpop.permute.xlu0 %3419
      %3421 = vrot.lane.b32.xlu0 %v2831, 4
      %v3422 = vpop.permute.xlu0 %3421
      %3423 = vrot.lane.b32.xlu0 %v2832, 4
      %v3424 = vpop.permute.xlu0 %3423
      %3425 = vrot.lane.b32.xlu0 %v2833, 4
      %v3426 = vpop.permute.xlu0 %3425
      %3427 = vrot.lane.b32.xlu0 %v2834, 4
      %v3428 = vpop.permute.xlu0 %3427
      %3429 = vrot.lane.b32.xlu0 %v2835, 4
      %v3430 = vpop.permute.xlu0 %3429
      %3431 = vrot.lane.b32.xlu0 %v2836, 4
      %v3432 = vpop.permute.xlu0 %3431
      %3433 = vrot.lane.b32.xlu0 %v2837, 4
      %v3434 = vpop.permute.xlu0 %3433
      %3435 = vrot.lane.b32.xlu0 %v2838, 4
      %v3436 = vpop.permute.xlu0 %3435
      %3437 = vrot.lane.b32.xlu0 %v2839, 4
      %v3438 = vpop.permute.xlu0 %3437
      %3439 = vrot.lane.b32.xlu0 %v2840, 4
      %v3440 = vpop.permute.xlu0 %3439
      %3441 = vrot.lane.b32.xlu0 %v2841, 4
      %v3442 = vpop.permute.xlu0 %3441
      %3443 = vrot.lane.b32.xlu0 %v2842, 4
      %v3444 = vpop.permute.xlu0 %3443
      %3445 = vrot.lane.b32.xlu0 %v2843, 4
      %v3446 = vpop.permute.xlu0 %3445
      %3447 = vrot.lane.b32.xlu0 %v2844, 4
      %v3448 = vpop.permute.xlu0 %3447
      %3449 = vrot.lane.b32.xlu0 %v2845, 4
      %v3450 = vpop.permute.xlu0 %3449
      %3451 = vrot.lane.b32.xlu0 %v2846, 4
      %v3452 = vpop.permute.xlu0 %3451
      %3453 = vrot.lane.b32.xlu0 %v2847, 4
      %v3454 = vpop.permute.xlu0 %3453
      %3455 = vrot.lane.b32.xlu0 %v2848, 4
      %v3456 = vpop.permute.xlu0 %3455
      %3521 = vrot.lane.b32.xlu0 %v2849, 20
      %v3522 = vpop.permute.xlu0 %3521
      %3523 = vrot.lane.b32.xlu0 %v2850, 20
      %v3524 = vpop.permute.xlu0 %3523
      %3525 = vrot.lane.b32.xlu0 %v2851, 20
      %v3526 = vpop.permute.xlu0 %3525
      %3527 = vrot.lane.b32.xlu0 %v2852, 20
      %v3528 = vpop.permute.xlu0 %3527
      %3529 = vrot.lane.b32.xlu0 %v2853, 20
      %v3530 = vpop.permute.xlu0 %3529
      %3531 = vrot.lane.b32.xlu0 %v2854, 20
      %v3532 = vpop.permute.xlu0 %3531
      %3533 = vrot.lane.b32.xlu0 %v2855, 20
      %v3534 = vpop.permute.xlu0 %3533
      %3535 = vrot.lane.b32.xlu0 %v2856, 20
      %v3536 = vpop.permute.xlu0 %3535
      %3537 = vrot.lane.b32.xlu0 %v2857, 20
      %v3538 = vpop.permute.xlu0 %3537
      %3539 = vrot.lane.b32.xlu0 %v2858, 20
      %v3540 = vpop.permute.xlu0 %3539
      %3541 = vrot.lane.b32.xlu0 %v2859, 20
      %v3542 = vpop.permute.xlu0 %3541
      %3543 = vrot.lane.b32.xlu0 %v2860, 20
      %v3544 = vpop.permute.xlu0 %3543
      %3545 = vrot.lane.b32.xlu0 %v2861, 20
      %v3546 = vpop.permute.xlu0 %3545
      %3547 = vrot.lane.b32.xlu0 %v2862, 20
      %v3548 = vpop.permute.xlu0 %3547
      %3549 = vrot.lane.b32.xlu0 %v2863, 20
      %v3550 = vpop.permute.xlu0 %3549
      %3551 = vrot.lane.b32.xlu0 %v2864, 20
      %v3552 = vpop.permute.xlu0 %3551
      %3553 = vrot.lane.b32.xlu0 %v2865, 20
      %v3554 = vpop.permute.xlu0 %3553
      %3555 = vrot.lane.b32.xlu0 %v2866, 20
      %v3556 = vpop.permute.xlu0 %3555
      %3557 = vrot.lane.b32.xlu0 %v2867, 20
      %v3558 = vpop.permute.xlu0 %3557
      %3559 = vrot.lane.b32.xlu0 %v2868, 20
      %v3560 = vpop.permute.xlu0 %3559
      %3561 = vrot.lane.b32.xlu0 %v2869, 20
      %v3562 = vpop.permute.xlu0 %3561
      %3563 = vrot.lane.b32.xlu0 %v2870, 20
      %v3564 = vpop.permute.xlu0 %3563
      %3565 = vrot.lane.b32.xlu0 %v2871, 20
      %v3566 = vpop.permute.xlu0 %3565
      %3567 = vrot.lane.b32.xlu0 %v2872, 20
      %v3568 = vpop.permute.xlu0 %3567
      %3569 = vrot.lane.b32.xlu0 %v2873, 20
      %v3570 = vpop.permute.xlu0 %3569
      %3571 = vrot.lane.b32.xlu0 %v2874, 20
      %v3572 = vpop.permute.xlu0 %3571
      %3573 = vrot.lane.b32.xlu0 %v2875, 20
      %v3574 = vpop.permute.xlu0 %3573
      %3575 = vrot.lane.b32.xlu0 %v2876, 20
      %v3576 = vpop.permute.xlu0 %3575
      %3577 = vrot.lane.b32.xlu0 %v2877, 20
      %v3578 = vpop.permute.xlu0 %3577
      %3579 = vrot.lane.b32.xlu0 %v2878, 20
      %v3580 = vpop.permute.xlu0 %3579
      %3581 = vrot.lane.b32.xlu0 %v2879, 20
      %v3582 = vpop.permute.xlu0 %3581
      %3583 = vrot.lane.b32.xlu0 %v2880, 20
      %v3584 = vpop.permute.xlu0 %3583
      %3649 = vrot.lane.b32.xlu0 %v2881, 24
      %v3650 = vpop.permute.xlu0 %3649
      %3651 = vrot.lane.b32.xlu0 %v2882, 24
      %v3652 = vpop.permute.xlu0 %3651
      %3653 = vrot.lane.b32.xlu0 %v2883, 24
      %v3654 = vpop.permute.xlu0 %3653
      %3655 = vrot.lane.b32.xlu0 %v2884, 24
      %v3656 = vpop.permute.xlu0 %3655
      %3657 = vrot.lane.b32.xlu0 %v2885, 24
      %v3658 = vpop.permute.xlu0 %3657
      %3659 = vrot.lane.b32.xlu0 %v2886, 24
      %v3660 = vpop.permute.xlu0 %3659
      %3661 = vrot.lane.b32.xlu0 %v2887, 24
      %v3662 = vpop.permute.xlu0 %3661
      %3663 = vrot.lane.b32.xlu0 %v2888, 24
      %v3664 = vpop.permute.xlu0 %3663
      %3665 = vrot.lane.b32.xlu0 %v2889, 24
      %v3666 = vpop.permute.xlu0 %3665
      %3667 = vrot.lane.b32.xlu0 %v2890, 24
      %v3668 = vpop.permute.xlu0 %3667
      %3669 = vrot.lane.b32.xlu0 %v2891, 24
      %v3670 = vpop.permute.xlu0 %3669
      %3671 = vrot.lane.b32.xlu0 %v2892, 24
      %v3672 = vpop.permute.xlu0 %3671
      %3673 = vrot.lane.b32.xlu0 %v2893, 24
      %v3674 = vpop.permute.xlu0 %3673
      %3675 = vrot.lane.b32.xlu0 %v2894, 24
      %v3676 = vpop.permute.xlu0 %3675
      %3677 = vrot.lane.b32.xlu0 %v2895, 24
      %v3678 = vpop.permute.xlu0 %3677
      %3679 = vrot.lane.b32.xlu0 %v2896, 24
      %v3680 = vpop.permute.xlu0 %3679
      %3681 = vrot.lane.b32.xlu0 %v2897, 24
      %v3682 = vpop.permute.xlu0 %3681
      %3683 = vrot.lane.b32.xlu0 %v2898, 24
      %v3684 = vpop.permute.xlu0 %3683
      %3685 = vrot.lane.b32.xlu0 %v2899, 24
      %v3686 = vpop.permute.xlu0 %3685
      %3687 = vrot.lane.b32.xlu0 %v2900, 24
      %v3688 = vpop.permute.xlu0 %3687
      %3689 = vrot.lane.b32.xlu0 %v2901, 24
      %v3690 = vpop.permute.xlu0 %3689
      %3691 = vrot.lane.b32.xlu0 %v2902, 24
      %v3692 = vpop.permute.xlu0 %3691
      %3693 = vrot.lane.b32.xlu0 %v2903, 24
      %v3694 = vpop.permute.xlu0 %3693
      %3695 = vrot.lane.b32.xlu0 %v2904, 24
      %v3696 = vpop.permute.xlu0 %3695
      %3697 = vrot.lane.b32.xlu0 %v2905, 24
      %v3698 = vpop.permute.xlu0 %3697
      %3699 = vrot.lane.b32.xlu0 %v2906, 24
      %v3700 = vpop.permute.xlu0 %3699
      %3701 = vrot.lane.b32.xlu0 %v2907, 24
      %v3702 = vpop.permute.xlu0 %3701
      %3703 = vrot.lane.b32.xlu0 %v2908, 24
      %v3704 = vpop.permute.xlu0 %3703
      %3705 = vrot.lane.b32.xlu0 %v2909, 24
      %v3706 = vpop.permute.xlu0 %3705
      %3707 = vrot.lane.b32.xlu0 %v2910, 24
      %v3708 = vpop.permute.xlu0 %3707
      %3709 = vrot.lane.b32.xlu0 %v2911, 24
      %v3710 = vpop.permute.xlu0 %3709
      %3711 = vrot.lane.b32.xlu0 %v2912, 24
      %v3712 = vpop.permute.xlu0 %3711
      %3777 = vrot.lane.b32.xlu0 %v2913, 40
      %v3778 = vpop.permute.xlu0 %3777
      %3779 = vrot.lane.b32.xlu0 %v2914, 40
      %v3780 = vpop.permute.xlu0 %3779
      %3781 = vrot.lane.b32.xlu0 %v2915, 40
      %v3782 = vpop.permute.xlu0 %3781
      %3783 = vrot.lane.b32.xlu0 %v2916, 40
      %v3784 = vpop.permute.xlu0 %3783
      %3785 = vrot.lane.b32.xlu0 %v2917, 40
      %v3786 = vpop.permute.xlu0 %3785
      %3787 = vrot.lane.b32.xlu0 %v2918, 40
      %v3788 = vpop.permute.xlu0 %3787
      %3789 = vrot.lane.b32.xlu0 %v2919, 40
      %v3790 = vpop.permute.xlu0 %3789
      %3791 = vrot.lane.b32.xlu0 %v2920, 40
      %v3792 = vpop.permute.xlu0 %3791
      %3793 = vrot.lane.b32.xlu0 %v2921, 40
      %v3794 = vpop.permute.xlu0 %3793
      %3795 = vrot.lane.b32.xlu0 %v2922, 40
      %v3796 = vpop.permute.xlu0 %3795
      %3797 = vrot.lane.b32.xlu0 %v2923, 40
      %v3798 = vpop.permute.xlu0 %3797
      %3799 = vrot.lane.b32.xlu0 %v2924, 40
      %v3800 = vpop.permute.xlu0 %3799
      %3801 = vrot.lane.b32.xlu0 %v2925, 40
      %v3802 = vpop.permute.xlu0 %3801
      %3803 = vrot.lane.b32.xlu0 %v2926, 40
      %v3804 = vpop.permute.xlu0 %3803
      %3805 = vrot.lane.b32.xlu0 %v2927, 40
      %v3806 = vpop.permute.xlu0 %3805
      %3807 = vrot.lane.b32.xlu0 %v2928, 40
      %v3808 = vpop.permute.xlu0 %3807
      %3809 = vrot.lane.b32.xlu0 %v2929, 40
      %v3810 = vpop.permute.xlu0 %3809
      %3811 = vrot.lane.b32.xlu0 %v2930, 40
      %v3812 = vpop.permute.xlu0 %3811
      %3813 = vrot.lane.b32.xlu0 %v2931, 40
      %v3814 = vpop.permute.xlu0 %3813
      %3815 = vrot.lane.b32.xlu0 %v2932, 40
      %v3816 = vpop.permute.xlu0 %3815
      %3817 = vrot.lane.b32.xlu0 %v2933, 40
      %v3818 = vpop.permute.xlu0 %3817
      %3819 = vrot.lane.b32.xlu0 %v2934, 40
      %v3820 = vpop.permute.xlu0 %3819
      %3821 = vrot.lane.b32.xlu0 %v2935, 40
      %v3822 = vpop.permute.xlu0 %3821
      %3823 = vrot.lane.b32.xlu0 %v2936, 40
      %v3824 = vpop.permute.xlu0 %3823
      %3825 = vrot.lane.b32.xlu0 %v2937, 40
      %v3826 = vpop.permute.xlu0 %3825
      %3827 = vrot.lane.b32.xlu0 %v2938, 40
      %v3828 = vpop.permute.xlu0 %3827
      %3829 = vrot.lane.b32.xlu0 %v2939, 40
      %v3830 = vpop.permute.xlu0 %3829
      %3831 = vrot.lane.b32.xlu0 %v2940, 40
      %v3832 = vpop.permute.xlu0 %3831
      %3833 = vrot.lane.b32.xlu0 %v2941, 40
      %v3834 = vpop.permute.xlu0 %3833
      %3835 = vrot.lane.b32.xlu0 %v2942, 40
      %v3836 = vpop.permute.xlu0 %3835
      %3837 = vrot.lane.b32.xlu0 %v2943, 40
      %v3838 = vpop.permute.xlu0 %3837
      %3839 = vrot.lane.b32.xlu0 %v2944, 40
      %v3840 = vpop.permute.xlu0 %3839
      %3905 = vrot.lane.b32.xlu0 %v2945, 44
      %v3906 = vpop.permute.xlu0 %3905
      %3907 = vrot.lane.b32.xlu0 %v2946, 44
      %v3908 = vpop.permute.xlu0 %3907
      %3909 = vrot.lane.b32.xlu0 %v2947, 44
      %v3910 = vpop.permute.xlu0 %3909
      %3911 = vrot.lane.b32.xlu0 %v2948, 44
      %v3912 = vpop.permute.xlu0 %3911
      %3913 = vrot.lane.b32.xlu0 %v2949, 44
      %v3914 = vpop.permute.xlu0 %3913
      %3915 = vrot.lane.b32.xlu0 %v2950, 44
      %v3916 = vpop.permute.xlu0 %3915
      %3917 = vrot.lane.b32.xlu0 %v2951, 44
      %v3918 = vpop.permute.xlu0 %3917
      %3919 = vrot.lane.b32.xlu0 %v2952, 44
      %v3920 = vpop.permute.xlu0 %3919
      %3921 = vrot.lane.b32.xlu0 %v2953, 44
      %v3922 = vpop.permute.xlu0 %3921
      %3923 = vrot.lane.b32.xlu0 %v2954, 44
      %v3924 = vpop.permute.xlu0 %3923
      %3925 = vrot.lane.b32.xlu0 %v2955, 44
      %v3926 = vpop.permute.xlu0 %3925
      %3927 = vrot.lane.b32.xlu0 %v2956, 44
      %v3928 = vpop.permute.xlu0 %3927
      %3929 = vrot.lane.b32.xlu0 %v2957, 44
      %v3930 = vpop.permute.xlu0 %3929
      %3931 = vrot.lane.b32.xlu0 %v2958, 44
      %v3932 = vpop.permute.xlu0 %3931
      %3933 = vrot.lane.b32.xlu0 %v2959, 44
      %v3934 = vpop.permute.xlu0 %3933
      %3935 = vrot.lane.b32.xlu0 %v2960, 44
      %v3936 = vpop.permute.xlu0 %3935
      %3937 = vrot.lane.b32.xlu0 %v2961, 44
      %v3938 = vpop.permute.xlu0 %3937
      %3939 = vrot.lane.b32.xlu0 %v2962, 44
      %v3940 = vpop.permute.xlu0 %3939
      %3941 = vrot.lane.b32.xlu0 %v2963, 44
      %v3942 = vpop.permute.xlu0 %3941
      %3943 = vrot.lane.b32.xlu0 %v2964, 44
      %v3944 = vpop.permute.xlu0 %3943
      %3945 = vrot.lane.b32.xlu0 %v2965, 44
      %v3946 = vpop.permute.xlu0 %3945
      %3947 = vrot.lane.b32.xlu0 %v2966, 44
      %v3948 = vpop.permute.xlu0 %3947
      %3949 = vrot.lane.b32.xlu0 %v2967, 44
      %v3950 = vpop.permute.xlu0 %3949
      %3951 = vrot.lane.b32.xlu0 %v2968, 44
      %v3952 = vpop.permute.xlu0 %3951
      %3953 = vrot.lane.b32.xlu0 %v2969, 44
      %v3954 = vpop.permute.xlu0 %3953
      %3955 = vrot.lane.b32.xlu0 %v2970, 44
      %v3956 = vpop.permute.xlu0 %3955
      %3957 = vrot.lane.b32.xlu0 %v2971, 44
      %v3958 = vpop.permute.xlu0 %3957
      %3959 = vrot.lane.b32.xlu0 %v2972, 44
      %v3960 = vpop.permute.xlu0 %3959
      %3961 = vrot.lane.b32.xlu0 %v2973, 44
      %v3962 = vpop.permute.xlu0 %3961
      %3963 = vrot.lane.b32.xlu0 %v2974, 44
      %v3964 = vpop.permute.xlu0 %3963
      %3965 = vrot.lane.b32.xlu0 %v2975, 44
      %v3966 = vpop.permute.xlu0 %3965
      %3967 = vrot.lane.b32.xlu0 %v2976, 44
      %v3968 = vpop.permute.xlu0 %3967
      %4033 = vrot.lane.b32.xlu0 %v2977, 60
      %v4034 = vpop.permute.xlu0 %4033
      %4035 = vrot.lane.b32.xlu0 %v2978, 60
      %v4036 = vpop.permute.xlu0 %4035
      %4037 = vrot.lane.b32.xlu0 %v2979, 60
      %v4038 = vpop.permute.xlu0 %4037
      %4039 = vrot.lane.b32.xlu0 %v2980, 60
      %v4040 = vpop.permute.xlu0 %4039
      %4041 = vrot.lane.b32.xlu0 %v2981, 60
      %v4042 = vpop.permute.xlu0 %4041
      %4043 = vrot.lane.b32.xlu0 %v2982, 60
      %v4044 = vpop.permute.xlu0 %4043
      %4045 = vrot.lane.b32.xlu0 %v2983, 60
      %v4046 = vpop.permute.xlu0 %4045
      %4047 = vrot.lane.b32.xlu0 %v2984, 60
      %v4048 = vpop.permute.xlu0 %4047
      %4049 = vrot.lane.b32.xlu0 %v2985, 60
      %v4050 = vpop.permute.xlu0 %4049
      %4051 = vrot.lane.b32.xlu0 %v2986, 60
      %v4052 = vpop.permute.xlu0 %4051
      %4053 = vrot.lane.b32.xlu0 %v2987, 60
      %v4054 = vpop.permute.xlu0 %4053
      %4055 = vrot.lane.b32.xlu0 %v2988, 60
      %v4056 = vpop.permute.xlu0 %4055
      %4057 = vrot.lane.b32.xlu0 %v2989, 60
      %v4058 = vpop.permute.xlu0 %4057
      %4059 = vrot.lane.b32.xlu0 %v2990, 60
      %v4060 = vpop.permute.xlu0 %4059
      %4061 = vrot.lane.b32.xlu0 %v2991, 60
      %v4062 = vpop.permute.xlu0 %4061
      %4063 = vrot.lane.b32.xlu0 %v2992, 60
      %v4064 = vpop.permute.xlu0 %4063
      %4065 = vrot.lane.b32.xlu0 %v2993, 60
      %v4066 = vpop.permute.xlu0 %4065
      %4067 = vrot.lane.b32.xlu0 %v2994, 60
      %v4068 = vpop.permute.xlu0 %4067
      %4069 = vrot.lane.b32.xlu0 %v2995, 60
      %v4070 = vpop.permute.xlu0 %4069
      %4071 = vrot.lane.b32.xlu0 %v2996, 60
      %v4072 = vpop.permute.xlu0 %4071
      %4073 = vrot.lane.b32.xlu0 %v2997, 60
      %v4074 = vpop.permute.xlu0 %4073
      %4075 = vrot.lane.b32.xlu0 %v2998, 60
      %v4076 = vpop.permute.xlu0 %4075
      %4077 = vrot.lane.b32.xlu0 %v2999, 60
      %v4078 = vpop.permute.xlu0 %4077
      %4079 = vrot.lane.b32.xlu0 %v3000, 60
      %v4080 = vpop.permute.xlu0 %4079
      %4081 = vrot.lane.b32.xlu0 %v3001, 60
      %v4082 = vpop.permute.xlu0 %4081
      %4083 = vrot.lane.b32.xlu0 %v3002, 60
      %v4084 = vpop.permute.xlu0 %4083
      %4085 = vrot.lane.b32.xlu0 %v3003, 60
      %v4086 = vpop.permute.xlu0 %4085
      %4087 = vrot.lane.b32.xlu0 %v3004, 60
      %v4088 = vpop.permute.xlu0 %4087
      %4089 = vrot.lane.b32.xlu0 %v3005, 60
      %v4090 = vpop.permute.xlu0 %4089
      %4091 = vrot.lane.b32.xlu0 %v3006, 60
      %v4092 = vpop.permute.xlu0 %4091
      %4093 = vrot.lane.b32.xlu0 %v3007, 60
      %v4094 = vpop.permute.xlu0 %4093
      %4095 = vrot.lane.b32.xlu0 %v3008, 60
      %v4096 = vpop.permute.xlu0 %4095
      %4161 = vrot.lane.b32.xlu0 %v3009, 64
      %v4162 = vpop.permute.xlu0 %4161
      %4163 = vrot.lane.b32.xlu0 %v3010, 64
      %v4164 = vpop.permute.xlu0 %4163
      %4165 = vrot.lane.b32.xlu0 %v3011, 64
      %v4166 = vpop.permute.xlu0 %4165
      %4167 = vrot.lane.b32.xlu0 %v3012, 64
      %v4168 = vpop.permute.xlu0 %4167
      %4169 = vrot.lane.b32.xlu0 %v3013, 64
      %v4170 = vpop.permute.xlu0 %4169
      %4171 = vrot.lane.b32.xlu0 %v3014, 64
      %v4172 = vpop.permute.xlu0 %4171
      %4173 = vrot.lane.b32.xlu0 %v3015, 64
      %v4174 = vpop.permute.xlu0 %4173
      %4175 = vrot.lane.b32.xlu0 %v3016, 64
      %v4176 = vpop.permute.xlu0 %4175
      %4177 = vrot.lane.b32.xlu0 %v3017, 64
      %v4178 = vpop.permute.xlu0 %4177
      %4179 = vrot.lane.b32.xlu0 %v3018, 64
      %v4180 = vpop.permute.xlu0 %4179
      %4181 = vrot.lane.b32.xlu0 %v3019, 64
      %v4182 = vpop.permute.xlu0 %4181
      %4183 = vrot.lane.b32.xlu0 %v3020, 64
      %v4184 = vpop.permute.xlu0 %4183
      %4185 = vrot.lane.b32.xlu0 %v3021, 64
      %v4186 = vpop.permute.xlu0 %4185
      %4187 = vrot.lane.b32.xlu0 %v3022, 64
      %v4188 = vpop.permute.xlu0 %4187
      %4189 = vrot.lane.b32.xlu0 %v3023, 64
      %v4190 = vpop.permute.xlu0 %4189
      %4191 = vrot.lane.b32.xlu0 %v3024, 64
      %v4192 = vpop.permute.xlu0 %4191
      %4193 = vrot.lane.b32.xlu0 %v3025, 64
      %v4194 = vpop.permute.xlu0 %4193
      %4195 = vrot.lane.b32.xlu0 %v3026, 64
      %v4196 = vpop.permute.xlu0 %4195
      %4197 = vrot.lane.b32.xlu0 %v3027, 64
      %v4198 = vpop.permute.xlu0 %4197
      %4199 = vrot.lane.b32.xlu0 %v3028, 64
      %v4200 = vpop.permute.xlu0 %4199
      %4201 = vrot.lane.b32.xlu0 %v3029, 64
      %v4202 = vpop.permute.xlu0 %4201
      %4203 = vrot.lane.b32.xlu0 %v3030, 64
      %v4204 = vpop.permute.xlu0 %4203
      %4205 = vrot.lane.b32.xlu0 %v3031, 64
      %v4206 = vpop.permute.xlu0 %4205
      %4207 = vrot.lane.b32.xlu0 %v3032, 64
      %v4208 = vpop.permute.xlu0 %4207
      %4209 = vrot.lane.b32.xlu0 %v3033, 64
      %v4210 = vpop.permute.xlu0 %4209
      %4211 = vrot.lane.b32.xlu0 %v3034, 64
      %v4212 = vpop.permute.xlu0 %4211
      %4213 = vrot.lane.b32.xlu0 %v3035, 64
      %v4214 = vpop.permute.xlu0 %4213
      %4215 = vrot.lane.b32.xlu0 %v3036, 64
      %v4216 = vpop.permute.xlu0 %4215
      %4217 = vrot.lane.b32.xlu0 %v3037, 64
      %v4218 = vpop.permute.xlu0 %4217
      %4219 = vrot.lane.b32.xlu0 %v3038, 64
      %v4220 = vpop.permute.xlu0 %4219
      %4221 = vrot.lane.b32.xlu0 %v3039, 64
      %v4222 = vpop.permute.xlu0 %4221
      %4223 = vrot.lane.b32.xlu0 %v3040, 64
      %v4224 = vpop.permute.xlu0 %4223
      %4289 = vrot.lane.b32.xlu0 %v3041, 80
      %v4290 = vpop.permute.xlu0 %4289
      %4291 = vrot.lane.b32.xlu0 %v3042, 80
      %v4292 = vpop.permute.xlu0 %4291
      %4293 = vrot.lane.b32.xlu0 %v3043, 80
      %v4294 = vpop.permute.xlu0 %4293
      %4295 = vrot.lane.b32.xlu0 %v3044, 80
      %v4296 = vpop.permute.xlu0 %4295
      %4297 = vrot.lane.b32.xlu0 %v3045, 80
      %v4298 = vpop.permute.xlu0 %4297
      %4299 = vrot.lane.b32.xlu0 %v3046, 80
      %v4300 = vpop.permute.xlu0 %4299
      %4301 = vrot.lane.b32.xlu0 %v3047, 80
      %v4302 = vpop.permute.xlu0 %4301
      %4303 = vrot.lane.b32.xlu0 %v3048, 80
      %v4304 = vpop.permute.xlu0 %4303
      %4305 = vrot.lane.b32.xlu0 %v3049, 80
      %v4306 = vpop.permute.xlu0 %4305
      %4307 = vrot.lane.b32.xlu0 %v3050, 80
      %v4308 = vpop.permute.xlu0 %4307
      %4309 = vrot.lane.b32.xlu0 %v3051, 80
      %v4310 = vpop.permute.xlu0 %4309
      %4311 = vrot.lane.b32.xlu0 %v3052, 80
      %v4312 = vpop.permute.xlu0 %4311
      %4313 = vrot.lane.b32.xlu0 %v3053, 80
      %v4314 = vpop.permute.xlu0 %4313
      %4315 = vrot.lane.b32.xlu0 %v3054, 80
      %v4316 = vpop.permute.xlu0 %4315
      %4317 = vrot.lane.b32.xlu0 %v3055, 80
      %v4318 = vpop.permute.xlu0 %4317
      %4319 = vrot.lane.b32.xlu0 %v3056, 80
      %v4320 = vpop.permute.xlu0 %4319
      %4321 = vrot.lane.b32.xlu0 %v3057, 80
      %v4322 = vpop.permute.xlu0 %4321
      %4323 = vrot.lane.b32.xlu0 %v3058, 80
      %v4324 = vpop.permute.xlu0 %4323
      %4325 = vrot.lane.b32.xlu0 %v3059, 80
      %v4326 = vpop.permute.xlu0 %4325
      %4327 = vrot.lane.b32.xlu0 %v3060, 80
      %v4328 = vpop.permute.xlu0 %4327
      %4329 = vrot.lane.b32.xlu0 %v3061, 80
      %v4330 = vpop.permute.xlu0 %4329
      %4331 = vrot.lane.b32.xlu0 %v3062, 80
      %v4332 = vpop.permute.xlu0 %4331
      %4333 = vrot.lane.b32.xlu0 %v3063, 80
      %v4334 = vpop.permute.xlu0 %4333
      %4335 = vrot.lane.b32.xlu0 %v3064, 80
      %v4336 = vpop.permute.xlu0 %4335
      %4337 = vrot.lane.b32.xlu0 %v3065, 80
      %v4338 = vpop.permute.xlu0 %4337
      %4339 = vrot.lane.b32.xlu0 %v3066, 80
      %v4340 = vpop.permute.xlu0 %4339
      %4341 = vrot.lane.b32.xlu0 %v3067, 80
      %v4342 = vpop.permute.xlu0 %4341
      %4343 = vrot.lane.b32.xlu0 %v3068, 80
      %v4344 = vpop.permute.xlu0 %4343
      %4345 = vrot.lane.b32.xlu0 %v3069, 80
      %v4346 = vpop.permute.xlu0 %4345
      %4347 = vrot.lane.b32.xlu0 %v3070, 80
      %v4348 = vpop.permute.xlu0 %4347
      %4349 = vrot.lane.b32.xlu0 %v3071, 80
      %v4350 = vpop.permute.xlu0 %4349
      %4351 = vrot.lane.b32.xlu0 %v3072, 80
      %v4352 = vpop.permute.xlu0 %4351
      %4417 = vrot.lane.b32.xlu0 %v3073, 84
      %v4418 = vpop.permute.xlu0 %4417
      %4419 = vrot.lane.b32.xlu0 %v3074, 84
      %v4420 = vpop.permute.xlu0 %4419
      %4421 = vrot.lane.b32.xlu0 %v3075, 84
      %v4422 = vpop.permute.xlu0 %4421
      %4423 = vrot.lane.b32.xlu0 %v3076, 84
      %v4424 = vpop.permute.xlu0 %4423
      %4425 = vrot.lane.b32.xlu0 %v3077, 84
      %v4426 = vpop.permute.xlu0 %4425
      %4427 = vrot.lane.b32.xlu0 %v3078, 84
      %v4428 = vpop.permute.xlu0 %4427
      %4429 = vrot.lane.b32.xlu0 %v3079, 84
      %v4430 = vpop.permute.xlu0 %4429
      %4431 = vrot.lane.b32.xlu0 %v3080, 84
      %v4432 = vpop.permute.xlu0 %4431
      %4433 = vrot.lane.b32.xlu0 %v3081, 84
      %v4434 = vpop.permute.xlu0 %4433
      %4435 = vrot.lane.b32.xlu0 %v3082, 84
      %v4436 = vpop.permute.xlu0 %4435
      %4437 = vrot.lane.b32.xlu0 %v3083, 84
      %v4438 = vpop.permute.xlu0 %4437
      %4439 = vrot.lane.b32.xlu0 %v3084, 84
      %v4440 = vpop.permute.xlu0 %4439
      %4441 = vrot.lane.b32.xlu0 %v3085, 84
      %v4442 = vpop.permute.xlu0 %4441
      %4443 = vrot.lane.b32.xlu0 %v3086, 84
      %v4444 = vpop.permute.xlu0 %4443
      %4445 = vrot.lane.b32.xlu0 %v3087, 84
      %v4446 = vpop.permute.xlu0 %4445
      %4447 = vrot.lane.b32.xlu0 %v3088, 84
      %v4448 = vpop.permute.xlu0 %4447
      %4449 = vrot.lane.b32.xlu0 %v3089, 84
      %v4450 = vpop.permute.xlu0 %4449
      %4451 = vrot.lane.b32.xlu0 %v3090, 84
      %v4452 = vpop.permute.xlu0 %4451
      %4453 = vrot.lane.b32.xlu0 %v3091, 84
      %v4454 = vpop.permute.xlu0 %4453
      %4455 = vrot.lane.b32.xlu0 %v3092, 84
      %v4456 = vpop.permute.xlu0 %4455
      %4457 = vrot.lane.b32.xlu0 %v3093, 84
      %v4458 = vpop.permute.xlu0 %4457
      %4459 = vrot.lane.b32.xlu0 %v3094, 84
      %v4460 = vpop.permute.xlu0 %4459
      %4461 = vrot.lane.b32.xlu0 %v3095, 84
      %v4462 = vpop.permute.xlu0 %4461
      %4463 = vrot.lane.b32.xlu0 %v3096, 84
      %v4464 = vpop.permute.xlu0 %4463
      %4465 = vrot.lane.b32.xlu0 %v3097, 84
      %v4466 = vpop.permute.xlu0 %4465
      %4467 = vrot.lane.b32.xlu0 %v3098, 84
      %v4468 = vpop.permute.xlu0 %4467
      %4469 = vrot.lane.b32.xlu0 %v3099, 84
      %v4470 = vpop.permute.xlu0 %4469
      %4471 = vrot.lane.b32.xlu0 %v3100, 84
      %v4472 = vpop.permute.xlu0 %4471
      %4473 = vrot.lane.b32.xlu0 %v3101, 84
      %v4474 = vpop.permute.xlu0 %4473
      %4475 = vrot.lane.b32.xlu0 %v3102, 84
      %v4476 = vpop.permute.xlu0 %4475
      %4477 = vrot.lane.b32.xlu0 %v3103, 84
      %v4478 = vpop.permute.xlu0 %4477
      %4479 = vrot.lane.b32.xlu0 %v3104, 84
      %v4480 = vpop.permute.xlu0 %4479
      %4545 = vrot.lane.b32.xlu0 %v3105, 100
      %v4546 = vpop.permute.xlu0 %4545
      %4547 = vrot.lane.b32.xlu0 %v3106, 100
      %v4548 = vpop.permute.xlu0 %4547
      %4549 = vrot.lane.b32.xlu0 %v3107, 100
      %v4550 = vpop.permute.xlu0 %4549
      %4551 = vrot.lane.b32.xlu0 %v3108, 100
      %v4552 = vpop.permute.xlu0 %4551
      %4553 = vrot.lane.b32.xlu0 %v3109, 100
      %v4554 = vpop.permute.xlu0 %4553
      %4555 = vrot.lane.b32.xlu0 %v3110, 100
      %v4556 = vpop.permute.xlu0 %4555
      %4557 = vrot.lane.b32.xlu0 %v3111, 100
      %v4558 = vpop.permute.xlu0 %4557
      %4559 = vrot.lane.b32.xlu0 %v3112, 100
      %v4560 = vpop.permute.xlu0 %4559
      %4561 = vrot.lane.b32.xlu0 %v3113, 100
      %v4562 = vpop.permute.xlu0 %4561
      %4563 = vrot.lane.b32.xlu0 %v3114, 100
      %v4564 = vpop.permute.xlu0 %4563
      %4565 = vrot.lane.b32.xlu0 %v3115, 100
      %v4566 = vpop.permute.xlu0 %4565
      %4567 = vrot.lane.b32.xlu0 %v3116, 100
      %v4568 = vpop.permute.xlu0 %4567
      %4569 = vrot.lane.b32.xlu0 %v3117, 100
      %v4570 = vpop.permute.xlu0 %4569
      %4571 = vrot.lane.b32.xlu0 %v3118, 100
      %v4572 = vpop.permute.xlu0 %4571
      %4573 = vrot.lane.b32.xlu0 %v3119, 100
      %v4574 = vpop.permute.xlu0 %4573
      %4575 = vrot.lane.b32.xlu0 %v3120, 100
      %v4576 = vpop.permute.xlu0 %4575
      %4577 = vrot.lane.b32.xlu0 %v3121, 100
      %v4578 = vpop.permute.xlu0 %4577
      %4579 = vrot.lane.b32.xlu0 %v3122, 100
      %v4580 = vpop.permute.xlu0 %4579
      %4581 = vrot.lane.b32.xlu0 %v3123, 100
      %v4582 = vpop.permute.xlu0 %4581
      %4583 = vrot.lane.b32.xlu0 %v3124, 100
      %v4584 = vpop.permute.xlu0 %4583
      %4585 = vrot.lane.b32.xlu0 %v3125, 100
      %v4586 = vpop.permute.xlu0 %4585
      %4587 = vrot.lane.b32.xlu0 %v3126, 100
      %v4588 = vpop.permute.xlu0 %4587
      %4589 = vrot.lane.b32.xlu0 %v3127, 100
      %v4590 = vpop.permute.xlu0 %4589
      %4591 = vrot.lane.b32.xlu0 %v3128, 100
      %v4592 = vpop.permute.xlu0 %4591
      %4593 = vrot.lane.b32.xlu0 %v3129, 100
      %v4594 = vpop.permute.xlu0 %4593
      %4595 = vrot.lane.b32.xlu0 %v3130, 100
      %v4596 = vpop.permute.xlu0 %4595
      %4597 = vrot.lane.b32.xlu0 %v3131, 100
      %v4598 = vpop.permute.xlu0 %4597
      %4599 = vrot.lane.b32.xlu0 %v3132, 100
      %v4600 = vpop.permute.xlu0 %4599
      %4601 = vrot.lane.b32.xlu0 %v3133, 100
      %v4602 = vpop.permute.xlu0 %4601
      %4603 = vrot.lane.b32.xlu0 %v3134, 100
      %v4604 = vpop.permute.xlu0 %4603
      %4605 = vrot.lane.b32.xlu0 %v3135, 100
      %v4606 = vpop.permute.xlu0 %4605
      %4607 = vrot.lane.b32.xlu0 %v3136, 100
      %v4608 = vpop.permute.xlu0 %4607
      %4673 = vrot.lane.b32.xlu0 %v3137, 104
      %v4674 = vpop.permute.xlu0 %4673
      %4675 = vrot.lane.b32.xlu0 %v3138, 104
      %v4676 = vpop.permute.xlu0 %4675
      %4677 = vrot.lane.b32.xlu0 %v3139, 104
      %v4678 = vpop.permute.xlu0 %4677
      %4679 = vrot.lane.b32.xlu0 %v3140, 104
      %v4680 = vpop.permute.xlu0 %4679
      %4681 = vrot.lane.b32.xlu0 %v3141, 104
      %v4682 = vpop.permute.xlu0 %4681
      %4683 = vrot.lane.b32.xlu0 %v3142, 104
      %v4684 = vpop.permute.xlu0 %4683
      %4685 = vrot.lane.b32.xlu0 %v3143, 104
      %v4686 = vpop.permute.xlu0 %4685
      %4687 = vrot.lane.b32.xlu0 %v3144, 104
      %v4688 = vpop.permute.xlu0 %4687
      %4689 = vrot.lane.b32.xlu0 %v3145, 104
      %v4690 = vpop.permute.xlu0 %4689
      %4691 = vrot.lane.b32.xlu0 %v3146, 104
      %v4692 = vpop.permute.xlu0 %4691
      %4693 = vrot.lane.b32.xlu0 %v3147, 104
      %v4694 = vpop.permute.xlu0 %4693
      %4695 = vrot.lane.b32.xlu0 %v3148, 104
      %v4696 = vpop.permute.xlu0 %4695
      %4697 = vrot.lane.b32.xlu0 %v3149, 104
      %v4698 = vpop.permute.xlu0 %4697
      %4699 = vrot.lane.b32.xlu0 %v3150, 104
      %v4700 = vpop.permute.xlu0 %4699
      %4701 = vrot.lane.b32.xlu0 %v3151, 104
      %v4702 = vpop.permute.xlu0 %4701
      %4703 = vrot.lane.b32.xlu0 %v3152, 104
      %v4704 = vpop.permute.xlu0 %4703
      %4705 = vrot.lane.b32.xlu0 %v3153, 104
      %v4706 = vpop.permute.xlu0 %4705
      %4707 = vrot.lane.b32.xlu0 %v3154, 104
      %v4708 = vpop.permute.xlu0 %4707
      %4709 = vrot.lane.b32.xlu0 %v3155, 104
      %v4710 = vpop.permute.xlu0 %4709
      %4711 = vrot.lane.b32.xlu0 %v3156, 104
      %v4712 = vpop.permute.xlu0 %4711
      %4713 = vrot.lane.b32.xlu0 %v3157, 104
      %v4714 = vpop.permute.xlu0 %4713
      %4715 = vrot.lane.b32.xlu0 %v3158, 104
      %v4716 = vpop.permute.xlu0 %4715
      %4717 = vrot.lane.b32.xlu0 %v3159, 104
      %v4718 = vpop.permute.xlu0 %4717
      %4719 = vrot.lane.b32.xlu0 %v3160, 104
      %v4720 = vpop.permute.xlu0 %4719
      %4721 = vrot.lane.b32.xlu0 %v3161, 104
      %v4722 = vpop.permute.xlu0 %4721
      %4723 = vrot.lane.b32.xlu0 %v3162, 104
      %v4724 = vpop.permute.xlu0 %4723
      %4725 = vrot.lane.b32.xlu0 %v3163, 104
      %v4726 = vpop.permute.xlu0 %4725
      %4727 = vrot.lane.b32.xlu0 %v3164, 104
      %v4728 = vpop.permute.xlu0 %4727
      %4729 = vrot.lane.b32.xlu0 %v3165, 104
      %v4730 = vpop.permute.xlu0 %4729
      %4731 = vrot.lane.b32.xlu0 %v3166, 104
      %v4732 = vpop.permute.xlu0 %4731
      %4733 = vrot.lane.b32.xlu0 %v3167, 104
      %v4734 = vpop.permute.xlu0 %4733
      %4735 = vrot.lane.b32.xlu0 %v3168, 104
      %v4736 = vpop.permute.xlu0 %4735
      %4801 = vrot.lane.b32.xlu0 %v3169, 120
      %v4802 = vpop.permute.xlu0 %4801
      %4803 = vrot.lane.b32.xlu0 %v3170, 120
      %v4804 = vpop.permute.xlu0 %4803
      %4805 = vrot.lane.b32.xlu0 %v3171, 120
      %v4806 = vpop.permute.xlu0 %4805
      %4807 = vrot.lane.b32.xlu0 %v3172, 120
      %v4808 = vpop.permute.xlu0 %4807
      %4809 = vrot.lane.b32.xlu0 %v3173, 120
      %v4810 = vpop.permute.xlu0 %4809
      %4811 = vrot.lane.b32.xlu0 %v3174, 120
      %v4812 = vpop.permute.xlu0 %4811
      %4813 = vrot.lane.b32.xlu0 %v3175, 120
      %v4814 = vpop.permute.xlu0 %4813
      %4815 = vrot.lane.b32.xlu0 %v3176, 120
      %v4816 = vpop.permute.xlu0 %4815
      %4817 = vrot.lane.b32.xlu0 %v3177, 120
      %v4818 = vpop.permute.xlu0 %4817
      %4819 = vrot.lane.b32.xlu0 %v3178, 120
      %v4820 = vpop.permute.xlu0 %4819
      %4821 = vrot.lane.b32.xlu0 %v3179, 120
      %v4822 = vpop.permute.xlu0 %4821
      %4823 = vrot.lane.b32.xlu0 %v3180, 120
      %v4824 = vpop.permute.xlu0 %4823
      %4825 = vrot.lane.b32.xlu0 %v3181, 120
      %v4826 = vpop.permute.xlu0 %4825
      %4827 = vrot.lane.b32.xlu0 %v3182, 120
      %v4828 = vpop.permute.xlu0 %4827
      %4829 = vrot.lane.b32.xlu0 %v3183, 120
      %v4830 = vpop.permute.xlu0 %4829
      %4831 = vrot.lane.b32.xlu0 %v3184, 120
      %v4832 = vpop.permute.xlu0 %4831
      %4833 = vrot.lane.b32.xlu0 %v3185, 120
      %v4834 = vpop.permute.xlu0 %4833
      %4835 = vrot.lane.b32.xlu0 %v3186, 120
      %v4836 = vpop.permute.xlu0 %4835
      %4837 = vrot.lane.b32.xlu0 %v3187, 120
      %v4838 = vpop.permute.xlu0 %4837
      %4839 = vrot.lane.b32.xlu0 %v3188, 120
      %v4840 = vpop.permute.xlu0 %4839
      %4841 = vrot.lane.b32.xlu0 %v3189, 120
      %v4842 = vpop.permute.xlu0 %4841
      %4843 = vrot.lane.b32.xlu0 %v3190, 120
      %v4844 = vpop.permute.xlu0 %4843
      %4845 = vrot.lane.b32.xlu0 %v3191, 120
      %v4846 = vpop.permute.xlu0 %4845
      %4847 = vrot.lane.b32.xlu0 %v3192, 120
      %v4848 = vpop.permute.xlu0 %4847
      %4849 = vrot.lane.b32.xlu0 %v3193, 120
      %v4850 = vpop.permute.xlu0 %4849
      %4851 = vrot.lane.b32.xlu0 %v3194, 120
      %v4852 = vpop.permute.xlu0 %4851
      %4853 = vrot.lane.b32.xlu0 %v3195, 120
      %v4854 = vpop.permute.xlu0 %4853
      %4855 = vrot.lane.b32.xlu0 %v3196, 120
      %v4856 = vpop.permute.xlu0 %4855
      %4857 = vrot.lane.b32.xlu0 %v3197, 120
      %v4858 = vpop.permute.xlu0 %4857
      %4859 = vrot.lane.b32.xlu0 %v3198, 120
      %v4860 = vpop.permute.xlu0 %4859
      %4861 = vrot.lane.b32.xlu0 %v3199, 120
      %v4862 = vpop.permute.xlu0 %4861
      %4863 = vrot.lane.b32.xlu0 %v3200, 120
      %v4864 = vpop.permute.xlu0 %4863
      %4929 = vrot.lane.b32.xlu0 %v3201, 124
      %v4930 = vpop.permute.xlu0 %4929
      %4931 = vrot.lane.b32.xlu0 %v3202, 124
      %v4932 = vpop.permute.xlu0 %4931
      %4933 = vrot.lane.b32.xlu0 %v3203, 124
      %v4934 = vpop.permute.xlu0 %4933
      %4935 = vrot.lane.b32.xlu0 %v3204, 124
      %v4936 = vpop.permute.xlu0 %4935
      %4937 = vrot.lane.b32.xlu0 %v3205, 124
      %v4938 = vpop.permute.xlu0 %4937
      %4939 = vrot.lane.b32.xlu0 %v3206, 124
      %v4940 = vpop.permute.xlu0 %4939
      %4941 = vrot.lane.b32.xlu0 %v3207, 124
      %v4942 = vpop.permute.xlu0 %4941
      %4943 = vrot.lane.b32.xlu0 %v3208, 124
      %v4944 = vpop.permute.xlu0 %4943
      %4945 = vrot.lane.b32.xlu0 %v3209, 124
      %v4946 = vpop.permute.xlu0 %4945
      %4947 = vrot.lane.b32.xlu0 %v3210, 124
      %v4948 = vpop.permute.xlu0 %4947
      %4949 = vrot.lane.b32.xlu0 %v3211, 124
      %v4950 = vpop.permute.xlu0 %4949
      %4951 = vrot.lane.b32.xlu0 %v3212, 124
      %v4952 = vpop.permute.xlu0 %4951
      %4953 = vrot.lane.b32.xlu0 %v3213, 124
      %v4954 = vpop.permute.xlu0 %4953
      %4955 = vrot.lane.b32.xlu0 %v3214, 124
      %v4956 = vpop.permute.xlu0 %4955
      %4957 = vrot.lane.b32.xlu0 %v3215, 124
      %v4958 = vpop.permute.xlu0 %4957
      %4959 = vrot.lane.b32.xlu0 %v3216, 124
      %v4960 = vpop.permute.xlu0 %4959
      %4961 = vrot.lane.b32.xlu0 %v3217, 124
      %v4962 = vpop.permute.xlu0 %4961
      %4963 = vrot.lane.b32.xlu0 %v3218, 124
      %v4964 = vpop.permute.xlu0 %4963
      %4965 = vrot.lane.b32.xlu0 %v3219, 124
      %v4966 = vpop.permute.xlu0 %4965
      %4967 = vrot.lane.b32.xlu0 %v3220, 124
      %v4968 = vpop.permute.xlu0 %4967
      %4969 = vrot.lane.b32.xlu0 %v3221, 124
      %v4970 = vpop.permute.xlu0 %4969
      %4971 = vrot.lane.b32.xlu0 %v3222, 124
      %v4972 = vpop.permute.xlu0 %4971
      %4973 = vrot.lane.b32.xlu0 %v3223, 124
      %v4974 = vpop.permute.xlu0 %4973
      %4975 = vrot.lane.b32.xlu0 %v3224, 124
      %v4976 = vpop.permute.xlu0 %4975
      %4977 = vrot.lane.b32.xlu0 %v3225, 124
      %v4978 = vpop.permute.xlu0 %4977
      %4979 = vrot.lane.b32.xlu0 %v3226, 124
      %v4980 = vpop.permute.xlu0 %4979
      %4981 = vrot.lane.b32.xlu0 %v3227, 124
      %v4982 = vpop.permute.xlu0 %4981
      %4983 = vrot.lane.b32.xlu0 %v3228, 124
      %v4984 = vpop.permute.xlu0 %4983
      %4985 = vrot.lane.b32.xlu0 %v3229, 124
      %v4986 = vpop.permute.xlu0 %4985
      %4987 = vrot.lane.b32.xlu0 %v3230, 124
      %v4988 = vpop.permute.xlu0 %4987
      %4989 = vrot.lane.b32.xlu0 %v3231, 124
      %v4990 = vpop.permute.xlu0 %4989
      %4991 = vrot.lane.b32.xlu0 %v3232, 124
      %v4992 = vpop.permute.xlu0 %4991
      %5057 = vrot.lane.b32.xlu0 %v3233, 12
      %v5058 = vpop.permute.xlu0 %5057
      %5059 = vrot.lane.b32.xlu0 %v3234, 12
      %v5060 = vpop.permute.xlu0 %5059
      %5061 = vrot.lane.b32.xlu0 %v3235, 12
      %v5062 = vpop.permute.xlu0 %5061
      %5063 = vrot.lane.b32.xlu0 %v3236, 12
      %v5064 = vpop.permute.xlu0 %5063
      %5065 = vrot.lane.b32.xlu0 %v3237, 12
      %v5066 = vpop.permute.xlu0 %5065
      %5067 = vrot.lane.b32.xlu0 %v3238, 12
      %v5068 = vpop.permute.xlu0 %5067
      %5069 = vrot.lane.b32.xlu0 %v3239, 12
      %v5070 = vpop.permute.xlu0 %5069
      %5071 = vrot.lane.b32.xlu0 %v3240, 12
      %v5072 = vpop.permute.xlu0 %5071
      %5073 = vrot.lane.b32.xlu0 %v3241, 12
      %v5074 = vpop.permute.xlu0 %5073
      %5075 = vrot.lane.b32.xlu0 %v3242, 12
      %v5076 = vpop.permute.xlu0 %5075
      %5077 = vrot.lane.b32.xlu0 %v3243, 12
      %v5078 = vpop.permute.xlu0 %5077
      %5079 = vrot.lane.b32.xlu0 %v3244, 12
      %v5080 = vpop.permute.xlu0 %5079
      %5081 = vrot.lane.b32.xlu0 %v3245, 12
      %v5082 = vpop.permute.xlu0 %5081
      %5083 = vrot.lane.b32.xlu0 %v3246, 12
      %v5084 = vpop.permute.xlu0 %5083
      %5085 = vrot.lane.b32.xlu0 %v3247, 12
      %v5086 = vpop.permute.xlu0 %5085
      %5087 = vrot.lane.b32.xlu0 %v3248, 12
      %v5088 = vpop.permute.xlu0 %5087
      %5089 = vrot.lane.b32.xlu0 %v3249, 12
      %v5090 = vpop.permute.xlu0 %5089
      %5091 = vrot.lane.b32.xlu0 %v3250, 12
      %v5092 = vpop.permute.xlu0 %5091
      %5093 = vrot.lane.b32.xlu0 %v3251, 12
      %v5094 = vpop.permute.xlu0 %5093
      %5095 = vrot.lane.b32.xlu0 %v3252, 12
      %v5096 = vpop.permute.xlu0 %5095
      %5097 = vrot.lane.b32.xlu0 %v3253, 12
      %v5098 = vpop.permute.xlu0 %5097
      %5099 = vrot.lane.b32.xlu0 %v3254, 12
      %v5100 = vpop.permute.xlu0 %5099
      %5101 = vrot.lane.b32.xlu0 %v3255, 12
      %v5102 = vpop.permute.xlu0 %5101
      %5103 = vrot.lane.b32.xlu0 %v3256, 12
      %v5104 = vpop.permute.xlu0 %5103
      %5105 = vrot.lane.b32.xlu0 %v3257, 12
      %v5106 = vpop.permute.xlu0 %5105
      %5107 = vrot.lane.b32.xlu0 %v3258, 12
      %v5108 = vpop.permute.xlu0 %5107
      %5109 = vrot.lane.b32.xlu0 %v3259, 12
      %v5110 = vpop.permute.xlu0 %5109
      %5111 = vrot.lane.b32.xlu0 %v3260, 12
      %v5112 = vpop.permute.xlu0 %5111
      %5113 = vrot.lane.b32.xlu0 %v3261, 12
      %v5114 = vpop.permute.xlu0 %5113
      %5115 = vrot.lane.b32.xlu0 %v3262, 12
      %v5116 = vpop.permute.xlu0 %5115
      %5117 = vrot.lane.b32.xlu0 %v3263, 12
      %v5118 = vpop.permute.xlu0 %5117
      %5119 = vrot.lane.b32.xlu0 %v3264, 12
      %v5120 = vpop.permute.xlu0 %5119
      %5185 = vrot.lane.b32.xlu0 %v3265, 16
      %v5186 = vpop.permute.xlu0 %5185
      %5187 = vrot.lane.b32.xlu0 %v3266, 16
      %v5188 = vpop.permute.xlu0 %5187
      %5189 = vrot.lane.b32.xlu0 %v3267, 16
      %v5190 = vpop.permute.xlu0 %5189
      %5191 = vrot.lane.b32.xlu0 %v3268, 16
      %v5192 = vpop.permute.xlu0 %5191
      %5193 = vrot.lane.b32.xlu0 %v3269, 16
      %v5194 = vpop.permute.xlu0 %5193
      %5195 = vrot.lane.b32.xlu0 %v3270, 16
      %v5196 = vpop.permute.xlu0 %5195
      %5197 = vrot.lane.b32.xlu0 %v3271, 16
      %v5198 = vpop.permute.xlu0 %5197
      %5199 = vrot.lane.b32.xlu0 %v3272, 16
      %v5200 = vpop.permute.xlu0 %5199
      %5201 = vrot.lane.b32.xlu0 %v3273, 16
      %v5202 = vpop.permute.xlu0 %5201
      %5203 = vrot.lane.b32.xlu0 %v3274, 16
      %v5204 = vpop.permute.xlu0 %5203
      %5205 = vrot.lane.b32.xlu0 %v3275, 16
      %v5206 = vpop.permute.xlu0 %5205
      %5207 = vrot.lane.b32.xlu0 %v3276, 16
      %v5208 = vpop.permute.xlu0 %5207
      %5209 = vrot.lane.b32.xlu0 %v3277, 16
      %v5210 = vpop.permute.xlu0 %5209
      %5211 = vrot.lane.b32.xlu0 %v3278, 16
      %v5212 = vpop.permute.xlu0 %5211
      %5213 = vrot.lane.b32.xlu0 %v3279, 16
      %v5214 = vpop.permute.xlu0 %5213
      %5215 = vrot.lane.b32.xlu0 %v3280, 16
      %v5216 = vpop.permute.xlu0 %5215
      %5217 = vrot.lane.b32.xlu0 %v3281, 16
      %v5218 = vpop.permute.xlu0 %5217
      %5219 = vrot.lane.b32.xlu0 %v3282, 16
      %v5220 = vpop.permute.xlu0 %5219
      %5221 = vrot.lane.b32.xlu0 %v3283, 16
      %v5222 = vpop.permute.xlu0 %5221
      %5223 = vrot.lane.b32.xlu0 %v3284, 16
      %v5224 = vpop.permute.xlu0 %5223
      %5225 = vrot.lane.b32.xlu0 %v3285, 16
      %v5226 = vpop.permute.xlu0 %5225
      %5227 = vrot.lane.b32.xlu0 %v3286, 16
      %v5228 = vpop.permute.xlu0 %5227
      %5229 = vrot.lane.b32.xlu0 %v3287, 16
      %v5230 = vpop.permute.xlu0 %5229
      %5231 = vrot.lane.b32.xlu0 %v3288, 16
      %v5232 = vpop.permute.xlu0 %5231
      %5233 = vrot.lane.b32.xlu0 %v3289, 16
      %v5234 = vpop.permute.xlu0 %5233
      %5235 = vrot.lane.b32.xlu0 %v3290, 16
      %v5236 = vpop.permute.xlu0 %5235
      %5237 = vrot.lane.b32.xlu0 %v3291, 16
      %v5238 = vpop.permute.xlu0 %5237
      %5239 = vrot.lane.b32.xlu0 %v3292, 16
      %v5240 = vpop.permute.xlu0 %5239
      %5241 = vrot.lane.b32.xlu0 %v3293, 16
      %v5242 = vpop.permute.xlu0 %5241
      %5243 = vrot.lane.b32.xlu0 %v3294, 16
      %v5244 = vpop.permute.xlu0 %5243
      %5245 = vrot.lane.b32.xlu0 %v3295, 16
      %v5246 = vpop.permute.xlu0 %5245
      %5247 = vrot.lane.b32.xlu0 %v3296, 16
      %v5248 = vpop.permute.xlu0 %5247
      %v5281 = vsel %vm467, %v2785, %v3394
      %v5282 = vsel %vm467, %v2786, %v3396
      %v5283 = vsel %vm467, %v2787, %v3398
      %v5284 = vsel %vm467, %v2788, %v3400
      %v5285 = vsel %vm467, %v2789, %v3402
      %v5286 = vsel %vm467, %v2790, %v3404
      %v5287 = vsel %vm467, %v2791, %v3406
      %v5288 = vsel %vm467, %v2792, %v3408
      %v5289 = vsel %vm467, %v2793, %v3410
      %v5290 = vsel %vm467, %v2794, %v3412
      %v5291 = vsel %vm467, %v2795, %v3414
      %v5292 = vsel %vm467, %v2796, %v3416
      %v5293 = vsel %vm467, %v2797, %v3418
      %v5294 = vsel %vm467, %v2798, %v3420
      %v5295 = vsel %vm467, %v2799, %v3422
      %v5296 = vsel %vm467, %v2800, %v3424
      %v5297 = vsel %vm467, %v2801, %v3426
      %v5298 = vsel %vm467, %v2802, %v3428
      %v5299 = vsel %vm467, %v2803, %v3430
      %v5300 = vsel %vm467, %v2804, %v3432
      %v5301 = vsel %vm467, %v2805, %v3434
      %v5302 = vsel %vm467, %v2806, %v3436
      %v5303 = vsel %vm467, %v2807, %v3438
      %v5304 = vsel %vm467, %v2808, %v3440
      %v5305 = vsel %vm467, %v2809, %v3442
      %v5306 = vsel %vm467, %v2810, %v3444
      %v5307 = vsel %vm467, %v2811, %v3446
      %v5308 = vsel %vm467, %v2812, %v3448
      %v5309 = vsel %vm467, %v2813, %v3450
      %v5310 = vsel %vm467, %v2814, %v3452
      %v5311 = vsel %vm467, %v2815, %v3454
      %v5312 = vsel %vm467, %v2816, %v3456
      %v5313 = vsel %vm2038, %v5281, %v3522
      %v5314 = vsel %vm2038, %v5282, %v3524
      %v5315 = vsel %vm2038, %v5283, %v3526
      %v5316 = vsel %vm2038, %v5284, %v3528
      %v5317 = vsel %vm2038, %v5285, %v3530
      %v5318 = vsel %vm2038, %v5286, %v3532
      %v5319 = vsel %vm2038, %v5287, %v3534
      %v5320 = vsel %vm2038, %v5288, %v3536
      %v5321 = vsel %vm2038, %v5289, %v3538
      %v5322 = vsel %vm2038, %v5290, %v3540
      %v5323 = vsel %vm2038, %v5291, %v3542
      %v5324 = vsel %vm2038, %v5292, %v3544
      %v5325 = vsel %vm2038, %v5293, %v3546
      %v5326 = vsel %vm2038, %v5294, %v3548
      %v5327 = vsel %vm2038, %v5295, %v3550
      %v5328 = vsel %vm2038, %v5296, %v3552
      %v5329 = vsel %vm2038, %v5297, %v3554
      %v5330 = vsel %vm2038, %v5298, %v3556
      %v5331 = vsel %vm2038, %v5299, %v3558
      %v5332 = vsel %vm2038, %v5300, %v3560
      %v5333 = vsel %vm2038, %v5301, %v3562
      %v5334 = vsel %vm2038, %v5302, %v3564
      %v5335 = vsel %vm2038, %v5303, %v3566
      %v5336 = vsel %vm2038, %v5304, %v3568
      %v5337 = vsel %vm2038, %v5305, %v3570
      %v5338 = vsel %vm2038, %v5306, %v3572
      %v5339 = vsel %vm2038, %v5307, %v3574
      %v5340 = vsel %vm2038, %v5308, %v3576
      %v5341 = vsel %vm2038, %v5309, %v3578
      %v5342 = vsel %vm2038, %v5310, %v3580
      %v5343 = vsel %vm2038, %v5311, %v3582
      %v5344 = vsel %vm2038, %v5312, %v3584
      %v5345 = vsel %vm2071, %v5313, %v3650
      %v5346 = vsel %vm2071, %v5314, %v3652
      %v5347 = vsel %vm2071, %v5315, %v3654
      %v5348 = vsel %vm2071, %v5316, %v3656
      %v5349 = vsel %vm2071, %v5317, %v3658
      %v5350 = vsel %vm2071, %v5318, %v3660
      %v5351 = vsel %vm2071, %v5319, %v3662
      %v5352 = vsel %vm2071, %v5320, %v3664
      %v5353 = vsel %vm2071, %v5321, %v3666
      %v5354 = vsel %vm2071, %v5322, %v3668
      %v5355 = vsel %vm2071, %v5323, %v3670
      %v5356 = vsel %vm2071, %v5324, %v3672
      %v5357 = vsel %vm2071, %v5325, %v3674
      %v5358 = vsel %vm2071, %v5326, %v3676
      %v5359 = vsel %vm2071, %v5327, %v3678
      %v5360 = vsel %vm2071, %v5328, %v3680
      %v5361 = vsel %vm2071, %v5329, %v3682
      %v5362 = vsel %vm2071, %v5330, %v3684
      %v5363 = vsel %vm2071, %v5331, %v3686
      %v5364 = vsel %vm2071, %v5332, %v3688
      %v5365 = vsel %vm2071, %v5333, %v3690
      %v5366 = vsel %vm2071, %v5334, %v3692
      %v5367 = vsel %vm2071, %v5335, %v3694
      %v5368 = vsel %vm2071, %v5336, %v3696
      %v5369 = vsel %vm2071, %v5337, %v3698
      %v5370 = vsel %vm2071, %v5338, %v3700
      %v5371 = vsel %vm2071, %v5339, %v3702
      %v5372 = vsel %vm2071, %v5340, %v3704
      %v5373 = vsel %vm2071, %v5341, %v3706
      %v5374 = vsel %vm2071, %v5342, %v3708
      %v5375 = vsel %vm2071, %v5343, %v3710
      %v5376 = vsel %vm2071, %v5344, %v3712
      %vm5377 = vcmask 326656
      %v5378 = vsel %vm5377, %v5345, %v3778
      %v5379 = vsel %vm5377, %v5346, %v3780
      %v5380 = vsel %vm5377, %v5347, %v3782
      %v5381 = vsel %vm5377, %v5348, %v3784
      %v5382 = vsel %vm5377, %v5349, %v3786
      %v5383 = vsel %vm5377, %v5350, %v3788
      %v5384 = vsel %vm5377, %v5351, %v3790
      %v5385 = vsel %vm5377, %v5352, %v3792
      %v5386 = vsel %vm5377, %v5353, %v3794
      %v5387 = vsel %vm5377, %v5354, %v3796
      %v5388 = vsel %vm5377, %v5355, %v3798
      %v5389 = vsel %vm5377, %v5356, %v3800
      %v5390 = vsel %vm5377, %v5357, %v3802
      %v5391 = vsel %vm5377, %v5358, %v3804
      %v5392 = vsel %vm5377, %v5359, %v3806
      %v5393 = vsel %vm5377, %v5360, %v3808
      %v5394 = vsel %vm5377, %v5361, %v3810
      %v5395 = vsel %vm5377, %v5362, %v3812
      %v5396 = vsel %vm5377, %v5363, %v3814
      %v5397 = vsel %vm5377, %v5364, %v3816
      %v5398 = vsel %vm5377, %v5365, %v3818
      %v5399 = vsel %vm5377, %v5366, %v3820
      %v5400 = vsel %vm5377, %v5367, %v3822
      %v5401 = vsel %vm5377, %v5368, %v3824
      %v5402 = vsel %vm5377, %v5369, %v3826
      %v5403 = vsel %vm5377, %v5370, %v3828
      %v5404 = vsel %vm5377, %v5371, %v3830
      %v5405 = vsel %vm5377, %v5372, %v3832
      %v5406 = vsel %vm5377, %v5373, %v3834
      %v5407 = vsel %vm5377, %v5374, %v3836
      %v5408 = vsel %vm5377, %v5375, %v3838
      %v5409 = vsel %vm5377, %v5376, %v3840
      %vm5410 = vcmask 359424
      %v5411 = vsel %vm5410, %v5378, %v3906
      %v5412 = vsel %vm5410, %v5379, %v3908
      %v5413 = vsel %vm5410, %v5380, %v3910
      %v5414 = vsel %vm5410, %v5381, %v3912
      %v5415 = vsel %vm5410, %v5382, %v3914
      %v5416 = vsel %vm5410, %v5383, %v3916
      %v5417 = vsel %vm5410, %v5384, %v3918
      %v5418 = vsel %vm5410, %v5385, %v3920
      %v5419 = vsel %vm5410, %v5386, %v3922
      %v5420 = vsel %vm5410, %v5387, %v3924
      %v5421 = vsel %vm5410, %v5388, %v3926
      %v5422 = vsel %vm5410, %v5389, %v3928
      %v5423 = vsel %vm5410, %v5390, %v3930
      %v5424 = vsel %vm5410, %v5391, %v3932
      %v5425 = vsel %vm5410, %v5392, %v3934
      %v5426 = vsel %vm5410, %v5393, %v3936
      %v5427 = vsel %vm5410, %v5394, %v3938
      %v5428 = vsel %vm5410, %v5395, %v3940
      %v5429 = vsel %vm5410, %v5396, %v3942
      %v5430 = vsel %vm5410, %v5397, %v3944
      %v5431 = vsel %vm5410, %v5398, %v3946
      %v5432 = vsel %vm5410, %v5399, %v3948
      %v5433 = vsel %vm5410, %v5400, %v3950
      %v5434 = vsel %vm5410, %v5401, %v3952
      %v5435 = vsel %vm5410, %v5402, %v3954
      %v5436 = vsel %vm5410, %v5403, %v3956
      %v5437 = vsel %vm5410, %v5404, %v3958
      %v5438 = vsel %vm5410, %v5405, %v3960
      %v5439 = vsel %vm5410, %v5406, %v3962
      %v5440 = vsel %vm5410, %v5407, %v3964
      %v5441 = vsel %vm5410, %v5408, %v3966
      %v5442 = vsel %vm5410, %v5409, %v3968
      %vm5443 = vcmask 490496
      %v5444 = vsel %vm5443, %v5411, %v4034
      %v5445 = vsel %vm5443, %v5412, %v4036
      %v5446 = vsel %vm5443, %v5413, %v4038
      %v5447 = vsel %vm5443, %v5414, %v4040
      %v5448 = vsel %vm5443, %v5415, %v4042
      %v5449 = vsel %vm5443, %v5416, %v4044
      %v5450 = vsel %vm5443, %v5417, %v4046
      %v5451 = vsel %vm5443, %v5418, %v4048
      %v5452 = vsel %vm5443, %v5419, %v4050
      %v5453 = vsel %vm5443, %v5420, %v4052
      %v5454 = vsel %vm5443, %v5421, %v4054
      %v5455 = vsel %vm5443, %v5422, %v4056
      %v5456 = vsel %vm5443, %v5423, %v4058
      %v5457 = vsel %vm5443, %v5424, %v4060
      %v5458 = vsel %vm5443, %v5425, %v4062
      %v5459 = vsel %vm5443, %v5426, %v4064
      %v5460 = vsel %vm5443, %v5427, %v4066
      %v5461 = vsel %vm5443, %v5428, %v4068
      %v5462 = vsel %vm5443, %v5429, %v4070
      %v5463 = vsel %vm5443, %v5430, %v4072
      %v5464 = vsel %vm5443, %v5431, %v4074
      %v5465 = vsel %vm5443, %v5432, %v4076
      %v5466 = vsel %vm5443, %v5433, %v4078
      %v5467 = vsel %vm5443, %v5434, %v4080
      %v5468 = vsel %vm5443, %v5435, %v4082
      %v5469 = vsel %vm5443, %v5436, %v4084
      %v5470 = vsel %vm5443, %v5437, %v4086
      %v5471 = vsel %vm5443, %v5438, %v4088
      %v5472 = vsel %vm5443, %v5439, %v4090
      %v5473 = vsel %vm5443, %v5440, %v4092
      %v5474 = vsel %vm5443, %v5441, %v4094
      %v5475 = vsel %vm5443, %v5442, %v4096
      %vm5476 = vcmask 523264
      %v5477 = vsel %vm5476, %v5444, %v4162
      %v5478 = vsel %vm5476, %v5445, %v4164
      %v5479 = vsel %vm5476, %v5446, %v4166
      %v5480 = vsel %vm5476, %v5447, %v4168
      %v5481 = vsel %vm5476, %v5448, %v4170
      %v5482 = vsel %vm5476, %v5449, %v4172
      %v5483 = vsel %vm5476, %v5450, %v4174
      %v5484 = vsel %vm5476, %v5451, %v4176
      %v5485 = vsel %vm5476, %v5452, %v4178
      %v5486 = vsel %vm5476, %v5453, %v4180
      %v5487 = vsel %vm5476, %v5454, %v4182
      %v5488 = vsel %vm5476, %v5455, %v4184
      %v5489 = vsel %vm5476, %v5456, %v4186
      %v5490 = vsel %vm5476, %v5457, %v4188
      %v5491 = vsel %vm5476, %v5458, %v4190
      %v5492 = vsel %vm5476, %v5459, %v4192
      %v5493 = vsel %vm5476, %v5460, %v4194
      %v5494 = vsel %vm5476, %v5461, %v4196
      %v5495 = vsel %vm5476, %v5462, %v4198
      %v5496 = vsel %vm5476, %v5463, %v4200
      %v5497 = vsel %vm5476, %v5464, %v4202
      %v5498 = vsel %vm5476, %v5465, %v4204
      %v5499 = vsel %vm5476, %v5466, %v4206
      %v5500 = vsel %vm5476, %v5467, %v4208
      %v5501 = vsel %vm5476, %v5468, %v4210
      %v5502 = vsel %vm5476, %v5469, %v4212
      %v5503 = vsel %vm5476, %v5470, %v4214
      %v5504 = vsel %vm5476, %v5471, %v4216
      %v5505 = vsel %vm5476, %v5472, %v4218
      %v5506 = vsel %vm5476, %v5473, %v4220
      %v5507 = vsel %vm5476, %v5474, %v4222
      %v5508 = vsel %vm5476, %v5475, %v4224
      %vm5509 = vcmask 654336
      %v5510 = vsel %vm5509, %v5477, %v4290
      %v5511 = vsel %vm5509, %v5478, %v4292
      %v5512 = vsel %vm5509, %v5479, %v4294
      %v5513 = vsel %vm5509, %v5480, %v4296
      %v5514 = vsel %vm5509, %v5481, %v4298
      %v5515 = vsel %vm5509, %v5482, %v4300
      %v5516 = vsel %vm5509, %v5483, %v4302
      %v5517 = vsel %vm5509, %v5484, %v4304
      %v5518 = vsel %vm5509, %v5485, %v4306
      %v5519 = vsel %vm5509, %v5486, %v4308
      %v5520 = vsel %vm5509, %v5487, %v4310
      %v5521 = vsel %vm5509, %v5488, %v4312
      %v5522 = vsel %vm5509, %v5489, %v4314
      %v5523 = vsel %vm5509, %v5490, %v4316
      %v5524 = vsel %vm5509, %v5491, %v4318
      %v5525 = vsel %vm5509, %v5492, %v4320
      %v5526 = vsel %vm5509, %v5493, %v4322
      %v5527 = vsel %vm5509, %v5494, %v4324
      %v5528 = vsel %vm5509, %v5495, %v4326
      %v5529 = vsel %vm5509, %v5496, %v4328
      %v5530 = vsel %vm5509, %v5497, %v4330
      %v5531 = vsel %vm5509, %v5498, %v4332
      %v5532 = vsel %vm5509, %v5499, %v4334
      %v5533 = vsel %vm5509, %v5500, %v4336
      %v5534 = vsel %vm5509, %v5501, %v4338
      %v5535 = vsel %vm5509, %v5502, %v4340
      %v5536 = vsel %vm5509, %v5503, %v4342
      %v5537 = vsel %vm5509, %v5504, %v4344
      %v5538 = vsel %vm5509, %v5505, %v4346
      %v5539 = vsel %vm5509, %v5506, %v4348
      %v5540 = vsel %vm5509, %v5507, %v4350
      %v5541 = vsel %vm5509, %v5508, %v4352
      %vm5542 = vcmask 687104
      %v5543 = vsel %vm5542, %v5510, %v4418
      %v5544 = vsel %vm5542, %v5511, %v4420
      %v5545 = vsel %vm5542, %v5512, %v4422
      %v5546 = vsel %vm5542, %v5513, %v4424
      %v5547 = vsel %vm5542, %v5514, %v4426
      %v5548 = vsel %vm5542, %v5515, %v4428
      %v5549 = vsel %vm5542, %v5516, %v4430
      %v5550 = vsel %vm5542, %v5517, %v4432
      %v5551 = vsel %vm5542, %v5518, %v4434
      %v5552 = vsel %vm5542, %v5519, %v4436
      %v5553 = vsel %vm5542, %v5520, %v4438
      %v5554 = vsel %vm5542, %v5521, %v4440
      %v5555 = vsel %vm5542, %v5522, %v4442
      %v5556 = vsel %vm5542, %v5523, %v4444
      %v5557 = vsel %vm5542, %v5524, %v4446
      %v5558 = vsel %vm5542, %v5525, %v4448
      %v5559 = vsel %vm5542, %v5526, %v4450
      %v5560 = vsel %vm5542, %v5527, %v4452
      %v5561 = vsel %vm5542, %v5528, %v4454
      %v5562 = vsel %vm5542, %v5529, %v4456
      %v5563 = vsel %vm5542, %v5530, %v4458
      %v5564 = vsel %vm5542, %v5531, %v4460
      %v5565 = vsel %vm5542, %v5532, %v4462
      %v5566 = vsel %vm5542, %v5533, %v4464
      %v5567 = vsel %vm5542, %v5534, %v4466
      %v5568 = vsel %vm5542, %v5535, %v4468
      %v5569 = vsel %vm5542, %v5536, %v4470
      %v5570 = vsel %vm5542, %v5537, %v4472
      %v5571 = vsel %vm5542, %v5538, %v4474
      %v5572 = vsel %vm5542, %v5539, %v4476
      %v5573 = vsel %vm5542, %v5540, %v4478
      %v5574 = vsel %vm5542, %v5541, %v4480
      %vm5575 = vcmask 818176
      %v5576 = vsel %vm5575, %v5543, %v4546
      %v5577 = vsel %vm5575, %v5544, %v4548
      %v5578 = vsel %vm5575, %v5545, %v4550
      %v5579 = vsel %vm5575, %v5546, %v4552
      %v5580 = vsel %vm5575, %v5547, %v4554
      %v5581 = vsel %vm5575, %v5548, %v4556
      %v5582 = vsel %vm5575, %v5549, %v4558
      %v5583 = vsel %vm5575, %v5550, %v4560
      %v5584 = vsel %vm5575, %v5551, %v4562
      %v5585 = vsel %vm5575, %v5552, %v4564
      %v5586 = vsel %vm5575, %v5553, %v4566
      %v5587 = vsel %vm5575, %v5554, %v4568
      %v5588 = vsel %vm5575, %v5555, %v4570
      %v5589 = vsel %vm5575, %v5556, %v4572
      %v5590 = vsel %vm5575, %v5557, %v4574
      %v5591 = vsel %vm5575, %v5558, %v4576
      %v5592 = vsel %vm5575, %v5559, %v4578
      %v5593 = vsel %vm5575, %v5560, %v4580
      %v5594 = vsel %vm5575, %v5561, %v4582
      %v5595 = vsel %vm5575, %v5562, %v4584
      %v5596 = vsel %vm5575, %v5563, %v4586
      %v5597 = vsel %vm5575, %v5564, %v4588
      %v5598 = vsel %vm5575, %v5565, %v4590
      %v5599 = vsel %vm5575, %v5566, %v4592
      %v5600 = vsel %vm5575, %v5567, %v4594
      %v5601 = vsel %vm5575, %v5568, %v4596
      %v5602 = vsel %vm5575, %v5569, %v4598
      %v5603 = vsel %vm5575, %v5570, %v4600
      %v5604 = vsel %vm5575, %v5571, %v4602
      %v5605 = vsel %vm5575, %v5572, %v4604
      %v5606 = vsel %vm5575, %v5573, %v4606
      %v5607 = vsel %vm5575, %v5574, %v4608
      %vm5608 = vcmask 850944
      %v5609 = vsel %vm5608, %v5576, %v4674
      %v5610 = vsel %vm5608, %v5577, %v4676
      %v5611 = vsel %vm5608, %v5578, %v4678
      %v5612 = vsel %vm5608, %v5579, %v4680
      %v5613 = vsel %vm5608, %v5580, %v4682
      %v5614 = vsel %vm5608, %v5581, %v4684
      %v5615 = vsel %vm5608, %v5582, %v4686
      %v5616 = vsel %vm5608, %v5583, %v4688
      %v5617 = vsel %vm5608, %v5584, %v4690
      %v5618 = vsel %vm5608, %v5585, %v4692
      %v5619 = vsel %vm5608, %v5586, %v4694
      %v5620 = vsel %vm5608, %v5587, %v4696
      %v5621 = vsel %vm5608, %v5588, %v4698
      %v5622 = vsel %vm5608, %v5589, %v4700
      %v5623 = vsel %vm5608, %v5590, %v4702
      %v5624 = vsel %vm5608, %v5591, %v4704
      %v5625 = vsel %vm5608, %v5592, %v4706
      %v5626 = vsel %vm5608, %v5593, %v4708
      %v5627 = vsel %vm5608, %v5594, %v4710
      %v5628 = vsel %vm5608, %v5595, %v4712
      %v5629 = vsel %vm5608, %v5596, %v4714
      %v5630 = vsel %vm5608, %v5597, %v4716
      %v5631 = vsel %vm5608, %v5598, %v4718
      %v5632 = vsel %vm5608, %v5599, %v4720
      %v5633 = vsel %vm5608, %v5600, %v4722
      %v5634 = vsel %vm5608, %v5601, %v4724
      %v5635 = vsel %vm5608, %v5602, %v4726
      %v5636 = vsel %vm5608, %v5603, %v4728
      %v5637 = vsel %vm5608, %v5604, %v4730
      %v5638 = vsel %vm5608, %v5605, %v4732
      %v5639 = vsel %vm5608, %v5606, %v4734
      %v5640 = vsel %vm5608, %v5607, %v4736
      %vm5641 = vcmask 982016
      %v5642 = vsel %vm5641, %v5609, %v4802
      %v5643 = vsel %vm5641, %v5610, %v4804
      %v5644 = vsel %vm5641, %v5611, %v4806
      %v5645 = vsel %vm5641, %v5612, %v4808
      %v5646 = vsel %vm5641, %v5613, %v4810
      %v5647 = vsel %vm5641, %v5614, %v4812
      %v5648 = vsel %vm5641, %v5615, %v4814
      %v5649 = vsel %vm5641, %v5616, %v4816
      %v5650 = vsel %vm5641, %v5617, %v4818
      %v5651 = vsel %vm5641, %v5618, %v4820
      %v5652 = vsel %vm5641, %v5619, %v4822
      %v5653 = vsel %vm5641, %v5620, %v4824
      %v5654 = vsel %vm5641, %v5621, %v4826
      %v5655 = vsel %vm5641, %v5622, %v4828
      %v5656 = vsel %vm5641, %v5623, %v4830
      %v5657 = vsel %vm5641, %v5624, %v4832
      %v5658 = vsel %vm5641, %v5625, %v4834
      %v5659 = vsel %vm5641, %v5626, %v4836
      %v5660 = vsel %vm5641, %v5627, %v4838
      %v5661 = vsel %vm5641, %v5628, %v4840
      %v5662 = vsel %vm5641, %v5629, %v4842
      %v5663 = vsel %vm5641, %v5630, %v4844
      %v5664 = vsel %vm5641, %v5631, %v4846
      %v5665 = vsel %vm5641, %v5632, %v4848
      %v5666 = vsel %vm5641, %v5633, %v4850
      %v5667 = vsel %vm5641, %v5634, %v4852
      %v5668 = vsel %vm5641, %v5635, %v4854
      %v5669 = vsel %vm5641, %v5636, %v4856
      %v5670 = vsel %vm5641, %v5637, %v4858
      %v5671 = vsel %vm5641, %v5638, %v4860
      %v5672 = vsel %vm5641, %v5639, %v4862
      %v5673 = vsel %vm5641, %v5640, %v4864
      %vm5674 = vcmask 1014784
      %v5675 = vsel %vm5674, %v5642, %v4930
      %v5676 = vsel %vm5674, %v5643, %v4932
      %v5677 = vsel %vm5674, %v5644, %v4934
      %v5678 = vsel %vm5674, %v5645, %v4936
      %v5679 = vsel %vm5674, %v5646, %v4938
      %v5680 = vsel %vm5674, %v5647, %v4940
      %v5681 = vsel %vm5674, %v5648, %v4942
      %v5682 = vsel %vm5674, %v5649, %v4944
      %v5683 = vsel %vm5674, %v5650, %v4946
      %v5684 = vsel %vm5674, %v5651, %v4948
      %v5685 = vsel %vm5674, %v5652, %v4950
      %v5686 = vsel %vm5674, %v5653, %v4952
      %v5687 = vsel %vm5674, %v5654, %v4954
      %v5688 = vsel %vm5674, %v5655, %v4956
      %v5689 = vsel %vm5674, %v5656, %v4958
      %v5690 = vsel %vm5674, %v5657, %v4960
      %v5691 = vsel %vm5674, %v5658, %v4962
      %v5692 = vsel %vm5674, %v5659, %v4964
      %v5693 = vsel %vm5674, %v5660, %v4966
      %v5694 = vsel %vm5674, %v5661, %v4968
      %v5695 = vsel %vm5674, %v5662, %v4970
      %v5696 = vsel %vm5674, %v5663, %v4972
      %v5697 = vsel %vm5674, %v5664, %v4974
      %v5698 = vsel %vm5674, %v5665, %v4976
      %v5699 = vsel %vm5674, %v5666, %v4978
      %v5700 = vsel %vm5674, %v5667, %v4980
      %v5701 = vsel %vm5674, %v5668, %v4982
      %v5702 = vsel %vm5674, %v5669, %v4984
      %v5703 = vsel %vm5674, %v5670, %v4986
      %v5704 = vsel %vm5674, %v5671, %v4988
      %v5705 = vsel %vm5674, %v5672, %v4990
      %v5706 = vsel %vm5674, %v5673, %v4992
      %v5707 = vsel %vm1972, %v4930, %v5058
      %v5708 = vsel %vm1972, %v4932, %v5060
      %v5709 = vsel %vm1972, %v4934, %v5062
      %v5710 = vsel %vm1972, %v4936, %v5064
      %v5711 = vsel %vm1972, %v4938, %v5066
      %v5712 = vsel %vm1972, %v4940, %v5068
      %v5713 = vsel %vm1972, %v4942, %v5070
      %v5714 = vsel %vm1972, %v4944, %v5072
      %v5715 = vsel %vm1972, %v4946, %v5074
      %v5716 = vsel %vm1972, %v4948, %v5076
      %v5717 = vsel %vm1972, %v4950, %v5078
      %v5718 = vsel %vm1972, %v4952, %v5080
      %v5719 = vsel %vm1972, %v4954, %v5082
      %v5720 = vsel %vm1972, %v4956, %v5084
      %v5721 = vsel %vm1972, %v4958, %v5086
      %v5722 = vsel %vm1972, %v4960, %v5088
      %v5723 = vsel %vm1972, %v4962, %v5090
      %v5724 = vsel %vm1972, %v4964, %v5092
      %v5725 = vsel %vm1972, %v4966, %v5094
      %v5726 = vsel %vm1972, %v4968, %v5096
      %v5727 = vsel %vm1972, %v4970, %v5098
      %v5728 = vsel %vm1972, %v4972, %v5100
      %v5729 = vsel %vm1972, %v4974, %v5102
      %v5730 = vsel %vm1972, %v4976, %v5104
      %v5731 = vsel %vm1972, %v4978, %v5106
      %v5732 = vsel %vm1972, %v4980, %v5108
      %v5733 = vsel %vm1972, %v4982, %v5110
      %v5734 = vsel %vm1972, %v4984, %v5112
      %v5735 = vsel %vm1972, %v4986, %v5114
      %v5736 = vsel %vm1972, %v4988, %v5116
      %v5737 = vsel %vm1972, %v4990, %v5118
      %v5738 = vsel %vm1972, %v4992, %v5120
      %v5739 = vsel %vm2005, %v5707, %v5186
      %v5740 = vsel %vm2005, %v5708, %v5188
      %v5741 = vsel %vm2005, %v5709, %v5190
      %v5742 = vsel %vm2005, %v5710, %v5192
      %v5743 = vsel %vm2005, %v5711, %v5194
      %v5744 = vsel %vm2005, %v5712, %v5196
      %v5745 = vsel %vm2005, %v5713, %v5198
      %v5746 = vsel %vm2005, %v5714, %v5200
      %v5747 = vsel %vm2005, %v5715, %v5202
      %v5748 = vsel %vm2005, %v5716, %v5204
      %v5749 = vsel %vm2005, %v5717, %v5206
      %v5750 = vsel %vm2005, %v5718, %v5208
      %v5751 = vsel %vm2005, %v5719, %v5210
      %v5752 = vsel %vm2005, %v5720, %v5212
      %v5753 = vsel %vm2005, %v5721, %v5214
      %v5754 = vsel %vm2005, %v5722, %v5216
      %v5755 = vsel %vm2005, %v5723, %v5218
      %v5756 = vsel %vm2005, %v5724, %v5220
      %v5757 = vsel %vm2005, %v5725, %v5222
      %v5758 = vsel %vm2005, %v5726, %v5224
      %v5759 = vsel %vm2005, %v5727, %v5226
      %v5760 = vsel %vm2005, %v5728, %v5228
      %v5761 = vsel %vm2005, %v5729, %v5230
      %v5762 = vsel %vm2005, %v5730, %v5232
      %v5763 = vsel %vm2005, %v5731, %v5234
      %v5764 = vsel %vm2005, %v5732, %v5236
      %v5765 = vsel %vm2005, %v5733, %v5238
      %v5766 = vsel %vm2005, %v5734, %v5240
      %v5767 = vsel %vm2005, %v5735, %v5242
      %v5768 = vsel %vm2005, %v5736, %v5244
      %v5769 = vsel %vm2005, %v5737, %v5246
      %v5770 = vsel %vm2005, %v5738, %v5248
      %5803 = vrot.lane.b32.xlu0 %v3329, 4
      %v5804 = vpop.permute.xlu0 %5803
      %5805 = vrot.lane.b32.xlu0 %v3330, 4
      %v5806 = vpop.permute.xlu0 %5805
      %5807 = vrot.lane.b32.xlu0 %v3331, 4
      %v5808 = vpop.permute.xlu0 %5807
      %5809 = vrot.lane.b32.xlu0 %v3332, 4
      %v5810 = vpop.permute.xlu0 %5809
      %5811 = vrot.lane.b32.xlu0 %v3333, 4
      %v5812 = vpop.permute.xlu0 %5811
      %5813 = vrot.lane.b32.xlu0 %v3334, 4
      %v5814 = vpop.permute.xlu0 %5813
      %5815 = vrot.lane.b32.xlu0 %v3335, 4
      %v5816 = vpop.permute.xlu0 %5815
      %5817 = vrot.lane.b32.xlu0 %v3336, 4
      %v5818 = vpop.permute.xlu0 %5817
      %5819 = vrot.lane.b32.xlu0 %v3337, 4
      %v5820 = vpop.permute.xlu0 %5819
      %5821 = vrot.lane.b32.xlu0 %v3338, 4
      %v5822 = vpop.permute.xlu0 %5821
      %5823 = vrot.lane.b32.xlu0 %v3339, 4
      %v5824 = vpop.permute.xlu0 %5823
      %5825 = vrot.lane.b32.xlu0 %v3340, 4
      %v5826 = vpop.permute.xlu0 %5825
      %5827 = vrot.lane.b32.xlu0 %v3341, 4
      %v5828 = vpop.permute.xlu0 %5827
      %5829 = vrot.lane.b32.xlu0 %v3342, 4
      %v5830 = vpop.permute.xlu0 %5829
      %5831 = vrot.lane.b32.xlu0 %v3343, 4
      %v5832 = vpop.permute.xlu0 %5831
      %5833 = vrot.lane.b32.xlu0 %v3344, 4
      %v5834 = vpop.permute.xlu0 %5833
      %5835 = vrot.lane.b32.xlu0 %v3345, 4
      %v5836 = vpop.permute.xlu0 %5835
      %5837 = vrot.lane.b32.xlu0 %v3346, 4
      %v5838 = vpop.permute.xlu0 %5837
      %5839 = vrot.lane.b32.xlu0 %v3347, 4
      %v5840 = vpop.permute.xlu0 %5839
      %5841 = vrot.lane.b32.xlu0 %v3348, 4
      %v5842 = vpop.permute.xlu0 %5841
      %5843 = vrot.lane.b32.xlu0 %v3349, 4
      %v5844 = vpop.permute.xlu0 %5843
      %5845 = vrot.lane.b32.xlu0 %v3350, 4
      %v5846 = vpop.permute.xlu0 %5845
      %5847 = vrot.lane.b32.xlu0 %v3351, 4
      %v5848 = vpop.permute.xlu0 %5847
      %5849 = vrot.lane.b32.xlu0 %v3352, 4
      %v5850 = vpop.permute.xlu0 %5849
      %5851 = vrot.lane.b32.xlu0 %v3353, 4
      %v5852 = vpop.permute.xlu0 %5851
      %5853 = vrot.lane.b32.xlu0 %v3354, 4
      %v5854 = vpop.permute.xlu0 %5853
      %5855 = vrot.lane.b32.xlu0 %v3355, 4
      %v5856 = vpop.permute.xlu0 %5855
      %5857 = vrot.lane.b32.xlu0 %v3356, 4
      %v5858 = vpop.permute.xlu0 %5857
      %5859 = vrot.lane.b32.xlu0 %v3357, 4
      %v5860 = vpop.permute.xlu0 %5859
      %5861 = vrot.lane.b32.xlu0 %v3358, 4
      %v5862 = vpop.permute.xlu0 %5861
      %5863 = vrot.lane.b32.xlu0 %v3359, 4
      %v5864 = vpop.permute.xlu0 %5863
      %5865 = vrot.lane.b32.xlu0 %v3360, 4
      %v5866 = vpop.permute.xlu0 %5865
      %v5899 = vsel %vm467, %v3297, %v5804
      %v5900 = vsel %vm467, %v3298, %v5806
      %v5901 = vsel %vm467, %v3299, %v5808
      %v5902 = vsel %vm467, %v3300, %v5810
      %v5903 = vsel %vm467, %v3301, %v5812
      %v5904 = vsel %vm467, %v3302, %v5814
      %v5905 = vsel %vm467, %v3303, %v5816
      %v5906 = vsel %vm467, %v3304, %v5818
      %v5907 = vsel %vm467, %v3305, %v5820
      %v5908 = vsel %vm467, %v3306, %v5822
      %v5909 = vsel %vm467, %v3307, %v5824
      %v5910 = vsel %vm467, %v3308, %v5826
      %v5911 = vsel %vm467, %v3309, %v5828
      %v5912 = vsel %vm467, %v3310, %v5830
      %v5913 = vsel %vm467, %v3311, %v5832
      %v5914 = vsel %vm467, %v3312, %v5834
      %v5915 = vsel %vm467, %v3313, %v5836
      %v5916 = vsel %vm467, %v3314, %v5838
      %v5917 = vsel %vm467, %v3315, %v5840
      %v5918 = vsel %vm467, %v3316, %v5842
      %v5919 = vsel %vm467, %v3317, %v5844
      %v5920 = vsel %vm467, %v3318, %v5846
      %v5921 = vsel %vm467, %v3319, %v5848
      %v5922 = vsel %vm467, %v3320, %v5850
      %v5923 = vsel %vm467, %v3321, %v5852
      %v5924 = vsel %vm467, %v3322, %v5854
      %v5925 = vsel %vm467, %v3323, %v5856
      %v5926 = vsel %vm467, %v3324, %v5858
      %v5927 = vsel %vm467, %v3325, %v5860
      %v5928 = vsel %vm467, %v3326, %v5862
      %v5929 = vsel %vm467, %v3327, %v5864
      %v5930 = vsel %vm467, %v3328, %v5866
      %5963 = vrot.lane.b32.xlu0 %v5899, 32
      %v5964 = vpop.permute.xlu0 %5963
      %5965 = vrot.lane.b32.xlu0 %v5900, 32
      %v5966 = vpop.permute.xlu0 %5965
      %5967 = vrot.lane.b32.xlu0 %v5901, 32
      %v5968 = vpop.permute.xlu0 %5967
      %5969 = vrot.lane.b32.xlu0 %v5902, 32
      %v5970 = vpop.permute.xlu0 %5969
      %5971 = vrot.lane.b32.xlu0 %v5903, 32
      %v5972 = vpop.permute.xlu0 %5971
      %5973 = vrot.lane.b32.xlu0 %v5904, 32
      %v5974 = vpop.permute.xlu0 %5973
      %5975 = vrot.lane.b32.xlu0 %v5905, 32
      %v5976 = vpop.permute.xlu0 %5975
      %5977 = vrot.lane.b32.xlu0 %v5906, 32
      %v5978 = vpop.permute.xlu0 %5977
      %5979 = vrot.lane.b32.xlu0 %v5907, 32
      %v5980 = vpop.permute.xlu0 %5979
      %5981 = vrot.lane.b32.xlu0 %v5908, 32
      %v5982 = vpop.permute.xlu0 %5981
      %5983 = vrot.lane.b32.xlu0 %v5909, 32
      %v5984 = vpop.permute.xlu0 %5983
      %5985 = vrot.lane.b32.xlu0 %v5910, 32
      %v5986 = vpop.permute.xlu0 %5985
      %5987 = vrot.lane.b32.xlu0 %v5911, 32
      %v5988 = vpop.permute.xlu0 %5987
      %5989 = vrot.lane.b32.xlu0 %v5912, 32
      %v5990 = vpop.permute.xlu0 %5989
      %5991 = vrot.lane.b32.xlu0 %v5913, 32
      %v5992 = vpop.permute.xlu0 %5991
      %5993 = vrot.lane.b32.xlu0 %v5914, 32
      %v5994 = vpop.permute.xlu0 %5993
      %5995 = vrot.lane.b32.xlu0 %v5915, 32
      %v5996 = vpop.permute.xlu0 %5995
      %5997 = vrot.lane.b32.xlu0 %v5916, 32
      %v5998 = vpop.permute.xlu0 %5997
      %5999 = vrot.lane.b32.xlu0 %v5917, 32
      %v6000 = vpop.permute.xlu0 %5999
      %6001 = vrot.lane.b32.xlu0 %v5918, 32
      %v6002 = vpop.permute.xlu0 %6001
      %6003 = vrot.lane.b32.xlu0 %v5919, 32
      %v6004 = vpop.permute.xlu0 %6003
      %6005 = vrot.lane.b32.xlu0 %v5920, 32
      %v6006 = vpop.permute.xlu0 %6005
      %6007 = vrot.lane.b32.xlu0 %v5921, 32
      %v6008 = vpop.permute.xlu0 %6007
      %6009 = vrot.lane.b32.xlu0 %v5922, 32
      %v6010 = vpop.permute.xlu0 %6009
      %6011 = vrot.lane.b32.xlu0 %v5923, 32
      %v6012 = vpop.permute.xlu0 %6011
      %6013 = vrot.lane.b32.xlu0 %v5924, 32
      %v6014 = vpop.permute.xlu0 %6013
      %6015 = vrot.lane.b32.xlu0 %v5925, 32
      %v6016 = vpop.permute.xlu0 %6015
      %6017 = vrot.lane.b32.xlu0 %v5926, 32
      %v6018 = vpop.permute.xlu0 %6017
      %6019 = vrot.lane.b32.xlu0 %v5927, 32
      %v6020 = vpop.permute.xlu0 %6019
      %6021 = vrot.lane.b32.xlu0 %v5928, 32
      %v6022 = vpop.permute.xlu0 %6021
      %6023 = vrot.lane.b32.xlu0 %v5929, 32
      %v6024 = vpop.permute.xlu0 %6023
      %6025 = vrot.lane.b32.xlu0 %v5930, 32
      %v6026 = vpop.permute.xlu0 %6025
      %v6059 = vsel %vm2137, %v5739, %v5964
      %v6060 = vsel %vm2137, %v5740, %v5966
      %v6061 = vsel %vm2137, %v5741, %v5968
      %v6062 = vsel %vm2137, %v5742, %v5970
      %v6063 = vsel %vm2137, %v5743, %v5972
      %v6064 = vsel %vm2137, %v5744, %v5974
      %v6065 = vsel %vm2137, %v5745, %v5976
      %v6066 = vsel %vm2137, %v5746, %v5978
      %v6067 = vsel %vm2137, %v5747, %v5980
      %v6068 = vsel %vm2137, %v5748, %v5982
      %v6069 = vsel %vm2137, %v5749, %v5984
      %v6070 = vsel %vm2137, %v5750, %v5986
      %v6071 = vsel %vm2137, %v5751, %v5988
      %v6072 = vsel %vm2137, %v5752, %v5990
      %v6073 = vsel %vm2137, %v5753, %v5992
      %v6074 = vsel %vm2137, %v5754, %v5994
      %v6075 = vsel %vm2137, %v5755, %v5996
      %v6076 = vsel %vm2137, %v5756, %v5998
      %v6077 = vsel %vm2137, %v5757, %v6000
      %v6078 = vsel %vm2137, %v5758, %v6002
      %v6079 = vsel %vm2137, %v5759, %v6004
      %v6080 = vsel %vm2137, %v5760, %v6006
      %v6081 = vsel %vm2137, %v5761, %v6008
      %v6082 = vsel %vm2137, %v5762, %v6010
      %v6083 = vsel %vm2137, %v5763, %v6012
      %v6084 = vsel %vm2137, %v5764, %v6014
      %v6085 = vsel %vm2137, %v5765, %v6016
      %v6086 = vsel %vm2137, %v5766, %v6018
      %v6087 = vsel %vm2137, %v5767, %v6020
      %v6088 = vsel %vm2137, %v5768, %v6022
      %v6089 = vsel %vm2137, %v5769, %v6024
      %v6090 = vsel %vm2137, %v5770, %v6026
      %v6091 = vld [vmem:[%s3] sm:$0xff]
      %v6092 = vld [vmem:[%s3 + $0x8] sm:$0xff]
      %v6093 = vld [vmem:[%s3 + $0x10] sm:$0xff]
      %v6094 = vld [vmem:[%s3 + $0x18] sm:$0xff]
      %v6095 = vld [vmem:[%s6] sm:$0xff]
      %v6096 = vld [vmem:[%s6 + $0x8] sm:$0xff]
      %6098 = vset.pattern.permute.xlu0 0
      %6099 = vperm.xlu0 %6098, %v6095
      %v6100 = vpop.permute.xlu0 %6099
      %6103 = vset.pattern.permute.xlu0 0
      %6104 = vperm.xlu0 %6103, %v6096
      %v6105 = vpop.permute.xlu0 %6104
      %vm6107 = vcmask 424960
      %v6109 = vsel %vm6107, %v6092, 0
      %v6112 = vsel %vm6107, %v6094, 0
      %v6115 = vsel %vm6107, %v6059, 0
      %v6118 = vsel %vm6107, %v6060, 0
      %v6121 = vsel %vm6107, %v6061, 0
      %v6124 = vsel %vm6107, %v6062, 0
      %v6127 = vsel %vm6107, %v6063, 0
      %v6130 = vsel %vm6107, %v6064, 0
      %v6133 = vsel %vm6107, %v6065, 0
      %v6136 = vsel %vm6107, %v6066, 0
      %v6139 = vsel %vm6107, %v6067, 0
      %v6142 = vsel %vm6107, %v6068, 0
      %v6145 = vsel %vm6107, %v6069, 0
      %v6148 = vsel %vm6107, %v6070, 0
      %v6151 = vsel %vm6107, %v6071, 0
      %v6154 = vsel %vm6107, %v6072, 0
      %v6157 = vsel %vm6107, %v6073, 0
      %v6160 = vsel %vm6107, %v6074, 0
      %v6163 = vsel %vm6107, %v6075, 0
      %v6166 = vsel %vm6107, %v6076, 0
      %v6169 = vsel %vm6107, %v6077, 0
      %v6172 = vsel %vm6107, %v6078, 0
      %v6175 = vsel %vm6107, %v6079, 0
      %v6178 = vsel %vm6107, %v6080, 0
      %v6181 = vsel %vm6107, %v6081, 0
      %v6184 = vsel %vm6107, %v6082, 0
      %v6187 = vsel %vm6107, %v6083, 0
      %v6190 = vsel %vm6107, %v6084, 0
      %v6193 = vsel %vm6107, %v6085, 0
      %v6196 = vsel %vm6107, %v6086, 0
      %v6199 = vsel %vm6107, %v6087, 0
      %v6202 = vsel %vm6107, %v6088, 0
      %v6205 = vsel %vm6107, %v6089, 0
      %v6208 = vsel %vm6107, %v6090, 0
      %6210 = vmatprep.subr.mxu0 %v6115
      %6211 = vmatpush1.xpose.msra.mxu0 %v5675
      %6212 = vmatprep.subr.mxu0 %v6118
      %6213 = vmatpush1.xpose.msra.mxu0 %v5676
      %6214 = vmatprep.subr.mxu0 %v6121
      %6215 = vmatpush1.xpose.msra.mxu0 %v5677
      %6216 = vmatprep.subr.mxu0 %v6124
      %6217 = vmatpush1.xpose.msra.mxu0 %v5678
      %6218 = vmatprep.subr.mxu0 %v6127
      %6219 = vmatpush1.xpose.msra.mxu0 %v5679
      %6220 = vmatprep.subr.mxu0 %v6130
      %6221 = vmatpush1.xpose.msra.mxu0 %v5680
      %6222 = vmatprep.subr.mxu0 %v6133
      %6223 = vmatpush1.xpose.msra.mxu0 %v5681
      %6224 = vmatprep.subr.mxu0 %v6136
      %6225 = vmatpush1.xpose.msra.mxu0 %v5682
      %6226 = vmatprep.subr.mxu0 %v6139
      %6227 = vmatpush1.xpose.msra.mxu0 %v5683
      %6228 = vmatprep.subr.mxu0 %v6142
      %6229 = vmatpush1.xpose.msra.mxu0 %v5684
      %6230 = vmatprep.subr.mxu0 %v6145
      %6231 = vmatpush1.xpose.msra.mxu0 %v5685
      %6232 = vmatprep.subr.mxu0 %v6148
      %6233 = vmatpush1.xpose.msra.mxu0 %v5686
      %6234 = vmatprep.subr.mxu0 %v6151
      %6235 = vmatpush1.xpose.msra.mxu0 %v5687
      %6236 = vmatprep.subr.mxu0 %v6154
      %6237 = vmatpush1.xpose.msra.mxu0 %v5688
      %6238 = vmatprep.subr.mxu0 %v6157
      %6239 = vmatpush1.xpose.msra.mxu0 %v5689
      %6240 = vmatprep.subr.mxu0 %v6160
      %6241 = vmatpush1.xpose.msra.mxu0 %v5690
      %6242 = vmatprep.subr.mxu0 %v6163
      %6243 = vmatpush1.xpose.msra.mxu0 %v5691
      %6244 = vmatprep.subr.mxu0 %v6166
      %6245 = vmatpush1.xpose.msra.mxu0 %v5692
      %6246 = vmatprep.subr.mxu0 %v6169
      %6247 = vmatpush1.xpose.msra.mxu0 %v5693
      %6248 = vmatprep.subr.mxu0 %v6172
      %6249 = vmatpush1.xpose.msra.mxu0 %v5694
      %6250 = vmatprep.subr.mxu0 %v6175
      %6251 = vmatpush1.xpose.msra.mxu0 %v5695
      %6252 = vmatprep.subr.mxu0 %v6178
      %6253 = vmatpush1.xpose.msra.mxu0 %v5696
      %6254 = vmatprep.subr.mxu0 %v6181
      %6255 = vmatpush1.xpose.msra.mxu0 %v5697
      %6256 = vmatprep.subr.mxu0 %v6184
      %6257 = vmatpush1.xpose.msra.mxu0 %v5698
      %6258 = vmatprep.subr.mxu0 %v6187
      %6259 = vmatpush1.xpose.msra.mxu0 %v5699
      %6260 = vmatprep.subr.mxu0 %v6190
      %6261 = vmatpush1.xpose.msra.mxu0 %v5700
      %6262 = vmatprep.subr.mxu0 %v6193
      %6263 = vmatpush1.xpose.msra.mxu0 %v5701
      %6264 = vmatprep.subr.mxu0 %v6196
      %6265 = vmatpush1.xpose.msra.mxu0 %v5702
      %6266 = vmatprep.subr.mxu0 %v6199
      %6267 = vmatpush1.xpose.msra.mxu0 %v5703
      %6268 = vmatprep.subr.mxu0 %v6202
      %6269 = vmatpush1.xpose.msra.mxu0 %v5704
      %6270 = vmatprep.subr.mxu0 %v6205
      %6271 = vmatpush1.xpose.msra.mxu0 %v5705
      %6272 = vmatprep.subr.mxu0 %v6208
      %6273 = vmatpush1.xpose.msra.mxu0 %v5706
      %6274 = vmatprep.mubr.f32.mxu0 %v6109
      %6275 = vmatmul.mubr.f32.gmra.mrb[0].mxu0 %v6091
      %v6276 = vpop.f32.mrb[0].mxu0
      %v6277 = vadd.f32 %v6100, %v6276
      %v6278 = vpop.f32.mrb[0].mxu0
      %v6279 = vadd.f32 %v6100, %v6278
      %6280 = vmatprep.mubr.f32.mxu0 %v6112
      %6281 = vmatmul.mubr.f32.gmra.mrb[0].mxu0 %v6093
      %v6282 = vpop.f32.mrb[0].mxu0
      %v6283 = vadd.f32 %v6105, %v6282
      %v6284 = vpop.f32.mrb[0].mxu0
      %v6285 = vadd.f32 %v6105, %v6284
      %6286 = vdwg.mxu0
      %v6287 = vmax.f32 %v6277, 0.0
      %v6288 = vmax.f32 %v6279, 0.0
      %v6289 = vmax.f32 %v6283, 0.0
      %v6290 = vmax.f32 %v6285, 0.0
      %v6295 = vrot.slane %v6287, 4
      %v6296 = vrot.slane %v6288, 4
      %v6297 = vrot.slane %v6289, 4
      %v6298 = vsel %vm2372, %v6295, %v6297
      %v6299 = vrot.slane %v6290, 4
      %v6300 = vsel %vm2372, %v6296, %v6299
      %6307 = vst [vmem:[%s433 + $0x20] sm:$0xf0] %v6295
      %6308 = vst [vmem:[%s433 + $0x28] sm:$0xf0] %v6296
      %6309 = vst [vmem:[%s433 + $0x30] sm:$0xff] %v6298
      %6310 = vst [vmem:[%s433 + $0x38] sm:$0xff] %v6300
      %6311 = vst [vmem:[%s433 + $0x40] sm:$0xf] %v6297
      %6312 = vst [vmem:[%s433 + $0x48] sm:$0xf] %v6299
      %v6313 = vld [vmem:[%s9] sm:$0xff]
      %v6314 = vld [vmem:[%s9 + $0x8] sm:$0xff]
      %v6315 = vld [vmem:[%s9 + $0x10] sm:$0xff]
      %v6316 = vld [vmem:[%s9 + $0x18] sm:$0xff]
      %v6317 = vld [vmem:[%s9 + $0x20] sm:$0xff]
      %v6318 = vld [vmem:[%s9 + $0x28] sm:$0xff]
      %v6319 = vld [vmem:[%s9 + $0x30] sm:$0xff]
      %v6320 = vld [vmem:[%s9 + $0x38] sm:$0xff]
      %v6321 = vld [vmem:[%s9 + $0x40] sm:$0xff]
      %v6322 = vld [vmem:[%s9 + $0x48] sm:$0xff]
      %v6323 = vld [vmem:[%s9 + $0x50] sm:$0xff]
      %v6324 = vld [vmem:[%s9 + $0x58] sm:$0xff]
      %v6325 = vld [vmem:[%s9 + $0x60] sm:$0xff]
      %v6326 = vld [vmem:[%s9 + $0x68] sm:$0xff]
      %v6327 = vld [vmem:[%s9 + $0x70] sm:$0xff]
      %v6328 = vld [vmem:[%s9 + $0x78] sm:$0xff]
      %v6329 = vld [vmem:[%s9 + $0x80] sm:$0xff]
      %v6330 = vld [vmem:[%s9 + $0x88] sm:$0xff]
      %v6331 = vld [vmem:[%s9 + $0x90] sm:$0xff]
      %v6332 = vld [vmem:[%s9 + $0x98] sm:$0xff]
      %v6333 = vld [vmem:[%s9 + $0xa0] sm:$0xff]
      %v6334 = vld [vmem:[%s9 + $0xa8] sm:$0xff]
      %v6335 = vld [vmem:[%s9 + $0xb0] sm:$0xf]
      %v6336 = vld [vmem:[%s11] sm:$0x1]
      %v6338 = vlaneseq
      %v6339 = vshrl.u32 %v6338, 7
      %v6340 = vsub.s32 0, %v6339
      %v6341 = vrot.slane %v6336, %v6340
      %v6344 = vsel %vm2372, %v6335, 0
      %6346 = vmatprep.subr.mxu0 0.0
      %6347 = vmatpush1.msra.mxu0 %v6313
      %6348 = vmatprep.subr.mxu0 0.0
      %6349 = vmatpush1.msra.mxu0 %v6314
      %6350 = vmatprep.subr.mxu0 0.0
      %6351 = vmatpush1.msra.mxu0 %v6315
      %6352 = vmatprep.subr.mxu0 0.0
      %6353 = vmatpush1.msra.mxu0 %v6316
      %6354 = vmatprep.subr.mxu0 0.0
      %6355 = vmatpush1.msra.mxu0 %v6317
      %6356 = vmatprep.subr.mxu0 0.0
      %6357 = vmatpush1.msra.mxu0 %v6318
      %6358 = vmatprep.subr.mxu0 0.0
      %6359 = vmatpush1.msra.mxu0 %v6319
      %6360 = vmatprep.subr.mxu0 0.0
      %6361 = vmatpush1.msra.mxu0 %v6320
      %6362 = vmatprep.subr.mxu0 0.0
      %6363 = vmatpush1.msra.mxu0 %v6321
      %6364 = vmatprep.subr.mxu0 0.0
      %6365 = vmatpush1.msra.mxu0 %v6322
      %6366 = vmatprep.subr.mxu0 0.0
      %6367 = vmatpush1.msra.mxu0 %v6323
      %6368 = vmatprep.subr.mxu0 0.0
      %6369 = vmatpush1.msra.mxu0 %v6324
      %6370 = vmatprep.subr.mxu0 0.0
      %6371 = vmatpush1.msra.mxu0 %v6325
      %6372 = vmatprep.subr.mxu0 0.0
      %6373 = vmatpush1.msra.mxu0 %v6326
      %6374 = vmatprep.subr.mxu0 0.0
      %6375 = vmatpush1.msra.mxu0 %v6327
      %6376 = vmatprep.subr.mxu0 0.0
      %6377 = vmatpush1.msra.mxu0 %v6328
      %6378 = vmatprep.subr.mxu0 0.0
      %6379 = vmatpush1.msra.mxu0 %v6329
      %6380 = vmatprep.subr.mxu0 0.0
      %6381 = vmatpush1.msra.mxu0 %v6330
      %6382 = vmatprep.subr.mxu0 0.0
      %6383 = vmatpush1.msra.mxu0 %v6331
      %6384 = vmatprep.subr.mxu0 0.0
      %6385 = vmatpush1.msra.mxu0 %v6332
      %6386 = vmatprep.subr.mxu0 0.0
      %6387 = vmatpush1.msra.mxu0 %v6333
      %6388 = vmatprep.subr.mxu0 0.0
      %6389 = vmatpush1.msra.mxu0 %v6334
      %6390 = vmatprep.subr.mxu0 0.0
      %6391 = vmatpush1.msra.mxu0 %v6344
      %6392 = vmatprep.subr.mxu0 0.0
      %6393 = vmatpush1.msra.mxu0 0.0
      %6394 = vmatprep.subr.mxu0 0.0
      %6395 = vmatpush1.msra.mxu0 0.0
      %6396 = vmatprep.subr.mxu0 0.0
      %6397 = vmatpush1.msra.mxu0 0.0
      %6398 = vmatprep.subr.mxu0 0.0
      %6399 = vmatpush1.msra.mxu0 0.0
      %6400 = vmatprep.subr.mxu0 0.0
      %6401 = vmatpush1.msra.mxu0 0.0
      %6402 = vmatprep.subr.mxu0 0.0
      %6403 = vmatpush1.msra.mxu0 0.0
      %6404 = vmatprep.subr.mxu0 0.0
      %6405 = vmatpush1.msra.mxu0 0.0
      %6406 = vmatprep.subr.mxu0 0.0
      %6407 = vmatpush1.msra.mxu0 0.0
      %6408 = vmatprep.subr.mxu0 0.0
      %6409 = vmatpush1.msra.mxu0 0.0
      %6410 = vmatprep.mubr.f32.mxu0 %v6115
      %6411 = vmatmul.mubr.f32.gmra.mrb[0].mxu0 %v5675
      %v6412 = vpop.f32.mrb[0].mxu0
      %v6413 = vadd.f32 %v6341, %v6412
      %v6414 = vpop.f32.mrb[0].mxu0
      %6415 = vmatprep.mubr.f32.mxu0 %v6118
      %6416 = vmatmul.mubr.f32.gmra.mrb[0].mxu0 %v5676
      %v6417 = vpop.f32.mrb[0].mxu0
      %v6418 = vadd.f32 %v6341, %v6417
      %v6419 = vpop.f32.mrb[0].mxu0
      %6420 = vmatprep.mubr.f32.mxu0 %v6121
      %6421 = vmatmul.mubr.f32.gmra.mrb[0].mxu0 %v5677
      %v6422 = vpop.f32.mrb[0].mxu0
      %v6423 = vadd.f32 %v6341, %v6422
      %v6424 = vpop.f32.mrb[0].mxu0
      %6425 = vmatprep.mubr.f32.mxu0 %v6124
      %6426 = vmatmul.mubr.f32.gmra.mrb[0].mxu0 %v5678
      %v6427 = vpop.f32.mrb[0].mxu0
      %v6428 = vadd.f32 %v6341, %v6427
      %v6429 = vpop.f32.mrb[0].mxu0
      %6430 = vmatprep.mubr.f32.mxu0 %v6127
      %6431 = vmatmul.mubr.f32.gmra.mrb[0].mxu0 %v5679
      %v6432 = vpop.f32.mrb[0].mxu0
      %v6433 = vadd.f32 %v6341, %v6432
      %v6434 = vpop.f32.mrb[0].mxu0
      %6435 = vmatprep.mubr.f32.mxu0 %v6130
      %6436 = vmatmul.mubr.f32.gmra.mrb[0].mxu0 %v5680
      %v6437 = vpop.f32.mrb[0].mxu0
      %v6438 = vadd.f32 %v6341, %v6437
      %v6439 = vpop.f32.mrb[0].mxu0
      %6440 = vmatprep.mubr.f32.mxu0 %v6133
      %6441 = vmatmul.mubr.f32.gmra.mrb[0].mxu0 %v5681
      %v6442 = vpop.f32.mrb[0].mxu0
      %v6443 = vadd.f32 %v6341, %v6442
      %v6444 = vpop.f32.mrb[0].mxu0
      %6445 = vmatprep.mubr.f32.mxu0 %v6136
      %6446 = vmatmul.mubr.f32.gmra.mrb[0].mxu0 %v5682
      %v6447 = vpop.f32.mrb[0].mxu0
      %v6448 = vadd.f32 %v6341, %v6447
      %v6449 = vpop.f32.mrb[0].mxu0
      %6450 = vmatprep.mubr.f32.mxu0 %v6139
      %6451 = vmatmul.mubr.f32.gmra.mrb[0].mxu0 %v5683
      %v6452 = vpop.f32.mrb[0].mxu0
      %v6453 = vadd.f32 %v6341, %v6452
      %v6454 = vpop.f32.mrb[0].mxu0
      %6455 = vmatprep.mubr.f32.mxu0 %v6142
      %6456 = vmatmul.mubr.f32.gmra.mrb[0].mxu0 %v5684
      %v6457 = vpop.f32.mrb[0].mxu0
      %v6458 = vadd.f32 %v6341, %v6457
      %v6459 = vpop.f32.mrb[0].mxu0
      %6460 = vmatprep.mubr.f32.mxu0 %v6145
      %6461 = vmatmul.mubr.f32.gmra.mrb[0].mxu0 %v5685
      %v6462 = vpop.f32.mrb[0].mxu0
      %v6463 = vadd.f32 %v6341, %v6462
      %v6464 = vpop.f32.mrb[0].mxu0
      %6465 = vmatprep.mubr.f32.mxu0 %v6148
      %6466 = vmatmul.mubr.f32.gmra.mrb[0].mxu0 %v5686
      %v6467 = vpop.f32.mrb[0].mxu0
      %v6468 = vadd.f32 %v6341, %v6467
      %v6469 = vpop.f32.mrb[0].mxu0
      %6470 = vmatprep.mubr.f32.mxu0 %v6151
      %6471 = vmatmul.mubr.f32.gmra.mrb[0].mxu0 %v5687
      %v6472 = vpop.f32.mrb[0].mxu0
      %v6473 = vadd.f32 %v6341, %v6472
      %v6474 = vpop.f32.mrb[0].mxu0
      %6475 = vmatprep.mubr.f32.mxu0 %v6154
      %6476 = vmatmul.mubr.f32.gmra.mrb[0].mxu0 %v5688
      %v6477 = vpop.f32.mrb[0].mxu0
      %v6478 = vadd.f32 %v6341, %v6477
      %v6479 = vpop.f32.mrb[0].mxu0
      %6480 = vmatprep.mubr.f32.mxu0 %v6157
      %6481 = vmatmul.mubr.f32.gmra.mrb[0].mxu0 %v5689
      %v6482 = vpop.f32.mrb[0].mxu0
      %v6483 = vadd.f32 %v6341, %v6482
      %v6484 = vpop.f32.mrb[0].mxu0
      %6485 = vmatprep.mubr.f32.mxu0 %v6160
      %6486 = vmatmul.mubr.f32.gmra.mrb[0].mxu0 %v5690
      %v6487 = vpop.f32.mrb[0].mxu0
      %v6488 = vadd.f32 %v6341, %v6487
      %v6489 = vpop.f32.mrb[0].mxu0
      %6490 = vmatprep.mubr.f32.mxu0 %v6163
      %6491 = vmatmul.mubr.f32.gmra.mrb[0].mxu0 %v5691
      %v6492 = vpop.f32.mrb[0].mxu0
      %v6493 = vadd.f32 %v6341, %v6492
      %v6494 = vpop.f32.mrb[0].mxu0
      %6495 = vmatprep.mubr.f32.mxu0 %v6166
      %6496 = vmatmul.mubr.f32.gmra.mrb[0].mxu0 %v5692
      %v6497 = vpop.f32.mrb[0].mxu0
      %v6498 = vadd.f32 %v6341, %v6497
      %v6499 = vpop.f32.mrb[0].mxu0
      %6500 = vmatprep.mubr.f32.mxu0 %v6169
      %6501 = vmatmul.mubr.f32.gmra.mrb[0].mxu0 %v5693
      %v6502 = vpop.f32.mrb[0].mxu0
      %v6503 = vadd.f32 %v6341, %v6502
      %v6504 = vpop.f32.mrb[0].mxu0
      %6505 = vmatprep.mubr.f32.mxu0 %v6172
      %6506 = vmatmul.mubr.f32.gmra.mrb[0].mxu0 %v5694
      %v6507 = vpop.f32.mrb[0].mxu0
      %v6508 = vadd.f32 %v6341, %v6507
      %v6509 = vpop.f32.mrb[0].mxu0
      %6510 = vmatprep.mubr.f32.mxu0 %v6175
      %6511 = vmatmul.mubr.f32.gmra.mrb[0].mxu0 %v5695
      %v6512 = vpop.f32.mrb[0].mxu0
      %v6513 = vadd.f32 %v6341, %v6512
      %v6514 = vpop.f32.mrb[0].mxu0
      %6515 = vmatprep.mubr.f32.mxu0 %v6178
      %6516 = vmatmul.mubr.f32.gmra.mrb[0].mxu0 %v5696
      %v6517 = vpop.f32.mrb[0].mxu0
      %v6518 = vadd.f32 %v6341, %v6517
      %v6519 = vpop.f32.mrb[0].mxu0
      %6520 = vmatprep.mubr.f32.mxu0 %v6181
      %6521 = vmatmul.mubr.f32.gmra.mrb[0].mxu0 %v5697
      %v6522 = vpop.f32.mrb[0].mxu0
      %v6523 = vadd.f32 %v6341, %v6522
      %v6524 = vpop.f32.mrb[0].mxu0
      %6525 = vmatprep.mubr.f32.mxu0 %v6184
      %6526 = vmatmul.mubr.f32.gmra.mrb[0].mxu0 %v5698
      %v6527 = vpop.f32.mrb[0].mxu0
      %v6528 = vadd.f32 %v6341, %v6527
      %v6529 = vpop.f32.mrb[0].mxu0
      %6530 = vmatprep.mubr.f32.mxu0 %v6187
      %6531 = vmatmul.mubr.f32.gmra.mrb[0].mxu0 %v5699
      %v6532 = vpop.f32.mrb[0].mxu0
      %v6533 = vadd.f32 %v6341, %v6532
      %v6534 = vpop.f32.mrb[0].mxu0
      %6535 = vmatprep.mubr.f32.mxu0 %v6190
      %6536 = vmatmul.mubr.f32.gmra.mrb[0].mxu0 %v5700
      %v6537 = vpop.f32.mrb[0].mxu0
      %v6538 = vadd.f32 %v6341, %v6537
      %v6539 = vpop.f32.mrb[0].mxu0
      %6540 = vmatprep.mubr.f32.mxu0 %v6193
      %6541 = vmatmul.mubr.f32.gmra.mrb[0].mxu0 %v5701
      %v6542 = vpop.f32.mrb[0].mxu0
      %v6543 = vadd.f32 %v6341, %v6542
      %v6544 = vpop.f32.mrb[0].mxu0
      %6545 = vmatprep.mubr.f32.mxu0 %v6196
      %6546 = vmatmul.mubr.f32.gmra.mrb[0].mxu0 %v5702
      %v6547 = vpop.f32.mrb[0].mxu0
      %v6548 = vadd.f32 %v6341, %v6547
      %v6549 = vpop.f32.mrb[0].mxu0
      %6550 = vmatprep.mubr.f32.mxu0 %v6199
      %6551 = vmatmul.mubr.f32.gmra.mrb[0].mxu0 %v5703
      %v6552 = vpop.f32.mrb[0].mxu0
      %v6553 = vadd.f32 %v6341, %v6552
      %v6554 = vpop.f32.mrb[0].mxu0
      %6555 = vmatprep.mubr.f32.mxu0 %v6202
      %6556 = vmatmul.mubr.f32.gmra.mrb[0].mxu0 %v5704
      %v6557 = vpop.f32.mrb[0].mxu0
      %v6558 = vadd.f32 %v6341, %v6557
      %v6559 = vpop.f32.mrb[0].mxu0
      %6560 = vmatprep.mubr.f32.mxu0 %v6205
      %6561 = vmatmul.mubr.f32.gmra.mrb[0].mxu0 %v5705
      %v6562 = vpop.f32.mrb[0].mxu0
      %v6563 = vadd.f32 %v6341, %v6562
      %v6564 = vpop.f32.mrb[0].mxu0
      %6565 = vmatprep.mubr.f32.mxu0 %v6208
      %6566 = vmatmul.mubr.f32.gmra.mrb[0].mxu0 %v5706
      %v6567 = vpop.f32.mrb[0].mxu0
      %v6568 = vadd.f32 %v6341, %v6567
      %v6569 = vpop.f32.mrb[0].mxu0
      %6570 = vdwg.mxu0
      %v6571 = vmax.f32 %v6413, 0.0
      %v6572 = vmax.f32 %v6418, 0.0
      %v6573 = vmax.f32 %v6423, 0.0
      %v6574 = vmax.f32 %v6428, 0.0
      %v6575 = vmax.f32 %v6433, 0.0
      %v6576 = vmax.f32 %v6438, 0.0
      %v6577 = vmax.f32 %v6443, 0.0
      %v6578 = vmax.f32 %v6448, 0.0
      %v6579 = vmax.f32 %v6453, 0.0
      %v6580 = vmax.f32 %v6458, 0.0
      %v6581 = vmax.f32 %v6463, 0.0
      %v6582 = vmax.f32 %v6468, 0.0
      %v6583 = vmax.f32 %v6473, 0.0
      %v6584 = vmax.f32 %v6478, 0.0
      %v6585 = vmax.f32 %v6483, 0.0
      %v6586 = vmax.f32 %v6488, 0.0
      %v6587 = vmax.f32 %v6493, 0.0
      %v6588 = vmax.f32 %v6498, 0.0
      %v6589 = vmax.f32 %v6503, 0.0
      %v6590 = vmax.f32 %v6508, 0.0
      %v6591 = vmax.f32 %v6513, 0.0
      %v6592 = vmax.f32 %v6518, 0.0
      %v6593 = vmax.f32 %v6523, 0.0
      %v6594 = vmax.f32 %v6528, 0.0
      %v6595 = vmax.f32 %v6533, 0.0
      %v6596 = vmax.f32 %v6538, 0.0
      %v6597 = vmax.f32 %v6543, 0.0
      %v6598 = vmax.f32 %v6548, 0.0
      %v6599 = vmax.f32 %v6553, 0.0
      %v6600 = vmax.f32 %v6558, 0.0
      %v6601 = vmax.f32 %v6563, 0.0
      %v6602 = vmax.f32 %v6568, 0.0
      %s6603 = scalar_lea.vmem [#allocation4], 24
      %6604 = vst.msk [vmem:[%s6603 + $0x1] sm:$0xff] %vm2005, %v6571
      %6605 = vst.msk [vmem:[%s6603 + $0x9] sm:$0xff] %vm2005, %v6572
      %6606 = vst.msk [vmem:[%s6603 + $0x19] sm:$0xff] %vm2005, %v6573
      %6607 = vst.msk [vmem:[%s6603 + $0x21] sm:$0xff] %vm2005, %v6574
      %6608 = vst.msk [vmem:[%s6603 + $0x31] sm:$0xff] %vm2005, %v6575
      %6609 = vst.msk [vmem:[%s6603 + $0x39] sm:$0xff] %vm2005, %v6576
      %6610 = vst.msk [vmem:[%s6603 + $0x49] sm:$0xff] %vm2005, %v6577
      %6611 = vst.msk [vmem:[%s6603 + $0x51] sm:$0xff] %vm2005, %v6578
      %6612 = vst.msk [vmem:[%s6603 + $0x61] sm:$0xff] %vm2005, %v6579
      %6613 = vst.msk [vmem:[%s6603 + $0x69] sm:$0xff] %vm2005, %v6580
      %6614 = vst.msk [vmem:[%s6603 + $0x79] sm:$0xff] %vm2005, %v6581
      %6615 = vst.msk [vmem:[%s6603 + $0x81] sm:$0xff] %vm2005, %v6582
      %6616 = vst.msk [vmem:[%s6603 + $0x91] sm:$0xff] %vm2005, %v6583
      %6617 = vst.msk [vmem:[%s6603 + $0x99] sm:$0xff] %vm2005, %v6584
      %6618 = vst.msk [vmem:[%s6603 + $0xa9] sm:$0xff] %vm2005, %v6585
      %6619 = vst.msk [vmem:[%s6603 + $0xb1] sm:$0xff] %vm2005, %v6586
      %6620 = vst.msk [vmem:[%s6603 + $0xc1] sm:$0xff] %vm2005, %v6587
      %6621 = vst.msk [vmem:[%s6603 + $0xc9] sm:$0xff] %vm2005, %v6588
      %6622 = vst.msk [vmem:[%s6603 + $0xd9] sm:$0xff] %vm2005, %v6589
      %6623 = vst.msk [vmem:[%s6603 + $0xe1] sm:$0xff] %vm2005, %v6590
      %6624 = vst.msk [vmem:[%s6603 + $0xf1] sm:$0xff] %vm2005, %v6591
      %6625 = vst.msk [vmem:[%s6603 + $0xf9] sm:$0xff] %vm2005, %v6592
      %6626 = vst.msk [vmem:[%s6603 + $0x109] sm:$0xff] %vm2005, %v6593
      %6627 = vst.msk [vmem:[%s6603 + $0x111] sm:$0xff] %vm2005, %v6594
      %6628 = vst.msk [vmem:[%s6603 + $0x121] sm:$0xff] %vm2005, %v6595
      %6629 = vst.msk [vmem:[%s6603 + $0x129] sm:$0xff] %vm2005, %v6596
      %6630 = vst.msk [vmem:[%s6603 + $0x139] sm:$0xff] %vm2005, %v6597
      %6631 = vst.msk [vmem:[%s6603 + $0x141] sm:$0xff] %vm2005, %v6598
      %6632 = vst.msk [vmem:[%s6603 + $0x151] sm:$0xff] %vm2005, %v6599
      %6633 = vst.msk [vmem:[%s6603 + $0x159] sm:$0xff] %vm2005, %v6600
      %6634 = vst.msk [vmem:[%s6603 + $0x169] sm:$0xff] %vm2005, %v6601
      %6635 = vst.msk [vmem:[%s6603 + $0x171] sm:$0xff] %vm2005, %v6602
      %s6636 = scalar_lea.vmem [#allocation4], 48
      %v6637 = vld [vmem:[%s6636] sm:$0xff]
      %v6638 = vld [vmem:[%s6636 + $0x8] sm:$0xff]
      %v6639 = vld [vmem:[%s6636 + $0x10] sm:$0x3]
      %6640 = vst.msk [vmem:[#allocation4] sm:$0xff] %vm2005, %v6637
      %6641 = vst.msk [vmem:[#allocation4 + $0x8] sm:$0xff] %vm2005, %v6638
      %6642 = vst.msk [vmem:[#allocation4 + $0x10] sm:$0x3] %vm2702, %v6639
      %s6643 = scalar_lea.vmem [#allocation4], 360
      %v6644 = vld [vmem:[%s6643] sm:$0xff]
      %v6645 = vld [vmem:[%s6643 + $0x8] sm:$0xff]
      %v6646 = vld [vmem:[%s6643 + $0x10] sm:$0x3]
      %s6647 = scalar_lea.vmem [#allocation4], 408
      %6648 = vst.msk [vmem:[%s6647] sm:$0xff] %vm2005, %v6644
      %6649 = vst.msk [vmem:[%s6647 + $0x8] sm:$0xff] %vm2005, %v6645
      %6650 = vst.msk [vmem:[%s6647 + $0x10] sm:$0x3] %vm2702, %v6646
      %v6651 = vld [vmem:[#allocation4 + $0x2] sm:$0x1]
      %v6652 = vld [vmem:[#allocation4 + $0x1a] sm:$0x1]
      %v6653 = vld [vmem:[#allocation4 + $0x32] sm:$0x1]
      %v6654 = vld [vmem:[#allocation4 + $0x4a] sm:$0x1]
      %v6655 = vld [vmem:[#allocation4 + $0x62] sm:$0x1]
      %v6656 = vld [vmem:[#allocation4 + $0x7a] sm:$0x1]
      %v6657 = vld [vmem:[#allocation4 + $0x92] sm:$0x1]
      %v6658 = vld [vmem:[#allocation4 + $0xaa] sm:$0x1]
      %v6659 = vld [vmem:[#allocation4 + $0xc2] sm:$0x1]
      %v6660 = vld [vmem:[#allocation4 + $0xda] sm:$0x1]
      %v6661 = vld [vmem:[#allocation4 + $0xf2] sm:$0x1]
      %v6662 = vld [vmem:[#allocation4 + $0x10a] sm:$0x1]
      %v6663 = vld [vmem:[#allocation4 + $0x122] sm:$0x1]
      %v6664 = vld [vmem:[#allocation4 + $0x13a] sm:$0x1]
      %v6665 = vld [vmem:[#allocation4 + $0x152] sm:$0x1]
      %v6666 = vld [vmem:[#allocation4 + $0x16a] sm:$0x1]
      %v6667 = vld [vmem:[#allocation4 + $0x182] sm:$0x1]
      %v6668 = vld [vmem:[#allocation4 + $0x19a] sm:$0x1]
      %6669 = vst.msk [vmem:[#allocation4] sm:$0x1] %vm2730, %v6651
      %6670 = vst.msk [vmem:[#allocation4 + $0x18] sm:$0x1] %vm2730, %v6652
      %6671 = vst.msk [vmem:[#allocation4 + $0x30] sm:$0x1] %vm2730, %v6653
      %6672 = vst.msk [vmem:[#allocation4 + $0x48] sm:$0x1] %vm2730, %v6654
      %6673 = vst.msk [vmem:[#allocation4 + $0x60] sm:$0x1] %vm2730, %v6655
      %6674 = vst.msk [vmem:[#allocation4 + $0x78] sm:$0x1] %vm2730, %v6656
      %6675 = vst.msk [vmem:[#allocation4 + $0x90] sm:$0x1] %vm2730, %v6657
      %6676 = vst.msk [vmem:[#allocation4 + $0xa8] sm:$0x1] %vm2730, %v6658
      %6677 = vst.msk [vmem:[#allocation4 + $0xc0] sm:$0x1] %vm2730, %v6659
      %6678 = vst.msk [vmem:[#allocation4 + $0xd8] sm:$0x1] %vm2730, %v6660
      %6679 = vst.msk [vmem:[#allocation4 + $0xf0] sm:$0x1] %vm2730, %v6661
      %6680 = vst.msk [vmem:[#allocation4 + $0x108] sm:$0x1] %vm2730, %v6662
      %6681 = vst.msk [vmem:[#allocation4 + $0x120] sm:$0x1] %vm2730, %v6663
      %6682 = vst.msk [vmem:[#allocation4 + $0x138] sm:$0x1] %vm2730, %v6664
      %6683 = vst.msk [vmem:[#allocation4 + $0x150] sm:$0x1] %vm2730, %v6665
      %6684 = vst.msk [vmem:[#allocation4 + $0x168] sm:$0x1] %vm2730, %v6666
      %6685 = vst.msk [vmem:[#allocation4 + $0x180] sm:$0x1] %vm2730, %v6667
      %6686 = vst.msk [vmem:[#allocation4 + $0x198] sm:$0x1] %vm2730, %v6668
      %v6687 = vld [vmem:[#allocation4 + $0xf] sm:$0x1]
      %v6688 = vld [vmem:[#allocation4 + $0x27] sm:$0x1]
      %v6689 = vld [vmem:[#allocation4 + $0x3f] sm:$0x1]
      %v6690 = vld [vmem:[#allocation4 + $0x57] sm:$0x1]
      %v6691 = vld [vmem:[#allocation4 + $0x6f] sm:$0x1]
      %v6692 = vld [vmem:[#allocation4 + $0x87] sm:$0x1]
      %v6693 = vld [vmem:[#allocation4 + $0x9f] sm:$0x1]
      %v6694 = vld [vmem:[#allocation4 + $0xb7] sm:$0x1]
      %v6695 = vld [vmem:[#allocation4 + $0xcf] sm:$0x1]
      %v6696 = vld [vmem:[#allocation4 + $0xe7] sm:$0x1]
      %v6697 = vld [vmem:[#allocation4 + $0xff] sm:$0x1]
      %v6698 = vld [vmem:[#allocation4 + $0x117] sm:$0x1]
      %v6699 = vld [vmem:[#allocation4 + $0x12f] sm:$0x1]
      %v6700 = vld [vmem:[#allocation4 + $0x147] sm:$0x1]
      %v6701 = vld [vmem:[#allocation4 + $0x15f] sm:$0x1]
      %v6702 = vld [vmem:[#allocation4 + $0x177] sm:$0x1]
      %v6703 = vld [vmem:[#allocation4 + $0x18f] sm:$0x1]
      %v6704 = vld [vmem:[#allocation4 + $0x1a7] sm:$0x1]
      %6705 = vst.msk [vmem:[#allocation4 + $0x11] sm:$0x1] %vm2730, %v6687
      %6706 = vst.msk [vmem:[#allocation4 + $0x29] sm:$0x1] %vm2730, %v6688
      %6707 = vst.msk [vmem:[#allocation4 + $0x41] sm:$0x1] %vm2730, %v6689
      %6708 = vst.msk [vmem:[#allocation4 + $0x59] sm:$0x1] %vm2730, %v6690
      %6709 = vst.msk [vmem:[#allocation4 + $0x71] sm:$0x1] %vm2730, %v6691
      %6710 = vst.msk [vmem:[#allocation4 + $0x89] sm:$0x1] %vm2730, %v6692
      %6711 = vst.msk [vmem:[#allocation4 + $0xa1] sm:$0x1] %vm2730, %v6693
      %6712 = vst.msk [vmem:[#allocation4 + $0xb9] sm:$0x1] %vm2730, %v6694
      %6713 = vst.msk [vmem:[#allocation4 + $0xd1] sm:$0x1] %vm2730, %v6695
      %6714 = vst.msk [vmem:[#allocation4 + $0xe9] sm:$0x1] %vm2730, %v6696
      %6715 = vst.msk [vmem:[#allocation4 + $0x101] sm:$0x1] %vm2730, %v6697
      %6716 = vst.msk [vmem:[#allocation4 + $0x119] sm:$0x1] %vm2730, %v6698
      %6717 = vst.msk [vmem:[#allocation4 + $0x131] sm:$0x1] %vm2730, %v6699
      %6718 = vst.msk [vmem:[#allocation4 + $0x149] sm:$0x1] %vm2730, %v6700
      %6719 = vst.msk [vmem:[#allocation4 + $0x161] sm:$0x1] %vm2730, %v6701
      %6720 = vst.msk [vmem:[#allocation4 + $0x179] sm:$0x1] %vm2730, %v6702
      %6721 = vst.msk [vmem:[#allocation4 + $0x191] sm:$0x1] %vm2730, %v6703
      %6722 = vst.msk [vmem:[#allocation4 + $0x1a9] sm:$0x1] %vm2730, %v6704
      %v6723 = vld [vmem:[#allocation2] sm:$0xff]
      %v6724 = vld [vmem:[#allocation2 + $0x8] sm:$0xff]
      %v6725 = vld [vmem:[#allocation2 + $0x18] sm:$0xff]
      %v6726 = vld [vmem:[#allocation2 + $0x20] sm:$0xff]
      %v6727 = vld [vmem:[#allocation2 + $0x30] sm:$0xff]
      %v6728 = vld [vmem:[#allocation2 + $0x38] sm:$0xff]
      %v6729 = vld [vmem:[#allocation2 + $0x48] sm:$0xff]
      %v6730 = vld [vmem:[#allocation2 + $0x50] sm:$0xff]
      %v6731 = vld [vmem:[#allocation2 + $0x60] sm:$0xff]
      %v6732 = vld [vmem:[#allocation2 + $0x68] sm:$0xff]
      %v6733 = vld [vmem:[#allocation2 + $0x78] sm:$0xff]
      %v6734 = vld [vmem:[#allocation2 + $0x80] sm:$0xff]
      %v6735 = vld [vmem:[#allocation2 + $0x90] sm:$0xff]
      %v6736 = vld [vmem:[#allocation2 + $0x98] sm:$0xff]
      %v6737 = vld [vmem:[#allocation2 + $0xa8] sm:$0xff]
      %v6738 = vld [vmem:[#allocation2 + $0xb0] sm:$0xff]
      %v6739 = vld [vmem:[#allocation2 + $0xc0] sm:$0xff]
      %v6740 = vld [vmem:[#allocation2 + $0xc8] sm:$0xff]
      %v6741 = vld [vmem:[#allocation2 + $0xd8] sm:$0xff]
      %v6742 = vld [vmem:[#allocation2 + $0xe0] sm:$0xff]
      %v6743 = vld [vmem:[#allocation2 + $0xf0] sm:$0xff]
      %v6744 = vld [vmem:[#allocation2 + $0xf8] sm:$0xff]
      %v6745 = vld [vmem:[#allocation2 + $0x108] sm:$0xff]
      %v6746 = vld [vmem:[#allocation2 + $0x110] sm:$0xff]
      %v6747 = vld [vmem:[#allocation2 + $0x120] sm:$0xff]
      %v6748 = vld [vmem:[#allocation2 + $0x128] sm:$0xff]
      %v6749 = vld [vmem:[#allocation2 + $0x138] sm:$0xff]
      %v6750 = vld [vmem:[#allocation2 + $0x140] sm:$0xff]
      %v6751 = vld [vmem:[#allocation2 + $0x150] sm:$0xff]
      %v6752 = vld [vmem:[#allocation2 + $0x158] sm:$0xff]
      %v6753 = vld [vmem:[#allocation2 + $0x168] sm:$0xff]
      %v6754 = vld [vmem:[#allocation2 + $0x170] sm:$0xff]
      %v6755 = vld [vmem:[#allocation3] sm:$0xff]
      %v6756 = vld [vmem:[#allocation3 + $0x8] sm:$0xff]
      %v6757 = vld [vmem:[#allocation3 + $0x18] sm:$0xff]
      %v6758 = vld [vmem:[#allocation3 + $0x20] sm:$0xff]
      %v6759 = vld [vmem:[#allocation3 + $0x30] sm:$0xff]
      %v6760 = vld [vmem:[#allocation3 + $0x38] sm:$0xff]
      %v6761 = vld [vmem:[#allocation3 + $0x48] sm:$0xff]
      %v6762 = vld [vmem:[#allocation3 + $0x50] sm:$0xff]
      %v6763 = vld [vmem:[#allocation3 + $0x60] sm:$0xff]
      %v6764 = vld [vmem:[#allocation3 + $0x68] sm:$0xff]
      %v6765 = vld [vmem:[#allocation3 + $0x78] sm:$0xff]
      %v6766 = vld [vmem:[#allocation3 + $0x80] sm:$0xff]
      %v6767 = vld [vmem:[#allocation3 + $0x90] sm:$0xff]
      %v6768 = vld [vmem:[#allocation3 + $0x98] sm:$0xff]
      %v6769 = vld [vmem:[#allocation3 + $0xa8] sm:$0xff]
      %v6770 = vld [vmem:[#allocation3 + $0xb0] sm:$0xff]
      %v6771 = vld [vmem:[#allocation3 + $0xc0] sm:$0xff]
      %v6772 = vld [vmem:[#allocation3 + $0xc8] sm:$0xff]
      %v6773 = vld [vmem:[#allocation3 + $0xd8] sm:$0xff]
      %v6774 = vld [vmem:[#allocation3 + $0xe0] sm:$0xff]
      %v6775 = vld [vmem:[#allocation3 + $0xf0] sm:$0xff]
      %v6776 = vld [vmem:[#allocation3 + $0xf8] sm:$0xff]
      %v6777 = vld [vmem:[#allocation3 + $0x108] sm:$0xff]
      %v6778 = vld [vmem:[#allocation3 + $0x110] sm:$0xff]
      %v6779 = vld [vmem:[#allocation3 + $0x120] sm:$0xff]
      %v6780 = vld [vmem:[#allocation3 + $0x128] sm:$0xff]
      %v6781 = vld [vmem:[#allocation3 + $0x138] sm:$0xff]
      %v6782 = vld [vmem:[#allocation3 + $0x140] sm:$0xff]
      %v6783 = vld [vmem:[#allocation3 + $0x150] sm:$0xff]
      %v6784 = vld [vmem:[#allocation3 + $0x158] sm:$0xff]
      %v6785 = vld [vmem:[#allocation3 + $0x168] sm:$0xff]
      %v6786 = vld [vmem:[#allocation3 + $0x170] sm:$0xff]
      %v6787 = vld [vmem:[#allocation4] sm:$0xff]
      %v6788 = vld [vmem:[#allocation4 + $0x8] sm:$0xff]
      %v6789 = vld [vmem:[#allocation4 + $0x18] sm:$0xff]
      %v6790 = vld [vmem:[#allocation4 + $0x20] sm:$0xff]
      %v6791 = vld [vmem:[#allocation4 + $0x30] sm:$0xff]
      %v6792 = vld [vmem:[#allocation4 + $0x38] sm:$0xff]
      %v6793 = vld [vmem:[#allocation4 + $0x48] sm:$0xff]
      %v6794 = vld [vmem:[#allocation4 + $0x50] sm:$0xff]
      %v6795 = vld [vmem:[#allocation4 + $0x60] sm:$0xff]
      %v6796 = vld [vmem:[#allocation4 + $0x68] sm:$0xff]
      %v6797 = vld [vmem:[#allocation4 + $0x78] sm:$0xff]
      %v6798 = vld [vmem:[#allocation4 + $0x80] sm:$0xff]
      %v6799 = vld [vmem:[#allocation4 + $0x90] sm:$0xff]
      %v6800 = vld [vmem:[#allocation4 + $0x98] sm:$0xff]
      %v6801 = vld [vmem:[#allocation4 + $0xa8] sm:$0xff]
      %v6802 = vld [vmem:[#allocation4 + $0xb0] sm:$0xff]
      %v6803 = vld [vmem:[#allocation4 + $0xc0] sm:$0xff]
      %v6804 = vld [vmem:[#allocation4 + $0xc8] sm:$0xff]
      %v6805 = vld [vmem:[#allocation4 + $0xd8] sm:$0xff]
      %v6806 = vld [vmem:[#allocation4 + $0xe0] sm:$0xff]
      %v6807 = vld [vmem:[#allocation4 + $0xf0] sm:$0xff]
      %v6808 = vld [vmem:[#allocation4 + $0xf8] sm:$0xff]
      %v6809 = vld [vmem:[#allocation4 + $0x108] sm:$0xff]
      %v6810 = vld [vmem:[#allocation4 + $0x110] sm:$0xff]
      %v6811 = vld [vmem:[#allocation4 + $0x120] sm:$0xff]
      %v6812 = vld [vmem:[#allocation4 + $0x128] sm:$0xff]
      %v6813 = vld [vmem:[#allocation4 + $0x138] sm:$0xff]
      %v6814 = vld [vmem:[#allocation4 + $0x140] sm:$0xff]
      %v6815 = vld [vmem:[#allocation4 + $0x150] sm:$0xff]
      %v6816 = vld [vmem:[#allocation4 + $0x158] sm:$0xff]
      %v6817 = vld [vmem:[#allocation4 + $0x168] sm:$0xff]
      %v6818 = vld [vmem:[#allocation4 + $0x170] sm:$0xff]
      %v6819 = vld [vmem:[#allocation2 + $0x1] sm:$0xff]
      %v6820 = vld [vmem:[#allocation2 + $0x9] sm:$0xff]
      %v6821 = vld [vmem:[#allocation2 + $0x19] sm:$0xff]
      %v6822 = vld [vmem:[#allocation2 + $0x21] sm:$0xff]
      %v6823 = vld [vmem:[#allocation2 + $0x31] sm:$0xff]
      %v6824 = vld [vmem:[#allocation2 + $0x39] sm:$0xff]
      %v6825 = vld [vmem:[#allocation2 + $0x49] sm:$0xff]
      %v6826 = vld [vmem:[#allocation2 + $0x51] sm:$0xff]
      %v6827 = vld [vmem:[#allocation2 + $0x61] sm:$0xff]
      %v6828 = vld [vmem:[#allocation2 + $0x69] sm:$0xff]
      %v6829 = vld [vmem:[#allocation2 + $0x79] sm:$0xff]
      %v6830 = vld [vmem:[#allocation2 + $0x81] sm:$0xff]
      %v6831 = vld [vmem:[#allocation2 + $0x91] sm:$0xff]
      %v6832 = vld [vmem:[#allocation2 + $0x99] sm:$0xff]
      %v6833 = vld [vmem:[#allocation2 + $0xa9] sm:$0xff]
      %v6834 = vld [vmem:[#allocation2 + $0xb1] sm:$0xff]
      %v6835 = vld [vmem:[#allocation2 + $0xc1] sm:$0xff]
      %v6836 = vld [vmem:[#allocation2 + $0xc9] sm:$0xff]
      %v6837 = vld [vmem:[#allocation2 + $0xd9] sm:$0xff]
      %v6838 = vld [vmem:[#allocation2 + $0xe1] sm:$0xff]
      %v6839 = vld [vmem:[#allocation2 + $0xf1] sm:$0xff]
      %v6840 = vld [vmem:[#allocation2 + $0xf9] sm:$0xff]
      %v6841 = vld [vmem:[#allocation2 + $0x109] sm:$0xff]
      %v6842 = vld [vmem:[#allocation2 + $0x111] sm:$0xff]
      %v6843 = vld [vmem:[#allocation2 + $0x121] sm:$0xff]
      %v6844 = vld [vmem:[#allocation2 + $0x129] sm:$0xff]
      %v6845 = vld [vmem:[#allocation2 + $0x139] sm:$0xff]
      %v6846 = vld [vmem:[#allocation2 + $0x141] sm:$0xff]
      %v6847 = vld [vmem:[#allocation2 + $0x151] sm:$0xff]
      %v6848 = vld [vmem:[#allocation2 + $0x159] sm:$0xff]
      %v6849 = vld [vmem:[#allocation2 + $0x169] sm:$0xff]
      %v6850 = vld [vmem:[#allocation2 + $0x171] sm:$0xff]
      %v6851 = vld [vmem:[#allocation3 + $0x1] sm:$0xff]
      %v6852 = vld [vmem:[#allocation3 + $0x9] sm:$0xff]
      %v6853 = vld [vmem:[#allocation3 + $0x19] sm:$0xff]
      %v6854 = vld [vmem:[#allocation3 + $0x21] sm:$0xff]
      %v6855 = vld [vmem:[#allocation3 + $0x31] sm:$0xff]
      %v6856 = vld [vmem:[#allocation3 + $0x39] sm:$0xff]
      %v6857 = vld [vmem:[#allocation3 + $0x49] sm:$0xff]
      %v6858 = vld [vmem:[#allocation3 + $0x51] sm:$0xff]
      %v6859 = vld [vmem:[#allocation3 + $0x61] sm:$0xff]
      %v6860 = vld [vmem:[#allocation3 + $0x69] sm:$0xff]
      %v6861 = vld [vmem:[#allocation3 + $0x79] sm:$0xff]
      %v6862 = vld [vmem:[#allocation3 + $0x81] sm:$0xff]
      %v6863 = vld [vmem:[#allocation3 + $0x91] sm:$0xff]
      %v6864 = vld [vmem:[#allocation3 + $0x99] sm:$0xff]
      %v6865 = vld [vmem:[#allocation3 + $0xa9] sm:$0xff]
      %v6866 = vld [vmem:[#allocation3 + $0xb1] sm:$0xff]
      %v6867 = vld [vmem:[#allocation3 + $0xc1] sm:$0xff]
      %v6868 = vld [vmem:[#allocation3 + $0xc9] sm:$0xff]
      %v6869 = vld [vmem:[#allocation3 + $0xd9] sm:$0xff]
      %v6870 = vld [vmem:[#allocation3 + $0xe1] sm:$0xff]
      %v6871 = vld [vmem:[#allocation3 + $0xf1] sm:$0xff]
      %v6872 = vld [vmem:[#allocation3 + $0xf9] sm:$0xff]
      %v6873 = vld [vmem:[#allocation3 + $0x109] sm:$0xff]
      %v6874 = vld [vmem:[#allocation3 + $0x111] sm:$0xff]
      %v6875 = vld [vmem:[#allocation3 + $0x121] sm:$0xff]
      %v6876 = vld [vmem:[#allocation3 + $0x129] sm:$0xff]
      %v6877 = vld [vmem:[#allocation3 + $0x139] sm:$0xff]
      %v6878 = vld [vmem:[#allocation3 + $0x141] sm:$0xff]
      %v6879 = vld [vmem:[#allocation3 + $0x151] sm:$0xff]
      %v6880 = vld [vmem:[#allocation3 + $0x159] sm:$0xff]
      %v6881 = vld [vmem:[#allocation3 + $0x169] sm:$0xff]
      %v6882 = vld [vmem:[#allocation3 + $0x171] sm:$0xff]
      %v6883 = vld [vmem:[#allocation4 + $0x1] sm:$0xff]
      %v6884 = vld [vmem:[#allocation4 + $0x9] sm:$0xff]
      %v6885 = vld [vmem:[#allocation4 + $0x19] sm:$0xff]
      %v6886 = vld [vmem:[#allocation4 + $0x21] sm:$0xff]
      %v6887 = vld [vmem:[#allocation4 + $0x31] sm:$0xff]
      %v6888 = vld [vmem:[#allocation4 + $0x39] sm:$0xff]
      %v6889 = vld [vmem:[#allocation4 + $0x49] sm:$0xff]
      %v6890 = vld [vmem:[#allocation4 + $0x51] sm:$0xff]
      %v6891 = vld [vmem:[#allocation4 + $0x61] sm:$0xff]
      %v6892 = vld [vmem:[#allocation4 + $0x69] sm:$0xff]
      %v6893 = vld [vmem:[#allocation4 + $0x79] sm:$0xff]
      %v6894 = vld [vmem:[#allocation4 + $0x81] sm:$0xff]
      %v6895 = vld [vmem:[#allocation4 + $0x91] sm:$0xff]
      %v6896 = vld [vmem:[#allocation4 + $0x99] sm:$0xff]
      %v6897 = vld [vmem:[#allocation4 + $0xa9] sm:$0xff]
      %v6898 = vld [vmem:[#allocation4 + $0xb1] sm:$0xff]
      %v6899 = vld [vmem:[#allocation4 + $0xc1] sm:$0xff]
      %v6900 = vld [vmem:[#allocation4 + $0xc9] sm:$0xff]
      %v6901 = vld [vmem:[#allocation4 + $0xd9] sm:$0xff]
      %v6902 = vld [vmem:[#allocation4 + $0xe1] sm:$0xff]
      %v6903 = vld [vmem:[#allocation4 + $0xf1] sm:$0xff]
      %v6904 = vld [vmem:[#allocation4 + $0xf9] sm:$0xff]
      %v6905 = vld [vmem:[#allocation4 + $0x109] sm:$0xff]
      %v6906 = vld [vmem:[#allocation4 + $0x111] sm:$0xff]
      %v6907 = vld [vmem:[#allocation4 + $0x121] sm:$0xff]
      %v6908 = vld [vmem:[#allocation4 + $0x129] sm:$0xff]
      %v6909 = vld [vmem:[#allocation4 + $0x139] sm:$0xff]
      %v6910 = vld [vmem:[#allocation4 + $0x141] sm:$0xff]
      %v6911 = vld [vmem:[#allocation4 + $0x151] sm:$0xff]
      %v6912 = vld [vmem:[#allocation4 + $0x159] sm:$0xff]
      %v6913 = vld [vmem:[#allocation4 + $0x169] sm:$0xff]
      %v6914 = vld [vmem:[#allocation4 + $0x171] sm:$0xff]
      %v6915 = vld [vmem:[#allocation2 + $0x2] sm:$0xff]
      %v6916 = vld [vmem:[#allocation2 + $0xa] sm:$0xff]
      %v6917 = vld [vmem:[#allocation2 + $0x1a] sm:$0xff]
      %v6918 = vld [vmem:[#allocation2 + $0x22] sm:$0xff]
      %v6919 = vld [vmem:[#allocation2 + $0x32] sm:$0xff]
      %v6920 = vld [vmem:[#allocation2 + $0x3a] sm:$0xff]
      %v6921 = vld [vmem:[#allocation2 + $0x4a] sm:$0xff]
      %v6922 = vld [vmem:[#allocation2 + $0x52] sm:$0xff]
      %v6923 = vld [vmem:[#allocation2 + $0x62] sm:$0xff]
      %v6924 = vld [vmem:[#allocation2 + $0x6a] sm:$0xff]
      %v6925 = vld [vmem:[#allocation2 + $0x7a] sm:$0xff]
      %v6926 = vld [vmem:[#allocation2 + $0x82] sm:$0xff]
      %v6927 = vld [vmem:[#allocation2 + $0x92] sm:$0xff]
      %v6928 = vld [vmem:[#allocation2 + $0x9a] sm:$0xff]
      %v6929 = vld [vmem:[#allocation2 + $0xaa] sm:$0xff]
      %v6930 = vld [vmem:[#allocation2 + $0xb2] sm:$0xff]
      %v6931 = vld [vmem:[#allocation2 + $0xc2] sm:$0xff]
      %v6932 = vld [vmem:[#allocation2 + $0xca] sm:$0xff]
      %v6933 = vld [vmem:[#allocation2 + $0xda] sm:$0xff]
      %v6934 = vld [vmem:[#allocation2 + $0xe2] sm:$0xff]
      %v6935 = vld [vmem:[#allocation2 + $0xf2] sm:$0xff]
      %v6936 = vld [vmem:[#allocation2 + $0xfa] sm:$0xff]
      %v6937 = vld [vmem:[#allocation2 + $0x10a] sm:$0xff]
      %v6938 = vld [vmem:[#allocation2 + $0x112] sm:$0xff]
      %v6939 = vld [vmem:[#allocation2 + $0x122] sm:$0xff]
      %v6940 = vld [vmem:[#allocation2 + $0x12a] sm:$0xff]
      %v6941 = vld [vmem:[#allocation2 + $0x13a] sm:$0xff]
      %v6942 = vld [vmem:[#allocation2 + $0x142] sm:$0xff]
      %v6943 = vld [vmem:[#allocation2 + $0x152] sm:$0xff]
      %v6944 = vld [vmem:[#allocation2 + $0x15a] sm:$0xff]
      %v6945 = vld [vmem:[#allocation2 + $0x16a] sm:$0xff]
      %v6946 = vld [vmem:[#allocation2 + $0x172] sm:$0xff]
      %v6947 = vld [vmem:[#allocation3 + $0x2] sm:$0xff]
      %v6948 = vld [vmem:[#allocation3 + $0xa] sm:$0xff]
      %v6949 = vld [vmem:[#allocation3 + $0x1a] sm:$0xff]
      %v6950 = vld [vmem:[#allocation3 + $0x22] sm:$0xff]
      %v6951 = vld [vmem:[#allocation3 + $0x32] sm:$0xff]
      %v6952 = vld [vmem:[#allocation3 + $0x3a] sm:$0xff]
      %v6953 = vld [vmem:[#allocation3 + $0x4a] sm:$0xff]
      %v6954 = vld [vmem:[#allocation3 + $0x52] sm:$0xff]
      %v6955 = vld [vmem:[#allocation3 + $0x62] sm:$0xff]
      %v6956 = vld [vmem:[#allocation3 + $0x6a] sm:$0xff]
      %v6957 = vld [vmem:[#allocation3 + $0x7a] sm:$0xff]
      %v6958 = vld [vmem:[#allocation3 + $0x82] sm:$0xff]
      %v6959 = vld [vmem:[#allocation3 + $0x92] sm:$0xff]
      %v6960 = vld [vmem:[#allocation3 + $0x9a] sm:$0xff]
      %v6961 = vld [vmem:[#allocation3 + $0xaa] sm:$0xff]
      %v6962 = vld [vmem:[#allocation3 + $0xb2] sm:$0xff]
      %v6963 = vld [vmem:[#allocation3 + $0xc2] sm:$0xff]
      %v6964 = vld [vmem:[#allocation3 + $0xca] sm:$0xff]
      %v6965 = vld [vmem:[#allocation3 + $0xda] sm:$0xff]
      %v6966 = vld [vmem:[#allocation3 + $0xe2] sm:$0xff]
      %v6967 = vld [vmem:[#allocation3 + $0xf2] sm:$0xff]
      %v6968 = vld [vmem:[#allocation3 + $0xfa] sm:$0xff]
      %v6969 = vld [vmem:[#allocation3 + $0x10a] sm:$0xff]
      %v6970 = vld [vmem:[#allocation3 + $0x112] sm:$0xff]
      %v6971 = vld [vmem:[#allocation3 + $0x122] sm:$0xff]
      %v6972 = vld [vmem:[#allocation3 + $0x12a] sm:$0xff]
      %v6973 = vld [vmem:[#allocation3 + $0x13a] sm:$0xff]
      %v6974 = vld [vmem:[#allocation3 + $0x142] sm:$0xff]
      %v6975 = vld [vmem:[#allocation3 + $0x152] sm:$0xff]
      %v6976 = vld [vmem:[#allocation3 + $0x15a] sm:$0xff]
      %v6977 = vld [vmem:[#allocation3 + $0x16a] sm:$0xff]
      %v6978 = vld [vmem:[#allocation3 + $0x172] sm:$0xff]
      %v6979 = vld [vmem:[#allocation4 + $0x2] sm:$0xff]
      %v6980 = vld [vmem:[#allocation4 + $0xa] sm:$0xff]
      %v6981 = vld [vmem:[#allocation4 + $0x1a] sm:$0xff]
      %v6982 = vld [vmem:[#allocation4 + $0x22] sm:$0xff]
      %v6983 = vld [vmem:[#allocation4 + $0x32] sm:$0xff]
      %v6984 = vld [vmem:[#allocation4 + $0x3a] sm:$0xff]
      %v6985 = vld [vmem:[#allocation4 + $0x4a] sm:$0xff]
      %v6986 = vld [vmem:[#allocation4 + $0x52] sm:$0xff]
      %v6987 = vld [vmem:[#allocation4 + $0x62] sm:$0xff]
      %v6988 = vld [vmem:[#allocation4 + $0x6a] sm:$0xff]
      %v6989 = vld [vmem:[#allocation4 + $0x7a] sm:$0xff]
      %v6990 = vld [vmem:[#allocation4 + $0x82] sm:$0xff]
      %v6991 = vld [vmem:[#allocation4 + $0x92] sm:$0xff]
      %v6992 = vld [vmem:[#allocation4 + $0x9a] sm:$0xff]
      %v6993 = vld [vmem:[#allocation4 + $0xaa] sm:$0xff]
      %v6994 = vld [vmem:[#allocation4 + $0xb2] sm:$0xff]
      %v6995 = vld [vmem:[#allocation4 + $0xc2] sm:$0xff]
      %v6996 = vld [vmem:[#allocation4 + $0xca] sm:$0xff]
      %v6997 = vld [vmem:[#allocation4 + $0xda] sm:$0xff]
      %v6998 = vld [vmem:[#allocation4 + $0xe2] sm:$0xff]
      %v6999 = vld [vmem:[#allocation4 + $0xf2] sm:$0xff]
      %v7000 = vld [vmem:[#allocation4 + $0xfa] sm:$0xff]
      %v7001 = vld [vmem:[#allocation4 + $0x10a] sm:$0xff]
      %v7002 = vld [vmem:[#allocation4 + $0x112] sm:$0xff]
      %v7003 = vld [vmem:[#allocation4 + $0x122] sm:$0xff]
      %v7004 = vld [vmem:[#allocation4 + $0x12a] sm:$0xff]
      %v7005 = vld [vmem:[#allocation4 + $0x13a] sm:$0xff]
      %v7006 = vld [vmem:[#allocation4 + $0x142] sm:$0xff]
      %v7007 = vld [vmem:[#allocation4 + $0x152] sm:$0xff]
      %v7008 = vld [vmem:[#allocation4 + $0x15a] sm:$0xff]
      %v7009 = vld [vmem:[#allocation4 + $0x16a] sm:$0xff]
      %v7010 = vld [vmem:[#allocation4 + $0x172] sm:$0xff]
      %v7011 = vld [vmem:[%s466] sm:$0xff]
      %v7012 = vld [vmem:[%s466 + $0x8] sm:$0xff]
      %v7013 = vld [vmem:[%s466 + $0x18] sm:$0xff]
      %v7014 = vld [vmem:[%s466 + $0x20] sm:$0xff]
      %v7015 = vld [vmem:[%s466 + $0x30] sm:$0xff]
      %v7016 = vld [vmem:[%s466 + $0x38] sm:$0xff]
      %v7017 = vld [vmem:[%s466 + $0x48] sm:$0xff]
      %v7018 = vld [vmem:[%s466 + $0x50] sm:$0xff]
      %v7019 = vld [vmem:[%s466 + $0x60] sm:$0xff]
      %v7020 = vld [vmem:[%s466 + $0x68] sm:$0xff]
      %v7021 = vld [vmem:[%s466 + $0x78] sm:$0xff]
      %v7022 = vld [vmem:[%s466 + $0x80] sm:$0xff]
      %v7023 = vld [vmem:[%s466 + $0x90] sm:$0xff]
      %v7024 = vld [vmem:[%s466 + $0x98] sm:$0xff]
      %v7025 = vld [vmem:[%s466 + $0xa8] sm:$0xff]
      %v7026 = vld [vmem:[%s466 + $0xb0] sm:$0xff]
      %v7027 = vld [vmem:[%s466 + $0xc0] sm:$0xff]
      %v7028 = vld [vmem:[%s466 + $0xc8] sm:$0xff]
      %v7029 = vld [vmem:[%s466 + $0xd8] sm:$0xff]
      %v7030 = vld [vmem:[%s466 + $0xe0] sm:$0xff]
      %v7031 = vld [vmem:[%s466 + $0xf0] sm:$0xff]
      %v7032 = vld [vmem:[%s466 + $0xf8] sm:$0xff]
      %v7033 = vld [vmem:[%s466 + $0x108] sm:$0xff]
      %v7034 = vld [vmem:[%s466 + $0x110] sm:$0xff]
      %v7035 = vld [vmem:[%s466 + $0x120] sm:$0xff]
      %v7036 = vld [vmem:[%s466 + $0x128] sm:$0xff]
      %v7037 = vld [vmem:[%s466 + $0x138] sm:$0xff]
      %v7038 = vld [vmem:[%s466 + $0x140] sm:$0xff]
      %v7039 = vld [vmem:[%s466 + $0x150] sm:$0xff]
      %v7040 = vld [vmem:[%s466 + $0x158] sm:$0xff]
      %v7041 = vld [vmem:[%s466 + $0x168] sm:$0xff]
      %v7042 = vld [vmem:[%s466 + $0x170] sm:$0xff]
      %v7043 = vld [vmem:[%s2663] sm:$0xff]
      %v7044 = vld [vmem:[%s2663 + $0x8] sm:$0xff]
      %v7045 = vld [vmem:[%s2663 + $0x18] sm:$0xff]
      %v7046 = vld [vmem:[%s2663 + $0x20] sm:$0xff]
      %v7047 = vld [vmem:[%s2663 + $0x30] sm:$0xff]
      %v7048 = vld [vmem:[%s2663 + $0x38] sm:$0xff]
      %v7049 = vld [vmem:[%s2663 + $0x48] sm:$0xff]
      %v7050 = vld [vmem:[%s2663 + $0x50] sm:$0xff]
      %v7051 = vld [vmem:[%s2663 + $0x60] sm:$0xff]
      %v7052 = vld [vmem:[%s2663 + $0x68] sm:$0xff]
      %v7053 = vld [vmem:[%s2663 + $0x78] sm:$0xff]
      %v7054 = vld [vmem:[%s2663 + $0x80] sm:$0xff]
      %v7055 = vld [vmem:[%s2663 + $0x90] sm:$0xff]
      %v7056 = vld [vmem:[%s2663 + $0x98] sm:$0xff]
      %v7057 = vld [vmem:[%s2663 + $0xa8] sm:$0xff]
      %v7058 = vld [vmem:[%s2663 + $0xb0] sm:$0xff]
      %v7059 = vld [vmem:[%s2663 + $0xc0] sm:$0xff]
      %v7060 = vld [vmem:[%s2663 + $0xc8] sm:$0xff]
      %v7061 = vld [vmem:[%s2663 + $0xd8] sm:$0xff]
      %v7062 = vld [vmem:[%s2663 + $0xe0] sm:$0xff]
      %v7063 = vld [vmem:[%s2663 + $0xf0] sm:$0xff]
      %v7064 = vld [vmem:[%s2663 + $0xf8] sm:$0xff]
      %v7065 = vld [vmem:[%s2663 + $0x108] sm:$0xff]
      %v7066 = vld [vmem:[%s2663 + $0x110] sm:$0xff]
      %v7067 = vld [vmem:[%s2663 + $0x120] sm:$0xff]
      %v7068 = vld [vmem:[%s2663 + $0x128] sm:$0xff]
      %v7069 = vld [vmem:[%s2663 + $0x138] sm:$0xff]
      %v7070 = vld [vmem:[%s2663 + $0x140] sm:$0xff]
      %v7071 = vld [vmem:[%s2663 + $0x150] sm:$0xff]
      %v7072 = vld [vmem:[%s2663 + $0x158] sm:$0xff]
      %v7073 = vld [vmem:[%s2663 + $0x168] sm:$0xff]
      %v7074 = vld [vmem:[%s2663 + $0x170] sm:$0xff]
      %v7075 = vld [vmem:[%s6603] sm:$0xff]
      %v7076 = vld [vmem:[%s6603 + $0x8] sm:$0xff]
      %v7077 = vld [vmem:[%s6603 + $0x18] sm:$0xff]
      %v7078 = vld [vmem:[%s6603 + $0x20] sm:$0xff]
      %v7079 = vld [vmem:[%s6603 + $0x30] sm:$0xff]
      %v7080 = vld [vmem:[%s6603 + $0x38] sm:$0xff]
      %v7081 = vld [vmem:[%s6603 + $0x48] sm:$0xff]
      %v7082 = vld [vmem:[%s6603 + $0x50] sm:$0xff]
      %v7083 = vld [vmem:[%s6603 + $0x60] sm:$0xff]
      %v7084 = vld [vmem:[%s6603 + $0x68] sm:$0xff]
      %v7085 = vld [vmem:[%s6603 + $0x78] sm:$0xff]
      %v7086 = vld [vmem:[%s6603 + $0x80] sm:$0xff]
      %v7087 = vld [vmem:[%s6603 + $0x90] sm:$0xff]
      %v7088 = vld [vmem:[%s6603 + $0x98] sm:$0xff]
      %v7089 = vld [vmem:[%s6603 + $0xa8] sm:$0xff]
      %v7090 = vld [vmem:[%s6603 + $0xb0] sm:$0xff]
      %v7091 = vld [vmem:[%s6603 + $0xc0] sm:$0xff]
      %v7092 = vld [vmem:[%s6603 + $0xc8] sm:$0xff]
      %v7093 = vld [vmem:[%s6603 + $0xd8] sm:$0xff]
      %v7094 = vld [vmem:[%s6603 + $0xe0] sm:$0xff]
      %v7095 = vld [vmem:[%s6603 + $0xf0] sm:$0xff]
      %v7096 = vld [vmem:[%s6603 + $0xf8] sm:$0xff]
      %v7097 = vld [vmem:[%s6603 + $0x108] sm:$0xff]
      %v7098 = vld [vmem:[%s6603 + $0x110] sm:$0xff]
      %v7099 = vld [vmem:[%s6603 + $0x120] sm:$0xff]
      %v7100 = vld [vmem:[%s6603 + $0x128] sm:$0xff]
      %v7101 = vld [vmem:[%s6603 + $0x138] sm:$0xff]
      %v7102 = vld [vmem:[%s6603 + $0x140] sm:$0xff]
      %v7103 = vld [vmem:[%s6603 + $0x150] sm:$0xff]
      %v7104 = vld [vmem:[%s6603 + $0x158] sm:$0xff]
      %v7105 = vld [vmem:[%s6603 + $0x168] sm:$0xff]
      %v7106 = vld [vmem:[%s6603 + $0x170] sm:$0xff]
      %v7107 = vld [vmem:[%s466 + $0x1] sm:$0xff]
      %v7108 = vld [vmem:[%s466 + $0x9] sm:$0xff]
      %v7109 = vld [vmem:[%s466 + $0x19] sm:$0xff]
      %v7110 = vld [vmem:[%s466 + $0x21] sm:$0xff]
      %v7111 = vld [vmem:[%s466 + $0x31] sm:$0xff]
      %v7112 = vld [vmem:[%s466 + $0x39] sm:$0xff]
      %v7113 = vld [vmem:[%s466 + $0x49] sm:$0xff]
      %v7114 = vld [vmem:[%s466 + $0x51] sm:$0xff]
      %v7115 = vld [vmem:[%s466 + $0x61] sm:$0xff]
      %v7116 = vld [vmem:[%s466 + $0x69] sm:$0xff]
      %v7117 = vld [vmem:[%s466 + $0x79] sm:$0xff]
      %v7118 = vld [vmem:[%s466 + $0x81] sm:$0xff]
      %v7119 = vld [vmem:[%s466 + $0x91] sm:$0xff]
      %v7120 = vld [vmem:[%s466 + $0x99] sm:$0xff]
      %v7121 = vld [vmem:[%s466 + $0xa9] sm:$0xff]
      %v7122 = vld [vmem:[%s466 + $0xb1] sm:$0xff]
      %v7123 = vld [vmem:[%s466 + $0xc1] sm:$0xff]
      %v7124 = vld [vmem:[%s466 + $0xc9] sm:$0xff]
      %v7125 = vld [vmem:[%s466 + $0xd9] sm:$0xff]
      %v7126 = vld [vmem:[%s466 + $0xe1] sm:$0xff]
      %v7127 = vld [vmem:[%s466 + $0xf1] sm:$0xff]
      %v7128 = vld [vmem:[%s466 + $0xf9] sm:$0xff]
      %v7129 = vld [vmem:[%s466 + $0x109] sm:$0xff]
      %v7130 = vld [vmem:[%s466 + $0x111] sm:$0xff]
      %v7131 = vld [vmem:[%s466 + $0x121] sm:$0xff]
      %v7132 = vld [vmem:[%s466 + $0x129] sm:$0xff]
      %v7133 = vld [vmem:[%s466 + $0x139] sm:$0xff]
      %v7134 = vld [vmem:[%s466 + $0x141] sm:$0xff]
      %v7135 = vld [vmem:[%s466 + $0x151] sm:$0xff]
      %v7136 = vld [vmem:[%s466 + $0x159] sm:$0xff]
      %v7137 = vld [vmem:[%s466 + $0x169] sm:$0xff]
      %v7138 = vld [vmem:[%s466 + $0x171] sm:$0xff]
      %v7139 = vld [vmem:[%s2663 + $0x1] sm:$0xff]
      %v7140 = vld [vmem:[%s2663 + $0x9] sm:$0xff]
      %v7141 = vld [vmem:[%s2663 + $0x19] sm:$0xff]
      %v7142 = vld [vmem:[%s2663 + $0x21] sm:$0xff]
      %v7143 = vld [vmem:[%s2663 + $0x31] sm:$0xff]
      %v7144 = vld [vmem:[%s2663 + $0x39] sm:$0xff]
      %v7145 = vld [vmem:[%s2663 + $0x49] sm:$0xff]
      %v7146 = vld [vmem:[%s2663 + $0x51] sm:$0xff]
      %v7147 = vld [vmem:[%s2663 + $0x61] sm:$0xff]
      %v7148 = vld [vmem:[%s2663 + $0x69] sm:$0xff]
      %v7149 = vld [vmem:[%s2663 + $0x79] sm:$0xff]
      %v7150 = vld [vmem:[%s2663 + $0x81] sm:$0xff]
      %v7151 = vld [vmem:[%s2663 + $0x91] sm:$0xff]
      %v7152 = vld [vmem:[%s2663 + $0x99] sm:$0xff]
      %v7153 = vld [vmem:[%s2663 + $0xa9] sm:$0xff]
      %v7154 = vld [vmem:[%s2663 + $0xb1] sm:$0xff]
      %v7155 = vld [vmem:[%s2663 + $0xc1] sm:$0xff]
      %v7156 = vld [vmem:[%s2663 + $0xc9] sm:$0xff]
      %v7157 = vld [vmem:[%s2663 + $0xd9] sm:$0xff]
      %v7158 = vld [vmem:[%s2663 + $0xe1] sm:$0xff]
      %v7159 = vld [vmem:[%s2663 + $0xf1] sm:$0xff]
      %v7160 = vld [vmem:[%s2663 + $0xf9] sm:$0xff]
      %v7161 = vld [vmem:[%s2663 + $0x109] sm:$0xff]
      %v7162 = vld [vmem:[%s2663 + $0x111] sm:$0xff]
      %v7163 = vld [vmem:[%s2663 + $0x121] sm:$0xff]
      %v7164 = vld [vmem:[%s2663 + $0x129] sm:$0xff]
      %v7165 = vld [vmem:[%s2663 + $0x139] sm:$0xff]
      %v7166 = vld [vmem:[%s2663 + $0x141] sm:$0xff]
      %v7167 = vld [vmem:[%s2663 + $0x151] sm:$0xff]
      %v7168 = vld [vmem:[%s2663 + $0x159] sm:$0xff]
      %v7169 = vld [vmem:[%s2663 + $0x169] sm:$0xff]
      %v7170 = vld [vmem:[%s2663 + $0x171] sm:$0xff]
      %v7171 = vld [vmem:[%s6603 + $0x1] sm:$0xff]
      %v7172 = vld [vmem:[%s6603 + $0x9] sm:$0xff]
      %v7173 = vld [vmem:[%s6603 + $0x19] sm:$0xff]
      %v7174 = vld [vmem:[%s6603 + $0x21] sm:$0xff]
      %v7175 = vld [vmem:[%s6603 + $0x31] sm:$0xff]
      %v7176 = vld [vmem:[%s6603 + $0x39] sm:$0xff]
      %v7177 = vld [vmem:[%s6603 + $0x49] sm:$0xff]
      %v7178 = vld [vmem:[%s6603 + $0x51] sm:$0xff]
      %v7179 = vld [vmem:[%s6603 + $0x61] sm:$0xff]
      %v7180 = vld [vmem:[%s6603 + $0x69] sm:$0xff]
      %v7181 = vld [vmem:[%s6603 + $0x79] sm:$0xff]
      %v7182 = vld [vmem:[%s6603 + $0x81] sm:$0xff]
      %v7183 = vld [vmem:[%s6603 + $0x91] sm:$0xff]
      %v7184 = vld [vmem:[%s6603 + $0x99] sm:$0xff]
      %v7185 = vld [vmem:[%s6603 + $0xa9] sm:$0xff]
      %v7186 = vld [vmem:[%s6603 + $0xb1] sm:$0xff]
      %v7187 = vld [vmem:[%s6603 + $0xc1] sm:$0xff]
      %v7188 = vld [vmem:[%s6603 + $0xc9] sm:$0xff]
      %v7189 = vld [vmem:[%s6603 + $0xd9] sm:$0xff]
      %v7190 = vld [vmem:[%s6603 + $0xe1] sm:$0xff]
      %v7191 = vld [vmem:[%s6603 + $0xf1] sm:$0xff]
      %v7192 = vld [vmem:[%s6603 + $0xf9] sm:$0xff]
      %v7193 = vld [vmem:[%s6603 + $0x109] sm:$0xff]
      %v7194 = vld [vmem:[%s6603 + $0x111] sm:$0xff]
      %v7195 = vld [vmem:[%s6603 + $0x121] sm:$0xff]
      %v7196 = vld [vmem:[%s6603 + $0x129] sm:$0xff]
      %v7197 = vld [vmem:[%s6603 + $0x139] sm:$0xff]
      %v7198 = vld [vmem:[%s6603 + $0x141] sm:$0xff]
      %v7199 = vld [vmem:[%s6603 + $0x151] sm:$0xff]
      %v7200 = vld [vmem:[%s6603 + $0x159] sm:$0xff]
      %v7201 = vld [vmem:[%s6603 + $0x169] sm:$0xff]
      %v7202 = vld [vmem:[%s6603 + $0x171] sm:$0xff]
      %v7203 = vld [vmem:[%s466 + $0x2] sm:$0xff]
      %v7204 = vld [vmem:[%s466 + $0xa] sm:$0xff]
      %v7205 = vld [vmem:[%s466 + $0x1a] sm:$0xff]
      %v7206 = vld [vmem:[%s466 + $0x22] sm:$0xff]
      %v7207 = vld [vmem:[%s466 + $0x32] sm:$0xff]
      %v7208 = vld [vmem:[%s466 + $0x3a] sm:$0xff]
      %v7209 = vld [vmem:[%s466 + $0x4a] sm:$0xff]
      %v7210 = vld [vmem:[%s466 + $0x52] sm:$0xff]
      %v7211 = vld [vmem:[%s466 + $0x62] sm:$0xff]
      %v7212 = vld [vmem:[%s466 + $0x6a] sm:$0xff]
      %v7213 = vld [vmem:[%s466 + $0x7a] sm:$0xff]
      %v7214 = vld [vmem:[%s466 + $0x82] sm:$0xff]
      %v7215 = vld [vmem:[%s466 + $0x92] sm:$0xff]
      %v7216 = vld [vmem:[%s466 + $0x9a] sm:$0xff]
      %v7217 = vld [vmem:[%s466 + $0xaa] sm:$0xff]
      %v7218 = vld [vmem:[%s466 + $0xb2] sm:$0xff]
      %v7219 = vld [vmem:[%s466 + $0xc2] sm:$0xff]
      %v7220 = vld [vmem:[%s466 + $0xca] sm:$0xff]
      %v7221 = vld [vmem:[%s466 + $0xda] sm:$0xff]
      %v7222 = vld [vmem:[%s466 + $0xe2] sm:$0xff]
      %v7223 = vld [vmem:[%s466 + $0xf2] sm:$0xff]
      %v7224 = vld [vmem:[%s466 + $0xfa] sm:$0xff]
      %v7225 = vld [vmem:[%s466 + $0x10a] sm:$0xff]
      %v7226 = vld [vmem:[%s466 + $0x112] sm:$0xff]
      %v7227 = vld [vmem:[%s466 + $0x122] sm:$0xff]
      %v7228 = vld [vmem:[%s466 + $0x12a] sm:$0xff]
      %v7229 = vld [vmem:[%s466 + $0x13a] sm:$0xff]
      %v7230 = vld [vmem:[%s466 + $0x142] sm:$0xff]
      %v7231 = vld [vmem:[%s466 + $0x152] sm:$0xff]
      %v7232 = vld [vmem:[%s466 + $0x15a] sm:$0xff]
      %v7233 = vld [vmem:[%s466 + $0x16a] sm:$0xff]
      %v7234 = vld [vmem:[%s466 + $0x172] sm:$0xff]
      %v7235 = vld [vmem:[%s2663 + $0x2] sm:$0xff]
      %v7236 = vld [vmem:[%s2663 + $0xa] sm:$0xff]
      %v7237 = vld [vmem:[%s2663 + $0x1a] sm:$0xff]
      %v7238 = vld [vmem:[%s2663 + $0x22] sm:$0xff]
      %v7239 = vld [vmem:[%s2663 + $0x32] sm:$0xff]
      %v7240 = vld [vmem:[%s2663 + $0x3a] sm:$0xff]
      %v7241 = vld [vmem:[%s2663 + $0x4a] sm:$0xff]
      %v7242 = vld [vmem:[%s2663 + $0x52] sm:$0xff]
      %v7243 = vld [vmem:[%s2663 + $0x62] sm:$0xff]
      %v7244 = vld [vmem:[%s2663 + $0x6a] sm:$0xff]
      %v7245 = vld [vmem:[%s2663 + $0x7a] sm:$0xff]
      %v7246 = vld [vmem:[%s2663 + $0x82] sm:$0xff]
      %v7247 = vld [vmem:[%s2663 + $0x92] sm:$0xff]
      %v7248 = vld [vmem:[%s2663 + $0x9a] sm:$0xff]
      %v7249 = vld [vmem:[%s2663 + $0xaa] sm:$0xff]
      %v7250 = vld [vmem:[%s2663 + $0xb2] sm:$0xff]
      %v7251 = vld [vmem:[%s2663 + $0xc2] sm:$0xff]
      %v7252 = vld [vmem:[%s2663 + $0xca] sm:$0xff]
      %v7253 = vld [vmem:[%s2663 + $0xda] sm:$0xff]
      %v7254 = vld [vmem:[%s2663 + $0xe2] sm:$0xff]
      %v7255 = vld [vmem:[%s2663 + $0xf2] sm:$0xff]
      %v7256 = vld [vmem:[%s2663 + $0xfa] sm:$0xff]
      %v7257 = vld [vmem:[%s2663 + $0x10a] sm:$0xff]
      %v7258 = vld [vmem:[%s2663 + $0x112] sm:$0xff]
      %v7259 = vld [vmem:[%s2663 + $0x122] sm:$0xff]
      %v7260 = vld [vmem:[%s2663 + $0x12a] sm:$0xff]
      %v7261 = vld [vmem:[%s2663 + $0x13a] sm:$0xff]
      %v7262 = vld [vmem:[%s2663 + $0x142] sm:$0xff]
      %v7263 = vld [vmem:[%s2663 + $0x152] sm:$0xff]
      %v7264 = vld [vmem:[%s2663 + $0x15a] sm:$0xff]
      %v7265 = vld [vmem:[%s2663 + $0x16a] sm:$0xff]
      %v7266 = vld [vmem:[%s2663 + $0x172] sm:$0xff]
      %v7267 = vld [vmem:[%s6603 + $0x2] sm:$0xff]
      %v7268 = vld [vmem:[%s6603 + $0xa] sm:$0xff]
      %v7269 = vld [vmem:[%s6603 + $0x1a] sm:$0xff]
      %v7270 = vld [vmem:[%s6603 + $0x22] sm:$0xff]
      %v7271 = vld [vmem:[%s6603 + $0x32] sm:$0xff]
      %v7272 = vld [vmem:[%s6603 + $0x3a] sm:$0xff]
      %v7273 = vld [vmem:[%s6603 + $0x4a] sm:$0xff]
      %v7274 = vld [vmem:[%s6603 + $0x52] sm:$0xff]
      %v7275 = vld [vmem:[%s6603 + $0x62] sm:$0xff]
      %v7276 = vld [vmem:[%s6603 + $0x6a] sm:$0xff]
      %v7277 = vld [vmem:[%s6603 + $0x7a] sm:$0xff]
      %v7278 = vld [vmem:[%s6603 + $0x82] sm:$0xff]
      %v7279 = vld [vmem:[%s6603 + $0x92] sm:$0xff]
      %v7280 = vld [vmem:[%s6603 + $0x9a] sm:$0xff]
      %v7281 = vld [vmem:[%s6603 + $0xaa] sm:$0xff]
      %v7282 = vld [vmem:[%s6603 + $0xb2] sm:$0xff]
      %v7283 = vld [vmem:[%s6603 + $0xc2] sm:$0xff]
      %v7284 = vld [vmem:[%s6603 + $0xca] sm:$0xff]
      %v7285 = vld [vmem:[%s6603 + $0xda] sm:$0xff]
      %v7286 = vld [vmem:[%s6603 + $0xe2] sm:$0xff]
      %v7287 = vld [vmem:[%s6603 + $0xf2] sm:$0xff]
      %v7288 = vld [vmem:[%s6603 + $0xfa] sm:$0xff]
      %v7289 = vld [vmem:[%s6603 + $0x10a] sm:$0xff]
      %v7290 = vld [vmem:[%s6603 + $0x112] sm:$0xff]
      %v7291 = vld [vmem:[%s6603 + $0x122] sm:$0xff]
      %v7292 = vld [vmem:[%s6603 + $0x12a] sm:$0xff]
      %v7293 = vld [vmem:[%s6603 + $0x13a] sm:$0xff]
      %v7294 = vld [vmem:[%s6603 + $0x142] sm:$0xff]
      %v7295 = vld [vmem:[%s6603 + $0x152] sm:$0xff]
      %v7296 = vld [vmem:[%s6603 + $0x15a] sm:$0xff]
      %v7297 = vld [vmem:[%s6603 + $0x16a] sm:$0xff]
      %v7298 = vld [vmem:[%s6603 + $0x172] sm:$0xff]
      %v7299 = vld [vmem:[%s500] sm:$0xff]
      %v7300 = vld [vmem:[%s500 + $0x8] sm:$0xff]
      %v7301 = vld [vmem:[%s500 + $0x18] sm:$0xff]
      %v7302 = vld [vmem:[%s500 + $0x20] sm:$0xff]
      %v7303 = vld [vmem:[%s500 + $0x30] sm:$0xff]
      %v7304 = vld [vmem:[%s500 + $0x38] sm:$0xff]
      %v7305 = vld [vmem:[%s500 + $0x48] sm:$0xff]
      %v7306 = vld [vmem:[%s500 + $0x50] sm:$0xff]
      %v7307 = vld [vmem:[%s500 + $0x60] sm:$0xff]
      %v7308 = vld [vmem:[%s500 + $0x68] sm:$0xff]
      %v7309 = vld [vmem:[%s500 + $0x78] sm:$0xff]
      %v7310 = vld [vmem:[%s500 + $0x80] sm:$0xff]
      %v7311 = vld [vmem:[%s500 + $0x90] sm:$0xff]
      %v7312 = vld [vmem:[%s500 + $0x98] sm:$0xff]
      %v7313 = vld [vmem:[%s500 + $0xa8] sm:$0xff]
      %v7314 = vld [vmem:[%s500 + $0xb0] sm:$0xff]
      %v7315 = vld [vmem:[%s500 + $0xc0] sm:$0xff]
      %v7316 = vld [vmem:[%s500 + $0xc8] sm:$0xff]
      %v7317 = vld [vmem:[%s500 + $0xd8] sm:$0xff]
      %v7318 = vld [vmem:[%s500 + $0xe0] sm:$0xff]
      %v7319 = vld [vmem:[%s500 + $0xf0] sm:$0xff]
      %v7320 = vld [vmem:[%s500 + $0xf8] sm:$0xff]
      %v7321 = vld [vmem:[%s500 + $0x108] sm:$0xff]
      %v7322 = vld [vmem:[%s500 + $0x110] sm:$0xff]
      %v7323 = vld [vmem:[%s500 + $0x120] sm:$0xff]
      %v7324 = vld [vmem:[%s500 + $0x128] sm:$0xff]
      %v7325 = vld [vmem:[%s500 + $0x138] sm:$0xff]
      %v7326 = vld [vmem:[%s500 + $0x140] sm:$0xff]
      %v7327 = vld [vmem:[%s500 + $0x150] sm:$0xff]
      %v7328 = vld [vmem:[%s500 + $0x158] sm:$0xff]
      %v7329 = vld [vmem:[%s500 + $0x168] sm:$0xff]
      %v7330 = vld [vmem:[%s500 + $0x170] sm:$0xff]
      %v7331 = vld [vmem:[%s2696] sm:$0xff]
      %v7332 = vld [vmem:[%s2696 + $0x8] sm:$0xff]
      %v7333 = vld [vmem:[%s2696 + $0x18] sm:$0xff]
      %v7334 = vld [vmem:[%s2696 + $0x20] sm:$0xff]
      %v7335 = vld [vmem:[%s2696 + $0x30] sm:$0xff]
      %v7336 = vld [vmem:[%s2696 + $0x38] sm:$0xff]
      %v7337 = vld [vmem:[%s2696 + $0x48] sm:$0xff]
      %v7338 = vld [vmem:[%s2696 + $0x50] sm:$0xff]
      %v7339 = vld [vmem:[%s2696 + $0x60] sm:$0xff]
      %v7340 = vld [vmem:[%s2696 + $0x68] sm:$0xff]
      %v7341 = vld [vmem:[%s2696 + $0x78] sm:$0xff]
      %v7342 = vld [vmem:[%s2696 + $0x80] sm:$0xff]
      %v7343 = vld [vmem:[%s2696 + $0x90] sm:$0xff]
      %v7344 = vld [vmem:[%s2696 + $0x98] sm:$0xff]
      %v7345 = vld [vmem:[%s2696 + $0xa8] sm:$0xff]
      %v7346 = vld [vmem:[%s2696 + $0xb0] sm:$0xff]
      %v7347 = vld [vmem:[%s2696 + $0xc0] sm:$0xff]
      %v7348 = vld [vmem:[%s2696 + $0xc8] sm:$0xff]
      %v7349 = vld [vmem:[%s2696 + $0xd8] sm:$0xff]
      %v7350 = vld [vmem:[%s2696 + $0xe0] sm:$0xff]
      %v7351 = vld [vmem:[%s2696 + $0xf0] sm:$0xff]
      %v7352 = vld [vmem:[%s2696 + $0xf8] sm:$0xff]
      %v7353 = vld [vmem:[%s2696 + $0x108] sm:$0xff]
      %v7354 = vld [vmem:[%s2696 + $0x110] sm:$0xff]
      %v7355 = vld [vmem:[%s2696 + $0x120] sm:$0xff]
      %v7356 = vld [vmem:[%s2696 + $0x128] sm:$0xff]
      %v7357 = vld [vmem:[%s2696 + $0x138] sm:$0xff]
      %v7358 = vld [vmem:[%s2696 + $0x140] sm:$0xff]
      %v7359 = vld [vmem:[%s2696 + $0x150] sm:$0xff]
      %v7360 = vld [vmem:[%s2696 + $0x158] sm:$0xff]
      %v7361 = vld [vmem:[%s2696 + $0x168] sm:$0xff]
      %v7362 = vld [vmem:[%s2696 + $0x170] sm:$0xff]
      %v7363 = vld [vmem:[%s6636] sm:$0xff]
      %v7364 = vld [vmem:[%s6636 + $0x8] sm:$0xff]
      %v7365 = vld [vmem:[%s6636 + $0x18] sm:$0xff]
      %v7366 = vld [vmem:[%s6636 + $0x20] sm:$0xff]
      %v7367 = vld [vmem:[%s6636 + $0x30] sm:$0xff]
      %v7368 = vld [vmem:[%s6636 + $0x38] sm:$0xff]
      %v7369 = vld [vmem:[%s6636 + $0x48] sm:$0xff]
      %v7370 = vld [vmem:[%s6636 + $0x50] sm:$0xff]
      %v7371 = vld [vmem:[%s6636 + $0x60] sm:$0xff]
      %v7372 = vld [vmem:[%s6636 + $0x68] sm:$0xff]
      %v7373 = vld [vmem:[%s6636 + $0x78] sm:$0xff]
      %v7374 = vld [vmem:[%s6636 + $0x80] sm:$0xff]
      %v7375 = vld [vmem:[%s6636 + $0x90] sm:$0xff]
      %v7376 = vld [vmem:[%s6636 + $0x98] sm:$0xff]
      %v7377 = vld [vmem:[%s6636 + $0xa8] sm:$0xff]
      %v7378 = vld [vmem:[%s6636 + $0xb0] sm:$0xff]
      %v7379 = vld [vmem:[%s6636 + $0xc0] sm:$0xff]
      %v7380 = vld [vmem:[%s6636 + $0xc8] sm:$0xff]
      %v7381 = vld [vmem:[%s6636 + $0xd8] sm:$0xff]
      %v7382 = vld [vmem:[%s6636 + $0xe0] sm:$0xff]
      %v7383 = vld [vmem:[%s6636 + $0xf0] sm:$0xff]
      %v7384 = vld [vmem:[%s6636 + $0xf8] sm:$0xff]
      %v7385 = vld [vmem:[%s6636 + $0x108] sm:$0xff]
      %v7386 = vld [vmem:[%s6636 + $0x110] sm:$0xff]
      %v7387 = vld [vmem:[%s6636 + $0x120] sm:$0xff]
      %v7388 = vld [vmem:[%s6636 + $0x128] sm:$0xff]
      %v7389 = vld [vmem:[%s6636 + $0x138] sm:$0xff]
      %v7390 = vld [vmem:[%s6636 + $0x140] sm:$0xff]
      %v7391 = vld [vmem:[%s6636 + $0x150] sm:$0xff]
      %v7392 = vld [vmem:[%s6636 + $0x158] sm:$0xff]
      %v7393 = vld [vmem:[%s6636 + $0x168] sm:$0xff]
      %v7394 = vld [vmem:[%s6636 + $0x170] sm:$0xff]
      %v7395 = vld [vmem:[%s500 + $0x1] sm:$0xff]
      %v7396 = vld [vmem:[%s500 + $0x9] sm:$0xff]
      %v7397 = vld [vmem:[%s500 + $0x19] sm:$0xff]
      %v7398 = vld [vmem:[%s500 + $0x21] sm:$0xff]
      %v7399 = vld [vmem:[%s500 + $0x31] sm:$0xff]
      %v7400 = vld [vmem:[%s500 + $0x39] sm:$0xff]
      %v7401 = vld [vmem:[%s500 + $0x49] sm:$0xff]
      %v7402 = vld [vmem:[%s500 + $0x51] sm:$0xff]
      %v7403 = vld [vmem:[%s500 + $0x61] sm:$0xff]
      %v7404 = vld [vmem:[%s500 + $0x69] sm:$0xff]
      %v7405 = vld [vmem:[%s500 + $0x79] sm:$0xff]
      %v7406 = vld [vmem:[%s500 + $0x81] sm:$0xff]
      %v7407 = vld [vmem:[%s500 + $0x91] sm:$0xff]
      %v7408 = vld [vmem:[%s500 + $0x99] sm:$0xff]
      %v7409 = vld [vmem:[%s500 + $0xa9] sm:$0xff]
      %v7410 = vld [vmem:[%s500 + $0xb1] sm:$0xff]
      %v7411 = vld [vmem:[%s500 + $0xc1] sm:$0xff]
      %v7412 = vld [vmem:[%s500 + $0xc9] sm:$0xff]
      %v7413 = vld [vmem:[%s500 + $0xd9] sm:$0xff]
      %v7414 = vld [vmem:[%s500 + $0xe1] sm:$0xff]
      %v7415 = vld [vmem:[%s500 + $0xf1] sm:$0xff]
      %v7416 = vld [vmem:[%s500 + $0xf9] sm:$0xff]
      %v7417 = vld [vmem:[%s500 + $0x109] sm:$0xff]
      %v7418 = vld [vmem:[%s500 + $0x111] sm:$0xff]
      %v7419 = vld [vmem:[%s500 + $0x121] sm:$0xff]
      %v7420 = vld [vmem:[%s500 + $0x129] sm:$0xff]
      %v7421 = vld [vmem:[%s500 + $0x139] sm:$0xff]
      %v7422 = vld [vmem:[%s500 + $0x141] sm:$0xff]
      %v7423 = vld [vmem:[%s500 + $0x151] sm:$0xff]
      %v7424 = vld [vmem:[%s500 + $0x159] sm:$0xff]
      %v7425 = vld [vmem:[%s500 + $0x169] sm:$0xff]
      %v7426 = vld [vmem:[%s500 + $0x171] sm:$0xff]
      %v7427 = vld [vmem:[%s2696 + $0x1] sm:$0xff]
      %v7428 = vld [vmem:[%s2696 + $0x9] sm:$0xff]
      %v7429 = vld [vmem:[%s2696 + $0x19] sm:$0xff]
      %v7430 = vld [vmem:[%s2696 + $0x21] sm:$0xff]
      %v7431 = vld [vmem:[%s2696 + $0x31] sm:$0xff]
      %v7432 = vld [vmem:[%s2696 + $0x39] sm:$0xff]
      %v7433 = vld [vmem:[%s2696 + $0x49] sm:$0xff]
      %v7434 = vld [vmem:[%s2696 + $0x51] sm:$0xff]
      %v7435 = vld [vmem:[%s2696 + $0x61] sm:$0xff]
      %v7436 = vld [vmem:[%s2696 + $0x69] sm:$0xff]
      %v7437 = vld [vmem:[%s2696 + $0x79] sm:$0xff]
      %v7438 = vld [vmem:[%s2696 + $0x81] sm:$0xff]
      %v7439 = vld [vmem:[%s2696 + $0x91] sm:$0xff]
      %v7440 = vld [vmem:[%s2696 + $0x99] sm:$0xff]
      %v7441 = vld [vmem:[%s2696 + $0xa9] sm:$0xff]
      %v7442 = vld [vmem:[%s2696 + $0xb1] sm:$0xff]
      %v7443 = vld [vmem:[%s2696 + $0xc1] sm:$0xff]
      %v7444 = vld [vmem:[%s2696 + $0xc9] sm:$0xff]
      %v7445 = vld [vmem:[%s2696 + $0xd9] sm:$0xff]
      %v7446 = vld [vmem:[%s2696 + $0xe1] sm:$0xff]
      %v7447 = vld [vmem:[%s2696 + $0xf1] sm:$0xff]
      %v7448 = vld [vmem:[%s2696 + $0xf9] sm:$0xff]
      %v7449 = vld [vmem:[%s2696 + $0x109] sm:$0xff]
      %v7450 = vld [vmem:[%s2696 + $0x111] sm:$0xff]
      %v7451 = vld [vmem:[%s2696 + $0x121] sm:$0xff]
      %v7452 = vld [vmem:[%s2696 + $0x129] sm:$0xff]
      %v7453 = vld [vmem:[%s2696 + $0x139] sm:$0xff]
      %v7454 = vld [vmem:[%s2696 + $0x141] sm:$0xff]
      %v7455 = vld [vmem:[%s2696 + $0x151] sm:$0xff]
      %v7456 = vld [vmem:[%s2696 + $0x159] sm:$0xff]
      %v7457 = vld [vmem:[%s2696 + $0x169] sm:$0xff]
      %v7458 = vld [vmem:[%s2696 + $0x171] sm:$0xff]
      %v7459 = vld [vmem:[%s6636 + $0x1] sm:$0xff]
      %v7460 = vld [vmem:[%s6636 + $0x9] sm:$0xff]
      %v7461 = vld [vmem:[%s6636 + $0x19] sm:$0xff]
      %v7462 = vld [vmem:[%s6636 + $0x21] sm:$0xff]
      %v7463 = vld [vmem:[%s6636 + $0x31] sm:$0xff]
      %v7464 = vld [vmem:[%s6636 + $0x39] sm:$0xff]
      %v7465 = vld [vmem:[%s6636 + $0x49] sm:$0xff]
      %v7466 = vld [vmem:[%s6636 + $0x51] sm:$0xff]
      %v7467 = vld [vmem:[%s6636 + $0x61] sm:$0xff]
      %v7468 = vld [vmem:[%s6636 + $0x69] sm:$0xff]
      %v7469 = vld [vmem:[%s6636 + $0x79] sm:$0xff]
      %v7470 = vld [vmem:[%s6636 + $0x81] sm:$0xff]
      %v7471 = vld [vmem:[%s6636 + $0x91] sm:$0xff]
      %v7472 = vld [vmem:[%s6636 + $0x99] sm:$0xff]
      %v7473 = vld [vmem:[%s6636 + $0xa9] sm:$0xff]
      %v7474 = vld [vmem:[%s6636 + $0xb1] sm:$0xff]
      %v7475 = vld [vmem:[%s6636 + $0xc1] sm:$0xff]
      %v7476 = vld [vmem:[%s6636 + $0xc9] sm:$0xff]
      %v7477 = vld [vmem:[%s6636 + $0xd9] sm:$0xff]
      %v7478 = vld [vmem:[%s6636 + $0xe1] sm:$0xff]
      %v7479 = vld [vmem:[%s6636 + $0xf1] sm:$0xff]
      %v7480 = vld [vmem:[%s6636 + $0xf9] sm:$0xff]
      %v7481 = vld [vmem:[%s6636 + $0x109] sm:$0xff]
      %v7482 = vld [vmem:[%s6636 + $0x111] sm:$0xff]
      %v7483 = vld [vmem:[%s6636 + $0x121] sm:$0xff]
      %v7484 = vld [vmem:[%s6636 + $0x129] sm:$0xff]
      %v7485 = vld [vmem:[%s6636 + $0x139] sm:$0xff]
      %v7486 = vld [vmem:[%s6636 + $0x141] sm:$0xff]
      %v7487 = vld [vmem:[%s6636 + $0x151] sm:$0xff]
      %v7488 = vld [vmem:[%s6636 + $0x159] sm:$0xff]
      %v7489 = vld [vmem:[%s6636 + $0x169] sm:$0xff]
      %v7490 = vld [vmem:[%s6636 + $0x171] sm:$0xff]
      %v7491 = vld [vmem:[%s500 + $0x2] sm:$0xff]
      %v7492 = vld [vmem:[%s500 + $0xa] sm:$0xff]
      %v7493 = vld [vmem:[%s500 + $0x1a] sm:$0xff]
      %v7494 = vld [vmem:[%s500 + $0x22] sm:$0xff]
      %v7495 = vld [vmem:[%s500 + $0x32] sm:$0xff]
      %v7496 = vld [vmem:[%s500 + $0x3a] sm:$0xff]
      %v7497 = vld [vmem:[%s500 + $0x4a] sm:$0xff]
      %v7498 = vld [vmem:[%s500 + $0x52] sm:$0xff]
      %v7499 = vld [vmem:[%s500 + $0x62] sm:$0xff]
      %v7500 = vld [vmem:[%s500 + $0x6a] sm:$0xff]
      %v7501 = vld [vmem:[%s500 + $0x7a] sm:$0xff]
      %v7502 = vld [vmem:[%s500 + $0x82] sm:$0xff]
      %v7503 = vld [vmem:[%s500 + $0x92] sm:$0xff]
      %v7504 = vld [vmem:[%s500 + $0x9a] sm:$0xff]
      %v7505 = vld [vmem:[%s500 + $0xaa] sm:$0xff]
      %v7506 = vld [vmem:[%s500 + $0xb2] sm:$0xff]
      %v7507 = vld [vmem:[%s500 + $0xc2] sm:$0xff]
      %v7508 = vld [vmem:[%s500 + $0xca] sm:$0xff]
      %v7509 = vld [vmem:[%s500 + $0xda] sm:$0xff]
      %v7510 = vld [vmem:[%s500 + $0xe2] sm:$0xff]
      %v7511 = vld [vmem:[%s500 + $0xf2] sm:$0xff]
      %v7512 = vld [vmem:[%s500 + $0xfa] sm:$0xff]
      %v7513 = vld [vmem:[%s500 + $0x10a] sm:$0xff]
      %v7514 = vld [vmem:[%s500 + $0x112] sm:$0xff]
      %v7515 = vld [vmem:[%s500 + $0x122] sm:$0xff]
      %v7516 = vld [vmem:[%s500 + $0x12a] sm:$0xff]
      %v7517 = vld [vmem:[%s500 + $0x13a] sm:$0xff]
      %v7518 = vld [vmem:[%s500 + $0x142] sm:$0xff]
      %v7519 = vld [vmem:[%s500 + $0x152] sm:$0xff]
      %v7520 = vld [vmem:[%s500 + $0x15a] sm:$0xff]
      %v7521 = vld [vmem:[%s500 + $0x16a] sm:$0xff]
      %v7522 = vld [vmem:[%s500 + $0x172] sm:$0xff]
      %v7523 = vld [vmem:[%s2696 + $0x2] sm:$0xff]
      %v7524 = vld [vmem:[%s2696 + $0xa] sm:$0xff]
      %v7525 = vld [vmem:[%s2696 + $0x1a] sm:$0xff]
      %v7526 = vld [vmem:[%s2696 + $0x22] sm:$0xff]
      %v7527 = vld [vmem:[%s2696 + $0x32] sm:$0xff]
      %v7528 = vld [vmem:[%s2696 + $0x3a] sm:$0xff]
      %v7529 = vld [vmem:[%s2696 + $0x4a] sm:$0xff]
      %v7530 = vld [vmem:[%s2696 + $0x52] sm:$0xff]
      %v7531 = vld [vmem:[%s2696 + $0x62] sm:$0xff]
      %v7532 = vld [vmem:[%s2696 + $0x6a] sm:$0xff]
      %v7533 = vld [vmem:[%s2696 + $0x7a] sm:$0xff]
      %v7534 = vld [vmem:[%s2696 + $0x82] sm:$0xff]
      %v7535 = vld [vmem:[%s2696 + $0x92] sm:$0xff]
      %v7536 = vld [vmem:[%s2696 + $0x9a] sm:$0xff]
      %v7537 = vld [vmem:[%s2696 + $0xaa] sm:$0xff]
      %v7538 = vld [vmem:[%s2696 + $0xb2] sm:$0xff]
      %v7539 = vld [vmem:[%s2696 + $0xc2] sm:$0xff]
      %v7540 = vld [vmem:[%s2696 + $0xca] sm:$0xff]
      %v7541 = vld [vmem:[%s2696 + $0xda] sm:$0xff]
      %v7542 = vld [vmem:[%s2696 + $0xe2] sm:$0xff]
      %v7543 = vld [vmem:[%s2696 + $0xf2] sm:$0xff]
      %v7544 = vld [vmem:[%s2696 + $0xfa] sm:$0xff]
      %v7545 = vld [vmem:[%s2696 + $0x10a] sm:$0xff]
      %v7546 = vld [vmem:[%s2696 + $0x112] sm:$0xff]
      %v7547 = vld [vmem:[%s2696 + $0x122] sm:$0xff]
      %v7548 = vld [vmem:[%s2696 + $0x12a] sm:$0xff]
      %v7549 = vld [vmem:[%s2696 + $0x13a] sm:$0xff]
      %v7550 = vld [vmem:[%s2696 + $0x142] sm:$0xff]
      %v7551 = vld [vmem:[%s2696 + $0x152] sm:$0xff]
      %v7552 = vld [vmem:[%s2696 + $0x15a] sm:$0xff]
      %v7553 = vld [vmem:[%s2696 + $0x16a] sm:$0xff]
      %v7554 = vld [vmem:[%s2696 + $0x172] sm:$0xff]
      %v7555 = vld [vmem:[%s6636 + $0x2] sm:$0xff]
      %v7556 = vld [vmem:[%s6636 + $0xa] sm:$0xff]
      %v7557 = vld [vmem:[%s6636 + $0x1a] sm:$0xff]
      %v7558 = vld [vmem:[%s6636 + $0x22] sm:$0xff]
      %v7559 = vld [vmem:[%s6636 + $0x32] sm:$0xff]
      %v7560 = vld [vmem:[%s6636 + $0x3a] sm:$0xff]
      %v7561 = vld [vmem:[%s6636 + $0x4a] sm:$0xff]
      %v7562 = vld [vmem:[%s6636 + $0x52] sm:$0xff]
      %v7563 = vld [vmem:[%s6636 + $0x62] sm:$0xff]
      %v7564 = vld [vmem:[%s6636 + $0x6a] sm:$0xff]
      %v7565 = vld [vmem:[%s6636 + $0x7a] sm:$0xff]
      %v7566 = vld [vmem:[%s6636 + $0x82] sm:$0xff]
      %v7567 = vld [vmem:[%s6636 + $0x92] sm:$0xff]
      %v7568 = vld [vmem:[%s6636 + $0x9a] sm:$0xff]
      %v7569 = vld [vmem:[%s6636 + $0xaa] sm:$0xff]
      %v7570 = vld [vmem:[%s6636 + $0xb2] sm:$0xff]
      %v7571 = vld [vmem:[%s6636 + $0xc2] sm:$0xff]
      %v7572 = vld [vmem:[%s6636 + $0xca] sm:$0xff]
      %v7573 = vld [vmem:[%s6636 + $0xda] sm:$0xff]
      %v7574 = vld [vmem:[%s6636 + $0xe2] sm:$0xff]
      %v7575 = vld [vmem:[%s6636 + $0xf2] sm:$0xff]
      %v7576 = vld [vmem:[%s6636 + $0xfa] sm:$0xff]
      %v7577 = vld [vmem:[%s6636 + $0x10a] sm:$0xff]
      %v7578 = vld [vmem:[%s6636 + $0x112] sm:$0xff]
      %v7579 = vld [vmem:[%s6636 + $0x122] sm:$0xff]
      %v7580 = vld [vmem:[%s6636 + $0x12a] sm:$0xff]
      %v7581 = vld [vmem:[%s6636 + $0x13a] sm:$0xff]
      %v7582 = vld [vmem:[%s6636 + $0x142] sm:$0xff]
      %v7583 = vld [vmem:[%s6636 + $0x152] sm:$0xff]
      %v7584 = vld [vmem:[%s6636 + $0x15a] sm:$0xff]
      %v7585 = vld [vmem:[%s6636 + $0x16a] sm:$0xff]
      %v7586 = vld [vmem:[%s6636 + $0x172] sm:$0xff]
      %7619 = vrot.lane.b32.xlu0 %v6755, 4
      %v7620 = vpop.permute.xlu0 %7619
      %7621 = vrot.lane.b32.xlu0 %v6756, 4
      %v7622 = vpop.permute.xlu0 %7621
      %7623 = vrot.lane.b32.xlu0 %v6757, 4
      %v7624 = vpop.permute.xlu0 %7623
      %7625 = vrot.lane.b32.xlu0 %v6758, 4
      %v7626 = vpop.permute.xlu0 %7625
      %7627 = vrot.lane.b32.xlu0 %v6759, 4
      %v7628 = vpop.permute.xlu0 %7627
      %7629 = vrot.lane.b32.xlu0 %v6760, 4
      %v7630 = vpop.permute.xlu0 %7629
      %7631 = vrot.lane.b32.xlu0 %v6761, 4
      %v7632 = vpop.permute.xlu0 %7631
      %7633 = vrot.lane.b32.xlu0 %v6762, 4
      %v7634 = vpop.permute.xlu0 %7633
      %7635 = vrot.lane.b32.xlu0 %v6763, 4
      %v7636 = vpop.permute.xlu0 %7635
      %7637 = vrot.lane.b32.xlu0 %v6764, 4
      %v7638 = vpop.permute.xlu0 %7637
      %7639 = vrot.lane.b32.xlu0 %v6765, 4
      %v7640 = vpop.permute.xlu0 %7639
      %7641 = vrot.lane.b32.xlu0 %v6766, 4
      %v7642 = vpop.permute.xlu0 %7641
      %7643 = vrot.lane.b32.xlu0 %v6767, 4
      %v7644 = vpop.permute.xlu0 %7643
      %7645 = vrot.lane.b32.xlu0 %v6768, 4
      %v7646 = vpop.permute.xlu0 %7645
      %7647 = vrot.lane.b32.xlu0 %v6769, 4
      %v7648 = vpop.permute.xlu0 %7647
      %7649 = vrot.lane.b32.xlu0 %v6770, 4
      %v7650 = vpop.permute.xlu0 %7649
      %7651 = vrot.lane.b32.xlu0 %v6771, 4
      %v7652 = vpop.permute.xlu0 %7651
      %7653 = vrot.lane.b32.xlu0 %v6772, 4
      %v7654 = vpop.permute.xlu0 %7653
      %7655 = vrot.lane.b32.xlu0 %v6773, 4
      %v7656 = vpop.permute.xlu0 %7655
      %7657 = vrot.lane.b32.xlu0 %v6774, 4
      %v7658 = vpop.permute.xlu0 %7657
      %7659 = vrot.lane.b32.xlu0 %v6775, 4
      %v7660 = vpop.permute.xlu0 %7659
      %7661 = vrot.lane.b32.xlu0 %v6776, 4
      %v7662 = vpop.permute.xlu0 %7661
      %7663 = vrot.lane.b32.xlu0 %v6777, 4
      %v7664 = vpop.permute.xlu0 %7663
      %7665 = vrot.lane.b32.xlu0 %v6778, 4
      %v7666 = vpop.permute.xlu0 %7665
      %7667 = vrot.lane.b32.xlu0 %v6779, 4
      %v7668 = vpop.permute.xlu0 %7667
      %7669 = vrot.lane.b32.xlu0 %v6780, 4
      %v7670 = vpop.permute.xlu0 %7669
      %7671 = vrot.lane.b32.xlu0 %v6781, 4
      %v7672 = vpop.permute.xlu0 %7671
      %7673 = vrot.lane.b32.xlu0 %v6782, 4
      %v7674 = vpop.permute.xlu0 %7673
      %7675 = vrot.lane.b32.xlu0 %v6783, 4
      %v7676 = vpop.permute.xlu0 %7675
      %7677 = vrot.lane.b32.xlu0 %v6784, 4
      %v7678 = vpop.permute.xlu0 %7677
      %7679 = vrot.lane.b32.xlu0 %v6785, 4
      %v7680 = vpop.permute.xlu0 %7679
      %7681 = vrot.lane.b32.xlu0 %v6786, 4
      %v7682 = vpop.permute.xlu0 %7681
      %7747 = vrot.lane.b32.xlu0 %v6787, 20
      %v7748 = vpop.permute.xlu0 %7747
      %7749 = vrot.lane.b32.xlu0 %v6788, 20
      %v7750 = vpop.permute.xlu0 %7749
      %7751 = vrot.lane.b32.xlu0 %v6789, 20
      %v7752 = vpop.permute.xlu0 %7751
      %7753 = vrot.lane.b32.xlu0 %v6790, 20
      %v7754 = vpop.permute.xlu0 %7753
      %7755 = vrot.lane.b32.xlu0 %v6791, 20
      %v7756 = vpop.permute.xlu0 %7755
      %7757 = vrot.lane.b32.xlu0 %v6792, 20
      %v7758 = vpop.permute.xlu0 %7757
      %7759 = vrot.lane.b32.xlu0 %v6793, 20
      %v7760 = vpop.permute.xlu0 %7759
      %7761 = vrot.lane.b32.xlu0 %v6794, 20
      %v7762 = vpop.permute.xlu0 %7761
      %7763 = vrot.lane.b32.xlu0 %v6795, 20
      %v7764 = vpop.permute.xlu0 %7763
      %7765 = vrot.lane.b32.xlu0 %v6796, 20
      %v7766 = vpop.permute.xlu0 %7765
      %7767 = vrot.lane.b32.xlu0 %v6797, 20
      %v7768 = vpop.permute.xlu0 %7767
      %7769 = vrot.lane.b32.xlu0 %v6798, 20
      %v7770 = vpop.permute.xlu0 %7769
      %7771 = vrot.lane.b32.xlu0 %v6799, 20
      %v7772 = vpop.permute.xlu0 %7771
      %7773 = vrot.lane.b32.xlu0 %v6800, 20
      %v7774 = vpop.permute.xlu0 %7773
      %7775 = vrot.lane.b32.xlu0 %v6801, 20
      %v7776 = vpop.permute.xlu0 %7775
      %7777 = vrot.lane.b32.xlu0 %v6802, 20
      %v7778 = vpop.permute.xlu0 %7777
      %7779 = vrot.lane.b32.xlu0 %v6803, 20
      %v7780 = vpop.permute.xlu0 %7779
      %7781 = vrot.lane.b32.xlu0 %v6804, 20
      %v7782 = vpop.permute.xlu0 %7781
      %7783 = vrot.lane.b32.xlu0 %v6805, 20
      %v7784 = vpop.permute.xlu0 %7783
      %7785 = vrot.lane.b32.xlu0 %v6806, 20
      %v7786 = vpop.permute.xlu0 %7785
      %7787 = vrot.lane.b32.xlu0 %v6807, 20
      %v7788 = vpop.permute.xlu0 %7787
      %7789 = vrot.lane.b32.xlu0 %v6808, 20
      %v7790 = vpop.permute.xlu0 %7789
      %7791 = vrot.lane.b32.xlu0 %v6809, 20
      %v7792 = vpop.permute.xlu0 %7791
      %7793 = vrot.lane.b32.xlu0 %v6810, 20
      %v7794 = vpop.permute.xlu0 %7793
      %7795 = vrot.lane.b32.xlu0 %v6811, 20
      %v7796 = vpop.permute.xlu0 %7795
      %7797 = vrot.lane.b32.xlu0 %v6812, 20
      %v7798 = vpop.permute.xlu0 %7797
      %7799 = vrot.lane.b32.xlu0 %v6813, 20
      %v7800 = vpop.permute.xlu0 %7799
      %7801 = vrot.lane.b32.xlu0 %v6814, 20
      %v7802 = vpop.permute.xlu0 %7801
      %7803 = vrot.lane.b32.xlu0 %v6815, 20
      %v7804 = vpop.permute.xlu0 %7803
      %7805 = vrot.lane.b32.xlu0 %v6816, 20
      %v7806 = vpop.permute.xlu0 %7805
      %7807 = vrot.lane.b32.xlu0 %v6817, 20
      %v7808 = vpop.permute.xlu0 %7807
      %7809 = vrot.lane.b32.xlu0 %v6818, 20
      %v7810 = vpop.permute.xlu0 %7809
      %7875 = vrot.lane.b32.xlu0 %v6819, 36
      %v7876 = vpop.permute.xlu0 %7875
      %7877 = vrot.lane.b32.xlu0 %v6820, 36
      %v7878 = vpop.permute.xlu0 %7877
      %7879 = vrot.lane.b32.xlu0 %v6821, 36
      %v7880 = vpop.permute.xlu0 %7879
      %7881 = vrot.lane.b32.xlu0 %v6822, 36
      %v7882 = vpop.permute.xlu0 %7881
      %7883 = vrot.lane.b32.xlu0 %v6823, 36
      %v7884 = vpop.permute.xlu0 %7883
      %7885 = vrot.lane.b32.xlu0 %v6824, 36
      %v7886 = vpop.permute.xlu0 %7885
      %7887 = vrot.lane.b32.xlu0 %v6825, 36
      %v7888 = vpop.permute.xlu0 %7887
      %7889 = vrot.lane.b32.xlu0 %v6826, 36
      %v7890 = vpop.permute.xlu0 %7889
      %7891 = vrot.lane.b32.xlu0 %v6827, 36
      %v7892 = vpop.permute.xlu0 %7891
      %7893 = vrot.lane.b32.xlu0 %v6828, 36
      %v7894 = vpop.permute.xlu0 %7893
      %7895 = vrot.lane.b32.xlu0 %v6829, 36
      %v7896 = vpop.permute.xlu0 %7895
      %7897 = vrot.lane.b32.xlu0 %v6830, 36
      %v7898 = vpop.permute.xlu0 %7897
      %7899 = vrot.lane.b32.xlu0 %v6831, 36
      %v7900 = vpop.permute.xlu0 %7899
      %7901 = vrot.lane.b32.xlu0 %v6832, 36
      %v7902 = vpop.permute.xlu0 %7901
      %7903 = vrot.lane.b32.xlu0 %v6833, 36
      %v7904 = vpop.permute.xlu0 %7903
      %7905 = vrot.lane.b32.xlu0 %v6834, 36
      %v7906 = vpop.permute.xlu0 %7905
      %7907 = vrot.lane.b32.xlu0 %v6835, 36
      %v7908 = vpop.permute.xlu0 %7907
      %7909 = vrot.lane.b32.xlu0 %v6836, 36
      %v7910 = vpop.permute.xlu0 %7909
      %7911 = vrot.lane.b32.xlu0 %v6837, 36
      %v7912 = vpop.permute.xlu0 %7911
      %7913 = vrot.lane.b32.xlu0 %v6838, 36
      %v7914 = vpop.permute.xlu0 %7913
      %7915 = vrot.lane.b32.xlu0 %v6839, 36
      %v7916 = vpop.permute.xlu0 %7915
      %7917 = vrot.lane.b32.xlu0 %v6840, 36
      %v7918 = vpop.permute.xlu0 %7917
      %7919 = vrot.lane.b32.xlu0 %v6841, 36
      %v7920 = vpop.permute.xlu0 %7919
      %7921 = vrot.lane.b32.xlu0 %v6842, 36
      %v7922 = vpop.permute.xlu0 %7921
      %7923 = vrot.lane.b32.xlu0 %v6843, 36
      %v7924 = vpop.permute.xlu0 %7923
      %7925 = vrot.lane.b32.xlu0 %v6844, 36
      %v7926 = vpop.permute.xlu0 %7925
      %7927 = vrot.lane.b32.xlu0 %v6845, 36
      %v7928 = vpop.permute.xlu0 %7927
      %7929 = vrot.lane.b32.xlu0 %v6846, 36
      %v7930 = vpop.permute.xlu0 %7929
      %7931 = vrot.lane.b32.xlu0 %v6847, 36
      %v7932 = vpop.permute.xlu0 %7931
      %7933 = vrot.lane.b32.xlu0 %v6848, 36
      %v7934 = vpop.permute.xlu0 %7933
      %7935 = vrot.lane.b32.xlu0 %v6849, 36
      %v7936 = vpop.permute.xlu0 %7935
      %7937 = vrot.lane.b32.xlu0 %v6850, 36
      %v7938 = vpop.permute.xlu0 %7937
      %8003 = vrot.lane.b32.xlu0 %v6851, 40
      %v8004 = vpop.permute.xlu0 %8003
      %8005 = vrot.lane.b32.xlu0 %v6852, 40
      %v8006 = vpop.permute.xlu0 %8005
      %8007 = vrot.lane.b32.xlu0 %v6853, 40
      %v8008 = vpop.permute.xlu0 %8007
      %8009 = vrot.lane.b32.xlu0 %v6854, 40
      %v8010 = vpop.permute.xlu0 %8009
      %8011 = vrot.lane.b32.xlu0 %v6855, 40
      %v8012 = vpop.permute.xlu0 %8011
      %8013 = vrot.lane.b32.xlu0 %v6856, 40
      %v8014 = vpop.permute.xlu0 %8013
      %8015 = vrot.lane.b32.xlu0 %v6857, 40
      %v8016 = vpop.permute.xlu0 %8015
      %8017 = vrot.lane.b32.xlu0 %v6858, 40
      %v8018 = vpop.permute.xlu0 %8017
      %8019 = vrot.lane.b32.xlu0 %v6859, 40
      %v8020 = vpop.permute.xlu0 %8019
      %8021 = vrot.lane.b32.xlu0 %v6860, 40
      %v8022 = vpop.permute.xlu0 %8021
      %8023 = vrot.lane.b32.xlu0 %v6861, 40
      %v8024 = vpop.permute.xlu0 %8023
      %8025 = vrot.lane.b32.xlu0 %v6862, 40
      %v8026 = vpop.permute.xlu0 %8025
      %8027 = vrot.lane.b32.xlu0 %v6863, 40
      %v8028 = vpop.permute.xlu0 %8027
      %8029 = vrot.lane.b32.xlu0 %v6864, 40
      %v8030 = vpop.permute.xlu0 %8029
      %8031 = vrot.lane.b32.xlu0 %v6865, 40
      %v8032 = vpop.permute.xlu0 %8031
      %8033 = vrot.lane.b32.xlu0 %v6866, 40
      %v8034 = vpop.permute.xlu0 %8033
      %8035 = vrot.lane.b32.xlu0 %v6867, 40
      %v8036 = vpop.permute.xlu0 %8035
      %8037 = vrot.lane.b32.xlu0 %v6868, 40
      %v8038 = vpop.permute.xlu0 %8037
      %8039 = vrot.lane.b32.xlu0 %v6869, 40
      %v8040 = vpop.permute.xlu0 %8039
      %8041 = vrot.lane.b32.xlu0 %v6870, 40
      %v8042 = vpop.permute.xlu0 %8041
      %8043 = vrot.lane.b32.xlu0 %v6871, 40
      %v8044 = vpop.permute.xlu0 %8043
      %8045 = vrot.lane.b32.xlu0 %v6872, 40
      %v8046 = vpop.permute.xlu0 %8045
      %8047 = vrot.lane.b32.xlu0 %v6873, 40
      %v8048 = vpop.permute.xlu0 %8047
      %8049 = vrot.lane.b32.xlu0 %v6874, 40
      %v8050 = vpop.permute.xlu0 %8049
      %8051 = vrot.lane.b32.xlu0 %v6875, 40
      %v8052 = vpop.permute.xlu0 %8051
      %8053 = vrot.lane.b32.xlu0 %v6876, 40
      %v8054 = vpop.permute.xlu0 %8053
      %8055 = vrot.lane.b32.xlu0 %v6877, 40
      %v8056 = vpop.permute.xlu0 %8055
      %8057 = vrot.lane.b32.xlu0 %v6878, 40
      %v8058 = vpop.permute.xlu0 %8057
      %8059 = vrot.lane.b32.xlu0 %v6879, 40
      %v8060 = vpop.permute.xlu0 %8059
      %8061 = vrot.lane.b32.xlu0 %v6880, 40
      %v8062 = vpop.permute.xlu0 %8061
      %8063 = vrot.lane.b32.xlu0 %v6881, 40
      %v8064 = vpop.permute.xlu0 %8063
      %8065 = vrot.lane.b32.xlu0 %v6882, 40
      %v8066 = vpop.permute.xlu0 %8065
      %8131 = vrot.lane.b32.xlu0 %v6883, 56
      %v8132 = vpop.permute.xlu0 %8131
      %8133 = vrot.lane.b32.xlu0 %v6884, 56
      %v8134 = vpop.permute.xlu0 %8133
      %8135 = vrot.lane.b32.xlu0 %v6885, 56
      %v8136 = vpop.permute.xlu0 %8135
      %8137 = vrot.lane.b32.xlu0 %v6886, 56
      %v8138 = vpop.permute.xlu0 %8137
      %8139 = vrot.lane.b32.xlu0 %v6887, 56
      %v8140 = vpop.permute.xlu0 %8139
      %8141 = vrot.lane.b32.xlu0 %v6888, 56
      %v8142 = vpop.permute.xlu0 %8141
      %8143 = vrot.lane.b32.xlu0 %v6889, 56
      %v8144 = vpop.permute.xlu0 %8143
      %8145 = vrot.lane.b32.xlu0 %v6890, 56
      %v8146 = vpop.permute.xlu0 %8145
      %8147 = vrot.lane.b32.xlu0 %v6891, 56
      %v8148 = vpop.permute.xlu0 %8147
      %8149 = vrot.lane.b32.xlu0 %v6892, 56
      %v8150 = vpop.permute.xlu0 %8149
      %8151 = vrot.lane.b32.xlu0 %v6893, 56
      %v8152 = vpop.permute.xlu0 %8151
      %8153 = vrot.lane.b32.xlu0 %v6894, 56
      %v8154 = vpop.permute.xlu0 %8153
      %8155 = vrot.lane.b32.xlu0 %v6895, 56
      %v8156 = vpop.permute.xlu0 %8155
      %8157 = vrot.lane.b32.xlu0 %v6896, 56
      %v8158 = vpop.permute.xlu0 %8157
      %8159 = vrot.lane.b32.xlu0 %v6897, 56
      %v8160 = vpop.permute.xlu0 %8159
      %8161 = vrot.lane.b32.xlu0 %v6898, 56
      %v8162 = vpop.permute.xlu0 %8161
      %8163 = vrot.lane.b32.xlu0 %v6899, 56
      %v8164 = vpop.permute.xlu0 %8163
      %8165 = vrot.lane.b32.xlu0 %v6900, 56
      %v8166 = vpop.permute.xlu0 %8165
      %8167 = vrot.lane.b32.xlu0 %v6901, 56
      %v8168 = vpop.permute.xlu0 %8167
      %8169 = vrot.lane.b32.xlu0 %v6902, 56
      %v8170 = vpop.permute.xlu0 %8169
      %8171 = vrot.lane.b32.xlu0 %v6903, 56
      %v8172 = vpop.permute.xlu0 %8171
      %8173 = vrot.lane.b32.xlu0 %v6904, 56
      %v8174 = vpop.permute.xlu0 %8173
      %8175 = vrot.lane.b32.xlu0 %v6905, 56
      %v8176 = vpop.permute.xlu0 %8175
      %8177 = vrot.lane.b32.xlu0 %v6906, 56
      %v8178 = vpop.permute.xlu0 %8177
      %8179 = vrot.lane.b32.xlu0 %v6907, 56
      %v8180 = vpop.permute.xlu0 %8179
      %8181 = vrot.lane.b32.xlu0 %v6908, 56
      %v8182 = vpop.permute.xlu0 %8181
      %8183 = vrot.lane.b32.xlu0 %v6909, 56
      %v8184 = vpop.permute.xlu0 %8183
      %8185 = vrot.lane.b32.xlu0 %v6910, 56
      %v8186 = vpop.permute.xlu0 %8185
      %8187 = vrot.lane.b32.xlu0 %v6911, 56
      %v8188 = vpop.permute.xlu0 %8187
      %8189 = vrot.lane.b32.xlu0 %v6912, 56
      %v8190 = vpop.permute.xlu0 %8189
      %8191 = vrot.lane.b32.xlu0 %v6913, 56
      %v8192 = vpop.permute.xlu0 %8191
      %8193 = vrot.lane.b32.xlu0 %v6914, 56
      %v8194 = vpop.permute.xlu0 %8193
      %8259 = vrot.lane.b32.xlu0 %v6915, 72
      %v8260 = vpop.permute.xlu0 %8259
      %8261 = vrot.lane.b32.xlu0 %v6916, 72
      %v8262 = vpop.permute.xlu0 %8261
      %8263 = vrot.lane.b32.xlu0 %v6917, 72
      %v8264 = vpop.permute.xlu0 %8263
      %8265 = vrot.lane.b32.xlu0 %v6918, 72
      %v8266 = vpop.permute.xlu0 %8265
      %8267 = vrot.lane.b32.xlu0 %v6919, 72
      %v8268 = vpop.permute.xlu0 %8267
      %8269 = vrot.lane.b32.xlu0 %v6920, 72
      %v8270 = vpop.permute.xlu0 %8269
      %8271 = vrot.lane.b32.xlu0 %v6921, 72
      %v8272 = vpop.permute.xlu0 %8271
      %8273 = vrot.lane.b32.xlu0 %v6922, 72
      %v8274 = vpop.permute.xlu0 %8273
      %8275 = vrot.lane.b32.xlu0 %v6923, 72
      %v8276 = vpop.permute.xlu0 %8275
      %8277 = vrot.lane.b32.xlu0 %v6924, 72
      %v8278 = vpop.permute.xlu0 %8277
      %8279 = vrot.lane.b32.xlu0 %v6925, 72
      %v8280 = vpop.permute.xlu0 %8279
      %8281 = vrot.lane.b32.xlu0 %v6926, 72
      %v8282 = vpop.permute.xlu0 %8281
      %8283 = vrot.lane.b32.xlu0 %v6927, 72
      %v8284 = vpop.permute.xlu0 %8283
      %8285 = vrot.lane.b32.xlu0 %v6928, 72
      %v8286 = vpop.permute.xlu0 %8285
      %8287 = vrot.lane.b32.xlu0 %v6929, 72
      %v8288 = vpop.permute.xlu0 %8287
      %8289 = vrot.lane.b32.xlu0 %v6930, 72
      %v8290 = vpop.permute.xlu0 %8289
      %8291 = vrot.lane.b32.xlu0 %v6931, 72
      %v8292 = vpop.permute.xlu0 %8291
      %8293 = vrot.lane.b32.xlu0 %v6932, 72
      %v8294 = vpop.permute.xlu0 %8293
      %8295 = vrot.lane.b32.xlu0 %v6933, 72
      %v8296 = vpop.permute.xlu0 %8295
      %8297 = vrot.lane.b32.xlu0 %v6934, 72
      %v8298 = vpop.permute.xlu0 %8297
      %8299 = vrot.lane.b32.xlu0 %v6935, 72
      %v8300 = vpop.permute.xlu0 %8299
      %8301 = vrot.lane.b32.xlu0 %v6936, 72
      %v8302 = vpop.permute.xlu0 %8301
      %8303 = vrot.lane.b32.xlu0 %v6937, 72
      %v8304 = vpop.permute.xlu0 %8303
      %8305 = vrot.lane.b32.xlu0 %v6938, 72
      %v8306 = vpop.permute.xlu0 %8305
      %8307 = vrot.lane.b32.xlu0 %v6939, 72
      %v8308 = vpop.permute.xlu0 %8307
      %8309 = vrot.lane.b32.xlu0 %v6940, 72
      %v8310 = vpop.permute.xlu0 %8309
      %8311 = vrot.lane.b32.xlu0 %v6941, 72
      %v8312 = vpop.permute.xlu0 %8311
      %8313 = vrot.lane.b32.xlu0 %v6942, 72
      %v8314 = vpop.permute.xlu0 %8313
      %8315 = vrot.lane.b32.xlu0 %v6943, 72
      %v8316 = vpop.permute.xlu0 %8315
      %8317 = vrot.lane.b32.xlu0 %v6944, 72
      %v8318 = vpop.permute.xlu0 %8317
      %8319 = vrot.lane.b32.xlu0 %v6945, 72
      %v8320 = vpop.permute.xlu0 %8319
      %8321 = vrot.lane.b32.xlu0 %v6946, 72
      %v8322 = vpop.permute.xlu0 %8321
      %8387 = vrot.lane.b32.xlu0 %v6947, 76
      %v8388 = vpop.permute.xlu0 %8387
      %8389 = vrot.lane.b32.xlu0 %v6948, 76
      %v8390 = vpop.permute.xlu0 %8389
      %8391 = vrot.lane.b32.xlu0 %v6949, 76
      %v8392 = vpop.permute.xlu0 %8391
      %8393 = vrot.lane.b32.xlu0 %v6950, 76
      %v8394 = vpop.permute.xlu0 %8393
      %8395 = vrot.lane.b32.xlu0 %v6951, 76
      %v8396 = vpop.permute.xlu0 %8395
      %8397 = vrot.lane.b32.xlu0 %v6952, 76
      %v8398 = vpop.permute.xlu0 %8397
      %8399 = vrot.lane.b32.xlu0 %v6953, 76
      %v8400 = vpop.permute.xlu0 %8399
      %8401 = vrot.lane.b32.xlu0 %v6954, 76
      %v8402 = vpop.permute.xlu0 %8401
      %8403 = vrot.lane.b32.xlu0 %v6955, 76
      %v8404 = vpop.permute.xlu0 %8403
      %8405 = vrot.lane.b32.xlu0 %v6956, 76
      %v8406 = vpop.permute.xlu0 %8405
      %8407 = vrot.lane.b32.xlu0 %v6957, 76
      %v8408 = vpop.permute.xlu0 %8407
      %8409 = vrot.lane.b32.xlu0 %v6958, 76
      %v8410 = vpop.permute.xlu0 %8409
      %8411 = vrot.lane.b32.xlu0 %v6959, 76
      %v8412 = vpop.permute.xlu0 %8411
      %8413 = vrot.lane.b32.xlu0 %v6960, 76
      %v8414 = vpop.permute.xlu0 %8413
      %8415 = vrot.lane.b32.xlu0 %v6961, 76
      %v8416 = vpop.permute.xlu0 %8415
      %8417 = vrot.lane.b32.xlu0 %v6962, 76
      %v8418 = vpop.permute.xlu0 %8417
      %8419 = vrot.lane.b32.xlu0 %v6963, 76
      %v8420 = vpop.permute.xlu0 %8419
      %8421 = vrot.lane.b32.xlu0 %v6964, 76
      %v8422 = vpop.permute.xlu0 %8421
      %8423 = vrot.lane.b32.xlu0 %v6965, 76
      %v8424 = vpop.permute.xlu0 %8423
      %8425 = vrot.lane.b32.xlu0 %v6966, 76
      %v8426 = vpop.permute.xlu0 %8425
      %8427 = vrot.lane.b32.xlu0 %v6967, 76
      %v8428 = vpop.permute.xlu0 %8427
      %8429 = vrot.lane.b32.xlu0 %v6968, 76
      %v8430 = vpop.permute.xlu0 %8429
      %8431 = vrot.lane.b32.xlu0 %v6969, 76
      %v8432 = vpop.permute.xlu0 %8431
      %8433 = vrot.lane.b32.xlu0 %v6970, 76
      %v8434 = vpop.permute.xlu0 %8433
      %8435 = vrot.lane.b32.xlu0 %v6971, 76
      %v8436 = vpop.permute.xlu0 %8435
      %8437 = vrot.lane.b32.xlu0 %v6972, 76
      %v8438 = vpop.permute.xlu0 %8437
      %8439 = vrot.lane.b32.xlu0 %v6973, 76
      %v8440 = vpop.permute.xlu0 %8439
      %8441 = vrot.lane.b32.xlu0 %v6974, 76
      %v8442 = vpop.permute.xlu0 %8441
      %8443 = vrot.lane.b32.xlu0 %v6975, 76
      %v8444 = vpop.permute.xlu0 %8443
      %8445 = vrot.lane.b32.xlu0 %v6976, 76
      %v8446 = vpop.permute.xlu0 %8445
      %8447 = vrot.lane.b32.xlu0 %v6977, 76
      %v8448 = vpop.permute.xlu0 %8447
      %8449 = vrot.lane.b32.xlu0 %v6978, 76
      %v8450 = vpop.permute.xlu0 %8449
      %8515 = vrot.lane.b32.xlu0 %v6979, 92
      %v8516 = vpop.permute.xlu0 %8515
      %8517 = vrot.lane.b32.xlu0 %v6980, 92
      %v8518 = vpop.permute.xlu0 %8517
      %8519 = vrot.lane.b32.xlu0 %v6981, 92
      %v8520 = vpop.permute.xlu0 %8519
      %8521 = vrot.lane.b32.xlu0 %v6982, 92
      %v8522 = vpop.permute.xlu0 %8521
      %8523 = vrot.lane.b32.xlu0 %v6983, 92
      %v8524 = vpop.permute.xlu0 %8523
      %8525 = vrot.lane.b32.xlu0 %v6984, 92
      %v8526 = vpop.permute.xlu0 %8525
      %8527 = vrot.lane.b32.xlu0 %v6985, 92
      %v8528 = vpop.permute.xlu0 %8527
      %8529 = vrot.lane.b32.xlu0 %v6986, 92
      %v8530 = vpop.permute.xlu0 %8529
      %8531 = vrot.lane.b32.xlu0 %v6987, 92
      %v8532 = vpop.permute.xlu0 %8531
      %8533 = vrot.lane.b32.xlu0 %v6988, 92
      %v8534 = vpop.permute.xlu0 %8533
      %8535 = vrot.lane.b32.xlu0 %v6989, 92
      %v8536 = vpop.permute.xlu0 %8535
      %8537 = vrot.lane.b32.xlu0 %v6990, 92
      %v8538 = vpop.permute.xlu0 %8537
      %8539 = vrot.lane.b32.xlu0 %v6991, 92
      %v8540 = vpop.permute.xlu0 %8539
      %8541 = vrot.lane.b32.xlu0 %v6992, 92
      %v8542 = vpop.permute.xlu0 %8541
      %8543 = vrot.lane.b32.xlu0 %v6993, 92
      %v8544 = vpop.permute.xlu0 %8543
      %8545 = vrot.lane.b32.xlu0 %v6994, 92
      %v8546 = vpop.permute.xlu0 %8545
      %8547 = vrot.lane.b32.xlu0 %v6995, 92
      %v8548 = vpop.permute.xlu0 %8547
      %8549 = vrot.lane.b32.xlu0 %v6996, 92
      %v8550 = vpop.permute.xlu0 %8549
      %8551 = vrot.lane.b32.xlu0 %v6997, 92
      %v8552 = vpop.permute.xlu0 %8551
      %8553 = vrot.lane.b32.xlu0 %v6998, 92
      %v8554 = vpop.permute.xlu0 %8553
      %8555 = vrot.lane.b32.xlu0 %v6999, 92
      %v8556 = vpop.permute.xlu0 %8555
      %8557 = vrot.lane.b32.xlu0 %v7000, 92
      %v8558 = vpop.permute.xlu0 %8557
      %8559 = vrot.lane.b32.xlu0 %v7001, 92
      %v8560 = vpop.permute.xlu0 %8559
      %8561 = vrot.lane.b32.xlu0 %v7002, 92
      %v8562 = vpop.permute.xlu0 %8561
      %8563 = vrot.lane.b32.xlu0 %v7003, 92
      %v8564 = vpop.permute.xlu0 %8563
      %8565 = vrot.lane.b32.xlu0 %v7004, 92
      %v8566 = vpop.permute.xlu0 %8565
      %8567 = vrot.lane.b32.xlu0 %v7005, 92
      %v8568 = vpop.permute.xlu0 %8567
      %8569 = vrot.lane.b32.xlu0 %v7006, 92
      %v8570 = vpop.permute.xlu0 %8569
      %8571 = vrot.lane.b32.xlu0 %v7007, 92
      %v8572 = vpop.permute.xlu0 %8571
      %8573 = vrot.lane.b32.xlu0 %v7008, 92
      %v8574 = vpop.permute.xlu0 %8573
      %8575 = vrot.lane.b32.xlu0 %v7009, 92
      %v8576 = vpop.permute.xlu0 %8575
      %8577 = vrot.lane.b32.xlu0 %v7010, 92
      %v8578 = vpop.permute.xlu0 %8577
      %8643 = vrot.lane.b32.xlu0 %v7011, 108
      %v8644 = vpop.permute.xlu0 %8643
      %8645 = vrot.lane.b32.xlu0 %v7012, 108
      %v8646 = vpop.permute.xlu0 %8645
      %8647 = vrot.lane.b32.xlu0 %v7013, 108
      %v8648 = vpop.permute.xlu0 %8647
      %8649 = vrot.lane.b32.xlu0 %v7014, 108
      %v8650 = vpop.permute.xlu0 %8649
      %8651 = vrot.lane.b32.xlu0 %v7015, 108
      %v8652 = vpop.permute.xlu0 %8651
      %8653 = vrot.lane.b32.xlu0 %v7016, 108
      %v8654 = vpop.permute.xlu0 %8653
      %8655 = vrot.lane.b32.xlu0 %v7017, 108
      %v8656 = vpop.permute.xlu0 %8655
      %8657 = vrot.lane.b32.xlu0 %v7018, 108
      %v8658 = vpop.permute.xlu0 %8657
      %8659 = vrot.lane.b32.xlu0 %v7019, 108
      %v8660 = vpop.permute.xlu0 %8659
      %8661 = vrot.lane.b32.xlu0 %v7020, 108
      %v8662 = vpop.permute.xlu0 %8661
      %8663 = vrot.lane.b32.xlu0 %v7021, 108
      %v8664 = vpop.permute.xlu0 %8663
      %8665 = vrot.lane.b32.xlu0 %v7022, 108
      %v8666 = vpop.permute.xlu0 %8665
      %8667 = vrot.lane.b32.xlu0 %v7023, 108
      %v8668 = vpop.permute.xlu0 %8667
      %8669 = vrot.lane.b32.xlu0 %v7024, 108
      %v8670 = vpop.permute.xlu0 %8669
      %8671 = vrot.lane.b32.xlu0 %v7025, 108
      %v8672 = vpop.permute.xlu0 %8671
      %8673 = vrot.lane.b32.xlu0 %v7026, 108
      %v8674 = vpop.permute.xlu0 %8673
      %8675 = vrot.lane.b32.xlu0 %v7027, 108
      %v8676 = vpop.permute.xlu0 %8675
      %8677 = vrot.lane.b32.xlu0 %v7028, 108
      %v8678 = vpop.permute.xlu0 %8677
      %8679 = vrot.lane.b32.xlu0 %v7029, 108
      %v8680 = vpop.permute.xlu0 %8679
      %8681 = vrot.lane.b32.xlu0 %v7030, 108
      %v8682 = vpop.permute.xlu0 %8681
      %8683 = vrot.lane.b32.xlu0 %v7031, 108
      %v8684 = vpop.permute.xlu0 %8683
      %8685 = vrot.lane.b32.xlu0 %v7032, 108
      %v8686 = vpop.permute.xlu0 %8685
      %8687 = vrot.lane.b32.xlu0 %v7033, 108
      %v8688 = vpop.permute.xlu0 %8687
      %8689 = vrot.lane.b32.xlu0 %v7034, 108
      %v8690 = vpop.permute.xlu0 %8689
      %8691 = vrot.lane.b32.xlu0 %v7035, 108
      %v8692 = vpop.permute.xlu0 %8691
      %8693 = vrot.lane.b32.xlu0 %v7036, 108
      %v8694 = vpop.permute.xlu0 %8693
      %8695 = vrot.lane.b32.xlu0 %v7037, 108
      %v8696 = vpop.permute.xlu0 %8695
      %8697 = vrot.lane.b32.xlu0 %v7038, 108
      %v8698 = vpop.permute.xlu0 %8697
      %8699 = vrot.lane.b32.xlu0 %v7039, 108
      %v8700 = vpop.permute.xlu0 %8699
      %8701 = vrot.lane.b32.xlu0 %v7040, 108
      %v8702 = vpop.permute.xlu0 %8701
      %8703 = vrot.lane.b32.xlu0 %v7041, 108
      %v8704 = vpop.permute.xlu0 %8703
      %8705 = vrot.lane.b32.xlu0 %v7042, 108
      %v8706 = vpop.permute.xlu0 %8705
      %8771 = vrot.lane.b32.xlu0 %v7043, 112
      %v8772 = vpop.permute.xlu0 %8771
      %8773 = vrot.lane.b32.xlu0 %v7044, 112
      %v8774 = vpop.permute.xlu0 %8773
      %8775 = vrot.lane.b32.xlu0 %v7045, 112
      %v8776 = vpop.permute.xlu0 %8775
      %8777 = vrot.lane.b32.xlu0 %v7046, 112
      %v8778 = vpop.permute.xlu0 %8777
      %8779 = vrot.lane.b32.xlu0 %v7047, 112
      %v8780 = vpop.permute.xlu0 %8779
      %8781 = vrot.lane.b32.xlu0 %v7048, 112
      %v8782 = vpop.permute.xlu0 %8781
      %8783 = vrot.lane.b32.xlu0 %v7049, 112
      %v8784 = vpop.permute.xlu0 %8783
      %8785 = vrot.lane.b32.xlu0 %v7050, 112
      %v8786 = vpop.permute.xlu0 %8785
      %8787 = vrot.lane.b32.xlu0 %v7051, 112
      %v8788 = vpop.permute.xlu0 %8787
      %8789 = vrot.lane.b32.xlu0 %v7052, 112
      %v8790 = vpop.permute.xlu0 %8789
      %8791 = vrot.lane.b32.xlu0 %v7053, 112
      %v8792 = vpop.permute.xlu0 %8791
      %8793 = vrot.lane.b32.xlu0 %v7054, 112
      %v8794 = vpop.permute.xlu0 %8793
      %8795 = vrot.lane.b32.xlu0 %v7055, 112
      %v8796 = vpop.permute.xlu0 %8795
      %8797 = vrot.lane.b32.xlu0 %v7056, 112
      %v8798 = vpop.permute.xlu0 %8797
      %8799 = vrot.lane.b32.xlu0 %v7057, 112
      %v8800 = vpop.permute.xlu0 %8799
      %8801 = vrot.lane.b32.xlu0 %v7058, 112
      %v8802 = vpop.permute.xlu0 %8801
      %8803 = vrot.lane.b32.xlu0 %v7059, 112
      %v8804 = vpop.permute.xlu0 %8803
      %8805 = vrot.lane.b32.xlu0 %v7060, 112
      %v8806 = vpop.permute.xlu0 %8805
      %8807 = vrot.lane.b32.xlu0 %v7061, 112
      %v8808 = vpop.permute.xlu0 %8807
      %8809 = vrot.lane.b32.xlu0 %v7062, 112
      %v8810 = vpop.permute.xlu0 %8809
      %8811 = vrot.lane.b32.xlu0 %v7063, 112
      %v8812 = vpop.permute.xlu0 %8811
      %8813 = vrot.lane.b32.xlu0 %v7064, 112
      %v8814 = vpop.permute.xlu0 %8813
      %8815 = vrot.lane.b32.xlu0 %v7065, 112
      %v8816 = vpop.permute.xlu0 %8815
      %8817 = vrot.lane.b32.xlu0 %v7066, 112
      %v8818 = vpop.permute.xlu0 %8817
      %8819 = vrot.lane.b32.xlu0 %v7067, 112
      %v8820 = vpop.permute.xlu0 %8819
      %8821 = vrot.lane.b32.xlu0 %v7068, 112
      %v8822 = vpop.permute.xlu0 %8821
      %8823 = vrot.lane.b32.xlu0 %v7069, 112
      %v8824 = vpop.permute.xlu0 %8823
      %8825 = vrot.lane.b32.xlu0 %v7070, 112
      %v8826 = vpop.permute.xlu0 %8825
      %8827 = vrot.lane.b32.xlu0 %v7071, 112
      %v8828 = vpop.permute.xlu0 %8827
      %8829 = vrot.lane.b32.xlu0 %v7072, 112
      %v8830 = vpop.permute.xlu0 %8829
      %8831 = vrot.lane.b32.xlu0 %v7073, 112
      %v8832 = vpop.permute.xlu0 %8831
      %8833 = vrot.lane.b32.xlu0 %v7074, 112
      %v8834 = vpop.permute.xlu0 %8833
      %8899 = vrot.lane.b32.xlu0 %v7107, 16
      %v8900 = vpop.permute.xlu0 %8899
      %8901 = vrot.lane.b32.xlu0 %v7108, 16
      %v8902 = vpop.permute.xlu0 %8901
      %8903 = vrot.lane.b32.xlu0 %v7109, 16
      %v8904 = vpop.permute.xlu0 %8903
      %8905 = vrot.lane.b32.xlu0 %v7110, 16
      %v8906 = vpop.permute.xlu0 %8905
      %8907 = vrot.lane.b32.xlu0 %v7111, 16
      %v8908 = vpop.permute.xlu0 %8907
      %8909 = vrot.lane.b32.xlu0 %v7112, 16
      %v8910 = vpop.permute.xlu0 %8909
      %8911 = vrot.lane.b32.xlu0 %v7113, 16
      %v8912 = vpop.permute.xlu0 %8911
      %8913 = vrot.lane.b32.xlu0 %v7114, 16
      %v8914 = vpop.permute.xlu0 %8913
      %8915 = vrot.lane.b32.xlu0 %v7115, 16
      %v8916 = vpop.permute.xlu0 %8915
      %8917 = vrot.lane.b32.xlu0 %v7116, 16
      %v8918 = vpop.permute.xlu0 %8917
      %8919 = vrot.lane.b32.xlu0 %v7117, 16
      %v8920 = vpop.permute.xlu0 %8919
      %8921 = vrot.lane.b32.xlu0 %v7118, 16
      %v8922 = vpop.permute.xlu0 %8921
      %8923 = vrot.lane.b32.xlu0 %v7119, 16
      %v8924 = vpop.permute.xlu0 %8923
      %8925 = vrot.lane.b32.xlu0 %v7120, 16
      %v8926 = vpop.permute.xlu0 %8925
      %8927 = vrot.lane.b32.xlu0 %v7121, 16
      %v8928 = vpop.permute.xlu0 %8927
      %8929 = vrot.lane.b32.xlu0 %v7122, 16
      %v8930 = vpop.permute.xlu0 %8929
      %8931 = vrot.lane.b32.xlu0 %v7123, 16
      %v8932 = vpop.permute.xlu0 %8931
      %8933 = vrot.lane.b32.xlu0 %v7124, 16
      %v8934 = vpop.permute.xlu0 %8933
      %8935 = vrot.lane.b32.xlu0 %v7125, 16
      %v8936 = vpop.permute.xlu0 %8935
      %8937 = vrot.lane.b32.xlu0 %v7126, 16
      %v8938 = vpop.permute.xlu0 %8937
      %8939 = vrot.lane.b32.xlu0 %v7127, 16
      %v8940 = vpop.permute.xlu0 %8939
      %8941 = vrot.lane.b32.xlu0 %v7128, 16
      %v8942 = vpop.permute.xlu0 %8941
      %8943 = vrot.lane.b32.xlu0 %v7129, 16
      %v8944 = vpop.permute.xlu0 %8943
      %8945 = vrot.lane.b32.xlu0 %v7130, 16
      %v8946 = vpop.permute.xlu0 %8945
      %8947 = vrot.lane.b32.xlu0 %v7131, 16
      %v8948 = vpop.permute.xlu0 %8947
      %8949 = vrot.lane.b32.xlu0 %v7132, 16
      %v8950 = vpop.permute.xlu0 %8949
      %8951 = vrot.lane.b32.xlu0 %v7133, 16
      %v8952 = vpop.permute.xlu0 %8951
      %8953 = vrot.lane.b32.xlu0 %v7134, 16
      %v8954 = vpop.permute.xlu0 %8953
      %8955 = vrot.lane.b32.xlu0 %v7135, 16
      %v8956 = vpop.permute.xlu0 %8955
      %8957 = vrot.lane.b32.xlu0 %v7136, 16
      %v8958 = vpop.permute.xlu0 %8957
      %8959 = vrot.lane.b32.xlu0 %v7137, 16
      %v8960 = vpop.permute.xlu0 %8959
      %8961 = vrot.lane.b32.xlu0 %v7138, 16
      %v8962 = vpop.permute.xlu0 %8961
      %9027 = vrot.lane.b32.xlu0 %v7139, 20
      %v9028 = vpop.permute.xlu0 %9027
      %9029 = vrot.lane.b32.xlu0 %v7140, 20
      %v9030 = vpop.permute.xlu0 %9029
      %9031 = vrot.lane.b32.xlu0 %v7141, 20
      %v9032 = vpop.permute.xlu0 %9031
      %9033 = vrot.lane.b32.xlu0 %v7142, 20
      %v9034 = vpop.permute.xlu0 %9033
      %9035 = vrot.lane.b32.xlu0 %v7143, 20
      %v9036 = vpop.permute.xlu0 %9035
      %9037 = vrot.lane.b32.xlu0 %v7144, 20
      %v9038 = vpop.permute.xlu0 %9037
      %9039 = vrot.lane.b32.xlu0 %v7145, 20
      %v9040 = vpop.permute.xlu0 %9039
      %9041 = vrot.lane.b32.xlu0 %v7146, 20
      %v9042 = vpop.permute.xlu0 %9041
      %9043 = vrot.lane.b32.xlu0 %v7147, 20
      %v9044 = vpop.permute.xlu0 %9043
      %9045 = vrot.lane.b32.xlu0 %v7148, 20
      %v9046 = vpop.permute.xlu0 %9045
      %9047 = vrot.lane.b32.xlu0 %v7149, 20
      %v9048 = vpop.permute.xlu0 %9047
      %9049 = vrot.lane.b32.xlu0 %v7150, 20
      %v9050 = vpop.permute.xlu0 %9049
      %9051 = vrot.lane.b32.xlu0 %v7151, 20
      %v9052 = vpop.permute.xlu0 %9051
      %9053 = vrot.lane.b32.xlu0 %v7152, 20
      %v9054 = vpop.permute.xlu0 %9053
      %9055 = vrot.lane.b32.xlu0 %v7153, 20
      %v9056 = vpop.permute.xlu0 %9055
      %9057 = vrot.lane.b32.xlu0 %v7154, 20
      %v9058 = vpop.permute.xlu0 %9057
      %9059 = vrot.lane.b32.xlu0 %v7155, 20
      %v9060 = vpop.permute.xlu0 %9059
      %9061 = vrot.lane.b32.xlu0 %v7156, 20
      %v9062 = vpop.permute.xlu0 %9061
      %9063 = vrot.lane.b32.xlu0 %v7157, 20
      %v9064 = vpop.permute.xlu0 %9063
      %9065 = vrot.lane.b32.xlu0 %v7158, 20
      %v9066 = vpop.permute.xlu0 %9065
      %9067 = vrot.lane.b32.xlu0 %v7159, 20
      %v9068 = vpop.permute.xlu0 %9067
      %9069 = vrot.lane.b32.xlu0 %v7160, 20
      %v9070 = vpop.permute.xlu0 %9069
      %9071 = vrot.lane.b32.xlu0 %v7161, 20
      %v9072 = vpop.permute.xlu0 %9071
      %9073 = vrot.lane.b32.xlu0 %v7162, 20
      %v9074 = vpop.permute.xlu0 %9073
      %9075 = vrot.lane.b32.xlu0 %v7163, 20
      %v9076 = vpop.permute.xlu0 %9075
      %9077 = vrot.lane.b32.xlu0 %v7164, 20
      %v9078 = vpop.permute.xlu0 %9077
      %9079 = vrot.lane.b32.xlu0 %v7165, 20
      %v9080 = vpop.permute.xlu0 %9079
      %9081 = vrot.lane.b32.xlu0 %v7166, 20
      %v9082 = vpop.permute.xlu0 %9081
      %9083 = vrot.lane.b32.xlu0 %v7167, 20
      %v9084 = vpop.permute.xlu0 %9083
      %9085 = vrot.lane.b32.xlu0 %v7168, 20
      %v9086 = vpop.permute.xlu0 %9085
      %9087 = vrot.lane.b32.xlu0 %v7169, 20
      %v9088 = vpop.permute.xlu0 %9087
      %9089 = vrot.lane.b32.xlu0 %v7170, 20
      %v9090 = vpop.permute.xlu0 %9089
      %9155 = vrot.lane.b32.xlu0 %v7171, 36
      %v9156 = vpop.permute.xlu0 %9155
      %9157 = vrot.lane.b32.xlu0 %v7172, 36
      %v9158 = vpop.permute.xlu0 %9157
      %9159 = vrot.lane.b32.xlu0 %v7173, 36
      %v9160 = vpop.permute.xlu0 %9159
      %9161 = vrot.lane.b32.xlu0 %v7174, 36
      %v9162 = vpop.permute.xlu0 %9161
      %9163 = vrot.lane.b32.xlu0 %v7175, 36
      %v9164 = vpop.permute.xlu0 %9163
      %9165 = vrot.lane.b32.xlu0 %v7176, 36
      %v9166 = vpop.permute.xlu0 %9165
      %9167 = vrot.lane.b32.xlu0 %v7177, 36
      %v9168 = vpop.permute.xlu0 %9167
      %9169 = vrot.lane.b32.xlu0 %v7178, 36
      %v9170 = vpop.permute.xlu0 %9169
      %9171 = vrot.lane.b32.xlu0 %v7179, 36
      %v9172 = vpop.permute.xlu0 %9171
      %9173 = vrot.lane.b32.xlu0 %v7180, 36
      %v9174 = vpop.permute.xlu0 %9173
      %9175 = vrot.lane.b32.xlu0 %v7181, 36
      %v9176 = vpop.permute.xlu0 %9175
      %9177 = vrot.lane.b32.xlu0 %v7182, 36
      %v9178 = vpop.permute.xlu0 %9177
      %9179 = vrot.lane.b32.xlu0 %v7183, 36
      %v9180 = vpop.permute.xlu0 %9179
      %9181 = vrot.lane.b32.xlu0 %v7184, 36
      %v9182 = vpop.permute.xlu0 %9181
      %9183 = vrot.lane.b32.xlu0 %v7185, 36
      %v9184 = vpop.permute.xlu0 %9183
      %9185 = vrot.lane.b32.xlu0 %v7186, 36
      %v9186 = vpop.permute.xlu0 %9185
      %9187 = vrot.lane.b32.xlu0 %v7187, 36
      %v9188 = vpop.permute.xlu0 %9187
      %9189 = vrot.lane.b32.xlu0 %v7188, 36
      %v9190 = vpop.permute.xlu0 %9189
      %9191 = vrot.lane.b32.xlu0 %v7189, 36
      %v9192 = vpop.permute.xlu0 %9191
      %9193 = vrot.lane.b32.xlu0 %v7190, 36
      %v9194 = vpop.permute.xlu0 %9193
      %9195 = vrot.lane.b32.xlu0 %v7191, 36
      %v9196 = vpop.permute.xlu0 %9195
      %9197 = vrot.lane.b32.xlu0 %v7192, 36
      %v9198 = vpop.permute.xlu0 %9197
      %9199 = vrot.lane.b32.xlu0 %v7193, 36
      %v9200 = vpop.permute.xlu0 %9199
      %9201 = vrot.lane.b32.xlu0 %v7194, 36
      %v9202 = vpop.permute.xlu0 %9201
      %9203 = vrot.lane.b32.xlu0 %v7195, 36
      %v9204 = vpop.permute.xlu0 %9203
      %9205 = vrot.lane.b32.xlu0 %v7196, 36
      %v9206 = vpop.permute.xlu0 %9205
      %9207 = vrot.lane.b32.xlu0 %v7197, 36
      %v9208 = vpop.permute.xlu0 %9207
      %9209 = vrot.lane.b32.xlu0 %v7198, 36
      %v9210 = vpop.permute.xlu0 %9209
      %9211 = vrot.lane.b32.xlu0 %v7199, 36
      %v9212 = vpop.permute.xlu0 %9211
      %9213 = vrot.lane.b32.xlu0 %v7200, 36
      %v9214 = vpop.permute.xlu0 %9213
      %9215 = vrot.lane.b32.xlu0 %v7201, 36
      %v9216 = vpop.permute.xlu0 %9215
      %9217 = vrot.lane.b32.xlu0 %v7202, 36
      %v9218 = vpop.permute.xlu0 %9217
      %9283 = vrot.lane.b32.xlu0 %v7203, 52
      %v9284 = vpop.permute.xlu0 %9283
      %9285 = vrot.lane.b32.xlu0 %v7204, 52
      %v9286 = vpop.permute.xlu0 %9285
      %9287 = vrot.lane.b32.xlu0 %v7205, 52
      %v9288 = vpop.permute.xlu0 %9287
      %9289 = vrot.lane.b32.xlu0 %v7206, 52
      %v9290 = vpop.permute.xlu0 %9289
      %9291 = vrot.lane.b32.xlu0 %v7207, 52
      %v9292 = vpop.permute.xlu0 %9291
      %9293 = vrot.lane.b32.xlu0 %v7208, 52
      %v9294 = vpop.permute.xlu0 %9293
      %9295 = vrot.lane.b32.xlu0 %v7209, 52
      %v9296 = vpop.permute.xlu0 %9295
      %9297 = vrot.lane.b32.xlu0 %v7210, 52
      %v9298 = vpop.permute.xlu0 %9297
      %9299 = vrot.lane.b32.xlu0 %v7211, 52
      %v9300 = vpop.permute.xlu0 %9299
      %9301 = vrot.lane.b32.xlu0 %v7212, 52
      %v9302 = vpop.permute.xlu0 %9301
      %9303 = vrot.lane.b32.xlu0 %v7213, 52
      %v9304 = vpop.permute.xlu0 %9303
      %9305 = vrot.lane.b32.xlu0 %v7214, 52
      %v9306 = vpop.permute.xlu0 %9305
      %9307 = vrot.lane.b32.xlu0 %v7215, 52
      %v9308 = vpop.permute.xlu0 %9307
      %9309 = vrot.lane.b32.xlu0 %v7216, 52
      %v9310 = vpop.permute.xlu0 %9309
      %9311 = vrot.lane.b32.xlu0 %v7217, 52
      %v9312 = vpop.permute.xlu0 %9311
      %9313 = vrot.lane.b32.xlu0 %v7218, 52
      %v9314 = vpop.permute.xlu0 %9313
      %9315 = vrot.lane.b32.xlu0 %v7219, 52
      %v9316 = vpop.permute.xlu0 %9315
      %9317 = vrot.lane.b32.xlu0 %v7220, 52
      %v9318 = vpop.permute.xlu0 %9317
      %9319 = vrot.lane.b32.xlu0 %v7221, 52
      %v9320 = vpop.permute.xlu0 %9319
      %9321 = vrot.lane.b32.xlu0 %v7222, 52
      %v9322 = vpop.permute.xlu0 %9321
      %9323 = vrot.lane.b32.xlu0 %v7223, 52
      %v9324 = vpop.permute.xlu0 %9323
      %9325 = vrot.lane.b32.xlu0 %v7224, 52
      %v9326 = vpop.permute.xlu0 %9325
      %9327 = vrot.lane.b32.xlu0 %v7225, 52
      %v9328 = vpop.permute.xlu0 %9327
      %9329 = vrot.lane.b32.xlu0 %v7226, 52
      %v9330 = vpop.permute.xlu0 %9329
      %9331 = vrot.lane.b32.xlu0 %v7227, 52
      %v9332 = vpop.permute.xlu0 %9331
      %9333 = vrot.lane.b32.xlu0 %v7228, 52
      %v9334 = vpop.permute.xlu0 %9333
      %9335 = vrot.lane.b32.xlu0 %v7229, 52
      %v9336 = vpop.permute.xlu0 %9335
      %9337 = vrot.lane.b32.xlu0 %v7230, 52
      %v9338 = vpop.permute.xlu0 %9337
      %9339 = vrot.lane.b32.xlu0 %v7231, 52
      %v9340 = vpop.permute.xlu0 %9339
      %9341 = vrot.lane.b32.xlu0 %v7232, 52
      %v9342 = vpop.permute.xlu0 %9341
      %9343 = vrot.lane.b32.xlu0 %v7233, 52
      %v9344 = vpop.permute.xlu0 %9343
      %9345 = vrot.lane.b32.xlu0 %v7234, 52
      %v9346 = vpop.permute.xlu0 %9345
      %v9379 = vsel %vm467, %v6723, %v7620
      %v9380 = vsel %vm467, %v6724, %v7622
      %v9381 = vsel %vm467, %v6725, %v7624
      %v9382 = vsel %vm467, %v6726, %v7626
      %v9383 = vsel %vm467, %v6727, %v7628
      %v9384 = vsel %vm467, %v6728, %v7630
      %v9385 = vsel %vm467, %v6729, %v7632
      %v9386 = vsel %vm467, %v6730, %v7634
      %v9387 = vsel %vm467, %v6731, %v7636
      %v9388 = vsel %vm467, %v6732, %v7638
      %v9389 = vsel %vm467, %v6733, %v7640
      %v9390 = vsel %vm467, %v6734, %v7642
      %v9391 = vsel %vm467, %v6735, %v7644
      %v9392 = vsel %vm467, %v6736, %v7646
      %v9393 = vsel %vm467, %v6737, %v7648
      %v9394 = vsel %vm467, %v6738, %v7650
      %v9395 = vsel %vm467, %v6739, %v7652
      %v9396 = vsel %vm467, %v6740, %v7654
      %v9397 = vsel %vm467, %v6741, %v7656
      %v9398 = vsel %vm467, %v6742, %v7658
      %v9399 = vsel %vm467, %v6743, %v7660
      %v9400 = vsel %vm467, %v6744, %v7662
      %v9401 = vsel %vm467, %v6745, %v7664
      %v9402 = vsel %vm467, %v6746, %v7666
      %v9403 = vsel %vm467, %v6747, %v7668
      %v9404 = vsel %vm467, %v6748, %v7670
      %v9405 = vsel %vm467, %v6749, %v7672
      %v9406 = vsel %vm467, %v6750, %v7674
      %v9407 = vsel %vm467, %v6751, %v7676
      %v9408 = vsel %vm467, %v6752, %v7678
      %v9409 = vsel %vm467, %v6753, %v7680
      %v9410 = vsel %vm467, %v6754, %v7682
      %v9411 = vsel %vm2038, %v9379, %v7748
      %v9412 = vsel %vm2038, %v9380, %v7750
      %v9413 = vsel %vm2038, %v9381, %v7752
      %v9414 = vsel %vm2038, %v9382, %v7754
      %v9415 = vsel %vm2038, %v9383, %v7756
      %v9416 = vsel %vm2038, %v9384, %v7758
      %v9417 = vsel %vm2038, %v9385, %v7760
      %v9418 = vsel %vm2038, %v9386, %v7762
      %v9419 = vsel %vm2038, %v9387, %v7764
      %v9420 = vsel %vm2038, %v9388, %v7766
      %v9421 = vsel %vm2038, %v9389, %v7768
      %v9422 = vsel %vm2038, %v9390, %v7770
      %v9423 = vsel %vm2038, %v9391, %v7772
      %v9424 = vsel %vm2038, %v9392, %v7774
      %v9425 = vsel %vm2038, %v9393, %v7776
      %v9426 = vsel %vm2038, %v9394, %v7778
      %v9427 = vsel %vm2038, %v9395, %v7780
      %v9428 = vsel %vm2038, %v9396, %v7782
      %v9429 = vsel %vm2038, %v9397, %v7784
      %v9430 = vsel %vm2038, %v9398, %v7786
      %v9431 = vsel %vm2038, %v9399, %v7788
      %v9432 = vsel %vm2038, %v9400, %v7790
      %v9433 = vsel %vm2038, %v9401, %v7792
      %v9434 = vsel %vm2038, %v9402, %v7794
      %v9435 = vsel %vm2038, %v9403, %v7796
      %v9436 = vsel %vm2038, %v9404, %v7798
      %v9437 = vsel %vm2038, %v9405, %v7800
      %v9438 = vsel %vm2038, %v9406, %v7802
      %v9439 = vsel %vm2038, %v9407, %v7804
      %v9440 = vsel %vm2038, %v9408, %v7806
      %v9441 = vsel %vm2038, %v9409, %v7808
      %v9442 = vsel %vm2038, %v9410, %v7810
      %v9443 = vsel %vm2184, %v9411, %v7876
      %v9444 = vsel %vm2184, %v9412, %v7878
      %v9445 = vsel %vm2184, %v9413, %v7880
      %v9446 = vsel %vm2184, %v9414, %v7882
      %v9447 = vsel %vm2184, %v9415, %v7884
      %v9448 = vsel %vm2184, %v9416, %v7886
      %v9449 = vsel %vm2184, %v9417, %v7888
      %v9450 = vsel %vm2184, %v9418, %v7890
      %v9451 = vsel %vm2184, %v9419, %v7892
      %v9452 = vsel %vm2184, %v9420, %v7894
      %v9453 = vsel %vm2184, %v9421, %v7896
      %v9454 = vsel %vm2184, %v9422, %v7898
      %v9455 = vsel %vm2184, %v9423, %v7900
      %v9456 = vsel %vm2184, %v9424, %v7902
      %v9457 = vsel %vm2184, %v9425, %v7904
      %v9458 = vsel %vm2184, %v9426, %v7906
      %v9459 = vsel %vm2184, %v9427, %v7908
      %v9460 = vsel %vm2184, %v9428, %v7910
      %v9461 = vsel %vm2184, %v9429, %v7912
      %v9462 = vsel %vm2184, %v9430, %v7914
      %v9463 = vsel %vm2184, %v9431, %v7916
      %v9464 = vsel %vm2184, %v9432, %v7918
      %v9465 = vsel %vm2184, %v9433, %v7920
      %v9466 = vsel %vm2184, %v9434, %v7922
      %v9467 = vsel %vm2184, %v9435, %v7924
      %v9468 = vsel %vm2184, %v9436, %v7926
      %v9469 = vsel %vm2184, %v9437, %v7928
      %v9470 = vsel %vm2184, %v9438, %v7930
      %v9471 = vsel %vm2184, %v9439, %v7932
      %v9472 = vsel %vm2184, %v9440, %v7934
      %v9473 = vsel %vm2184, %v9441, %v7936
      %v9474 = vsel %vm2184, %v9442, %v7938
      %v9475 = vsel %vm5377, %v9443, %v8004
      %v9476 = vsel %vm5377, %v9444, %v8006
      %v9477 = vsel %vm5377, %v9445, %v8008
      %v9478 = vsel %vm5377, %v9446, %v8010
      %v9479 = vsel %vm5377, %v9447, %v8012
      %v9480 = vsel %vm5377, %v9448, %v8014
      %v9481 = vsel %vm5377, %v9449, %v8016
      %v9482 = vsel %vm5377, %v9450, %v8018
      %v9483 = vsel %vm5377, %v9451, %v8020
      %v9484 = vsel %vm5377, %v9452, %v8022
      %v9485 = vsel %vm5377, %v9453, %v8024
      %v9486 = vsel %vm5377, %v9454, %v8026
      %v9487 = vsel %vm5377, %v9455, %v8028
      %v9488 = vsel %vm5377, %v9456, %v8030
      %v9489 = vsel %vm5377, %v9457, %v8032
      %v9490 = vsel %vm5377, %v9458, %v8034
      %v9491 = vsel %vm5377, %v9459, %v8036
      %v9492 = vsel %vm5377, %v9460, %v8038
      %v9493 = vsel %vm5377, %v9461, %v8040
      %v9494 = vsel %vm5377, %v9462, %v8042
      %v9495 = vsel %vm5377, %v9463, %v8044
      %v9496 = vsel %vm5377, %v9464, %v8046
      %v9497 = vsel %vm5377, %v9465, %v8048
      %v9498 = vsel %vm5377, %v9466, %v8050
      %v9499 = vsel %vm5377, %v9467, %v8052
      %v9500 = vsel %vm5377, %v9468, %v8054
      %v9501 = vsel %vm5377, %v9469, %v8056
      %v9502 = vsel %vm5377, %v9470, %v8058
      %v9503 = vsel %vm5377, %v9471, %v8060
      %v9504 = vsel %vm5377, %v9472, %v8062
      %v9505 = vsel %vm5377, %v9473, %v8064
      %v9506 = vsel %vm5377, %v9474, %v8066
      %vm9507 = vcmask 457728
      %v9508 = vsel %vm9507, %v9475, %v8132
      %v9509 = vsel %vm9507, %v9476, %v8134
      %v9510 = vsel %vm9507, %v9477, %v8136
      %v9511 = vsel %vm9507, %v9478, %v8138
      %v9512 = vsel %vm9507, %v9479, %v8140
      %v9513 = vsel %vm9507, %v9480, %v8142
      %v9514 = vsel %vm9507, %v9481, %v8144
      %v9515 = vsel %vm9507, %v9482, %v8146
      %v9516 = vsel %vm9507, %v9483, %v8148
      %v9517 = vsel %vm9507, %v9484, %v8150
      %v9518 = vsel %vm9507, %v9485, %v8152
      %v9519 = vsel %vm9507, %v9486, %v8154
      %v9520 = vsel %vm9507, %v9487, %v8156
      %v9521 = vsel %vm9507, %v9488, %v8158
      %v9522 = vsel %vm9507, %v9489, %v8160
      %v9523 = vsel %vm9507, %v9490, %v8162
      %v9524 = vsel %vm9507, %v9491, %v8164
      %v9525 = vsel %vm9507, %v9492, %v8166
      %v9526 = vsel %vm9507, %v9493, %v8168
      %v9527 = vsel %vm9507, %v9494, %v8170
      %v9528 = vsel %vm9507, %v9495, %v8172
      %v9529 = vsel %vm9507, %v9496, %v8174
      %v9530 = vsel %vm9507, %v9497, %v8176
      %v9531 = vsel %vm9507, %v9498, %v8178
      %v9532 = vsel %vm9507, %v9499, %v8180
      %v9533 = vsel %vm9507, %v9500, %v8182
      %v9534 = vsel %vm9507, %v9501, %v8184
      %v9535 = vsel %vm9507, %v9502, %v8186
      %v9536 = vsel %vm9507, %v9503, %v8188
      %v9537 = vsel %vm9507, %v9504, %v8190
      %v9538 = vsel %vm9507, %v9505, %v8192
      %v9539 = vsel %vm9507, %v9506, %v8194
      %vm9540 = vcmask 588800
      %v9541 = vsel %vm9540, %v9508, %v8260
      %v9542 = vsel %vm9540, %v9509, %v8262
      %v9543 = vsel %vm9540, %v9510, %v8264
      %v9544 = vsel %vm9540, %v9511, %v8266
      %v9545 = vsel %vm9540, %v9512, %v8268
      %v9546 = vsel %vm9540, %v9513, %v8270
      %v9547 = vsel %vm9540, %v9514, %v8272
      %v9548 = vsel %vm9540, %v9515, %v8274
      %v9549 = vsel %vm9540, %v9516, %v8276
      %v9550 = vsel %vm9540, %v9517, %v8278
      %v9551 = vsel %vm9540, %v9518, %v8280
      %v9552 = vsel %vm9540, %v9519, %v8282
      %v9553 = vsel %vm9540, %v9520, %v8284
      %v9554 = vsel %vm9540, %v9521, %v8286
      %v9555 = vsel %vm9540, %v9522, %v8288
      %v9556 = vsel %vm9540, %v9523, %v8290
      %v9557 = vsel %vm9540, %v9524, %v8292
      %v9558 = vsel %vm9540, %v9525, %v8294
      %v9559 = vsel %vm9540, %v9526, %v8296
      %v9560 = vsel %vm9540, %v9527, %v8298
      %v9561 = vsel %vm9540, %v9528, %v8300
      %v9562 = vsel %vm9540, %v9529, %v8302
      %v9563 = vsel %vm9540, %v9530, %v8304
      %v9564 = vsel %vm9540, %v9531, %v8306
      %v9565 = vsel %vm9540, %v9532, %v8308
      %v9566 = vsel %vm9540, %v9533, %v8310
      %v9567 = vsel %vm9540, %v9534, %v8312
      %v9568 = vsel %vm9540, %v9535, %v8314
      %v9569 = vsel %vm9540, %v9536, %v8316
      %v9570 = vsel %vm9540, %v9537, %v8318
      %v9571 = vsel %vm9540, %v9538, %v8320
      %v9572 = vsel %vm9540, %v9539, %v8322
      %vm9573 = vcmask 621568
      %v9574 = vsel %vm9573, %v9541, %v8388
      %v9575 = vsel %vm9573, %v9542, %v8390
      %v9576 = vsel %vm9573, %v9543, %v8392
      %v9577 = vsel %vm9573, %v9544, %v8394
      %v9578 = vsel %vm9573, %v9545, %v8396
      %v9579 = vsel %vm9573, %v9546, %v8398
      %v9580 = vsel %vm9573, %v9547, %v8400
      %v9581 = vsel %vm9573, %v9548, %v8402
      %v9582 = vsel %vm9573, %v9549, %v8404
      %v9583 = vsel %vm9573, %v9550, %v8406
      %v9584 = vsel %vm9573, %v9551, %v8408
      %v9585 = vsel %vm9573, %v9552, %v8410
      %v9586 = vsel %vm9573, %v9553, %v8412
      %v9587 = vsel %vm9573, %v9554, %v8414
      %v9588 = vsel %vm9573, %v9555, %v8416
      %v9589 = vsel %vm9573, %v9556, %v8418
      %v9590 = vsel %vm9573, %v9557, %v8420
      %v9591 = vsel %vm9573, %v9558, %v8422
      %v9592 = vsel %vm9573, %v9559, %v8424
      %v9593 = vsel %vm9573, %v9560, %v8426
      %v9594 = vsel %vm9573, %v9561, %v8428
      %v9595 = vsel %vm9573, %v9562, %v8430
      %v9596 = vsel %vm9573, %v9563, %v8432
      %v9597 = vsel %vm9573, %v9564, %v8434
      %v9598 = vsel %vm9573, %v9565, %v8436
      %v9599 = vsel %vm9573, %v9566, %v8438
      %v9600 = vsel %vm9573, %v9567, %v8440
      %v9601 = vsel %vm9573, %v9568, %v8442
      %v9602 = vsel %vm9573, %v9569, %v8444
      %v9603 = vsel %vm9573, %v9570, %v8446
      %v9604 = vsel %vm9573, %v9571, %v8448
      %v9605 = vsel %vm9573, %v9572, %v8450
      %vm9606 = vcmask 752640
      %v9607 = vsel %vm9606, %v9574, %v8516
      %v9608 = vsel %vm9606, %v9575, %v8518
      %v9609 = vsel %vm9606, %v9576, %v8520
      %v9610 = vsel %vm9606, %v9577, %v8522
      %v9611 = vsel %vm9606, %v9578, %v8524
      %v9612 = vsel %vm9606, %v9579, %v8526
      %v9613 = vsel %vm9606, %v9580, %v8528
      %v9614 = vsel %vm9606, %v9581, %v8530
      %v9615 = vsel %vm9606, %v9582, %v8532
      %v9616 = vsel %vm9606, %v9583, %v8534
      %v9617 = vsel %vm9606, %v9584, %v8536
      %v9618 = vsel %vm9606, %v9585, %v8538
      %v9619 = vsel %vm9606, %v9586, %v8540
      %v9620 = vsel %vm9606, %v9587, %v8542
      %v9621 = vsel %vm9606, %v9588, %v8544
      %v9622 = vsel %vm9606, %v9589, %v8546
      %v9623 = vsel %vm9606, %v9590, %v8548
      %v9624 = vsel %vm9606, %v9591, %v8550
      %v9625 = vsel %vm9606, %v9592, %v8552
      %v9626 = vsel %vm9606, %v9593, %v8554
      %v9627 = vsel %vm9606, %v9594, %v8556
      %v9628 = vsel %vm9606, %v9595, %v8558
      %v9629 = vsel %vm9606, %v9596, %v8560
      %v9630 = vsel %vm9606, %v9597, %v8562
      %v9631 = vsel %vm9606, %v9598, %v8564
      %v9632 = vsel %vm9606, %v9599, %v8566
      %v9633 = vsel %vm9606, %v9600, %v8568
      %v9634 = vsel %vm9606, %v9601, %v8570
      %v9635 = vsel %vm9606, %v9602, %v8572
      %v9636 = vsel %vm9606, %v9603, %v8574
      %v9637 = vsel %vm9606, %v9604, %v8576
      %v9638 = vsel %vm9606, %v9605, %v8578
      %vm9639 = vcmask 883712
      %v9640 = vsel %vm9639, %v9607, %v8644
      %v9641 = vsel %vm9639, %v9608, %v8646
      %v9642 = vsel %vm9639, %v9609, %v8648
      %v9643 = vsel %vm9639, %v9610, %v8650
      %v9644 = vsel %vm9639, %v9611, %v8652
      %v9645 = vsel %vm9639, %v9612, %v8654
      %v9646 = vsel %vm9639, %v9613, %v8656
      %v9647 = vsel %vm9639, %v9614, %v8658
      %v9648 = vsel %vm9639, %v9615, %v8660
      %v9649 = vsel %vm9639, %v9616, %v8662
      %v9650 = vsel %vm9639, %v9617, %v8664
      %v9651 = vsel %vm9639, %v9618, %v8666
      %v9652 = vsel %vm9639, %v9619, %v8668
      %v9653 = vsel %vm9639, %v9620, %v8670
      %v9654 = vsel %vm9639, %v9621, %v8672
      %v9655 = vsel %vm9639, %v9622, %v8674
      %v9656 = vsel %vm9639, %v9623, %v8676
      %v9657 = vsel %vm9639, %v9624, %v8678
      %v9658 = vsel %vm9639, %v9625, %v8680
      %v9659 = vsel %vm9639, %v9626, %v8682
      %v9660 = vsel %vm9639, %v9627, %v8684
      %v9661 = vsel %vm9639, %v9628, %v8686
      %v9662 = vsel %vm9639, %v9629, %v8688
      %v9663 = vsel %vm9639, %v9630, %v8690
      %v9664 = vsel %vm9639, %v9631, %v8692
      %v9665 = vsel %vm9639, %v9632, %v8694
      %v9666 = vsel %vm9639, %v9633, %v8696
      %v9667 = vsel %vm9639, %v9634, %v8698
      %v9668 = vsel %vm9639, %v9635, %v8700
      %v9669 = vsel %vm9639, %v9636, %v8702
      %v9670 = vsel %vm9639, %v9637, %v8704
      %v9671 = vsel %vm9639, %v9638, %v8706
      %vm9672 = vcmask 916480
      %v9673 = vsel %vm9672, %v9640, %v8772
      %v9674 = vsel %vm9672, %v9641, %v8774
      %v9675 = vsel %vm9672, %v9642, %v8776
      %v9676 = vsel %vm9672, %v9643, %v8778
      %v9677 = vsel %vm9672, %v9644, %v8780
      %v9678 = vsel %vm9672, %v9645, %v8782
      %v9679 = vsel %vm9672, %v9646, %v8784
      %v9680 = vsel %vm9672, %v9647, %v8786
      %v9681 = vsel %vm9672, %v9648, %v8788
      %v9682 = vsel %vm9672, %v9649, %v8790
      %v9683 = vsel %vm9672, %v9650, %v8792
      %v9684 = vsel %vm9672, %v9651, %v8794
      %v9685 = vsel %vm9672, %v9652, %v8796
      %v9686 = vsel %vm9672, %v9653, %v8798
      %v9687 = vsel %vm9672, %v9654, %v8800
      %v9688 = vsel %vm9672, %v9655, %v8802
      %v9689 = vsel %vm9672, %v9656, %v8804
      %v9690 = vsel %vm9672, %v9657, %v8806
      %v9691 = vsel %vm9672, %v9658, %v8808
      %v9692 = vsel %vm9672, %v9659, %v8810
      %v9693 = vsel %vm9672, %v9660, %v8812
      %v9694 = vsel %vm9672, %v9661, %v8814
      %v9695 = vsel %vm9672, %v9662, %v8816
      %v9696 = vsel %vm9672, %v9663, %v8818
      %v9697 = vsel %vm9672, %v9664, %v8820
      %v9698 = vsel %vm9672, %v9665, %v8822
      %v9699 = vsel %vm9672, %v9666, %v8824
      %v9700 = vsel %vm9672, %v9667, %v8826
      %v9701 = vsel %vm9672, %v9668, %v8828
      %v9702 = vsel %vm9672, %v9669, %v8830
      %v9703 = vsel %vm9672, %v9670, %v8832
      %v9704 = vsel %vm9672, %v9671, %v8834
      %v9705 = vsel %vm2005, %v7075, %v8900
      %v9706 = vsel %vm2005, %v7076, %v8902
      %v9707 = vsel %vm2005, %v7077, %v8904
      %v9708 = vsel %vm2005, %v7078, %v8906
      %v9709 = vsel %vm2005, %v7079, %v8908
      %v9710 = vsel %vm2005, %v7080, %v8910
      %v9711 = vsel %vm2005, %v7081, %v8912
      %v9712 = vsel %vm2005, %v7082, %v8914
      %v9713 = vsel %vm2005, %v7083, %v8916
      %v9714 = vsel %vm2005, %v7084, %v8918
      %v9715 = vsel %vm2005, %v7085, %v8920
      %v9716 = vsel %vm2005, %v7086, %v8922
      %v9717 = vsel %vm2005, %v7087, %v8924
      %v9718 = vsel %vm2005, %v7088, %v8926
      %v9719 = vsel %vm2005, %v7089, %v8928
      %v9720 = vsel %vm2005, %v7090, %v8930
      %v9721 = vsel %vm2005, %v7091, %v8932
      %v9722 = vsel %vm2005, %v7092, %v8934
      %v9723 = vsel %vm2005, %v7093, %v8936
      %v9724 = vsel %vm2005, %v7094, %v8938
      %v9725 = vsel %vm2005, %v7095, %v8940
      %v9726 = vsel %vm2005, %v7096, %v8942
      %v9727 = vsel %vm2005, %v7097, %v8944
      %v9728 = vsel %vm2005, %v7098, %v8946
      %v9729 = vsel %vm2005, %v7099, %v8948
      %v9730 = vsel %vm2005, %v7100, %v8950
      %v9731 = vsel %vm2005, %v7101, %v8952
      %v9732 = vsel %vm2005, %v7102, %v8954
      %v9733 = vsel %vm2005, %v7103, %v8956
      %v9734 = vsel %vm2005, %v7104, %v8958
      %v9735 = vsel %vm2005, %v7105, %v8960
      %v9736 = vsel %vm2005, %v7106, %v8962
      %v9737 = vsel %vm2038, %v9705, %v9028
      %v9738 = vsel %vm2038, %v9706, %v9030
      %v9739 = vsel %vm2038, %v9707, %v9032
      %v9740 = vsel %vm2038, %v9708, %v9034
      %v9741 = vsel %vm2038, %v9709, %v9036
      %v9742 = vsel %vm2038, %v9710, %v9038
      %v9743 = vsel %vm2038, %v9711, %v9040
      %v9744 = vsel %vm2038, %v9712, %v9042
      %v9745 = vsel %vm2038, %v9713, %v9044
      %v9746 = vsel %vm2038, %v9714, %v9046
      %v9747 = vsel %vm2038, %v9715, %v9048
      %v9748 = vsel %vm2038, %v9716, %v9050
      %v9749 = vsel %vm2038, %v9717, %v9052
      %v9750 = vsel %vm2038, %v9718, %v9054
      %v9751 = vsel %vm2038, %v9719, %v9056
      %v9752 = vsel %vm2038, %v9720, %v9058
      %v9753 = vsel %vm2038, %v9721, %v9060
      %v9754 = vsel %vm2038, %v9722, %v9062
      %v9755 = vsel %vm2038, %v9723, %v9064
      %v9756 = vsel %vm2038, %v9724, %v9066
      %v9757 = vsel %vm2038, %v9725, %v9068
      %v9758 = vsel %vm2038, %v9726, %v9070
      %v9759 = vsel %vm2038, %v9727, %v9072
      %v9760 = vsel %vm2038, %v9728, %v9074
      %v9761 = vsel %vm2038, %v9729, %v9076
      %v9762 = vsel %vm2038, %v9730, %v9078
      %v9763 = vsel %vm2038, %v9731, %v9080
      %v9764 = vsel %vm2038, %v9732, %v9082
      %v9765 = vsel %vm2038, %v9733, %v9084
      %v9766 = vsel %vm2038, %v9734, %v9086
      %v9767 = vsel %vm2038, %v9735, %v9088
      %v9768 = vsel %vm2038, %v9736, %v9090
      %v9769 = vsel %vm2184, %v9737, %v9156
      %v9770 = vsel %vm2184, %v9738, %v9158
      %v9771 = vsel %vm2184, %v9739, %v9160
      %v9772 = vsel %vm2184, %v9740, %v9162
      %v9773 = vsel %vm2184, %v9741, %v9164
      %v9774 = vsel %vm2184, %v9742, %v9166
      %v9775 = vsel %vm2184, %v9743, %v9168
      %v9776 = vsel %vm2184, %v9744, %v9170
      %v9777 = vsel %vm2184, %v9745, %v9172
      %v9778 = vsel %vm2184, %v9746, %v9174
      %v9779 = vsel %vm2184, %v9747, %v9176
      %v9780 = vsel %vm2184, %v9748, %v9178
      %v9781 = vsel %vm2184, %v9749, %v9180
      %v9782 = vsel %vm2184, %v9750, %v9182
      %v9783 = vsel %vm2184, %v9751, %v9184
      %v9784 = vsel %vm2184, %v9752, %v9186
      %v9785 = vsel %vm2184, %v9753, %v9188
      %v9786 = vsel %vm2184, %v9754, %v9190
      %v9787 = vsel %vm2184, %v9755, %v9192
      %v9788 = vsel %vm2184, %v9756, %v9194
      %v9789 = vsel %vm2184, %v9757, %v9196
      %v9790 = vsel %vm2184, %v9758, %v9198
      %v9791 = vsel %vm2184, %v9759, %v9200
      %v9792 = vsel %vm2184, %v9760, %v9202
      %v9793 = vsel %vm2184, %v9761, %v9204
      %v9794 = vsel %vm2184, %v9762, %v9206
      %v9795 = vsel %vm2184, %v9763, %v9208
      %v9796 = vsel %vm2184, %v9764, %v9210
      %v9797 = vsel %vm2184, %v9765, %v9212
      %v9798 = vsel %vm2184, %v9766, %v9214
      %v9799 = vsel %vm2184, %v9767, %v9216
      %v9800 = vsel %vm2184, %v9768, %v9218
      %v9801 = vsel %vm6107, %v9769, %v9284
      %v9802 = vsel %vm6107, %v9770, %v9286
      %v9803 = vsel %vm6107, %v9771, %v9288
      %v9804 = vsel %vm6107, %v9772, %v9290
      %v9805 = vsel %vm6107, %v9773, %v9292
      %v9806 = vsel %vm6107, %v9774, %v9294
      %v9807 = vsel %vm6107, %v9775, %v9296
      %v9808 = vsel %vm6107, %v9776, %v9298
      %v9809 = vsel %vm6107, %v9777, %v9300
      %v9810 = vsel %vm6107, %v9778, %v9302
      %v9811 = vsel %vm6107, %v9779, %v9304
      %v9812 = vsel %vm6107, %v9780, %v9306
      %v9813 = vsel %vm6107, %v9781, %v9308
      %v9814 = vsel %vm6107, %v9782, %v9310
      %v9815 = vsel %vm6107, %v9783, %v9312
      %v9816 = vsel %vm6107, %v9784, %v9314
      %v9817 = vsel %vm6107, %v9785, %v9316
      %v9818 = vsel %vm6107, %v9786, %v9318
      %v9819 = vsel %vm6107, %v9787, %v9320
      %v9820 = vsel %vm6107, %v9788, %v9322
      %v9821 = vsel %vm6107, %v9789, %v9324
      %v9822 = vsel %vm6107, %v9790, %v9326
      %v9823 = vsel %vm6107, %v9791, %v9328
      %v9824 = vsel %vm6107, %v9792, %v9330
      %v9825 = vsel %vm6107, %v9793, %v9332
      %v9826 = vsel %vm6107, %v9794, %v9334
      %v9827 = vsel %vm6107, %v9795, %v9336
      %v9828 = vsel %vm6107, %v9796, %v9338
      %v9829 = vsel %vm6107, %v9797, %v9340
      %v9830 = vsel %vm6107, %v9798, %v9342
      %v9831 = vsel %vm6107, %v9799, %v9344
      %v9832 = vsel %vm6107, %v9800, %v9346
      %9865 = vrot.lane.b32.xlu0 %v7267, 16
      %v9866 = vpop.permute.xlu0 %9865
      %9867 = vrot.lane.b32.xlu0 %v7268, 16
      %v9868 = vpop.permute.xlu0 %9867
      %9869 = vrot.lane.b32.xlu0 %v7269, 16
      %v9870 = vpop.permute.xlu0 %9869
      %9871 = vrot.lane.b32.xlu0 %v7270, 16
      %v9872 = vpop.permute.xlu0 %9871
      %9873 = vrot.lane.b32.xlu0 %v7271, 16
      %v9874 = vpop.permute.xlu0 %9873
      %9875 = vrot.lane.b32.xlu0 %v7272, 16
      %v9876 = vpop.permute.xlu0 %9875
      %9877 = vrot.lane.b32.xlu0 %v7273, 16
      %v9878 = vpop.permute.xlu0 %9877
      %9879 = vrot.lane.b32.xlu0 %v7274, 16
      %v9880 = vpop.permute.xlu0 %9879
      %9881 = vrot.lane.b32.xlu0 %v7275, 16
      %v9882 = vpop.permute.xlu0 %9881
      %9883 = vrot.lane.b32.xlu0 %v7276, 16
      %v9884 = vpop.permute.xlu0 %9883
      %9885 = vrot.lane.b32.xlu0 %v7277, 16
      %v9886 = vpop.permute.xlu0 %9885
      %9887 = vrot.lane.b32.xlu0 %v7278, 16
      %v9888 = vpop.permute.xlu0 %9887
      %9889 = vrot.lane.b32.xlu0 %v7279, 16
      %v9890 = vpop.permute.xlu0 %9889
      %9891 = vrot.lane.b32.xlu0 %v7280, 16
      %v9892 = vpop.permute.xlu0 %9891
      %9893 = vrot.lane.b32.xlu0 %v7281, 16
      %v9894 = vpop.permute.xlu0 %9893
      %9895 = vrot.lane.b32.xlu0 %v7282, 16
      %v9896 = vpop.permute.xlu0 %9895
      %9897 = vrot.lane.b32.xlu0 %v7283, 16
      %v9898 = vpop.permute.xlu0 %9897
      %9899 = vrot.lane.b32.xlu0 %v7284, 16
      %v9900 = vpop.permute.xlu0 %9899
      %9901 = vrot.lane.b32.xlu0 %v7285, 16
      %v9902 = vpop.permute.xlu0 %9901
      %9903 = vrot.lane.b32.xlu0 %v7286, 16
      %v9904 = vpop.permute.xlu0 %9903
      %9905 = vrot.lane.b32.xlu0 %v7287, 16
      %v9906 = vpop.permute.xlu0 %9905
      %9907 = vrot.lane.b32.xlu0 %v7288, 16
      %v9908 = vpop.permute.xlu0 %9907
      %9909 = vrot.lane.b32.xlu0 %v7289, 16
      %v9910 = vpop.permute.xlu0 %9909
      %9911 = vrot.lane.b32.xlu0 %v7290, 16
      %v9912 = vpop.permute.xlu0 %9911
      %9913 = vrot.lane.b32.xlu0 %v7291, 16
      %v9914 = vpop.permute.xlu0 %9913
      %9915 = vrot.lane.b32.xlu0 %v7292, 16
      %v9916 = vpop.permute.xlu0 %9915
      %9917 = vrot.lane.b32.xlu0 %v7293, 16
      %v9918 = vpop.permute.xlu0 %9917
      %9919 = vrot.lane.b32.xlu0 %v7294, 16
      %v9920 = vpop.permute.xlu0 %9919
      %9921 = vrot.lane.b32.xlu0 %v7295, 16
      %v9922 = vpop.permute.xlu0 %9921
      %9923 = vrot.lane.b32.xlu0 %v7296, 16
      %v9924 = vpop.permute.xlu0 %9923
      %9925 = vrot.lane.b32.xlu0 %v7297, 16
      %v9926 = vpop.permute.xlu0 %9925
      %9927 = vrot.lane.b32.xlu0 %v7298, 16
      %v9928 = vpop.permute.xlu0 %9927
      %9993 = vrot.lane.b32.xlu0 %v7299, 32
      %v9994 = vpop.permute.xlu0 %9993
      %9995 = vrot.lane.b32.xlu0 %v7300, 32
      %v9996 = vpop.permute.xlu0 %9995
      %9997 = vrot.lane.b32.xlu0 %v7301, 32
      %v9998 = vpop.permute.xlu0 %9997
      %9999 = vrot.lane.b32.xlu0 %v7302, 32
      %v10000 = vpop.permute.xlu0 %9999
      %10001 = vrot.lane.b32.xlu0 %v7303, 32
      %v10002 = vpop.permute.xlu0 %10001
      %10003 = vrot.lane.b32.xlu0 %v7304, 32
      %v10004 = vpop.permute.xlu0 %10003
      %10005 = vrot.lane.b32.xlu0 %v7305, 32
      %v10006 = vpop.permute.xlu0 %10005
      %10007 = vrot.lane.b32.xlu0 %v7306, 32
      %v10008 = vpop.permute.xlu0 %10007
      %10009 = vrot.lane.b32.xlu0 %v7307, 32
      %v10010 = vpop.permute.xlu0 %10009
      %10011 = vrot.lane.b32.xlu0 %v7308, 32
      %v10012 = vpop.permute.xlu0 %10011
      %10013 = vrot.lane.b32.xlu0 %v7309, 32
      %v10014 = vpop.permute.xlu0 %10013
      %10015 = vrot.lane.b32.xlu0 %v7310, 32
      %v10016 = vpop.permute.xlu0 %10015
      %10017 = vrot.lane.b32.xlu0 %v7311, 32
      %v10018 = vpop.permute.xlu0 %10017
      %10019 = vrot.lane.b32.xlu0 %v7312, 32
      %v10020 = vpop.permute.xlu0 %10019
      %10021 = vrot.lane.b32.xlu0 %v7313, 32
      %v10022 = vpop.permute.xlu0 %10021
      %10023 = vrot.lane.b32.xlu0 %v7314, 32
      %v10024 = vpop.permute.xlu0 %10023
      %10025 = vrot.lane.b32.xlu0 %v7315, 32
      %v10026 = vpop.permute.xlu0 %10025
      %10027 = vrot.lane.b32.xlu0 %v7316, 32
      %v10028 = vpop.permute.xlu0 %10027
      %10029 = vrot.lane.b32.xlu0 %v7317, 32
      %v10030 = vpop.permute.xlu0 %10029
      %10031 = vrot.lane.b32.xlu0 %v7318, 32
      %v10032 = vpop.permute.xlu0 %10031
      %10033 = vrot.lane.b32.xlu0 %v7319, 32
      %v10034 = vpop.permute.xlu0 %10033
      %10035 = vrot.lane.b32.xlu0 %v7320, 32
      %v10036 = vpop.permute.xlu0 %10035
      %10037 = vrot.lane.b32.xlu0 %v7321, 32
      %v10038 = vpop.permute.xlu0 %10037
      %10039 = vrot.lane.b32.xlu0 %v7322, 32
      %v10040 = vpop.permute.xlu0 %10039
      %10041 = vrot.lane.b32.xlu0 %v7323, 32
      %v10042 = vpop.permute.xlu0 %10041
      %10043 = vrot.lane.b32.xlu0 %v7324, 32
      %v10044 = vpop.permute.xlu0 %10043
      %10045 = vrot.lane.b32.xlu0 %v7325, 32
      %v10046 = vpop.permute.xlu0 %10045
      %10047 = vrot.lane.b32.xlu0 %v7326, 32
      %v10048 = vpop.permute.xlu0 %10047
      %10049 = vrot.lane.b32.xlu0 %v7327, 32
      %v10050 = vpop.permute.xlu0 %10049
      %10051 = vrot.lane.b32.xlu0 %v7328, 32
      %v10052 = vpop.permute.xlu0 %10051
      %10053 = vrot.lane.b32.xlu0 %v7329, 32
      %v10054 = vpop.permute.xlu0 %10053
      %10055 = vrot.lane.b32.xlu0 %v7330, 32
      %v10056 = vpop.permute.xlu0 %10055
      %10121 = vrot.lane.b32.xlu0 %v7331, 36
      %v10122 = vpop.permute.xlu0 %10121
      %10123 = vrot.lane.b32.xlu0 %v7332, 36
      %v10124 = vpop.permute.xlu0 %10123
      %10125 = vrot.lane.b32.xlu0 %v7333, 36
      %v10126 = vpop.permute.xlu0 %10125
      %10127 = vrot.lane.b32.xlu0 %v7334, 36
      %v10128 = vpop.permute.xlu0 %10127
      %10129 = vrot.lane.b32.xlu0 %v7335, 36
      %v10130 = vpop.permute.xlu0 %10129
      %10131 = vrot.lane.b32.xlu0 %v7336, 36
      %v10132 = vpop.permute.xlu0 %10131
      %10133 = vrot.lane.b32.xlu0 %v7337, 36
      %v10134 = vpop.permute.xlu0 %10133
      %10135 = vrot.lane.b32.xlu0 %v7338, 36
      %v10136 = vpop.permute.xlu0 %10135
      %10137 = vrot.lane.b32.xlu0 %v7339, 36
      %v10138 = vpop.permute.xlu0 %10137
      %10139 = vrot.lane.b32.xlu0 %v7340, 36
      %v10140 = vpop.permute.xlu0 %10139
      %10141 = vrot.lane.b32.xlu0 %v7341, 36
      %v10142 = vpop.permute.xlu0 %10141
      %10143 = vrot.lane.b32.xlu0 %v7342, 36
      %v10144 = vpop.permute.xlu0 %10143
      %10145 = vrot.lane.b32.xlu0 %v7343, 36
      %v10146 = vpop.permute.xlu0 %10145
      %10147 = vrot.lane.b32.xlu0 %v7344, 36
      %v10148 = vpop.permute.xlu0 %10147
      %10149 = vrot.lane.b32.xlu0 %v7345, 36
      %v10150 = vpop.permute.xlu0 %10149
      %10151 = vrot.lane.b32.xlu0 %v7346, 36
      %v10152 = vpop.permute.xlu0 %10151
      %10153 = vrot.lane.b32.xlu0 %v7347, 36
      %v10154 = vpop.permute.xlu0 %10153
      %10155 = vrot.lane.b32.xlu0 %v7348, 36
      %v10156 = vpop.permute.xlu0 %10155
      %10157 = vrot.lane.b32.xlu0 %v7349, 36
      %v10158 = vpop.permute.xlu0 %10157
      %10159 = vrot.lane.b32.xlu0 %v7350, 36
      %v10160 = vpop.permute.xlu0 %10159
      %10161 = vrot.lane.b32.xlu0 %v7351, 36
      %v10162 = vpop.permute.xlu0 %10161
      %10163 = vrot.lane.b32.xlu0 %v7352, 36
      %v10164 = vpop.permute.xlu0 %10163
      %10165 = vrot.lane.b32.xlu0 %v7353, 36
      %v10166 = vpop.permute.xlu0 %10165
      %10167 = vrot.lane.b32.xlu0 %v7354, 36
      %v10168 = vpop.permute.xlu0 %10167
      %10169 = vrot.lane.b32.xlu0 %v7355, 36
      %v10170 = vpop.permute.xlu0 %10169
      %10171 = vrot.lane.b32.xlu0 %v7356, 36
      %v10172 = vpop.permute.xlu0 %10171
      %10173 = vrot.lane.b32.xlu0 %v7357, 36
      %v10174 = vpop.permute.xlu0 %10173
      %10175 = vrot.lane.b32.xlu0 %v7358, 36
      %v10176 = vpop.permute.xlu0 %10175
      %10177 = vrot.lane.b32.xlu0 %v7359, 36
      %v10178 = vpop.permute.xlu0 %10177
      %10179 = vrot.lane.b32.xlu0 %v7360, 36
      %v10180 = vpop.permute.xlu0 %10179
      %10181 = vrot.lane.b32.xlu0 %v7361, 36
      %v10182 = vpop.permute.xlu0 %10181
      %10183 = vrot.lane.b32.xlu0 %v7362, 36
      %v10184 = vpop.permute.xlu0 %10183
      %10249 = vrot.lane.b32.xlu0 %v7363, 52
      %v10250 = vpop.permute.xlu0 %10249
      %10251 = vrot.lane.b32.xlu0 %v7364, 52
      %v10252 = vpop.permute.xlu0 %10251
      %10253 = vrot.lane.b32.xlu0 %v7365, 52
      %v10254 = vpop.permute.xlu0 %10253
      %10255 = vrot.lane.b32.xlu0 %v7366, 52
      %v10256 = vpop.permute.xlu0 %10255
      %10257 = vrot.lane.b32.xlu0 %v7367, 52
      %v10258 = vpop.permute.xlu0 %10257
      %10259 = vrot.lane.b32.xlu0 %v7368, 52
      %v10260 = vpop.permute.xlu0 %10259
      %10261 = vrot.lane.b32.xlu0 %v7369, 52
      %v10262 = vpop.permute.xlu0 %10261
      %10263 = vrot.lane.b32.xlu0 %v7370, 52
      %v10264 = vpop.permute.xlu0 %10263
      %10265 = vrot.lane.b32.xlu0 %v7371, 52
      %v10266 = vpop.permute.xlu0 %10265
      %10267 = vrot.lane.b32.xlu0 %v7372, 52
      %v10268 = vpop.permute.xlu0 %10267
      %10269 = vrot.lane.b32.xlu0 %v7373, 52
      %v10270 = vpop.permute.xlu0 %10269
      %10271 = vrot.lane.b32.xlu0 %v7374, 52
      %v10272 = vpop.permute.xlu0 %10271
      %10273 = vrot.lane.b32.xlu0 %v7375, 52
      %v10274 = vpop.permute.xlu0 %10273
      %10275 = vrot.lane.b32.xlu0 %v7376, 52
      %v10276 = vpop.permute.xlu0 %10275
      %10277 = vrot.lane.b32.xlu0 %v7377, 52
      %v10278 = vpop.permute.xlu0 %10277
      %10279 = vrot.lane.b32.xlu0 %v7378, 52
      %v10280 = vpop.permute.xlu0 %10279
      %10281 = vrot.lane.b32.xlu0 %v7379, 52
      %v10282 = vpop.permute.xlu0 %10281
      %10283 = vrot.lane.b32.xlu0 %v7380, 52
      %v10284 = vpop.permute.xlu0 %10283
      %10285 = vrot.lane.b32.xlu0 %v7381, 52
      %v10286 = vpop.permute.xlu0 %10285
      %10287 = vrot.lane.b32.xlu0 %v7382, 52
      %v10288 = vpop.permute.xlu0 %10287
      %10289 = vrot.lane.b32.xlu0 %v7383, 52
      %v10290 = vpop.permute.xlu0 %10289
      %10291 = vrot.lane.b32.xlu0 %v7384, 52
      %v10292 = vpop.permute.xlu0 %10291
      %10293 = vrot.lane.b32.xlu0 %v7385, 52
      %v10294 = vpop.permute.xlu0 %10293
      %10295 = vrot.lane.b32.xlu0 %v7386, 52
      %v10296 = vpop.permute.xlu0 %10295
      %10297 = vrot.lane.b32.xlu0 %v7387, 52
      %v10298 = vpop.permute.xlu0 %10297
      %10299 = vrot.lane.b32.xlu0 %v7388, 52
      %v10300 = vpop.permute.xlu0 %10299
      %10301 = vrot.lane.b32.xlu0 %v7389, 52
      %v10302 = vpop.permute.xlu0 %10301
      %10303 = vrot.lane.b32.xlu0 %v7390, 52
      %v10304 = vpop.permute.xlu0 %10303
      %10305 = vrot.lane.b32.xlu0 %v7391, 52
      %v10306 = vpop.permute.xlu0 %10305
      %10307 = vrot.lane.b32.xlu0 %v7392, 52
      %v10308 = vpop.permute.xlu0 %10307
      %10309 = vrot.lane.b32.xlu0 %v7393, 52
      %v10310 = vpop.permute.xlu0 %10309
      %10311 = vrot.lane.b32.xlu0 %v7394, 52
      %v10312 = vpop.permute.xlu0 %10311
      %10377 = vrot.lane.b32.xlu0 %v7395, 68
      %v10378 = vpop.permute.xlu0 %10377
      %10379 = vrot.lane.b32.xlu0 %v7396, 68
      %v10380 = vpop.permute.xlu0 %10379
      %10381 = vrot.lane.b32.xlu0 %v7397, 68
      %v10382 = vpop.permute.xlu0 %10381
      %10383 = vrot.lane.b32.xlu0 %v7398, 68
      %v10384 = vpop.permute.xlu0 %10383
      %10385 = vrot.lane.b32.xlu0 %v7399, 68
      %v10386 = vpop.permute.xlu0 %10385
      %10387 = vrot.lane.b32.xlu0 %v7400, 68
      %v10388 = vpop.permute.xlu0 %10387
      %10389 = vrot.lane.b32.xlu0 %v7401, 68
      %v10390 = vpop.permute.xlu0 %10389
      %10391 = vrot.lane.b32.xlu0 %v7402, 68
      %v10392 = vpop.permute.xlu0 %10391
      %10393 = vrot.lane.b32.xlu0 %v7403, 68
      %v10394 = vpop.permute.xlu0 %10393
      %10395 = vrot.lane.b32.xlu0 %v7404, 68
      %v10396 = vpop.permute.xlu0 %10395
      %10397 = vrot.lane.b32.xlu0 %v7405, 68
      %v10398 = vpop.permute.xlu0 %10397
      %10399 = vrot.lane.b32.xlu0 %v7406, 68
      %v10400 = vpop.permute.xlu0 %10399
      %10401 = vrot.lane.b32.xlu0 %v7407, 68
      %v10402 = vpop.permute.xlu0 %10401
      %10403 = vrot.lane.b32.xlu0 %v7408, 68
      %v10404 = vpop.permute.xlu0 %10403
      %10405 = vrot.lane.b32.xlu0 %v7409, 68
      %v10406 = vpop.permute.xlu0 %10405
      %10407 = vrot.lane.b32.xlu0 %v7410, 68
      %v10408 = vpop.permute.xlu0 %10407
      %10409 = vrot.lane.b32.xlu0 %v7411, 68
      %v10410 = vpop.permute.xlu0 %10409
      %10411 = vrot.lane.b32.xlu0 %v7412, 68
      %v10412 = vpop.permute.xlu0 %10411
      %10413 = vrot.lane.b32.xlu0 %v7413, 68
      %v10414 = vpop.permute.xlu0 %10413
      %10415 = vrot.lane.b32.xlu0 %v7414, 68
      %v10416 = vpop.permute.xlu0 %10415
      %10417 = vrot.lane.b32.xlu0 %v7415, 68
      %v10418 = vpop.permute.xlu0 %10417
      %10419 = vrot.lane.b32.xlu0 %v7416, 68
      %v10420 = vpop.permute.xlu0 %10419
      %10421 = vrot.lane.b32.xlu0 %v7417, 68
      %v10422 = vpop.permute.xlu0 %10421
      %10423 = vrot.lane.b32.xlu0 %v7418, 68
      %v10424 = vpop.permute.xlu0 %10423
      %10425 = vrot.lane.b32.xlu0 %v7419, 68
      %v10426 = vpop.permute.xlu0 %10425
      %10427 = vrot.lane.b32.xlu0 %v7420, 68
      %v10428 = vpop.permute.xlu0 %10427
      %10429 = vrot.lane.b32.xlu0 %v7421, 68
      %v10430 = vpop.permute.xlu0 %10429
      %10431 = vrot.lane.b32.xlu0 %v7422, 68
      %v10432 = vpop.permute.xlu0 %10431
      %10433 = vrot.lane.b32.xlu0 %v7423, 68
      %v10434 = vpop.permute.xlu0 %10433
      %10435 = vrot.lane.b32.xlu0 %v7424, 68
      %v10436 = vpop.permute.xlu0 %10435
      %10437 = vrot.lane.b32.xlu0 %v7425, 68
      %v10438 = vpop.permute.xlu0 %10437
      %10439 = vrot.lane.b32.xlu0 %v7426, 68
      %v10440 = vpop.permute.xlu0 %10439
      %10505 = vrot.lane.b32.xlu0 %v7427, 72
      %v10506 = vpop.permute.xlu0 %10505
      %10507 = vrot.lane.b32.xlu0 %v7428, 72
      %v10508 = vpop.permute.xlu0 %10507
      %10509 = vrot.lane.b32.xlu0 %v7429, 72
      %v10510 = vpop.permute.xlu0 %10509
      %10511 = vrot.lane.b32.xlu0 %v7430, 72
      %v10512 = vpop.permute.xlu0 %10511
      %10513 = vrot.lane.b32.xlu0 %v7431, 72
      %v10514 = vpop.permute.xlu0 %10513
      %10515 = vrot.lane.b32.xlu0 %v7432, 72
      %v10516 = vpop.permute.xlu0 %10515
      %10517 = vrot.lane.b32.xlu0 %v7433, 72
      %v10518 = vpop.permute.xlu0 %10517
      %10519 = vrot.lane.b32.xlu0 %v7434, 72
      %v10520 = vpop.permute.xlu0 %10519
      %10521 = vrot.lane.b32.xlu0 %v7435, 72
      %v10522 = vpop.permute.xlu0 %10521
      %10523 = vrot.lane.b32.xlu0 %v7436, 72
      %v10524 = vpop.permute.xlu0 %10523
      %10525 = vrot.lane.b32.xlu0 %v7437, 72
      %v10526 = vpop.permute.xlu0 %10525
      %10527 = vrot.lane.b32.xlu0 %v7438, 72
      %v10528 = vpop.permute.xlu0 %10527
      %10529 = vrot.lane.b32.xlu0 %v7439, 72
      %v10530 = vpop.permute.xlu0 %10529
      %10531 = vrot.lane.b32.xlu0 %v7440, 72
      %v10532 = vpop.permute.xlu0 %10531
      %10533 = vrot.lane.b32.xlu0 %v7441, 72
      %v10534 = vpop.permute.xlu0 %10533
      %10535 = vrot.lane.b32.xlu0 %v7442, 72
      %v10536 = vpop.permute.xlu0 %10535
      %10537 = vrot.lane.b32.xlu0 %v7443, 72
      %v10538 = vpop.permute.xlu0 %10537
      %10539 = vrot.lane.b32.xlu0 %v7444, 72
      %v10540 = vpop.permute.xlu0 %10539
      %10541 = vrot.lane.b32.xlu0 %v7445, 72
      %v10542 = vpop.permute.xlu0 %10541
      %10543 = vrot.lane.b32.xlu0 %v7446, 72
      %v10544 = vpop.permute.xlu0 %10543
      %10545 = vrot.lane.b32.xlu0 %v7447, 72
      %v10546 = vpop.permute.xlu0 %10545
      %10547 = vrot.lane.b32.xlu0 %v7448, 72
      %v10548 = vpop.permute.xlu0 %10547
      %10549 = vrot.lane.b32.xlu0 %v7449, 72
      %v10550 = vpop.permute.xlu0 %10549
      %10551 = vrot.lane.b32.xlu0 %v7450, 72
      %v10552 = vpop.permute.xlu0 %10551
      %10553 = vrot.lane.b32.xlu0 %v7451, 72
      %v10554 = vpop.permute.xlu0 %10553
      %10555 = vrot.lane.b32.xlu0 %v7452, 72
      %v10556 = vpop.permute.xlu0 %10555
      %10557 = vrot.lane.b32.xlu0 %v7453, 72
      %v10558 = vpop.permute.xlu0 %10557
      %10559 = vrot.lane.b32.xlu0 %v7454, 72
      %v10560 = vpop.permute.xlu0 %10559
      %10561 = vrot.lane.b32.xlu0 %v7455, 72
      %v10562 = vpop.permute.xlu0 %10561
      %10563 = vrot.lane.b32.xlu0 %v7456, 72
      %v10564 = vpop.permute.xlu0 %10563
      %10565 = vrot.lane.b32.xlu0 %v7457, 72
      %v10566 = vpop.permute.xlu0 %10565
      %10567 = vrot.lane.b32.xlu0 %v7458, 72
      %v10568 = vpop.permute.xlu0 %10567
      %10633 = vrot.lane.b32.xlu0 %v7459, 88
      %v10634 = vpop.permute.xlu0 %10633
      %10635 = vrot.lane.b32.xlu0 %v7460, 88
      %v10636 = vpop.permute.xlu0 %10635
      %10637 = vrot.lane.b32.xlu0 %v7461, 88
      %v10638 = vpop.permute.xlu0 %10637
      %10639 = vrot.lane.b32.xlu0 %v7462, 88
      %v10640 = vpop.permute.xlu0 %10639
      %10641 = vrot.lane.b32.xlu0 %v7463, 88
      %v10642 = vpop.permute.xlu0 %10641
      %10643 = vrot.lane.b32.xlu0 %v7464, 88
      %v10644 = vpop.permute.xlu0 %10643
      %10645 = vrot.lane.b32.xlu0 %v7465, 88
      %v10646 = vpop.permute.xlu0 %10645
      %10647 = vrot.lane.b32.xlu0 %v7466, 88
      %v10648 = vpop.permute.xlu0 %10647
      %10649 = vrot.lane.b32.xlu0 %v7467, 88
      %v10650 = vpop.permute.xlu0 %10649
      %10651 = vrot.lane.b32.xlu0 %v7468, 88
      %v10652 = vpop.permute.xlu0 %10651
      %10653 = vrot.lane.b32.xlu0 %v7469, 88
      %v10654 = vpop.permute.xlu0 %10653
      %10655 = vrot.lane.b32.xlu0 %v7470, 88
      %v10656 = vpop.permute.xlu0 %10655
      %10657 = vrot.lane.b32.xlu0 %v7471, 88
      %v10658 = vpop.permute.xlu0 %10657
      %10659 = vrot.lane.b32.xlu0 %v7472, 88
      %v10660 = vpop.permute.xlu0 %10659
      %10661 = vrot.lane.b32.xlu0 %v7473, 88
      %v10662 = vpop.permute.xlu0 %10661
      %10663 = vrot.lane.b32.xlu0 %v7474, 88
      %v10664 = vpop.permute.xlu0 %10663
      %10665 = vrot.lane.b32.xlu0 %v7475, 88
      %v10666 = vpop.permute.xlu0 %10665
      %10667 = vrot.lane.b32.xlu0 %v7476, 88
      %v10668 = vpop.permute.xlu0 %10667
      %10669 = vrot.lane.b32.xlu0 %v7477, 88
      %v10670 = vpop.permute.xlu0 %10669
      %10671 = vrot.lane.b32.xlu0 %v7478, 88
      %v10672 = vpop.permute.xlu0 %10671
      %10673 = vrot.lane.b32.xlu0 %v7479, 88
      %v10674 = vpop.permute.xlu0 %10673
      %10675 = vrot.lane.b32.xlu0 %v7480, 88
      %v10676 = vpop.permute.xlu0 %10675
      %10677 = vrot.lane.b32.xlu0 %v7481, 88
      %v10678 = vpop.permute.xlu0 %10677
      %10679 = vrot.lane.b32.xlu0 %v7482, 88
      %v10680 = vpop.permute.xlu0 %10679
      %10681 = vrot.lane.b32.xlu0 %v7483, 88
      %v10682 = vpop.permute.xlu0 %10681
      %10683 = vrot.lane.b32.xlu0 %v7484, 88
      %v10684 = vpop.permute.xlu0 %10683
      %10685 = vrot.lane.b32.xlu0 %v7485, 88
      %v10686 = vpop.permute.xlu0 %10685
      %10687 = vrot.lane.b32.xlu0 %v7486, 88
      %v10688 = vpop.permute.xlu0 %10687
      %10689 = vrot.lane.b32.xlu0 %v7487, 88
      %v10690 = vpop.permute.xlu0 %10689
      %10691 = vrot.lane.b32.xlu0 %v7488, 88
      %v10692 = vpop.permute.xlu0 %10691
      %10693 = vrot.lane.b32.xlu0 %v7489, 88
      %v10694 = vpop.permute.xlu0 %10693
      %10695 = vrot.lane.b32.xlu0 %v7490, 88
      %v10696 = vpop.permute.xlu0 %10695
      %10761 = vrot.lane.b32.xlu0 %v7491, 104
      %v10762 = vpop.permute.xlu0 %10761
      %10763 = vrot.lane.b32.xlu0 %v7492, 104
      %v10764 = vpop.permute.xlu0 %10763
      %10765 = vrot.lane.b32.xlu0 %v7493, 104
      %v10766 = vpop.permute.xlu0 %10765
      %10767 = vrot.lane.b32.xlu0 %v7494, 104
      %v10768 = vpop.permute.xlu0 %10767
      %10769 = vrot.lane.b32.xlu0 %v7495, 104
      %v10770 = vpop.permute.xlu0 %10769
      %10771 = vrot.lane.b32.xlu0 %v7496, 104
      %v10772 = vpop.permute.xlu0 %10771
      %10773 = vrot.lane.b32.xlu0 %v7497, 104
      %v10774 = vpop.permute.xlu0 %10773
      %10775 = vrot.lane.b32.xlu0 %v7498, 104
      %v10776 = vpop.permute.xlu0 %10775
      %10777 = vrot.lane.b32.xlu0 %v7499, 104
      %v10778 = vpop.permute.xlu0 %10777
      %10779 = vrot.lane.b32.xlu0 %v7500, 104
      %v10780 = vpop.permute.xlu0 %10779
      %10781 = vrot.lane.b32.xlu0 %v7501, 104
      %v10782 = vpop.permute.xlu0 %10781
      %10783 = vrot.lane.b32.xlu0 %v7502, 104
      %v10784 = vpop.permute.xlu0 %10783
      %10785 = vrot.lane.b32.xlu0 %v7503, 104
      %v10786 = vpop.permute.xlu0 %10785
      %10787 = vrot.lane.b32.xlu0 %v7504, 104
      %v10788 = vpop.permute.xlu0 %10787
      %10789 = vrot.lane.b32.xlu0 %v7505, 104
      %v10790 = vpop.permute.xlu0 %10789
      %10791 = vrot.lane.b32.xlu0 %v7506, 104
      %v10792 = vpop.permute.xlu0 %10791
      %10793 = vrot.lane.b32.xlu0 %v7507, 104
      %v10794 = vpop.permute.xlu0 %10793
      %10795 = vrot.lane.b32.xlu0 %v7508, 104
      %v10796 = vpop.permute.xlu0 %10795
      %10797 = vrot.lane.b32.xlu0 %v7509, 104
      %v10798 = vpop.permute.xlu0 %10797
      %10799 = vrot.lane.b32.xlu0 %v7510, 104
      %v10800 = vpop.permute.xlu0 %10799
      %10801 = vrot.lane.b32.xlu0 %v7511, 104
      %v10802 = vpop.permute.xlu0 %10801
      %10803 = vrot.lane.b32.xlu0 %v7512, 104
      %v10804 = vpop.permute.xlu0 %10803
      %10805 = vrot.lane.b32.xlu0 %v7513, 104
      %v10806 = vpop.permute.xlu0 %10805
      %10807 = vrot.lane.b32.xlu0 %v7514, 104
      %v10808 = vpop.permute.xlu0 %10807
      %10809 = vrot.lane.b32.xlu0 %v7515, 104
      %v10810 = vpop.permute.xlu0 %10809
      %10811 = vrot.lane.b32.xlu0 %v7516, 104
      %v10812 = vpop.permute.xlu0 %10811
      %10813 = vrot.lane.b32.xlu0 %v7517, 104
      %v10814 = vpop.permute.xlu0 %10813
      %10815 = vrot.lane.b32.xlu0 %v7518, 104
      %v10816 = vpop.permute.xlu0 %10815
      %10817 = vrot.lane.b32.xlu0 %v7519, 104
      %v10818 = vpop.permute.xlu0 %10817
      %10819 = vrot.lane.b32.xlu0 %v7520, 104
      %v10820 = vpop.permute.xlu0 %10819
      %10821 = vrot.lane.b32.xlu0 %v7521, 104
      %v10822 = vpop.permute.xlu0 %10821
      %10823 = vrot.lane.b32.xlu0 %v7522, 104
      %v10824 = vpop.permute.xlu0 %10823
      %10889 = vrot.lane.b32.xlu0 %v7523, 108
      %v10890 = vpop.permute.xlu0 %10889
      %10891 = vrot.lane.b32.xlu0 %v7524, 108
      %v10892 = vpop.permute.xlu0 %10891
      %10893 = vrot.lane.b32.xlu0 %v7525, 108
      %v10894 = vpop.permute.xlu0 %10893
      %10895 = vrot.lane.b32.xlu0 %v7526, 108
      %v10896 = vpop.permute.xlu0 %10895
      %10897 = vrot.lane.b32.xlu0 %v7527, 108
      %v10898 = vpop.permute.xlu0 %10897
      %10899 = vrot.lane.b32.xlu0 %v7528, 108
      %v10900 = vpop.permute.xlu0 %10899
      %10901 = vrot.lane.b32.xlu0 %v7529, 108
      %v10902 = vpop.permute.xlu0 %10901
      %10903 = vrot.lane.b32.xlu0 %v7530, 108
      %v10904 = vpop.permute.xlu0 %10903
      %10905 = vrot.lane.b32.xlu0 %v7531, 108
      %v10906 = vpop.permute.xlu0 %10905
      %10907 = vrot.lane.b32.xlu0 %v7532, 108
      %v10908 = vpop.permute.xlu0 %10907
      %10909 = vrot.lane.b32.xlu0 %v7533, 108
      %v10910 = vpop.permute.xlu0 %10909
      %10911 = vrot.lane.b32.xlu0 %v7534, 108
      %v10912 = vpop.permute.xlu0 %10911
      %10913 = vrot.lane.b32.xlu0 %v7535, 108
      %v10914 = vpop.permute.xlu0 %10913
      %10915 = vrot.lane.b32.xlu0 %v7536, 108
      %v10916 = vpop.permute.xlu0 %10915
      %10917 = vrot.lane.b32.xlu0 %v7537, 108
      %v10918 = vpop.permute.xlu0 %10917
      %10919 = vrot.lane.b32.xlu0 %v7538, 108
      %v10920 = vpop.permute.xlu0 %10919
      %10921 = vrot.lane.b32.xlu0 %v7539, 108
      %v10922 = vpop.permute.xlu0 %10921
      %10923 = vrot.lane.b32.xlu0 %v7540, 108
      %v10924 = vpop.permute.xlu0 %10923
      %10925 = vrot.lane.b32.xlu0 %v7541, 108
      %v10926 = vpop.permute.xlu0 %10925
      %10927 = vrot.lane.b32.xlu0 %v7542, 108
      %v10928 = vpop.permute.xlu0 %10927
      %10929 = vrot.lane.b32.xlu0 %v7543, 108
      %v10930 = vpop.permute.xlu0 %10929
      %10931 = vrot.lane.b32.xlu0 %v7544, 108
      %v10932 = vpop.permute.xlu0 %10931
      %10933 = vrot.lane.b32.xlu0 %v7545, 108
      %v10934 = vpop.permute.xlu0 %10933
      %10935 = vrot.lane.b32.xlu0 %v7546, 108
      %v10936 = vpop.permute.xlu0 %10935
      %10937 = vrot.lane.b32.xlu0 %v7547, 108
      %v10938 = vpop.permute.xlu0 %10937
      %10939 = vrot.lane.b32.xlu0 %v7548, 108
      %v10940 = vpop.permute.xlu0 %10939
      %10941 = vrot.lane.b32.xlu0 %v7549, 108
      %v10942 = vpop.permute.xlu0 %10941
      %10943 = vrot.lane.b32.xlu0 %v7550, 108
      %v10944 = vpop.permute.xlu0 %10943
      %10945 = vrot.lane.b32.xlu0 %v7551, 108
      %v10946 = vpop.permute.xlu0 %10945
      %10947 = vrot.lane.b32.xlu0 %v7552, 108
      %v10948 = vpop.permute.xlu0 %10947
      %10949 = vrot.lane.b32.xlu0 %v7553, 108
      %v10950 = vpop.permute.xlu0 %10949
      %10951 = vrot.lane.b32.xlu0 %v7554, 108
      %v10952 = vpop.permute.xlu0 %10951
      %11017 = vrot.lane.b32.xlu0 %v7555, 124
      %v11018 = vpop.permute.xlu0 %11017
      %11019 = vrot.lane.b32.xlu0 %v7556, 124
      %v11020 = vpop.permute.xlu0 %11019
      %11021 = vrot.lane.b32.xlu0 %v7557, 124
      %v11022 = vpop.permute.xlu0 %11021
      %11023 = vrot.lane.b32.xlu0 %v7558, 124
      %v11024 = vpop.permute.xlu0 %11023
      %11025 = vrot.lane.b32.xlu0 %v7559, 124
      %v11026 = vpop.permute.xlu0 %11025
      %11027 = vrot.lane.b32.xlu0 %v7560, 124
      %v11028 = vpop.permute.xlu0 %11027
      %11029 = vrot.lane.b32.xlu0 %v7561, 124
      %v11030 = vpop.permute.xlu0 %11029
      %11031 = vrot.lane.b32.xlu0 %v7562, 124
      %v11032 = vpop.permute.xlu0 %11031
      %11033 = vrot.lane.b32.xlu0 %v7563, 124
      %v11034 = vpop.permute.xlu0 %11033
      %11035 = vrot.lane.b32.xlu0 %v7564, 124
      %v11036 = vpop.permute.xlu0 %11035
      %11037 = vrot.lane.b32.xlu0 %v7565, 124
      %v11038 = vpop.permute.xlu0 %11037
      %11039 = vrot.lane.b32.xlu0 %v7566, 124
      %v11040 = vpop.permute.xlu0 %11039
      %11041 = vrot.lane.b32.xlu0 %v7567, 124
      %v11042 = vpop.permute.xlu0 %11041
      %11043 = vrot.lane.b32.xlu0 %v7568, 124
      %v11044 = vpop.permute.xlu0 %11043
      %11045 = vrot.lane.b32.xlu0 %v7569, 124
      %v11046 = vpop.permute.xlu0 %11045
      %11047 = vrot.lane.b32.xlu0 %v7570, 124
      %v11048 = vpop.permute.xlu0 %11047
      %11049 = vrot.lane.b32.xlu0 %v7571, 124
      %v11050 = vpop.permute.xlu0 %11049
      %11051 = vrot.lane.b32.xlu0 %v7572, 124
      %v11052 = vpop.permute.xlu0 %11051
      %11053 = vrot.lane.b32.xlu0 %v7573, 124
      %v11054 = vpop.permute.xlu0 %11053
      %11055 = vrot.lane.b32.xlu0 %v7574, 124
      %v11056 = vpop.permute.xlu0 %11055
      %11057 = vrot.lane.b32.xlu0 %v7575, 124
      %v11058 = vpop.permute.xlu0 %11057
      %11059 = vrot.lane.b32.xlu0 %v7576, 124
      %v11060 = vpop.permute.xlu0 %11059
      %11061 = vrot.lane.b32.xlu0 %v7577, 124
      %v11062 = vpop.permute.xlu0 %11061
      %11063 = vrot.lane.b32.xlu0 %v7578, 124
      %v11064 = vpop.permute.xlu0 %11063
      %11065 = vrot.lane.b32.xlu0 %v7579, 124
      %v11066 = vpop.permute.xlu0 %11065
      %11067 = vrot.lane.b32.xlu0 %v7580, 124
      %v11068 = vpop.permute.xlu0 %11067
      %11069 = vrot.lane.b32.xlu0 %v7581, 124
      %v11070 = vpop.permute.xlu0 %11069
      %11071 = vrot.lane.b32.xlu0 %v7582, 124
      %v11072 = vpop.permute.xlu0 %11071
      %11073 = vrot.lane.b32.xlu0 %v7583, 124
      %v11074 = vpop.permute.xlu0 %11073
      %11075 = vrot.lane.b32.xlu0 %v7584, 124
      %v11076 = vpop.permute.xlu0 %11075
      %11077 = vrot.lane.b32.xlu0 %v7585, 124
      %v11078 = vpop.permute.xlu0 %11077
      %11079 = vrot.lane.b32.xlu0 %v7586, 124
      %v11080 = vpop.permute.xlu0 %11079
      %v11113 = vsel %vm2005, %v7235, %v9866
      %v11114 = vsel %vm2005, %v7236, %v9868
      %v11115 = vsel %vm2005, %v7237, %v9870
      %v11116 = vsel %vm2005, %v7238, %v9872
      %v11117 = vsel %vm2005, %v7239, %v9874
      %v11118 = vsel %vm2005, %v7240, %v9876
      %v11119 = vsel %vm2005, %v7241, %v9878
      %v11120 = vsel %vm2005, %v7242, %v9880
      %v11121 = vsel %vm2005, %v7243, %v9882
      %v11122 = vsel %vm2005, %v7244, %v9884
      %v11123 = vsel %vm2005, %v7245, %v9886
      %v11124 = vsel %vm2005, %v7246, %v9888
      %v11125 = vsel %vm2005, %v7247, %v9890
      %v11126 = vsel %vm2005, %v7248, %v9892
      %v11127 = vsel %vm2005, %v7249, %v9894
      %v11128 = vsel %vm2005, %v7250, %v9896
      %v11129 = vsel %vm2005, %v7251, %v9898
      %v11130 = vsel %vm2005, %v7252, %v9900
      %v11131 = vsel %vm2005, %v7253, %v9902
      %v11132 = vsel %vm2005, %v7254, %v9904
      %v11133 = vsel %vm2005, %v7255, %v9906
      %v11134 = vsel %vm2005, %v7256, %v9908
      %v11135 = vsel %vm2005, %v7257, %v9910
      %v11136 = vsel %vm2005, %v7258, %v9912
      %v11137 = vsel %vm2005, %v7259, %v9914
      %v11138 = vsel %vm2005, %v7260, %v9916
      %v11139 = vsel %vm2005, %v7261, %v9918
      %v11140 = vsel %vm2005, %v7262, %v9920
      %v11141 = vsel %vm2005, %v7263, %v9922
      %v11142 = vsel %vm2005, %v7264, %v9924
      %v11143 = vsel %vm2005, %v7265, %v9926
      %v11144 = vsel %vm2005, %v7266, %v9928
      %v11145 = vsel %vm2137, %v11113, %v9994
      %v11146 = vsel %vm2137, %v11114, %v9996
      %v11147 = vsel %vm2137, %v11115, %v9998
      %v11148 = vsel %vm2137, %v11116, %v10000
      %v11149 = vsel %vm2137, %v11117, %v10002
      %v11150 = vsel %vm2137, %v11118, %v10004
      %v11151 = vsel %vm2137, %v11119, %v10006
      %v11152 = vsel %vm2137, %v11120, %v10008
      %v11153 = vsel %vm2137, %v11121, %v10010
      %v11154 = vsel %vm2137, %v11122, %v10012
      %v11155 = vsel %vm2137, %v11123, %v10014
      %v11156 = vsel %vm2137, %v11124, %v10016
      %v11157 = vsel %vm2137, %v11125, %v10018
      %v11158 = vsel %vm2137, %v11126, %v10020
      %v11159 = vsel %vm2137, %v11127, %v10022
      %v11160 = vsel %vm2137, %v11128, %v10024
      %v11161 = vsel %vm2137, %v11129, %v10026
      %v11162 = vsel %vm2137, %v11130, %v10028
      %v11163 = vsel %vm2137, %v11131, %v10030
      %v11164 = vsel %vm2137, %v11132, %v10032
      %v11165 = vsel %vm2137, %v11133, %v10034
      %v11166 = vsel %vm2137, %v11134, %v10036
      %v11167 = vsel %vm2137, %v11135, %v10038
      %v11168 = vsel %vm2137, %v11136, %v10040
      %v11169 = vsel %vm2137, %v11137, %v10042
      %v11170 = vsel %vm2137, %v11138, %v10044
      %v11171 = vsel %vm2137, %v11139, %v10046
      %v11172 = vsel %vm2137, %v11140, %v10048
      %v11173 = vsel %vm2137, %v11141, %v10050
      %v11174 = vsel %vm2137, %v11142, %v10052
      %v11175 = vsel %vm2137, %v11143, %v10054
      %v11176 = vsel %vm2137, %v11144, %v10056
      %v11177 = vsel %vm2184, %v11145, %v10122
      %v11178 = vsel %vm2184, %v11146, %v10124
      %v11179 = vsel %vm2184, %v11147, %v10126
      %v11180 = vsel %vm2184, %v11148, %v10128
      %v11181 = vsel %vm2184, %v11149, %v10130
      %v11182 = vsel %vm2184, %v11150, %v10132
      %v11183 = vsel %vm2184, %v11151, %v10134
      %v11184 = vsel %vm2184, %v11152, %v10136
      %v11185 = vsel %vm2184, %v11153, %v10138
      %v11186 = vsel %vm2184, %v11154, %v10140
      %v11187 = vsel %vm2184, %v11155, %v10142
      %v11188 = vsel %vm2184, %v11156, %v10144
      %v11189 = vsel %vm2184, %v11157, %v10146
      %v11190 = vsel %vm2184, %v11158, %v10148
      %v11191 = vsel %vm2184, %v11159, %v10150
      %v11192 = vsel %vm2184, %v11160, %v10152
      %v11193 = vsel %vm2184, %v11161, %v10154
      %v11194 = vsel %vm2184, %v11162, %v10156
      %v11195 = vsel %vm2184, %v11163, %v10158
      %v11196 = vsel %vm2184, %v11164, %v10160
      %v11197 = vsel %vm2184, %v11165, %v10162
      %v11198 = vsel %vm2184, %v11166, %v10164
      %v11199 = vsel %vm2184, %v11167, %v10166
      %v11200 = vsel %vm2184, %v11168, %v10168
      %v11201 = vsel %vm2184, %v11169, %v10170
      %v11202 = vsel %vm2184, %v11170, %v10172
      %v11203 = vsel %vm2184, %v11171, %v10174
      %v11204 = vsel %vm2184, %v11172, %v10176
      %v11205 = vsel %vm2184, %v11173, %v10178
      %v11206 = vsel %vm2184, %v11174, %v10180
      %v11207 = vsel %vm2184, %v11175, %v10182
      %v11208 = vsel %vm2184, %v11176, %v10184
      %v11209 = vsel %vm6107, %v11177, %v10250
      %v11210 = vsel %vm6107, %v11178, %v10252
      %v11211 = vsel %vm6107, %v11179, %v10254
      %v11212 = vsel %vm6107, %v11180, %v10256
      %v11213 = vsel %vm6107, %v11181, %v10258
      %v11214 = vsel %vm6107, %v11182, %v10260
      %v11215 = vsel %vm6107, %v11183, %v10262
      %v11216 = vsel %vm6107, %v11184, %v10264
      %v11217 = vsel %vm6107, %v11185, %v10266
      %v11218 = vsel %vm6107, %v11186, %v10268
      %v11219 = vsel %vm6107, %v11187, %v10270
      %v11220 = vsel %vm6107, %v11188, %v10272
      %v11221 = vsel %vm6107, %v11189, %v10274
      %v11222 = vsel %vm6107, %v11190, %v10276
      %v11223 = vsel %vm6107, %v11191, %v10278
      %v11224 = vsel %vm6107, %v11192, %v10280
      %v11225 = vsel %vm6107, %v11193, %v10282
      %v11226 = vsel %vm6107, %v11194, %v10284
      %v11227 = vsel %vm6107, %v11195, %v10286
      %v11228 = vsel %vm6107, %v11196, %v10288
      %v11229 = vsel %vm6107, %v11197, %v10290
      %v11230 = vsel %vm6107, %v11198, %v10292
      %v11231 = vsel %vm6107, %v11199, %v10294
      %v11232 = vsel %vm6107, %v11200, %v10296
      %v11233 = vsel %vm6107, %v11201, %v10298
      %v11234 = vsel %vm6107, %v11202, %v10300
      %v11235 = vsel %vm6107, %v11203, %v10302
      %v11236 = vsel %vm6107, %v11204, %v10304
      %v11237 = vsel %vm6107, %v11205, %v10306
      %v11238 = vsel %vm6107, %v11206, %v10308
      %v11239 = vsel %vm6107, %v11207, %v10310
      %v11240 = vsel %vm6107, %v11208, %v10312
      %vm11241 = vcmask 556032
      %v11242 = vsel %vm11241, %v11209, %v10378
      %v11243 = vsel %vm11241, %v11210, %v10380
      %v11244 = vsel %vm11241, %v11211, %v10382
      %v11245 = vsel %vm11241, %v11212, %v10384
      %v11246 = vsel %vm11241, %v11213, %v10386
      %v11247 = vsel %vm11241, %v11214, %v10388
      %v11248 = vsel %vm11241, %v11215, %v10390
      %v11249 = vsel %vm11241, %v11216, %v10392
      %v11250 = vsel %vm11241, %v11217, %v10394
      %v11251 = vsel %vm11241, %v11218, %v10396
      %v11252 = vsel %vm11241, %v11219, %v10398
      %v11253 = vsel %vm11241, %v11220, %v10400
      %v11254 = vsel %vm11241, %v11221, %v10402
      %v11255 = vsel %vm11241, %v11222, %v10404
      %v11256 = vsel %vm11241, %v11223, %v10406
      %v11257 = vsel %vm11241, %v11224, %v10408
      %v11258 = vsel %vm11241, %v11225, %v10410
      %v11259 = vsel %vm11241, %v11226, %v10412
      %v11260 = vsel %vm11241, %v11227, %v10414
      %v11261 = vsel %vm11241, %v11228, %v10416
      %v11262 = vsel %vm11241, %v11229, %v10418
      %v11263 = vsel %vm11241, %v11230, %v10420
      %v11264 = vsel %vm11241, %v11231, %v10422
      %v11265 = vsel %vm11241, %v11232, %v10424
      %v11266 = vsel %vm11241, %v11233, %v10426
      %v11267 = vsel %vm11241, %v11234, %v10428
      %v11268 = vsel %vm11241, %v11235, %v10430
      %v11269 = vsel %vm11241, %v11236, %v10432
      %v11270 = vsel %vm11241, %v11237, %v10434
      %v11271 = vsel %vm11241, %v11238, %v10436
      %v11272 = vsel %vm11241, %v11239, %v10438
      %v11273 = vsel %vm11241, %v11240, %v10440
      %v11274 = vsel %vm9540, %v11242, %v10506
      %v11275 = vsel %vm9540, %v11243, %v10508
      %v11276 = vsel %vm9540, %v11244, %v10510
      %v11277 = vsel %vm9540, %v11245, %v10512
      %v11278 = vsel %vm9540, %v11246, %v10514
      %v11279 = vsel %vm9540, %v11247, %v10516
      %v11280 = vsel %vm9540, %v11248, %v10518
      %v11281 = vsel %vm9540, %v11249, %v10520
      %v11282 = vsel %vm9540, %v11250, %v10522
      %v11283 = vsel %vm9540, %v11251, %v10524
      %v11284 = vsel %vm9540, %v11252, %v10526
      %v11285 = vsel %vm9540, %v11253, %v10528
      %v11286 = vsel %vm9540, %v11254, %v10530
      %v11287 = vsel %vm9540, %v11255, %v10532
      %v11288 = vsel %vm9540, %v11256, %v10534
      %v11289 = vsel %vm9540, %v11257, %v10536
      %v11290 = vsel %vm9540, %v11258, %v10538
      %v11291 = vsel %vm9540, %v11259, %v10540
      %v11292 = vsel %vm9540, %v11260, %v10542
      %v11293 = vsel %vm9540, %v11261, %v10544
      %v11294 = vsel %vm9540, %v11262, %v10546
      %v11295 = vsel %vm9540, %v11263, %v10548
      %v11296 = vsel %vm9540, %v11264, %v10550
      %v11297 = vsel %vm9540, %v11265, %v10552
      %v11298 = vsel %vm9540, %v11266, %v10554
      %v11299 = vsel %vm9540, %v11267, %v10556
      %v11300 = vsel %vm9540, %v11268, %v10558
      %v11301 = vsel %vm9540, %v11269, %v10560
      %v11302 = vsel %vm9540, %v11270, %v10562
      %v11303 = vsel %vm9540, %v11271, %v10564
      %v11304 = vsel %vm9540, %v11272, %v10566
      %v11305 = vsel %vm9540, %v11273, %v10568
      %vm11306 = vcmask 719872
      %v11307 = vsel %vm11306, %v11274, %v10634
      %v11308 = vsel %vm11306, %v11275, %v10636
      %v11309 = vsel %vm11306, %v11276, %v10638
      %v11310 = vsel %vm11306, %v11277, %v10640
      %v11311 = vsel %vm11306, %v11278, %v10642
      %v11312 = vsel %vm11306, %v11279, %v10644
      %v11313 = vsel %vm11306, %v11280, %v10646
      %v11314 = vsel %vm11306, %v11281, %v10648
      %v11315 = vsel %vm11306, %v11282, %v10650
      %v11316 = vsel %vm11306, %v11283, %v10652
      %v11317 = vsel %vm11306, %v11284, %v10654
      %v11318 = vsel %vm11306, %v11285, %v10656
      %v11319 = vsel %vm11306, %v11286, %v10658
      %v11320 = vsel %vm11306, %v11287, %v10660
      %v11321 = vsel %vm11306, %v11288, %v10662
      %v11322 = vsel %vm11306, %v11289, %v10664
      %v11323 = vsel %vm11306, %v11290, %v10666
      %v11324 = vsel %vm11306, %v11291, %v10668
      %v11325 = vsel %vm11306, %v11292, %v10670
      %v11326 = vsel %vm11306, %v11293, %v10672
      %v11327 = vsel %vm11306, %v11294, %v10674
      %v11328 = vsel %vm11306, %v11295, %v10676
      %v11329 = vsel %vm11306, %v11296, %v10678
      %v11330 = vsel %vm11306, %v11297, %v10680
      %v11331 = vsel %vm11306, %v11298, %v10682
      %v11332 = vsel %vm11306, %v11299, %v10684
      %v11333 = vsel %vm11306, %v11300, %v10686
      %v11334 = vsel %vm11306, %v11301, %v10688
      %v11335 = vsel %vm11306, %v11302, %v10690
      %v11336 = vsel %vm11306, %v11303, %v10692
      %v11337 = vsel %vm11306, %v11304, %v10694
      %v11338 = vsel %vm11306, %v11305, %v10696
      %v11339 = vsel %vm5608, %v11307, %v10762
      %v11340 = vsel %vm5608, %v11308, %v10764
      %v11341 = vsel %vm5608, %v11309, %v10766
      %v11342 = vsel %vm5608, %v11310, %v10768
      %v11343 = vsel %vm5608, %v11311, %v10770
      %v11344 = vsel %vm5608, %v11312, %v10772
      %v11345 = vsel %vm5608, %v11313, %v10774
      %v11346 = vsel %vm5608, %v11314, %v10776
      %v11347 = vsel %vm5608, %v11315, %v10778
      %v11348 = vsel %vm5608, %v11316, %v10780
      %v11349 = vsel %vm5608, %v11317, %v10782
      %v11350 = vsel %vm5608, %v11318, %v10784
      %v11351 = vsel %vm5608, %v11319, %v10786
      %v11352 = vsel %vm5608, %v11320, %v10788
      %v11353 = vsel %vm5608, %v11321, %v10790
      %v11354 = vsel %vm5608, %v11322, %v10792
      %v11355 = vsel %vm5608, %v11323, %v10794
      %v11356 = vsel %vm5608, %v11324, %v10796
      %v11357 = vsel %vm5608, %v11325, %v10798
      %v11358 = vsel %vm5608, %v11326, %v10800
      %v11359 = vsel %vm5608, %v11327, %v10802
      %v11360 = vsel %vm5608, %v11328, %v10804
      %v11361 = vsel %vm5608, %v11329, %v10806
      %v11362 = vsel %vm5608, %v11330, %v10808
      %v11363 = vsel %vm5608, %v11331, %v10810
      %v11364 = vsel %vm5608, %v11332, %v10812
      %v11365 = vsel %vm5608, %v11333, %v10814
      %v11366 = vsel %vm5608, %v11334, %v10816
      %v11367 = vsel %vm5608, %v11335, %v10818
      %v11368 = vsel %vm5608, %v11336, %v10820
      %v11369 = vsel %vm5608, %v11337, %v10822
      %v11370 = vsel %vm5608, %v11338, %v10824
      %v11371 = vsel %vm9639, %v11339, %v10890
      %v11372 = vsel %vm9639, %v11340, %v10892
      %v11373 = vsel %vm9639, %v11341, %v10894
      %v11374 = vsel %vm9639, %v11342, %v10896
      %v11375 = vsel %vm9639, %v11343, %v10898
      %v11376 = vsel %vm9639, %v11344, %v10900
      %v11377 = vsel %vm9639, %v11345, %v10902
      %v11378 = vsel %vm9639, %v11346, %v10904
      %v11379 = vsel %vm9639, %v11347, %v10906
      %v11380 = vsel %vm9639, %v11348, %v10908
      %v11381 = vsel %vm9639, %v11349, %v10910
      %v11382 = vsel %vm9639, %v11350, %v10912
      %v11383 = vsel %vm9639, %v11351, %v10914
      %v11384 = vsel %vm9639, %v11352, %v10916
      %v11385 = vsel %vm9639, %v11353, %v10918
      %v11386 = vsel %vm9639, %v11354, %v10920
      %v11387 = vsel %vm9639, %v11355, %v10922
      %v11388 = vsel %vm9639, %v11356, %v10924
      %v11389 = vsel %vm9639, %v11357, %v10926
      %v11390 = vsel %vm9639, %v11358, %v10928
      %v11391 = vsel %vm9639, %v11359, %v10930
      %v11392 = vsel %vm9639, %v11360, %v10932
      %v11393 = vsel %vm9639, %v11361, %v10934
      %v11394 = vsel %vm9639, %v11362, %v10936
      %v11395 = vsel %vm9639, %v11363, %v10938
      %v11396 = vsel %vm9639, %v11364, %v10940
      %v11397 = vsel %vm9639, %v11365, %v10942
      %v11398 = vsel %vm9639, %v11366, %v10944
      %v11399 = vsel %vm9639, %v11367, %v10946
      %v11400 = vsel %vm9639, %v11368, %v10948
      %v11401 = vsel %vm9639, %v11369, %v10950
      %v11402 = vsel %vm9639, %v11370, %v10952
      %v11403 = vsel %vm5674, %v11371, %v11018
      %v11404 = vsel %vm5674, %v11372, %v11020
      %v11405 = vsel %vm5674, %v11373, %v11022
      %v11406 = vsel %vm5674, %v11374, %v11024
      %v11407 = vsel %vm5674, %v11375, %v11026
      %v11408 = vsel %vm5674, %v11376, %v11028
      %v11409 = vsel %vm5674, %v11377, %v11030
      %v11410 = vsel %vm5674, %v11378, %v11032
      %v11411 = vsel %vm5674, %v11379, %v11034
      %v11412 = vsel %vm5674, %v11380, %v11036
      %v11413 = vsel %vm5674, %v11381, %v11038
      %v11414 = vsel %vm5674, %v11382, %v11040
      %v11415 = vsel %vm5674, %v11383, %v11042
      %v11416 = vsel %vm5674, %v11384, %v11044
      %v11417 = vsel %vm5674, %v11385, %v11046
      %v11418 = vsel %vm5674, %v11386, %v11048
      %v11419 = vsel %vm5674, %v11387, %v11050
      %v11420 = vsel %vm5674, %v11388, %v11052
      %v11421 = vsel %vm5674, %v11389, %v11054
      %v11422 = vsel %vm5674, %v11390, %v11056
      %v11423 = vsel %vm5674, %v11391, %v11058
      %v11424 = vsel %vm5674, %v11392, %v11060
      %v11425 = vsel %vm5674, %v11393, %v11062
      %v11426 = vsel %vm5674, %v11394, %v11064
      %v11427 = vsel %vm5674, %v11395, %v11066
      %v11428 = vsel %vm5674, %v11396, %v11068
      %v11429 = vsel %vm5674, %v11397, %v11070
      %v11430 = vsel %vm5674, %v11398, %v11072
      %v11431 = vsel %vm5674, %v11399, %v11074
      %v11432 = vsel %vm5674, %v11400, %v11076
      %v11433 = vsel %vm5674, %v11401, %v11078
      %v11434 = vsel %vm5674, %v11402, %v11080
      %11467 = vrot.lane.b32.xlu0 %v11403, 56
      %v11468 = vpop.permute.xlu0 %11467
      %11469 = vrot.lane.b32.xlu0 %v11018, 56
      %v11470 = vpop.permute.xlu0 %11469
      %11471 = vrot.lane.b32.xlu0 %v11404, 56
      %v11472 = vpop.permute.xlu0 %11471
      %11473 = vrot.lane.b32.xlu0 %v11020, 56
      %v11474 = vpop.permute.xlu0 %11473
      %11475 = vrot.lane.b32.xlu0 %v11405, 56
      %v11476 = vpop.permute.xlu0 %11475
      %11477 = vrot.lane.b32.xlu0 %v11022, 56
      %v11478 = vpop.permute.xlu0 %11477
      %11479 = vrot.lane.b32.xlu0 %v11406, 56
      %v11480 = vpop.permute.xlu0 %11479
      %11481 = vrot.lane.b32.xlu0 %v11024, 56
      %v11482 = vpop.permute.xlu0 %11481
      %11483 = vrot.lane.b32.xlu0 %v11407, 56
      %v11484 = vpop.permute.xlu0 %11483
      %11485 = vrot.lane.b32.xlu0 %v11026, 56
      %v11486 = vpop.permute.xlu0 %11485
      %11487 = vrot.lane.b32.xlu0 %v11408, 56
      %v11488 = vpop.permute.xlu0 %11487
      %11489 = vrot.lane.b32.xlu0 %v11028, 56
      %v11490 = vpop.permute.xlu0 %11489
      %11491 = vrot.lane.b32.xlu0 %v11409, 56
      %v11492 = vpop.permute.xlu0 %11491
      %11493 = vrot.lane.b32.xlu0 %v11030, 56
      %v11494 = vpop.permute.xlu0 %11493
      %11495 = vrot.lane.b32.xlu0 %v11410, 56
      %v11496 = vpop.permute.xlu0 %11495
      %11497 = vrot.lane.b32.xlu0 %v11032, 56
      %v11498 = vpop.permute.xlu0 %11497
      %11499 = vrot.lane.b32.xlu0 %v11411, 56
      %v11500 = vpop.permute.xlu0 %11499
      %11501 = vrot.lane.b32.xlu0 %v11034, 56
      %v11502 = vpop.permute.xlu0 %11501
      %11503 = vrot.lane.b32.xlu0 %v11412, 56
      %v11504 = vpop.permute.xlu0 %11503
      %11505 = vrot.lane.b32.xlu0 %v11036, 56
      %v11506 = vpop.permute.xlu0 %11505
      %11507 = vrot.lane.b32.xlu0 %v11413, 56
      %v11508 = vpop.permute.xlu0 %11507
      %11509 = vrot.lane.b32.xlu0 %v11038, 56
      %v11510 = vpop.permute.xlu0 %11509
      %11511 = vrot.lane.b32.xlu0 %v11414, 56
      %v11512 = vpop.permute.xlu0 %11511
      %11513 = vrot.lane.b32.xlu0 %v11040, 56
      %v11514 = vpop.permute.xlu0 %11513
      %11515 = vrot.lane.b32.xlu0 %v11415, 56
      %v11516 = vpop.permute.xlu0 %11515
      %11517 = vrot.lane.b32.xlu0 %v11042, 56
      %v11518 = vpop.permute.xlu0 %11517
      %11519 = vrot.lane.b32.xlu0 %v11416, 56
      %v11520 = vpop.permute.xlu0 %11519
      %11521 = vrot.lane.b32.xlu0 %v11044, 56
      %v11522 = vpop.permute.xlu0 %11521
      %11523 = vrot.lane.b32.xlu0 %v11417, 56
      %v11524 = vpop.permute.xlu0 %11523
      %11525 = vrot.lane.b32.xlu0 %v11046, 56
      %v11526 = vpop.permute.xlu0 %11525
      %11527 = vrot.lane.b32.xlu0 %v11418, 56
      %v11528 = vpop.permute.xlu0 %11527
      %11529 = vrot.lane.b32.xlu0 %v11048, 56
      %v11530 = vpop.permute.xlu0 %11529
      %11531 = vrot.lane.b32.xlu0 %v11419, 56
      %v11532 = vpop.permute.xlu0 %11531
      %11533 = vrot.lane.b32.xlu0 %v11050, 56
      %v11534 = vpop.permute.xlu0 %11533
      %11535 = vrot.lane.b32.xlu0 %v11420, 56
      %v11536 = vpop.permute.xlu0 %11535
      %11537 = vrot.lane.b32.xlu0 %v11052, 56
      %v11538 = vpop.permute.xlu0 %11537
      %11539 = vrot.lane.b32.xlu0 %v11421, 56
      %v11540 = vpop.permute.xlu0 %11539
      %11541 = vrot.lane.b32.xlu0 %v11054, 56
      %v11542 = vpop.permute.xlu0 %11541
      %11543 = vrot.lane.b32.xlu0 %v11422, 56
      %v11544 = vpop.permute.xlu0 %11543
      %11545 = vrot.lane.b32.xlu0 %v11056, 56
      %v11546 = vpop.permute.xlu0 %11545
      %11547 = vrot.lane.b32.xlu0 %v11423, 56
      %v11548 = vpop.permute.xlu0 %11547
      %11549 = vrot.lane.b32.xlu0 %v11058, 56
      %v11550 = vpop.permute.xlu0 %11549
      %11551 = vrot.lane.b32.xlu0 %v11424, 56
      %v11552 = vpop.permute.xlu0 %11551
      %11553 = vrot.lane.b32.xlu0 %v11060, 56
      %v11554 = vpop.permute.xlu0 %11553
      %11555 = vrot.lane.b32.xlu0 %v11425, 56
      %v11556 = vpop.permute.xlu0 %11555
      %11557 = vrot.lane.b32.xlu0 %v11062, 56
      %v11558 = vpop.permute.xlu0 %11557
      %11559 = vrot.lane.b32.xlu0 %v11426, 56
      %v11560 = vpop.permute.xlu0 %11559
      %11561 = vrot.lane.b32.xlu0 %v11064, 56
      %v11562 = vpop.permute.xlu0 %11561
      %11563 = vrot.lane.b32.xlu0 %v11427, 56
      %v11564 = vpop.permute.xlu0 %11563
      %11565 = vrot.lane.b32.xlu0 %v11066, 56
      %v11566 = vpop.permute.xlu0 %11565
      %11567 = vrot.lane.b32.xlu0 %v11428, 56
      %v11568 = vpop.permute.xlu0 %11567
      %11569 = vrot.lane.b32.xlu0 %v11068, 56
      %v11570 = vpop.permute.xlu0 %11569
      %11571 = vrot.lane.b32.xlu0 %v11429, 56
      %v11572 = vpop.permute.xlu0 %11571
      %11573 = vrot.lane.b32.xlu0 %v11070, 56
      %v11574 = vpop.permute.xlu0 %11573
      %11575 = vrot.lane.b32.xlu0 %v11430, 56
      %v11576 = vpop.permute.xlu0 %11575
      %11577 = vrot.lane.b32.xlu0 %v11072, 56
      %v11578 = vpop.permute.xlu0 %11577
      %11579 = vrot.lane.b32.xlu0 %v11431, 56
      %v11580 = vpop.permute.xlu0 %11579
      %11581 = vrot.lane.b32.xlu0 %v11074, 56
      %v11582 = vpop.permute.xlu0 %11581
      %11583 = vrot.lane.b32.xlu0 %v11432, 56
      %v11584 = vpop.permute.xlu0 %11583
      %11585 = vrot.lane.b32.xlu0 %v11076, 56
      %v11586 = vpop.permute.xlu0 %11585
      %11587 = vrot.lane.b32.xlu0 %v11433, 56
      %v11588 = vpop.permute.xlu0 %11587
      %11589 = vrot.lane.b32.xlu0 %v11078, 56
      %v11590 = vpop.permute.xlu0 %11589
      %11591 = vrot.lane.b32.xlu0 %v11434, 56
      %v11592 = vpop.permute.xlu0 %11591
      %11593 = vrot.lane.b32.xlu0 %v11080, 56
      %v11594 = vpop.permute.xlu0 %11593
      %v11595 = vsel %vm9507, %v11468, %v11470
      %v11596 = vsel %vm9507, %v11472, %v11474
      %v11597 = vsel %vm9507, %v11476, %v11478
      %v11598 = vsel %vm9507, %v11480, %v11482
      %v11599 = vsel %vm9507, %v11484, %v11486
      %v11600 = vsel %vm9507, %v11488, %v11490
      %v11601 = vsel %vm9507, %v11492, %v11494
      %v11602 = vsel %vm9507, %v11496, %v11498
      %v11603 = vsel %vm9507, %v11500, %v11502
      %v11604 = vsel %vm9507, %v11504, %v11506
      %v11605 = vsel %vm9507, %v11508, %v11510
      %v11606 = vsel %vm9507, %v11512, %v11514
      %v11607 = vsel %vm9507, %v11516, %v11518
      %v11608 = vsel %vm9507, %v11520, %v11522
      %v11609 = vsel %vm9507, %v11524, %v11526
      %v11610 = vsel %vm9507, %v11528, %v11530
      %v11611 = vsel %vm9507, %v11532, %v11534
      %v11612 = vsel %vm9507, %v11536, %v11538
      %v11613 = vsel %vm9507, %v11540, %v11542
      %v11614 = vsel %vm9507, %v11544, %v11546
      %v11615 = vsel %vm9507, %v11548, %v11550
      %v11616 = vsel %vm9507, %v11552, %v11554
      %v11617 = vsel %vm9507, %v11556, %v11558
      %v11618 = vsel %vm9507, %v11560, %v11562
      %v11619 = vsel %vm9507, %v11564, %v11566
      %v11620 = vsel %vm9507, %v11568, %v11570
      %v11621 = vsel %vm9507, %v11572, %v11574
      %v11622 = vsel %vm9507, %v11576, %v11578
      %v11623 = vsel %vm9507, %v11580, %v11582
      %v11624 = vsel %vm9507, %v11584, %v11586
      %v11625 = vsel %vm9507, %v11588, %v11590
      %v11626 = vsel %vm9507, %v11592, %v11594
      %v11659 = vsel %vm9507, %v9801, %v11468
      %v11660 = vsel %vm9507, %v9802, %v11472
      %v11661 = vsel %vm9507, %v9803, %v11476
      %v11662 = vsel %vm9507, %v9804, %v11480
      %v11663 = vsel %vm9507, %v9805, %v11484
      %v11664 = vsel %vm9507, %v9806, %v11488
      %v11665 = vsel %vm9507, %v9807, %v11492
      %v11666 = vsel %vm9507, %v9808, %v11496
      %v11667 = vsel %vm9507, %v9809, %v11500
      %v11668 = vsel %vm9507, %v9810, %v11504
      %v11669 = vsel %vm9507, %v9811, %v11508
      %v11670 = vsel %vm9507, %v9812, %v11512
      %v11671 = vsel %vm9507, %v9813, %v11516
      %v11672 = vsel %vm9507, %v9814, %v11520
      %v11673 = vsel %vm9507, %v9815, %v11524
      %v11674 = vsel %vm9507, %v9816, %v11528
      %v11675 = vsel %vm9507, %v9817, %v11532
      %v11676 = vsel %vm9507, %v9818, %v11536
      %v11677 = vsel %vm9507, %v9819, %v11540
      %v11678 = vsel %vm9507, %v9820, %v11544
      %v11679 = vsel %vm9507, %v9821, %v11548
      %v11680 = vsel %vm9507, %v9822, %v11552
      %v11681 = vsel %vm9507, %v9823, %v11556
      %v11682 = vsel %vm9507, %v9824, %v11560
      %v11683 = vsel %vm9507, %v9825, %v11564
      %v11684 = vsel %vm9507, %v9826, %v11568
      %v11685 = vsel %vm9507, %v9827, %v11572
      %v11686 = vsel %vm9507, %v9828, %v11576
      %v11687 = vsel %vm9507, %v9829, %v11580
      %v11688 = vsel %vm9507, %v9830, %v11584
      %v11689 = vsel %vm9507, %v9831, %v11588
      %v11690 = vsel %vm9507, %v9832, %v11592
      %v11691 = vld [vmem:[%s4] sm:$0xff]
      %v11692 = vld [vmem:[%s4 + $0x8] sm:$0xff]
      %v11693 = vld [vmem:[%s4 + $0x10] sm:$0xff]
      %v11694 = vld [vmem:[%s4 + $0x18] sm:$0xff]
      %v11695 = vld [vmem:[%s4 + $0x20] sm:$0xff]
      %v11696 = vld [vmem:[%s4 + $0x28] sm:$0xff]
      %v11697 = vld [vmem:[%s7] sm:$0xff]
      %v11698 = vld [vmem:[%s7 + $0x8] sm:$0xff]
      %11700 = vset.pattern.permute.xlu0 0
      %11701 = vperm.xlu0 %11700, %v11697
      %v11702 = vpop.permute.xlu0 %11701
      %11705 = vset.pattern.permute.xlu0 0
      %11706 = vperm.xlu0 %11705, %v11698
      %v11707 = vpop.permute.xlu0 %11706
      %v11710 = vsel %vm11241, %v11693, 0
      %v11713 = vsel %vm11241, %v11696, 0
      %v11715 = vsel %vm11241, %v11595, 0
      %v11717 = vsel %vm11241, %v11596, 0
      %v11719 = vsel %vm11241, %v11597, 0
      %v11721 = vsel %vm11241, %v11598, 0
      %v11723 = vsel %vm11241, %v11599, 0
      %v11725 = vsel %vm11241, %v11600, 0
      %v11727 = vsel %vm11241, %v11601, 0
      %v11729 = vsel %vm11241, %v11602, 0
      %v11731 = vsel %vm11241, %v11603, 0
      %v11733 = vsel %vm11241, %v11604, 0
      %v11735 = vsel %vm11241, %v11605, 0
      %v11737 = vsel %vm11241, %v11606, 0
      %v11739 = vsel %vm11241, %v11607, 0
      %v11741 = vsel %vm11241, %v11608, 0
      %v11743 = vsel %vm11241, %v11609, 0
      %v11745 = vsel %vm11241, %v11610, 0
      %v11747 = vsel %vm11241, %v11611, 0
      %v11749 = vsel %vm11241, %v11612, 0
      %v11751 = vsel %vm11241, %v11613, 0
      %v11753 = vsel %vm11241, %v11614, 0
      %v11755 = vsel %vm11241, %v11615, 0
      %v11757 = vsel %vm11241, %v11616, 0
      %v11759 = vsel %vm11241, %v11617, 0
      %v11761 = vsel %vm11241, %v11618, 0
      %v11763 = vsel %vm11241, %v11619, 0
      %v11765 = vsel %vm11241, %v11620, 0
      %v11767 = vsel %vm11241, %v11621, 0
      %v11769 = vsel %vm11241, %v11622, 0
      %v11771 = vsel %vm11241, %v11623, 0
      %v11773 = vsel %vm11241, %v11624, 0
      %v11775 = vsel %vm11241, %v11625, 0
      %v11777 = vsel %vm11241, %v11626, 0
      %11779 = vmatprep.subr.mxu0 %v11659
      %11780 = vmatpush1.xpose.msra.mxu0 %v9673
      %11781 = vmatprep.subr.mxu0 %v11660
      %11782 = vmatpush1.xpose.msra.mxu0 %v9674
      %11783 = vmatprep.subr.mxu0 %v11661
      %11784 = vmatpush1.xpose.msra.mxu0 %v9675
      %11785 = vmatprep.subr.mxu0 %v11662
      %11786 = vmatpush1.xpose.msra.mxu0 %v9676
      %11787 = vmatprep.subr.mxu0 %v11663
      %11788 = vmatpush1.xpose.msra.mxu0 %v9677
      %11789 = vmatprep.subr.mxu0 %v11664
      %11790 = vmatpush1.xpose.msra.mxu0 %v9678
      %11791 = vmatprep.subr.mxu0 %v11665
      %11792 = vmatpush1.xpose.msra.mxu0 %v9679
      %11793 = vmatprep.subr.mxu0 %v11666
      %11794 = vmatpush1.xpose.msra.mxu0 %v9680
      %11795 = vmatprep.subr.mxu0 %v11667
      %11796 = vmatpush1.xpose.msra.mxu0 %v9681
      %11797 = vmatprep.subr.mxu0 %v11668
      %11798 = vmatpush1.xpose.msra.mxu0 %v9682
      %11799 = vmatprep.subr.mxu0 %v11669
      %11800 = vmatpush1.xpose.msra.mxu0 %v9683
      %11801 = vmatprep.subr.mxu0 %v11670
      %11802 = vmatpush1.xpose.msra.mxu0 %v9684
      %11803 = vmatprep.subr.mxu0 %v11671
      %11804 = vmatpush1.xpose.msra.mxu0 %v9685
      %11805 = vmatprep.subr.mxu0 %v11672
      %11806 = vmatpush1.xpose.msra.mxu0 %v9686
      %11807 = vmatprep.subr.mxu0 %v11673
      %11808 = vmatpush1.xpose.msra.mxu0 %v9687
      %11809 = vmatprep.subr.mxu0 %v11674
      %11810 = vmatpush1.xpose.msra.mxu0 %v9688
      %11811 = vmatprep.subr.mxu0 %v11675
      %11812 = vmatpush1.xpose.msra.mxu0 %v9689
      %11813 = vmatprep.subr.mxu0 %v11676
      %11814 = vmatpush1.xpose.msra.mxu0 %v9690
      %11815 = vmatprep.subr.mxu0 %v11677
      %11816 = vmatpush1.xpose.msra.mxu0 %v9691
      %11817 = vmatprep.subr.mxu0 %v11678
      %11818 = vmatpush1.xpose.msra.mxu0 %v9692
      %11819 = vmatprep.subr.mxu0 %v11679
      %11820 = vmatpush1.xpose.msra.mxu0 %v9693
      %11821 = vmatprep.subr.mxu0 %v11680
      %11822 = vmatpush1.xpose.msra.mxu0 %v9694
      %11823 = vmatprep.subr.mxu0 %v11681
      %11824 = vmatpush1.xpose.msra.mxu0 %v9695
      %11825 = vmatprep.subr.mxu0 %v11682
      %11826 = vmatpush1.xpose.msra.mxu0 %v9696
      %11827 = vmatprep.subr.mxu0 %v11683
      %11828 = vmatpush1.xpose.msra.mxu0 %v9697
      %11829 = vmatprep.subr.mxu0 %v11684
      %11830 = vmatpush1.xpose.msra.mxu0 %v9698
      %11831 = vmatprep.subr.mxu0 %v11685
      %11832 = vmatpush1.xpose.msra.mxu0 %v9699
      %11833 = vmatprep.subr.mxu0 %v11686
      %11834 = vmatpush1.xpose.msra.mxu0 %v9700
      %11835 = vmatprep.subr.mxu0 %v11687
      %11836 = vmatpush1.xpose.msra.mxu0 %v9701
      %11837 = vmatprep.subr.mxu0 %v11688
      %11838 = vmatpush1.xpose.msra.mxu0 %v9702
      %11839 = vmatprep.subr.mxu0 %v11689
      %11840 = vmatpush1.xpose.msra.mxu0 %v9703
      %11841 = vmatprep.subr.mxu0 %v11690
      %11842 = vmatpush1.xpose.msra.mxu0 %v9704
      %11843 = vmatprep.mubr.f32.mxu0 %v11692
      %11844 = vmatmul.mubr.f32.gmra.mrb[0].mxu0 %v11691
      %v11845 = vpop.f32.mrb[0].mxu0
      %v11846 = vadd.f32 %v11702, %v11845
      %v11847 = vpop.f32.mrb[0].mxu0
      %v11848 = vadd.f32 %v11702, %v11847
      %11849 = vmatprep.mubr.f32.mxu0 %v11695
      %11850 = vmatmul.mubr.f32.gmra.mrb[0].mxu0 %v11694
      %v11851 = vpop.f32.mrb[0].mxu0
      %v11852 = vadd.f32 %v11707, %v11851
      %v11853 = vpop.f32.mrb[0].mxu0
      %v11854 = vadd.f32 %v11707, %v11853
      %11855 = vdwg.mxu0
      %11856 = vmatprep.subr.mxu0 0.0
      %11857 = vmatpush1.xpose.msra.mxu0 %v11715
      %11858 = vmatprep.subr.mxu0 0.0
      %11859 = vmatpush1.xpose.msra.mxu0 %v11717
      %11860 = vmatprep.subr.mxu0 0.0
      %11861 = vmatpush1.xpose.msra.mxu0 %v11719
      %11862 = vmatprep.subr.mxu0 0.0
      %11863 = vmatpush1.xpose.msra.mxu0 %v11721
      %11864 = vmatprep.subr.mxu0 0.0
      %11865 = vmatpush1.xpose.msra.mxu0 %v11723
      %11866 = vmatprep.subr.mxu0 0.0
      %11867 = vmatpush1.xpose.msra.mxu0 %v11725
      %11868 = vmatprep.subr.mxu0 0.0
      %11869 = vmatpush1.xpose.msra.mxu0 %v11727
      %11870 = vmatprep.subr.mxu0 0.0
      %11871 = vmatpush1.xpose.msra.mxu0 %v11729
      %11872 = vmatprep.subr.mxu0 0.0
      %11873 = vmatpush1.xpose.msra.mxu0 %v11731
      %11874 = vmatprep.subr.mxu0 0.0
      %11875 = vmatpush1.xpose.msra.mxu0 %v11733
      %11876 = vmatprep.subr.mxu0 0.0
      %11877 = vmatpush1.xpose.msra.mxu0 %v11735
      %11878 = vmatprep.subr.mxu0 0.0
      %11879 = vmatpush1.xpose.msra.mxu0 %v11737
      %11880 = vmatprep.subr.mxu0 0.0
      %11881 = vmatpush1.xpose.msra.mxu0 %v11739
      %11882 = vmatprep.subr.mxu0 0.0
      %11883 = vmatpush1.xpose.msra.mxu0 %v11741
      %11884 = vmatprep.subr.mxu0 0.0
      %11885 = vmatpush1.xpose.msra.mxu0 %v11743
      %11886 = vmatprep.subr.mxu0 0.0
      %11887 = vmatpush1.xpose.msra.mxu0 %v11745
      %11888 = vmatprep.subr.mxu0 0.0
      %11889 = vmatpush1.xpose.msra.mxu0 %v11747
      %11890 = vmatprep.subr.mxu0 0.0
      %11891 = vmatpush1.xpose.msra.mxu0 %v11749
      %11892 = vmatprep.subr.mxu0 0.0
      %11893 = vmatpush1.xpose.msra.mxu0 %v11751
      %11894 = vmatprep.subr.mxu0 0.0
      %11895 = vmatpush1.xpose.msra.mxu0 %v11753
      %11896 = vmatprep.subr.mxu0 0.0
      %11897 = vmatpush1.xpose.msra.mxu0 %v11755
      %11898 = vmatprep.subr.mxu0 0.0
      %11899 = vmatpush1.xpose.msra.mxu0 %v11757
      %11900 = vmatprep.subr.mxu0 0.0
      %11901 = vmatpush1.xpose.msra.mxu0 %v11759
      %11902 = vmatprep.subr.mxu0 0.0
      %11903 = vmatpush1.xpose.msra.mxu0 %v11761
      %11904 = vmatprep.subr.mxu0 0.0
      %11905 = vmatpush1.xpose.msra.mxu0 %v11763
      %11906 = vmatprep.subr.mxu0 0.0
      %11907 = vmatpush1.xpose.msra.mxu0 %v11765
      %11908 = vmatprep.subr.mxu0 0.0
      %11909 = vmatpush1.xpose.msra.mxu0 %v11767
      %11910 = vmatprep.subr.mxu0 0.0
      %11911 = vmatpush1.xpose.msra.mxu0 %v11769
      %11912 = vmatprep.subr.mxu0 0.0
      %11913 = vmatpush1.xpose.msra.mxu0 %v11771
      %11914 = vmatprep.subr.mxu0 0.0
      %11915 = vmatpush1.xpose.msra.mxu0 %v11773
      %11916 = vmatprep.subr.mxu0 0.0
      %11917 = vmatpush1.xpose.msra.mxu0 %v11775
      %11918 = vmatprep.subr.mxu0 0.0
      %11919 = vmatpush1.xpose.msra.mxu0 %v11777
      %11920 = vmatprep.mubr.f32.mxu0 0.0
      %11921 = vmatmul.mubr.f32.gmra.mrb[0].mxu0 %v11710
      %v11922 = vpop.f32.mrb[0].mxu0
      %v11923 = vadd.f32 %v11846, %v11922
      %v11924 = vpop.f32.mrb[0].mxu0
      %v11925 = vadd.f32 %v11848, %v11924
      %11926 = vmatprep.mubr.f32.mxu0 0.0
      %11927 = vmatmul.mubr.f32.gmra.mrb[0].mxu0 %v11713
      %v11928 = vpop.f32.mrb[0].mxu0
      %v11929 = vadd.f32 %v11852, %v11928
      %v11930 = vpop.f32.mrb[0].mxu0
      %v11931 = vadd.f32 %v11854, %v11930
      %11932 = vdwg.mxu0
      %v11933 = vmax.f32 %v11923, 0.0
      %v11934 = vmax.f32 %v11925, 0.0
      %v11935 = vmax.f32 %v11929, 0.0
      %v11936 = vmax.f32 %v11931, 0.0
      %v11941 = vrot.slane %v11933, 4
      %v11942 = vrot.slane %v11934, 4
      %v11943 = vrot.slane %v11935, 4
      %v11944 = vsel %vm2372, %v11941, %v11943
      %v11945 = vrot.slane %v11936, 4
      %v11946 = vsel %vm2372, %v11942, %v11945
      %11953 = vst [vmem:[%s433 + $0x40] sm:$0xf0] %v11941
      %11954 = vst [vmem:[%s433 + $0x48] sm:$0xf0] %v11942
      %11955 = vst [vmem:[%s433 + $0x50] sm:$0xff] %v11944
      %11956 = vst [vmem:[%s433 + $0x58] sm:$0xff] %v11946
      %11957 = vst [vmem:[%s433 + $0x60] sm:$0xf] %v11943
      %11958 = vst [vmem:[%s433 + $0x68] sm:$0xf] %v11945
      %p11959 = scmp.lt.s32.totalorder %s23, 1
      %s11960 = scalar_select %p11959, %s23, 1
      %s11961 = smul.addr %s11960, 14
      %s11962 = smul.addr %s11961, 8
      %s11963 = scalar_lea.vmem %s12, %s11962
      // Predicated region
      $region69: #{dense_block_forward.1} parent=67 // pred_check
        %p11964 = pneg %p303
      $region70: #{dense_block_forward.1} parent=67 // pred_check_branch
        %11966 = sbr.rel (%p11964) target = $region72
      $region71: #{dense_block_forward.1} parent=67 // pred_region
        _
      $region72: #{dense_block_forward.1} parent=67 // pred_fallthru
        _
    $region68: #{dense_block_forward.1} parent=5 // pred_fallthru
      _
    %p11967 = scmp.le.s32.totalorder 2, %s18
    // Predicated region
    $region73: #{dense_block_forward.1} parent=5 // pred_check
      %p11968 = pneg %p11967
    $region74: #{dense_block_forward.1} parent=5 // pred_check_branch
      %11970 = sbr.rel (%p11968) target = $region76
    $region75: #{dense_block_forward.1} parent=5 // pred_region
      %s11971 = ssub.s32 %s18, 2
      // Predicated region
      $region77: #{dense_block_forward.1} parent=75 // pred_check
        %p11972 = pneg %p309
      $region78: #{dense_block_forward.1} parent=75 // pred_check_branch
        %11974 = sbr.rel (%p11972) target = $region80
      $region79: #{dense_block_forward.1} parent=75 // pred_region
        %p11975 = scmp.lt.s32.totalorder %s24, 1
        %s11976 = scalar_select %p11975, %s24, 1
        %s11977 = smul.addr %s11976, 14
        %s11978 = smul.addr %s11977, 8
        %s11979 = scalar_lea.vmem %s12, %s11978
      $region80: #{dense_block_forward.1} parent=75 // pred_fallthru
        _
    $region76: #{dense_block_forward.1} parent=5 // pred_fallthru
      _
  $region6: #{dense_block_forward.1} parent=0 // loop_footer
    %s22 = sadd.s32 1, %s18
  $region7: #{dense_block_forward.1} parent=0 // loop_footer_branch
    %17 = sbr.rel target = $region3
  $region8: #{dense_block_forward.1} parent=0 // loop_exit
    _

</llo_original>
